<compile_context>
chip_gen: v5e
topology: v5e:2x2
jax: 0.10.0
libtpu: 0.0.40
codegen_flags: <defaults>
</compile_context>

<pallas_src>
import functools
import math

import jax
import jax.numpy as jnp
from jax import lax
from jax.experimental import pallas as pl
from jax.experimental.pallas import tpu as pltpu

LN_EPS = 1e-5             # PyTorch nn.LayerNorm default
_MXU_DTYPE = jnp.bfloat16  # MXU operand dtype


# ----------------------------------------------------------------------------
# Per-generation compiler params
# ----------------------------------------------------------------------------

def _vmem_limit_bytes():
    # Leave ~8 MiB headroom under physical VMEM, capped at 100 MiB
    # (v5e/v6e: 128 MiB physical -> 100 MiB; v7x: 64 MiB physical -> 56 MiB).
    try:
        cap = int(pltpu.get_tpu_info().vmem_capacity_bytes)
    except Exception:
        cap = 64 * 1024 * 1024
    return max(32 * 1024 * 1024, min(cap - 8 * 1024 * 1024, 100 * 1024 * 1024))


_VMEM_LIMIT = _vmem_limit_bytes()


def _compiler_params(dimension_semantics):
    return pltpu.CompilerParams(dimension_semantics=dimension_semantics,
                                vmem_limit_bytes=_VMEM_LIMIT)


def _const_spec(shape):
    """Weights / biases / LN params: constant block index -> single-buffered."""
    return pl.BlockSpec(shape, lambda *_: (0,) * len(shape),
                        pipeline_mode=pl.Buffered(1))


# ----------------------------------------------------------------------------
# In-kernel helpers
# ----------------------------------------------------------------------------

def _layernorm_f32(x, g, b, eps=LN_EPS):
    xf = x.astype(jnp.float32)
    mu = jnp.mean(xf, axis=-1, keepdims=True)
    var = jnp.mean((xf - mu) ** 2, axis=-1, keepdims=True)
    y = (xf - mu) * lax.rsqrt(var + eps)
    return y * g.astype(jnp.float32) + b.astype(jnp.float32)


def _mha_fused_outproj(q, k, v, keep, w_o, *, num_heads, scale, probs_ref=None):
    """Multi-head attention fused with a single output-projection matmul.

    q: (Tq, D) bf16, k/v: (Tk, D) bf16, keep: bool broadcastable to (Tq, Tk),
    w_o: (D, Dout) bf16.  Returns f32 (Tq, Dout) (no bias).  Optionally writes
    exactly-normalized probabilities per head to probs_ref[(H, Tq, Tk)].
    """
    tq, d = q.shape
    dh = d // num_heads
    ctx_parts = []
    for h in range(num_heads):
        sl = slice(h * dh, (h + 1) * dh)
        s = lax.dot_general(q[:, sl], k[:, sl], (((1,), (1,)), ((), ())),
                            preferred_element_type=jnp.float32) * scale
        s = jnp.where(keep, s, -1e9)
        s = s - jnp.max(s, axis=-1, keepdims=True)
        e = jnp.exp(s)
        denom = jnp.sum(e, axis=-1, keepdims=True)
        # PV on unnormalized exp weights; normalize the (Tq, dh) context after.
        ctx = jnp.dot(e.astype(v.dtype), v[:, sl], preferred_element_type=jnp.float32)
        ctx = ctx * pl.reciprocal(denom, approx=True)
        if probs_ref is not None:
            probs_ref[h, :, :] = (e / denom).astype(probs_ref.dtype)  # exact softmax
        ctx_parts.append(ctx.astype(_MXU_DTYPE))
    ctx_full = jnp.concatenate(ctx_parts, axis=-1)                     # (Tq, D)
    return jnp.dot(ctx_full, w_o, preferred_element_type=jnp.float32)  # one K=D matmul


# ----------------------------------------------------------------------------
# Fused kernels
# ----------------------------------------------------------------------------

def _self_attn_kernel(x_ref, pad_ref, g_ref, b_ref,
                      w_qkv_ref, b_qkv_ref, w_o_ref, b_o_ref,
                      o_ref, kv_scr, *, num_heads, q_tile):
    qi = pl.program_id(1)
    t, d = x_ref.shape
    q0 = pl.multiple_of(qi * q_tile, q_tile)

    # K/V projection of the full LayerNorm'd block: computed once per batch row
    # (qi == 0) into VMEM scratch, reused by every q-tile.
    @pl.when(qi == 0)
    def _():
        xn_full = _layernorm_f32(x_ref[...], g_ref[...], b_ref[...]).astype(_MXU_DTYPE)
        kv = jnp.dot(xn_full, w_qkv_ref[:, d:], preferred_element_type=jnp.float32)
        kv = kv + b_qkv_ref[:, d:].astype(jnp.float32)
        kv_scr[...] = kv.astype(_MXU_DTYPE)

    x_q = x_ref[pl.ds(q0, q_tile), :]                                  # (tq, D)
    xn_q = _layernorm_f32(x_q, g_ref[...], b_ref[...]).astype(_MXU_DTYPE)
    q = jnp.dot(xn_q, w_qkv_ref[:, :d], preferred_element_type=jnp.float32)
    q = (q + b_qkv_ref[:, :d].astype(jnp.float32)).astype(_MXU_DTYPE)  # (tq, D)
    kv = kv_scr[...]
    k, v = kv[:, :d], kv[:, d:]

    # trg_mask = causal & target-padding, built in-kernel (no (B,T,T) HBM stream).
    rows = q0 + lax.broadcasted_iota(jnp.int32, (q_tile, t), 0)
    cols = lax.broadcasted_iota(jnp.int32, (q_tile, t), 1)
    keep = (rows >= cols) & (pad_ref[...] != 0)                        # (tq, T)

    scale = 1.0 / math.sqrt(d // num_heads)
    out = _mha_fused_outproj(q, k, v, keep, w_o_ref[...],
                             num_heads=num_heads, scale=scale)
    out = out + b_o_ref[...].astype(jnp.float32)
    o_ref[...] = (x_q.astype(jnp.float32) + out).astype(o_ref.dtype)


def _cross_attn_kernel(x_ref, mem_ref, bert_ref, mask_ref,
                       g_ref, b_ref,
                       w_q2_ref, b_q2_ref,
                       w_kv_e_ref, b_kv_e_ref,
                       w_kv_b_ref, b_kv_b_ref,
                       w_oe_ref, b_oe_ref,
                       w_ob_ref, b_ob_ref,
                       o_ref, *rest, num_heads, with_probs):
    if with_probs:
        probs_ref, kv_e_scr, kv_b_scr = rest
    else:
        probs_ref = None
        kv_e_scr, kv_b_scr = rest

    qi = pl.program_id(1)
    x = x_ref[...]                                                     # (tq, D)
    d = x.shape[1]

    # Encoder / BERT K,V projections: once per batch row, reused by all q-tiles.
    @pl.when(qi == 0)
    def _():
        kv_e = jnp.dot(mem_ref[...].astype(_MXU_DTYPE), w_kv_e_ref[...],
                       preferred_element_type=jnp.float32)
        kv_e_scr[...] = (kv_e + b_kv_e_ref[...].astype(jnp.float32)).astype(_MXU_DTYPE)
        kv_b = jnp.dot(bert_ref[...].astype(_MXU_DTYPE), w_kv_b_ref[...],
                       preferred_element_type=jnp.float32)
        kv_b_scr[...] = (kv_b + b_kv_b_ref[...].astype(jnp.float32)).astype(_MXU_DTYPE)

    xn = _layernorm_f32(x, g_ref[...], b_ref[...]).astype(_MXU_DTYPE)
    q2 = jnp.dot(xn, w_q2_ref[...], preferred_element_type=jnp.float32)
    q2 = (q2 + b_q2_ref[...].astype(jnp.float32)).astype(_MXU_DTYPE)   # (tq, 2D)
    q_e, q_b = q2[:, :d], q2[:, d:]
    kv_e = kv_e_scr[...]
    k_e, v_e = kv_e[:, :d], kv_e[:, d:]
    kv_b = kv_b_scr[...]
    k_b, v_b = kv_b[:, :d], kv_b[:, d:]

    keep = mask_ref[...] != 0                                          # (1, S)
    scale = 1.0 / math.sqrt(d // num_heads)
    out_e = _mha_fused_outproj(q_e, k_e, v_e, keep, w_oe_ref[...],
                               num_heads=num_heads, scale=scale, probs_ref=probs_ref)
    out_e = out_e + b_oe_ref[...].astype(jnp.float32)
    out_b = _mha_fused_outproj(q_b, k_b, v_b, keep, w_ob_ref[...],
                               num_heads=num_heads, scale=scale)
    out_b = out_b + b_ob_ref[...].astype(jnp.float32)
    o_ref[...] = (x.astype(jnp.float32) + 0.5 * (out_e + out_b)).astype(o_ref.dtype)


def _ffn_kernel(x_ref, g_ref, b_ref, w1_ref, b1_ref, w2_ref, b2_ref, o_ref):
    x = x_ref[...]                                                     # (tn, D)
    xn = _layernorm_f32(x, g_ref[...], b_ref[...]).astype(_MXU_DTYPE)
    h = jnp.dot(xn, w1_ref[...], preferred_element_type=jnp.float32) \
        + b1_ref[...].astype(jnp.float32)
    h = jnp.maximum(h, 0.0).astype(_MXU_DTYPE)
    y = jnp.dot(h, w2_ref[...], preferred_element_type=jnp.float32) \
        + b2_ref[...].astype(jnp.float32)
    o_ref[...] = (x.astype(jnp.float32) + y).astype(o_ref.dtype)


# ----------------------------------------------------------------------------
# pallas_call wrappers
# ----------------------------------------------------------------------------

def _q_tile(t):
    """Query-row tile: full T if small, else the largest divisor <=128 (mult of 8)."""
    if t <= 128:
        return t
    for c in (128, 64, 32, 16, 8):
        if t % c == 0:
            return c
    return t


def self_attn_block(x, trg_pad_mask, p, num_heads):
    B, T, D = x.shape
    tq = _q_tile(T)
    n_qt = T // tq
    return pl.pallas_call(
        functools.partial(_self_attn_kernel, num_heads=num_heads, q_tile=tq),
        out_shape=jax.ShapeDtypeStruct((B, T, D), x.dtype),
        grid=(B, n_qt),
        in_specs=[
            pl.BlockSpec((None, T, D), lambda b, q: (b, 0, 0)),   # x (K/V + q rows)
            pl.BlockSpec((None, 1, T), lambda b, q: (b, 0, 0)),   # trg pad mask (int8)
            _const_spec((1, D)),                                  # ln gamma
            _const_spec((1, D)),                                  # ln beta
            _const_spec((D, 3 * D)),                              # fused W_qkv (bf16)
            _const_spec((1, 3 * D)),
            _const_spec((D, D)),                                  # W_o (bf16)
            _const_spec((1, D)),
        ],
        out_specs=pl.BlockSpec((None, tq, D), lambda b, q: (b, q, 0)),
        scratch_shapes=[pltpu.VMEM((T, 2 * D), _MXU_DTYPE)],      # hoisted K/V
        compiler_params=_compiler_params(("parallel", "arbitrary")),
    )(x, trg_pad_mask, p['ln_g'], p['ln_b'], p['w_qkv'], p['b_qkv'], p['w_o'], p['b_o'])


def cross_attn_block(x, memory, bert_out, src_mask, p, num_heads, return_probs):
    B, T, D = x.shape
    S = memory.shape[1]
    H = num_heads
    tq = _q_tile(T)
    n_qt = T // tq
    in_specs = [
        pl.BlockSpec((None, tq, D), lambda b, q: (b, q, 0)),      # x query rows
        pl.BlockSpec((None, S, D), lambda b, q: (b, 0, 0)),       # memory
        pl.BlockSpec((None, S, D), lambda b, q: (b, 0, 0)),       # bert_out
        pl.BlockSpec((None, 1, S), lambda b, q: (b, 0, 0)),       # src mask (int8)
        _const_spec((1, D)),
        _const_spec((1, D)),
        _const_spec((D, 2 * D)),                                  # fused Wq (enc|bert)
        _const_spec((1, 2 * D)),
        _const_spec((D, 2 * D)),                                  # fused K/V enc
        _const_spec((1, 2 * D)),
        _const_spec((D, 2 * D)),                                  # fused K/V bert
        _const_spec((1, 2 * D)),
        _const_spec((D, D)),                                      # W_o enc
        _const_spec((1, D)),
        _const_spec((D, D)),                                      # W_o bert
        _const_spec((1, D)),
    ]
    args = (x, memory, bert_out, src_mask,
            p['ln_g'], p['ln_b'],
            p['w_q2'], p['b_q2'],
            p['w_kv_enc'], p['b_kv_enc'],
            p['w_kv_bert'], p['b_kv_bert'],
            p['w_o_enc'], p['b_o_enc'],
            p['w_o_bert'], p['b_o_bert'])
    kernel = functools.partial(_cross_attn_kernel, num_heads=num_heads,
                               with_probs=return_probs)
    scratch = [pltpu.VMEM((S, 2 * D), _MXU_DTYPE),
               pltpu.VMEM((S, 2 * D), _MXU_DTYPE)]
    cp = _compiler_params(("parallel", "arbitrary"))
    if return_probs:
        out, probs = pl.pallas_call(
            kernel,
            out_shape=(jax.ShapeDtypeStruct((B, T, D), x.dtype),
                       jax.ShapeDtypeStruct((B, H, T, S), jnp.bfloat16)),
            grid=(B, n_qt),
            in_specs=in_specs,
            out_specs=(pl.BlockSpec((None, tq, D), lambda b, q: (b, q, 0)),
                       pl.BlockSpec((None, H, tq, S), lambda b, q: (b, 0, q, 0))),
            scratch_shapes=scratch,
            compiler_params=cp,
        )(*args)
        return out, probs
    out = pl.pallas_call(
        kernel,
        out_shape=jax.ShapeDtypeStruct((B, T, D), x.dtype),
        grid=(B, n_qt),
        in_specs=in_specs,
        out_specs=pl.BlockSpec((None, tq, D), lambda b, q: (b, q, 0)),
        scratch_shapes=scratch,
        compiler_params=cp,
    )(*args)
    return out, None


def _row_tile(n):
    """Largest row tile <=512 dividing n with >=2 grid steps (megacore-shardable)."""
    for t in (512, 256, 128, 64, 32, 16, 8):
        if n % t == 0 and n // t >= 2:
            return t
    return n


def ffn_block(x, p):
    B, T, D = x.shape
    N = B * T
    FF = p['w1'].shape[1]
    xr = x.reshape(N, D)
    tn = _row_tile(N)
    out = pl.pallas_call(
        _ffn_kernel,
        out_shape=jax.ShapeDtypeStruct((N, D), x.dtype),
        grid=(N // tn,),
        in_specs=[
            pl.BlockSpec((tn, D), lambda i: (i, 0)),
            _const_spec((1, D)),
            _const_spec((1, D)),
            _const_spec((D, FF)),
            _const_spec((1, FF)),
            _const_spec((FF, D)),
            _const_spec((1, D)),
        ],
        out_specs=pl.BlockSpec((tn, D), lambda i: (i, 0)),
        compiler_params=_compiler_params(("parallel",)),
    )(xr, p['ln_g'], p['ln_b'], p['w1'], p['b1'], p['w2'], p['b2'])
    return out.reshape(B, T, D)


# ----------------------------------------------------------------------------
# Module glue
# ----------------------------------------------------------------------------

def decoder(memory, trg, bert_out, src_mask, trg_pad_mask, layer_params, num_heads):
    # trg_mask = trg_pad_mask & causal is rebuilt in-kernel from the compact
    # (B,1,T) padding component; src_mask is the compact (B,1,S) padding mask.
    x = trg
    attn = None
    n_layers = len(layer_params)
    for li, p in enumerate(layer_params):
        x = self_attn_block(x, trg_pad_mask, p['self'], num_heads)
        x, probs = cross_attn_block(x, memory, bert_out, src_mask, p['cross'],
                                    num_heads, return_probs=(li == n_layers - 1))
        if probs is not None:
            attn = probs
        x = ffn_block(x, p['ffn'])
    return x, attn


# ----------------------------------------------------------------------------
# Deterministic parameter init (torch-like) + fusion into kernel layout
# ----------------------------------------------------------------------------

def init_linear(key, din, dout):
    w = jax.random.normal(key, (din, dout), jnp.float32) * 0.02
    return w, jnp.zeros((dout,), jnp.float32)


def init_mha(key, d_model):
    ks = jax.random.split(key, 4)
    p = {}
    for name, k in zip(['q', 'k', 'v', 'o'], ks):
        w, b = init_linear(k, d_model, d_model)
        p['w' + name] = w
        p['b' + name] = b
    return p


def init_layer(key, d_model, d_ff):
    ks = jax.random.split(key, 5)
    w1, b1 = init_linear(ks[3], d_model, d_ff)
    w2, b2 = init_linear(ks[4], d_ff, d_model)
    ones = jnp.ones((d_model,), jnp.float32)
    zeros = jnp.zeros((d_model,), jnp.float32)
    return {
        'self_attn': init_mha(ks[0], d_model),
        'enc_attn': init_mha(ks[1], d_model),
        'bert_attn': init_mha(ks[2], d_model),
        'ff_w1': w1, 'ff_b1': b1, 'ff_w2': w2, 'ff_b2': b2,
        'ln1_g': ones, 'ln1_b': zeros,
        'ln2_g': ones, 'ln2_b': zeros,
        'ln3_g': ones, 'ln3_b': zeros,
    }


def fuse_layer_params(p):
    """Concatenate per-projection weights into fused bf16 matrices for the MXU."""
    sa, ea, ba = p['self_attn'], p['enc_attn'], p['bert_attn']
    row = lambda v: v.reshape(1, -1)
    bf = lambda w: w.astype(_MXU_DTYPE)
    return {
        'self': {
            'ln_g': row(p['ln1_g']), 'ln_b': row(p['ln1_b']),
            'w_qkv': bf(jnp.concatenate([sa['wq'], sa['wk'], sa['wv']], axis=1)),
            'b_qkv': row(jnp.concatenate([sa['bq'], sa['bk'], sa['bv']])),
            'w_o': bf(sa['wo']), 'b_o': row(sa['bo']),
        },
        'cross': {
            'ln_g': row(p['ln2_g']), 'ln_b': row(p['ln2_b']),
            'w_q2': bf(jnp.concatenate([ea['wq'], ba['wq']], axis=1)),
            'b_q2': row(jnp.concatenate([ea['bq'], ba['bq']])),
            'w_kv_enc': bf(jnp.concatenate([ea['wk'], ea['wv']], axis=1)),
            'b_kv_enc': row(jnp.concatenate([ea['bk'], ea['bv']])),
            'w_kv_bert': bf(jnp.concatenate([ba['wk'], ba['wv']], axis=1)),
            'b_kv_bert': row(jnp.concatenate([ba['bk'], ba['bv']])),
            'w_o_enc': bf(ea['wo']), 'b_o_enc': row(ea['bo']),
            'w_o_bert': bf(ba['wo']), 'b_o_bert': row(ba['bo']),
        },
        'ffn': {
            'ln_g': row(p['ln3_g']), 'ln_b': row(p['ln3_b']),
            'w1': bf(p['ff_w1']), 'b1': row(p['ff_b1']),
            'w2': bf(p['ff_w2']), 'b2': row(p['ff_b2']),
        },
    }


# ----------------------------------------------------------------------------
# Main
# ----------------------------------------------------------------------------

if __name__ == "__main__":
    B, S, T, D, H, FF, L = 2, 8, 8, 32, 4, 64, 2

    key = jax.random.PRNGKey(0)
    k_mem, k_trg, k_bert, k_par = jax.random.split(key, 4)

    memory = jax.random.normal(k_mem, (B, S, D), jnp.float32)      # encoder output
    trg = jax.random.normal(k_trg, (B, T, D), jnp.float32)         # decoder input (embedded)
    bert_out = jax.random.normal(k_bert, (B, S, D), jnp.float32)   # BERT encoder output

    # Compact int8 padding masks; the causal component of trg_mask is built in-kernel.
    src_len = jnp.array([S, S - 2])
    src_mask = (jnp.arange(S)[None, :] < src_len[:, None]).astype(jnp.int8)[:, None, :]
    trg_len = jnp.array([T, T - 1])
    trg_pad_mask = (jnp.arange(T)[None, :] < trg_len[:, None]).astype(jnp.int8)[:, None, :]

    raw_params = [init_layer(k, D, FF) for k in jax.random.split(k_par, L)]
    layer_params = [fuse_layer_params(p) for p in raw_params]

    run = jax.jit(functools.partial(decoder, num_heads=H))
    out, attn = run(memory, trg, bert_out, src_mask, trg_pad_mask, layer_params)
    jax.block_until_ready((out, attn))

    assert out.shape == (B, T, D) and attn.shape == (B, H, T, S)
    assert bool(jnp.all(jnp.isfinite(out)))
    assert bool(jnp.all(jnp.isfinite(attn.astype(jnp.float32))))
    print("KERNEL_OK")
</pallas_src>

<mosaic_0001>
module attributes {stable_mosaic.version = 11 : i64} {
  func.func @_cross_attn_kernel(%arg0: i32, %arg1: i32, %arg2: memref<1x8x32xf32, #tpu.memory_space<vmem>>, %arg3: memref<1x8x32xf32, #tpu.memory_space<vmem>>, %arg4: memref<1x8x32xf32, #tpu.memory_space<vmem>>, %arg5: memref<1x1x8xi8, #tpu.memory_space<vmem>>, %arg6: memref<1x32xf32, #tpu.memory_space<vmem>>, %arg7: memref<1x32xf32, #tpu.memory_space<vmem>>, %arg8: memref<32x64xbf16, #tpu.memory_space<vmem>>, %arg9: memref<1x64xf32, #tpu.memory_space<vmem>>, %arg10: memref<32x64xbf16, #tpu.memory_space<vmem>>, %arg11: memref<1x64xf32, #tpu.memory_space<vmem>>, %arg12: memref<32x64xbf16, #tpu.memory_space<vmem>>, %arg13: memref<1x64xf32, #tpu.memory_space<vmem>>, %arg14: memref<32x32xbf16, #tpu.memory_space<vmem>>, %arg15: memref<1x32xf32, #tpu.memory_space<vmem>>, %arg16: memref<32x32xbf16, #tpu.memory_space<vmem>>, %arg17: memref<1x32xf32, #tpu.memory_space<vmem>>, %arg18: memref<1x8x32xf32, #tpu.memory_space<vmem>>, %arg19: memref<8x64xbf16, #tpu.memory_space<vmem>>, %arg20: memref<8x64xbf16, #tpu.memory_space<vmem>>) attributes {dimension_semantics = [#tpu.dimension_semantics<parallel>, #tpu.dimension_semantics<arbitrary>], iteration_bounds = array<i64: 2, 1>, scalar_prefetch = 0 : i64, scratch_operands = 2 : i64, tpu.core_type = #tpu.core_type<tc>, window_params = [{transform_indices = @transform_0, window_bounds = array<i64: 1, 8, 32>}, {transform_indices = @transform_1, window_bounds = array<i64: 1, 8, 32>}, {transform_indices = @transform_2, window_bounds = array<i64: 1, 8, 32>}, {transform_indices = @transform_3, window_bounds = array<i64: 1, 1, 8>}, {pipeline_mode = #tpu.pipeline_mode<synchronous>, transform_indices = @transform_4, window_bounds = array<i64: 1, 32>}, {pipeline_mode = #tpu.pipeline_mode<synchronous>, transform_indices = @transform_5, window_bounds = array<i64: 1, 32>}, {pipeline_mode = #tpu.pipeline_mode<synchronous>, transform_indices = @transform_6, window_bounds = array<i64: 32, 64>}, {pipeline_mode = #tpu.pipeline_mode<synchronous>, transform_indices = @transform_7, window_bounds = array<i64: 1, 64>}, {pipeline_mode = #tpu.pipeline_mode<synchronous>, transform_indices = @transform_8, window_bounds = array<i64: 32, 64>}, {pipeline_mode = #tpu.pipeline_mode<synchronous>, transform_indices = @transform_9, window_bounds = array<i64: 1, 64>}, {pipeline_mode = #tpu.pipeline_mode<synchronous>, transform_indices = @transform_10, window_bounds = array<i64: 32, 64>}, {pipeline_mode = #tpu.pipeline_mode<synchronous>, transform_indices = @transform_11, window_bounds = array<i64: 1, 64>}, {pipeline_mode = #tpu.pipeline_mode<synchronous>, transform_indices = @transform_12, window_bounds = array<i64: 32, 32>}, {pipeline_mode = #tpu.pipeline_mode<synchronous>, transform_indices = @transform_13, window_bounds = array<i64: 1, 32>}, {pipeline_mode = #tpu.pipeline_mode<synchronous>, transform_indices = @transform_14, window_bounds = array<i64: 32, 32>}, {pipeline_mode = #tpu.pipeline_mode<synchronous>, transform_indices = @transform_15, window_bounds = array<i64: 1, 32>}, {transform_indices = @transform_16, window_bounds = array<i64: 1, 8, 32>}]} {
    %c0 = arith.constant 0 : index
    %c0_0 = arith.constant 0 : index
    %c0_1 = arith.constant 0 : index
    %0 = vector.load %arg2[%c0, %c0_0, %c0_1] : memref<1x8x32xf32, #tpu.memory_space<vmem>>, vector<1x8x32xf32>
    %1 = vector.shape_cast %0 : vector<1x8x32xf32> to vector<8x32xf32>
    %c0_i32 = arith.constant 0 : i32
    %2 = arith.cmpi eq, %arg1, %c0_i32 : i32
    %3 = arith.extui %2 : i1 to i32
    %c0_i32_2 = arith.constant 0 : i32
    %4 = arith.cmpi ne, %3, %c0_i32_2 : i32
    scf.if %4 {
      %c0_85 = arith.constant 0 : index
      %c0_86 = arith.constant 0 : index
      %c0_87 = arith.constant 0 : index
      %251 = vector.load %arg3[%c0_85, %c0_86, %c0_87] : memref<1x8x32xf32, #tpu.memory_space<vmem>>, vector<1x8x32xf32>
      %252 = vector.shape_cast %251 : vector<1x8x32xf32> to vector<8x32xf32>
      %253 = arith.truncf %252 : vector<8x32xf32> to vector<8x32xbf16>
      %c0_88 = arith.constant 0 : index
      %c0_89 = arith.constant 0 : index
      %254 = vector.load %arg10[%c0_88, %c0_89] : memref<32x64xbf16, #tpu.memory_space<vmem>>, vector<32x64xbf16>
      %cst_90 = arith.constant dense<0.000000e+00> : vector<8x64xf32>
      %255 = tpu.matmul %253, %254, %cst_90 {dimension_numbers = #tpu.dot_dimension_numbers<[1], [0], [0], [1], [0, 0, 1, 1], [], []>} : vector<8x32xbf16>, vector<32x64xbf16>, vector<8x64xf32> -> vector<8x64xf32>
      %c0_91 = arith.constant 0 : index
      %c0_92 = arith.constant 0 : index
      %256 = vector.load %arg11[%c0_91, %c0_92] : memref<1x64xf32, #tpu.memory_space<vmem>>, vector<1x64xf32>
      %257 = vector.broadcast %256 : vector<1x64xf32> to vector<8x64xf32>
      %258 = arith.addf %255, %257 : vector<8x64xf32>
      %259 = arith.truncf %258 : vector<8x64xf32> to vector<8x64xbf16>
      %c0_93 = arith.constant 0 : index
      %c0_94 = arith.constant 0 : index
      %260 = vector.load %arg19[%c0_93, %c0_94] : memref<8x64xbf16, #tpu.memory_space<vmem>>, vector<8x64xbf16>
      tpu.vector_store %arg19[%c0_93, %c0_94], %259 {strides = array<i32>} : memref<8x64xbf16, #tpu.memory_space<vmem>>, vector<8x64xbf16>,
      %c0_95 = arith.constant 0 : index
      %c0_96 = arith.constant 0 : index
      %c0_97 = arith.constant 0 : index
      %261 = vector.load %arg4[%c0_95, %c0_96, %c0_97] : memref<1x8x32xf32, #tpu.memory_space<vmem>>, vector<1x8x32xf32>
      %262 = vector.shape_cast %261 : vector<1x8x32xf32> to vector<8x32xf32>
      %263 = arith.truncf %262 : vector<8x32xf32> to vector<8x32xbf16>
      %c0_98 = arith.constant 0 : index
      %c0_99 = arith.constant 0 : index
      %264 = vector.load %arg12[%c0_98, %c0_99] : memref<32x64xbf16, #tpu.memory_space<vmem>>, vector<32x64xbf16>
      %cst_100 = arith.constant dense<0.000000e+00> : vector<8x64xf32>
      %265 = tpu.matmul %263, %264, %cst_100 {dimension_numbers = #tpu.dot_dimension_numbers<[1], [0], [0], [1], [0, 0, 1, 1], [], []>} : vector<8x32xbf16>, vector<32x64xbf16>, vector<8x64xf32> -> vector<8x64xf32>
      %c0_101 = arith.constant 0 : index
      %c0_102 = arith.constant 0 : index
      %266 = vector.load %arg13[%c0_101, %c0_102] : memref<1x64xf32, #tpu.memory_space<vmem>>, vector<1x64xf32>
      %267 = vector.broadcast %266 : vector<1x64xf32> to vector<8x64xf32>
      %268 = arith.addf %265, %267 : vector<8x64xf32>
      %269 = arith.truncf %268 : vector<8x64xf32> to vector<8x64xbf16>
      %c0_103 = arith.constant 0 : index
      %c0_104 = arith.constant 0 : index
      %270 = vector.load %arg20[%c0_103, %c0_104] : memref<8x64xbf16, #tpu.memory_space<vmem>>, vector<8x64xbf16>
      tpu.vector_store %arg20[%c0_103, %c0_104], %269 {strides = array<i32>} : memref<8x64xbf16, #tpu.memory_space<vmem>>, vector<8x64xbf16>,
    } else {
    }
    %c0_3 = arith.constant 0 : index
    %c0_4 = arith.constant 0 : index
    %5 = vector.load %arg6[%c0_3, %c0_4] : memref<1x32xf32, #tpu.memory_space<vmem>>, vector<1x32xf32>
    %c0_5 = arith.constant 0 : index
    %c0_6 = arith.constant 0 : index
    %6 = vector.load %arg7[%c0_5, %c0_6] : memref<1x32xf32, #tpu.memory_space<vmem>>, vector<1x32xf32>
    %cst = arith.constant dense<0.000000e+00> : vector<8xf32>
    %7 = vector.multi_reduction <add>, %1, %cst [1] : vector<8x32xf32> to vector<8xf32>
    %8 = vector.shape_cast %7 : vector<8xf32> to vector<8x1xf32>
    %cst_7 = arith.constant 3.200000e+01 : f32
    %9 = vector.broadcast %cst_7 : f32 to vector<8x1xf32>
    %10 = arith.divf %8, %9 : vector<8x1xf32>
    %11 = vector.broadcast %10 : vector<8x1xf32> to vector<8x32xf32>
    %12 = arith.subf %1, %11 : vector<8x32xf32>
    %13 = arith.mulf %12, %12 : vector<8x32xf32>
    %cst_8 = arith.constant dense<0.000000e+00> : vector<8xf32>
    %14 = vector.multi_reduction <add>, %13, %cst_8 [1] : vector<8x32xf32> to vector<8xf32>
    %15 = vector.shape_cast %14 : vector<8xf32> to vector<8x1xf32>
    %cst_9 = arith.constant 3.200000e+01 : f32
    %16 = vector.broadcast %cst_9 : f32 to vector<8x1xf32>
    %17 = arith.divf %15, %16 : vector<8x1xf32>
    %18 = vector.broadcast %10 : vector<8x1xf32> to vector<8x32xf32>
    %19 = arith.subf %1, %18 : vector<8x32xf32>
    %cst_10 = arith.constant 9.99999974E-6 : f32
    %20 = vector.broadcast %cst_10 : f32 to vector<8x1xf32>
    %21 = arith.addf %17, %20 : vector<8x1xf32>
    %22 = math.rsqrt %21 : vector<8x1xf32>
    %23 = vector.broadcast %22 : vector<8x1xf32> to vector<8x32xf32>
    %24 = arith.mulf %19, %23 : vector<8x32xf32>
    %25 = vector.broadcast %5 : vector<1x32xf32> to vector<8x32xf32>
    %26 = arith.mulf %24, %25 : vector<8x32xf32>
    %27 = vector.broadcast %6 : vector<1x32xf32> to vector<8x32xf32>
    %28 = arith.addf %26, %27 : vector<8x32xf32>
    %29 = arith.truncf %28 : vector<8x32xf32> to vector<8x32xbf16>
    %c0_11 = arith.constant 0 : index
    %c0_12 = arith.constant 0 : index
    %30 = vector.load %arg8[%c0_11, %c0_12] : memref<32x64xbf16, #tpu.memory_space<vmem>>, vector<32x64xbf16>
    %cst_13 = arith.constant dense<0.000000e+00> : vector<8x64xf32>
    %31 = tpu.matmul %29, %30, %cst_13 {dimension_numbers = #tpu.dot_dimension_numbers<[1], [0], [0], [1], [0, 0, 1, 1], [], []>} : vector<8x32xbf16>, vector<32x64xbf16>, vector<8x64xf32> -> vector<8x64xf32>
    %c0_14 = arith.constant 0 : index
    %c0_15 = arith.constant 0 : index
    %32 = vector.load %arg9[%c0_14, %c0_15] : memref<1x64xf32, #tpu.memory_space<vmem>>, vector<1x64xf32>
    %33 = vector.broadcast %32 : vector<1x64xf32> to vector<8x64xf32>
    %34 = arith.addf %31, %33 : vector<8x64xf32>
    %35 = arith.truncf %34 : vector<8x64xf32> to vector<8x64xbf16>
    %36 = vector.extract_strided_slice %35 {offsets = [0, 0], sizes = [8, 32], strides = [1, 1]} : vector<8x64xbf16> to vector<8x32xbf16>
    %37 = vector.extract_strided_slice %35 {offsets = [0, 32], sizes = [8, 32], strides = [1, 1]} : vector<8x64xbf16> to vector<8x32xbf16>
    %c0_16 = arith.constant 0 : index
    %c0_17 = arith.constant 0 : index
    %38 = vector.load %arg19[%c0_16, %c0_17] : memref<8x64xbf16, #tpu.memory_space<vmem>>, vector<8x64xbf16>
    %39 = vector.extract_strided_slice %38 {offsets = [0, 0], sizes = [8, 32], strides = [1, 1]} : vector<8x64xbf16> to vector<8x32xbf16>
    %40 = vector.extract_strided_slice %38 {offsets = [0, 32], sizes = [8, 32], strides = [1, 1]} : vector<8x64xbf16> to vector<8x32xbf16>
    %c0_18 = arith.constant 0 : index
    %c0_19 = arith.constant 0 : index
    %41 = vector.load %arg20[%c0_18, %c0_19] : memref<8x64xbf16, #tpu.memory_space<vmem>>, vector<8x64xbf16>
    %42 = vector.extract_strided_slice %41 {offsets = [0, 0], sizes = [8, 32], strides = [1, 1]} : vector<8x64xbf16> to vector<8x32xbf16>
    %43 = vector.extract_strided_slice %41 {offsets = [0, 32], sizes = [8, 32], strides = [1, 1]} : vector<8x64xbf16> to vector<8x32xbf16>
    %c0_20 = arith.constant 0 : index
    %c0_21 = arith.constant 0 : index
    %c0_22 = arith.constant 0 : index
    %44 = vector.load %arg5[%c0_20, %c0_21, %c0_22] : memref<1x1x8xi8, #tpu.memory_space<vmem>>, vector<1x1x8xi8>
    %45 = vector.shape_cast %44 : vector<1x1x8xi8> to vector<1x8xi8>
    %c0_i8 = arith.constant 0 : i8
    %46 = vector.broadcast %c0_i8 : i8 to vector<1x8xi8>
    %47 = arith.cmpi ne, %45, %46 : vector<1x8xi8>
    %c0_23 = arith.constant 0 : index
    %c0_24 = arith.constant 0 : index
    %48 = vector.load %arg14[%c0_23, %c0_24] : memref<32x32xbf16, #tpu.memory_space<vmem>>, vector<32x32xbf16>
    %49 = vector.extract_strided_slice %36 {offsets = [0, 0], sizes = [8, 8], strides = [1, 1]} : vector<8x32xbf16> to vector<8x8xbf16>
    %50 = vector.extract_strided_slice %39 {offsets = [0, 0], sizes = [8, 8], strides = [1, 1]} : vector<8x32xbf16> to vector<8x8xbf16>
    %cst_25 = arith.constant dense<0.000000e+00> : vector<8x8xf32>
    %51 = tpu.matmul %49, %50, %cst_25 {dimension_numbers = #tpu.dot_dimension_numbers<[1], [1], [0], [0], [0, 0, 1, 0], [], []>} : vector<8x8xbf16>, vector<8x8xbf16>, vector<8x8xf32> -> vector<8x8xf32>
    %cst_26 = arith.constant 0.353553385 : f32
    %52 = vector.broadcast %cst_26 : f32 to vector<8x8xf32>
    %53 = arith.mulf %51, %52 : vector<8x8xf32>
    %cst_27 = arith.constant -1.000000e+09 : f32
    %54 = vector.shape_cast %47 : vector<1x8xi1> to vector<1x8xi1>
    %55 = vector.broadcast %54 : vector<1x8xi1> to vector<8x8xi1>
    %56 = vector.broadcast %cst_27 : f32 to vector<8x8xf32>
    %57 = arith.select %55, %53, %56 : vector<8x8xi1>, vector<8x8xf32>
    %cst_28 = arith.constant dense<0xFF800000> : vector<8xf32>
    %58 = vector.multi_reduction <maximumf>, %57, %cst_28 [1] : vector<8x8xf32> to vector<8xf32>
    %59 = vector.shape_cast %58 : vector<8xf32> to vector<8x1xf32>
    %60 = vector.broadcast %59 : vector<8x1xf32> to vector<8x8xf32>
    %61 = arith.subf %57, %60 : vector<8x8xf32>
    %62 = math.exp %61 : vector<8x8xf32>
    %cst_29 = arith.constant dense<0.000000e+00> : vector<8xf32>
    %63 = vector.multi_reduction <add>, %62, %cst_29 [1] : vector<8x8xf32> to vector<8xf32>
    %64 = vector.shape_cast %63 : vector<8xf32> to vector<8x1xf32>
    %65 = arith.truncf %62 : vector<8x8xf32> to vector<8x8xbf16>
    %66 = vector.extract_strided_slice %40 {offsets = [0, 0], sizes = [8, 8], strides = [1, 1]} : vector<8x32xbf16> to vector<8x8xbf16>
    %cst_30 = arith.constant dense<0.000000e+00> : vector<8x8xf32>
    %67 = tpu.matmul %65, %66, %cst_30 {dimension_numbers = #tpu.dot_dimension_numbers<[1], [0], [0], [1], [0, 0, 1, 1], [], []>} : vector<8x8xbf16>, vector<8x8xbf16>, vector<8x8xf32> -> vector<8x8xf32>
    %68 = tpu.reciprocal %64 {approx = true} : vector<8x1xf32> -> vector<8x1xf32>
    %69 = vector.broadcast %68 : vector<8x1xf32> to vector<8x8xf32>
    %70 = arith.mulf %67, %69 : vector<8x8xf32>
    %71 = arith.truncf %70 : vector<8x8xf32> to vector<8x8xbf16>
    %72 = vector.extract_strided_slice %36 {offsets = [0, 8], sizes = [8, 8], strides = [1, 1]} : vector<8x32xbf16> to vector<8x8xbf16>
    %73 = vector.extract_strided_slice %39 {offsets = [0, 8], sizes = [8, 8], strides = [1, 1]} : vector<8x32xbf16> to vector<8x8xbf16>
    %cst_31 = arith.constant dense<0.000000e+00> : vector<8x8xf32>
    %74 = tpu.matmul %72, %73, %cst_31 {dimension_numbers = #tpu.dot_dimension_numbers<[1], [1], [0], [0], [0, 0, 1, 0], [], []>} : vector<8x8xbf16>, vector<8x8xbf16>, vector<8x8xf32> -> vector<8x8xf32>
    %cst_32 = arith.constant 0.353553385 : f32
    %75 = vector.broadcast %cst_32 : f32 to vector<8x8xf32>
    %76 = arith.mulf %74, %75 : vector<8x8xf32>
    %cst_33 = arith.constant -1.000000e+09 : f32
    %77 = vector.shape_cast %47 : vector<1x8xi1> to vector<1x8xi1>
    %78 = vector.broadcast %77 : vector<1x8xi1> to vector<8x8xi1>
    %79 = vector.broadcast %cst_33 : f32 to vector<8x8xf32>
    %80 = arith.select %78, %76, %79 : vector<8x8xi1>, vector<8x8xf32>
    %cst_34 = arith.constant dense<0xFF800000> : vector<8xf32>
    %81 = vector.multi_reduction <maximumf>, %80, %cst_34 [1] : vector<8x8xf32> to vector<8xf32>
    %82 = vector.shape_cast %81 : vector<8xf32> to vector<8x1xf32>
    %83 = vector.broadcast %82 : vector<8x1xf32> to vector<8x8xf32>
    %84 = arith.subf %80, %83 : vector<8x8xf32>
    %85 = math.exp %84 : vector<8x8xf32>
    %cst_35 = arith.constant dense<0.000000e+00> : vector<8xf32>
    %86 = vector.multi_reduction <add>, %85, %cst_35 [1] : vector<8x8xf32> to vector<8xf32>
    %87 = vector.shape_cast %86 : vector<8xf32> to vector<8x1xf32>
    %88 = arith.truncf %85 : vector<8x8xf32> to vector<8x8xbf16>
    %89 = vector.extract_strided_slice %40 {offsets = [0, 8], sizes = [8, 8], strides = [1, 1]} : vector<8x32xbf16> to vector<8x8xbf16>
    %cst_36 = arith.constant dense<0.000000e+00> : vector<8x8xf32>
    %90 = tpu.matmul %88, %89, %cst_36 {dimension_numbers = #tpu.dot_dimension_numbers<[1], [0], [0], [1], [0, 0, 1, 1], [], []>} : vector<8x8xbf16>, vector<8x8xbf16>, vector<8x8xf32> -> vector<8x8xf32>
    %91 = tpu.reciprocal %87 {approx = true} : vector<8x1xf32> -> vector<8x1xf32>
    %92 = vector.broadcast %91 : vector<8x1xf32> to vector<8x8xf32>
    %93 = arith.mulf %90, %92 : vector<8x8xf32>
    %94 = arith.truncf %93 : vector<8x8xf32> to vector<8x8xbf16>
    %95 = vector.extract_strided_slice %36 {offsets = [0, 16], sizes = [8, 8], strides = [1, 1]} : vector<8x32xbf16> to vector<8x8xbf16>
    %96 = vector.extract_strided_slice %39 {offsets = [0, 16], sizes = [8, 8], strides = [1, 1]} : vector<8x32xbf16> to vector<8x8xbf16>
    %cst_37 = arith.constant dense<0.000000e+00> : vector<8x8xf32>
    %97 = tpu.matmul %95, %96, %cst_37 {dimension_numbers = #tpu.dot_dimension_numbers<[1], [1], [0], [0], [0, 0, 1, 0], [], []>} : vector<8x8xbf16>, vector<8x8xbf16>, vector<8x8xf32> -> vector<8x8xf32>
    %cst_38 = arith.constant 0.353553385 : f32
    %98 = vector.broadcast %cst_38 : f32 to vector<8x8xf32>
    %99 = arith.mulf %97, %98 : vector<8x8xf32>
    %cst_39 = arith.constant -1.000000e+09 : f32
    %100 = vector.shape_cast %47 : vector<1x8xi1> to vector<1x8xi1>
    %101 = vector.broadcast %100 : vector<1x8xi1> to vector<8x8xi1>
    %102 = vector.broadcast %cst_39 : f32 to vector<8x8xf32>
    %103 = arith.select %101, %99, %102 : vector<8x8xi1>, vector<8x8xf32>
    %cst_40 = arith.constant dense<0xFF800000> : vector<8xf32>
    %104 = vector.multi_reduction <maximumf>, %103, %cst_40 [1] : vector<8x8xf32> to vector<8xf32>
    %105 = vector.shape_cast %104 : vector<8xf32> to vector<8x1xf32>
    %106 = vector.broadcast %105 : vector<8x1xf32> to vector<8x8xf32>
    %107 = arith.subf %103, %106 : vector<8x8xf32>
    %108 = math.exp %107 : vector<8x8xf32>
    %cst_41 = arith.constant dense<0.000000e+00> : vector<8xf32>
    %109 = vector.multi_reduction <add>, %108, %cst_41 [1] : vector<8x8xf32> to vector<8xf32>
    %110 = vector.shape_cast %109 : vector<8xf32> to vector<8x1xf32>
    %111 = arith.truncf %108 : vector<8x8xf32> to vector<8x8xbf16>
    %112 = vector.extract_strided_slice %40 {offsets = [0, 16], sizes = [8, 8], strides = [1, 1]} : vector<8x32xbf16> to vector<8x8xbf16>
    %cst_42 = arith.constant dense<0.000000e+00> : vector<8x8xf32>
    %113 = tpu.matmul %111, %112, %cst_42 {dimension_numbers = #tpu.dot_dimension_numbers<[1], [0], [0], [1], [0, 0, 1, 1], [], []>} : vector<8x8xbf16>, vector<8x8xbf16>, vector<8x8xf32> -> vector<8x8xf32>
    %114 = tpu.reciprocal %110 {approx = true} : vector<8x1xf32> -> vector<8x1xf32>
    %115 = vector.broadcast %114 : vector<8x1xf32> to vector<8x8xf32>
    %116 = arith.mulf %113, %115 : vector<8x8xf32>
    %117 = arith.truncf %116 : vector<8x8xf32> to vector<8x8xbf16>
    %118 = vector.extract_strided_slice %36 {offsets = [0, 24], sizes = [8, 8], strides = [1, 1]} : vector<8x32xbf16> to vector<8x8xbf16>
    %119 = vector.extract_strided_slice %39 {offsets = [0, 24], sizes = [8, 8], strides = [1, 1]} : vector<8x32xbf16> to vector<8x8xbf16>
    %cst_43 = arith.constant dense<0.000000e+00> : vector<8x8xf32>
    %120 = tpu.matmul %118, %119, %cst_43 {dimension_numbers = #tpu.dot_dimension_numbers<[1], [1], [0], [0], [0, 0, 1, 0], [], []>} : vector<8x8xbf16>, vector<8x8xbf16>, vector<8x8xf32> -> vector<8x8xf32>
    %cst_44 = arith.constant 0.353553385 : f32
    %121 = vector.broadcast %cst_44 : f32 to vector<8x8xf32>
    %122 = arith.mulf %120, %121 : vector<8x8xf32>
    %cst_45 = arith.constant -1.000000e+09 : f32
    %123 = vector.shape_cast %47 : vector<1x8xi1> to vector<1x8xi1>
    %124 = vector.broadcast %123 : vector<1x8xi1> to vector<8x8xi1>
    %125 = vector.broadcast %cst_45 : f32 to vector<8x8xf32>
    %126 = arith.select %124, %122, %125 : vector<8x8xi1>, vector<8x8xf32>
    %cst_46 = arith.constant dense<0xFF800000> : vector<8xf32>
    %127 = vector.multi_reduction <maximumf>, %126, %cst_46 [1] : vector<8x8xf32> to vector<8xf32>
    %128 = vector.shape_cast %127 : vector<8xf32> to vector<8x1xf32>
    %129 = vector.broadcast %128 : vector<8x1xf32> to vector<8x8xf32>
    %130 = arith.subf %126, %129 : vector<8x8xf32>
    %131 = math.exp %130 : vector<8x8xf32>
    %cst_47 = arith.constant dense<0.000000e+00> : vector<8xf32>
    %132 = vector.multi_reduction <add>, %131, %cst_47 [1] : vector<8x8xf32> to vector<8xf32>
    %133 = vector.shape_cast %132 : vector<8xf32> to vector<8x1xf32>
    %134 = arith.truncf %131 : vector<8x8xf32> to vector<8x8xbf16>
    %135 = vector.extract_strided_slice %40 {offsets = [0, 24], sizes = [8, 8], strides = [1, 1]} : vector<8x32xbf16> to vector<8x8xbf16>
    %cst_48 = arith.constant dense<0.000000e+00> : vector<8x8xf32>
    %136 = tpu.matmul %134, %135, %cst_48 {dimension_numbers = #tpu.dot_dimension_numbers<[1], [0], [0], [1], [0, 0, 1, 1], [], []>} : vector<8x8xbf16>, vector<8x8xbf16>, vector<8x8xf32> -> vector<8x8xf32>
    %137 = tpu.reciprocal %133 {approx = true} : vector<8x1xf32> -> vector<8x1xf32>
    %138 = vector.broadcast %137 : vector<8x1xf32> to vector<8x8xf32>
    %139 = arith.mulf %136, %138 : vector<8x8xf32>
    %140 = arith.truncf %139 : vector<8x8xf32> to vector<8x8xbf16>
    %141 = tpu.concatenate %71, %94, %117, %140 in 1 : vector<8x8xbf16>, vector<8x8xbf16>, vector<8x8xbf16>, vector<8x8xbf16> -> vector<8x32xbf16>
    %cst_49 = arith.constant dense<0.000000e+00> : vector<8x32xf32>
    %142 = tpu.matmul %141, %48, %cst_49 {dimension_numbers = #tpu.dot_dimension_numbers<[1], [0], [0], [1], [0, 0, 1, 1], [], []>} : vector<8x32xbf16>, vector<32x32xbf16>, vector<8x32xf32> -> vector<8x32xf32>
    %c0_50 = arith.constant 0 : index
    %c0_51 = arith.constant 0 : index
    %143 = vector.load %arg15[%c0_50, %c0_51] : memref<1x32xf32, #tpu.memory_space<vmem>>, vector<1x32xf32>
    %144 = vector.broadcast %143 : vector<1x32xf32> to vector<8x32xf32>
    %145 = arith.addf %142, %144 : vector<8x32xf32>
    %c0_52 = arith.constant 0 : index
    %c0_53 = arith.constant 0 : index
    %146 = vector.load %arg16[%c0_52, %c0_53] : memref<32x32xbf16, #tpu.memory_space<vmem>>, vector<32x32xbf16>
    %147 = vector.extract_strided_slice %37 {offsets = [0, 0], sizes = [8, 8], strides = [1, 1]} : vector<8x32xbf16> to vector<8x8xbf16>
    %148 = vector.extract_strided_slice %42 {offsets = [0, 0], sizes = [8, 8], strides = [1, 1]} : vector<8x32xbf16> to vector<8x8xbf16>
    %cst_54 = arith.constant dense<0.000000e+00> : vector<8x8xf32>
    %149 = tpu.matmul %147, %148, %cst_54 {dimension_numbers = #tpu.dot_dimension_numbers<[1], [1], [0], [0], [0, 0, 1, 0], [], []>} : vector<8x8xbf16>, vector<8x8xbf16>, vector<8x8xf32> -> vector<8x8xf32>
    %cst_55 = arith.constant 0.353553385 : f32
    %150 = vector.broadcast %cst_55 : f32 to vector<8x8xf32>
    %151 = arith.mulf %149, %150 : vector<8x8xf32>
    %cst_56 = arith.constant -1.000000e+09 : f32
    %152 = vector.shape_cast %47 : vector<1x8xi1> to vector<1x8xi1>
    %153 = vector.broadcast %152 : vector<1x8xi1> to vector<8x8xi1>
    %154 = vector.broadcast %cst_56 : f32 to vector<8x8xf32>
    %155 = arith.select %153, %151, %154 : vector<8x8xi1>, vector<8x8xf32>
    %cst_57 = arith.constant dense<0xFF800000> : vector<8xf32>
    %156 = vector.multi_reduction <maximumf>, %155, %cst_57 [1] : vector<8x8xf32> to vector<8xf32>
    %157 = vector.shape_cast %156 : vector<8xf32> to vector<8x1xf32>
    %158 = vector.broadcast %157 : vector<8x1xf32> to vector<8x8xf32>
    %159 = arith.subf %155, %158 : vector<8x8xf32>
    %160 = math.exp %159 : vector<8x8xf32>
    %cst_58 = arith.constant dense<0.000000e+00> : vector<8xf32>
    %161 = vector.multi_reduction <add>, %160, %cst_58 [1] : vector<8x8xf32> to vector<8xf32>
    %162 = vector.shape_cast %161 : vector<8xf32> to vector<8x1xf32>
    %163 = arith.truncf %160 : vector<8x8xf32> to vector<8x8xbf16>
    %164 = vector.extract_strided_slice %43 {offsets = [0, 0], sizes = [8, 8], strides = [1, 1]} : vector<8x32xbf16> to vector<8x8xbf16>
    %cst_59 = arith.constant dense<0.000000e+00> : vector<8x8xf32>
    %165 = tpu.matmul %163, %164, %cst_59 {dimension_numbers = #tpu.dot_dimension_numbers<[1], [0], [0], [1], [0, 0, 1, 1], [], []>} : vector<8x8xbf16>, vector<8x8xbf16>, vector<8x8xf32> -> vector<8x8xf32>
    %166 = tpu.reciprocal %162 {approx = true} : vector<8x1xf32> -> vector<8x1xf32>
    %167 = vector.broadcast %166 : vector<8x1xf32> to vector<8x8xf32>
    %168 = arith.mulf %165, %167 : vector<8x8xf32>
    %169 = arith.truncf %168 : vector<8x8xf32> to vector<8x8xbf16>
    %170 = vector.extract_strided_slice %37 {offsets = [0, 8], sizes = [8, 8], strides = [1, 1]} : vector<8x32xbf16> to vector<8x8xbf16>
    %171 = vector.extract_strided_slice %42 {offsets = [0, 8], sizes = [8, 8], strides = [1, 1]} : vector<8x32xbf16> to vector<8x8xbf16>
    %cst_60 = arith.constant dense<0.000000e+00> : vector<8x8xf32>
    %172 = tpu.matmul %170, %171, %cst_60 {dimension_numbers = #tpu.dot_dimension_numbers<[1], [1], [0], [0], [0, 0, 1, 0], [], []>} : vector<8x8xbf16>, vector<8x8xbf16>, vector<8x8xf32> -> vector<8x8xf32>
    %cst_61 = arith.constant 0.353553385 : f32
    %173 = vector.broadcast %cst_61 : f32 to vector<8x8xf32>
    %174 = arith.mulf %172, %173 : vector<8x8xf32>
    %cst_62 = arith.constant -1.000000e+09 : f32
    %175 = vector.shape_cast %47 : vector<1x8xi1> to vector<1x8xi1>
    %176 = vector.broadcast %175 : vector<1x8xi1> to vector<8x8xi1>
    %177 = vector.broadcast %cst_62 : f32 to vector<8x8xf32>
    %178 = arith.select %176, %174, %177 : vector<8x8xi1>, vector<8x8xf32>
    %cst_63 = arith.constant dense<0xFF800000> : vector<8xf32>
    %179 = vector.multi_reduction <maximumf>, %178, %cst_63 [1] : vector<8x8xf32> to vector<8xf32>
    %180 = vector.shape_cast %179 : vector<8xf32> to vector<8x1xf32>
    %181 = vector.broadcast %180 : vector<8x1xf32> to vector<8x8xf32>
    %182 = arith.subf %178, %181 : vector<8x8xf32>
    %183 = math.exp %182 : vector<8x8xf32>
    %cst_64 = arith.constant dense<0.000000e+00> : vector<8xf32>
    %184 = vector.multi_reduction <add>, %183, %cst_64 [1] : vector<8x8xf32> to vector<8xf32>
    %185 = vector.shape_cast %184 : vector<8xf32> to vector<8x1xf32>
    %186 = arith.truncf %183 : vector<8x8xf32> to vector<8x8xbf16>
    %187 = vector.extract_strided_slice %43 {offsets = [0, 8], sizes = [8, 8], strides = [1, 1]} : vector<8x32xbf16> to vector<8x8xbf16>
    %cst_65 = arith.constant dense<0.000000e+00> : vector<8x8xf32>
    %188 = tpu.matmul %186, %187, %cst_65 {dimension_numbers = #tpu.dot_dimension_numbers<[1], [0], [0], [1], [0, 0, 1, 1], [], []>} : vector<8x8xbf16>, vector<8x8xbf16>, vector<8x8xf32> -> vector<8x8xf32>
    %189 = tpu.reciprocal %185 {approx = true} : vector<8x1xf32> -> vector<8x1xf32>
    %190 = vector.broadcast %189 : vector<8x1xf32> to vector<8x8xf32>
    %191 = arith.mulf %188, %190 : vector<8x8xf32>
    %192 = arith.truncf %191 : vector<8x8xf32> to vector<8x8xbf16>
    %193 = vector.extract_strided_slice %37 {offsets = [0, 16], sizes = [8, 8], strides = [1, 1]} : vector<8x32xbf16> to vector<8x8xbf16>
    %194 = vector.extract_strided_slice %42 {offsets = [0, 16], sizes = [8, 8], strides = [1, 1]} : vector<8x32xbf16> to vector<8x8xbf16>
    %cst_66 = arith.constant dense<0.000000e+00> : vector<8x8xf32>
    %195 = tpu.matmul %193, %194, %cst_66 {dimension_numbers = #tpu.dot_dimension_numbers<[1], [1], [0], [0], [0, 0, 1, 0], [], []>} : vector<8x8xbf16>, vector<8x8xbf16>, vector<8x8xf32> -> vector<8x8xf32>
    %cst_67 = arith.constant 0.353553385 : f32
    %196 = vector.broadcast %cst_67 : f32 to vector<8x8xf32>
    %197 = arith.mulf %195, %196 : vector<8x8xf32>
    %cst_68 = arith.constant -1.000000e+09 : f32
    %198 = vector.shape_cast %47 : vector<1x8xi1> to vector<1x8xi1>
    %199 = vector.broadcast %198 : vector<1x8xi1> to vector<8x8xi1>
    %200 = vector.broadcast %cst_68 : f32 to vector<8x8xf32>
    %201 = arith.select %199, %197, %200 : vector<8x8xi1>, vector<8x8xf32>
    %cst_69 = arith.constant dense<0xFF800000> : vector<8xf32>
    %202 = vector.multi_reduction <maximumf>, %201, %cst_69 [1] : vector<8x8xf32> to vector<8xf32>
    %203 = vector.shape_cast %202 : vector<8xf32> to vector<8x1xf32>
    %204 = vector.broadcast %203 : vector<8x1xf32> to vector<8x8xf32>
    %205 = arith.subf %201, %204 : vector<8x8xf32>
    %206 = math.exp %205 : vector<8x8xf32>
    %cst_70 = arith.constant dense<0.000000e+00> : vector<8xf32>
    %207 = vector.multi_reduction <add>, %206, %cst_70 [1] : vector<8x8xf32> to vector<8xf32>
    %208 = vector.shape_cast %207 : vector<8xf32> to vector<8x1xf32>
    %209 = arith.truncf %206 : vector<8x8xf32> to vector<8x8xbf16>
    %210 = vector.extract_strided_slice %43 {offsets = [0, 16], sizes = [8, 8], strides = [1, 1]} : vector<8x32xbf16> to vector<8x8xbf16>
    %cst_71 = arith.constant dense<0.000000e+00> : vector<8x8xf32>
    %211 = tpu.matmul %209, %210, %cst_71 {dimension_numbers = #tpu.dot_dimension_numbers<[1], [0], [0], [1], [0, 0, 1, 1], [], []>} : vector<8x8xbf16>, vector<8x8xbf16>, vector<8x8xf32> -> vector<8x8xf32>
    %212 = tpu.reciprocal %208 {approx = true} : vector<8x1xf32> -> vector<8x1xf32>
    %213 = vector.broadcast %212 : vector<8x1xf32> to vector<8x8xf32>
    %214 = arith.mulf %211, %213 : vector<8x8xf32>
    %215 = arith.truncf %214 : vector<8x8xf32> to vector<8x8xbf16>
    %216 = vector.extract_strided_slice %37 {offsets = [0, 24], sizes = [8, 8], strides = [1, 1]} : vector<8x32xbf16> to vector<8x8xbf16>
    %217 = vector.extract_strided_slice %42 {offsets = [0, 24], sizes = [8, 8], strides = [1, 1]} : vector<8x32xbf16> to vector<8x8xbf16>
    %cst_72 = arith.constant dense<0.000000e+00> : vector<8x8xf32>
    %218 = tpu.matmul %216, %217, %cst_72 {dimension_numbers = #tpu.dot_dimension_numbers<[1], [1], [0], [0], [0, 0, 1, 0], [], []>} : vector<8x8xbf16>, vector<8x8xbf16>, vector<8x8xf32> -> vector<8x8xf32>
    %cst_73 = arith.constant 0.353553385 : f32
    %219 = vector.broadcast %cst_73 : f32 to vector<8x8xf32>
    %220 = arith.mulf %218, %219 : vector<8x8xf32>
    %cst_74 = arith.constant -1.000000e+09 : f32
    %221 = vector.shape_cast %47 : vector<1x8xi1> to vector<1x8xi1>
    %222 = vector.broadcast %221 : vector<1x8xi1> to vector<8x8xi1>
    %223 = vector.broadcast %cst_74 : f32 to vector<8x8xf32>
    %224 = arith.select %222, %220, %223 : vector<8x8xi1>, vector<8x8xf32>
    %cst_75 = arith.constant dense<0xFF800000> : vector<8xf32>
    %225 = vector.multi_reduction <maximumf>, %224, %cst_75 [1] : vector<8x8xf32> to vector<8xf32>
    %226 = vector.shape_cast %225 : vector<8xf32> to vector<8x1xf32>
    %227 = vector.broadcast %226 : vector<8x1xf32> to vector<8x8xf32>
    %228 = arith.subf %224, %227 : vector<8x8xf32>
    %229 = math.exp %228 : vector<8x8xf32>
    %cst_76 = arith.constant dense<0.000000e+00> : vector<8xf32>
    %230 = vector.multi_reduction <add>, %229, %cst_76 [1] : vector<8x8xf32> to vector<8xf32>
    %231 = vector.shape_cast %230 : vector<8xf32> to vector<8x1xf32>
    %232 = arith.truncf %229 : vector<8x8xf32> to vector<8x8xbf16>
    %233 = vector.extract_strided_slice %43 {offsets = [0, 24], sizes = [8, 8], strides = [1, 1]} : vector<8x32xbf16> to vector<8x8xbf16>
    %cst_77 = arith.constant dense<0.000000e+00> : vector<8x8xf32>
    %234 = tpu.matmul %232, %233, %cst_77 {dimension_numbers = #tpu.dot_dimension_numbers<[1], [0], [0], [1], [0, 0, 1, 1], [], []>} : vector<8x8xbf16>, vector<8x8xbf16>, vector<8x8xf32> -> vector<8x8xf32>
    %235 = tpu.reciprocal %231 {approx = true} : vector<8x1xf32> -> vector<8x1xf32>
    %236 = vector.broadcast %235 : vector<8x1xf32> to vector<8x8xf32>
    %237 = arith.mulf %234, %236 : vector<8x8xf32>
    %238 = arith.truncf %237 : vector<8x8xf32> to vector<8x8xbf16>
    %239 = tpu.concatenate %169, %192, %215, %238 in 1 : vector<8x8xbf16>, vector<8x8xbf16>, vector<8x8xbf16>, vector<8x8xbf16> -> vector<8x32xbf16>
    %cst_78 = arith.constant dense<0.000000e+00> : vector<8x32xf32>
    %240 = tpu.matmul %239, %146, %cst_78 {dimension_numbers = #tpu.dot_dimension_numbers<[1], [0], [0], [1], [0, 0, 1, 1], [], []>} : vector<8x32xbf16>, vector<32x32xbf16>, vector<8x32xf32> -> vector<8x32xf32>
    %c0_79 = arith.constant 0 : index
    %c0_80 = arith.constant 0 : index
    %241 = vector.load %arg17[%c0_79, %c0_80] : memref<1x32xf32, #tpu.memory_space<vmem>>, vector<1x32xf32>
    %242 = vector.broadcast %241 : vector<1x32xf32> to vector<8x32xf32>
    %243 = arith.addf %240, %242 : vector<8x32xf32>
    %244 = arith.addf %145, %243 : vector<8x32xf32>
    %cst_81 = arith.constant 5.000000e-01 : f32
    %245 = vector.broadcast %cst_81 : f32 to vector<8x32xf32>
    %246 = arith.mulf %245, %244 : vector<8x32xf32>
    %247 = arith.addf %1, %246 : vector<8x32xf32>
    %c0_82 = arith.constant 0 : index
    %c0_83 = arith.constant 0 : index
    %c0_84 = arith.constant 0 : index
    %248 = vector.load %arg18[%c0_82, %c0_83, %c0_84] : memref<1x8x32xf32, #tpu.memory_space<vmem>>, vector<1x8x32xf32>
    %249 = vector.shape_cast %248 : vector<1x8x32xf32> to vector<8x32xf32>
    %250 = vector.shape_cast %247 : vector<8x32xf32> to vector<1x8x32xf32>
    tpu.vector_store %arg18[%c0_82, %c0_83, %c0_84], %250 {strides = array<i32>} : memref<1x8x32xf32, #tpu.memory_space<vmem>>, vector<1x8x32xf32>,
    return
  }
  func.func @transform_0(%arg0: i32, %arg1: i32) -> (i32, i32, i32) {
    %c0_i32 = arith.constant 0 : i32
    %c0_i32_0 = arith.constant 0 : i32
    return %arg0, %arg1, %c0_i32 : i32, i32, i32
  }
  func.func @transform_1(%arg0: i32, %arg1: i32) -> (i32, i32, i32) {
    %c0_i32 = arith.constant 0 : i32
    %c0_i32_0 = arith.constant 0 : i32
    %c0_i32_1 = arith.constant 0 : i32
    return %arg0, %c0_i32, %c0_i32_0 : i32, i32, i32
  }
  func.func @transform_2(%arg0: i32, %arg1: i32) -> (i32, i32, i32) {
    %c0_i32 = arith.constant 0 : i32
    %c0_i32_0 = arith.constant 0 : i32
    %c0_i32_1 = arith.constant 0 : i32
    return %arg0, %c0_i32, %c0_i32_0 : i32, i32, i32
  }
  func.func @transform_3(%arg0: i32, %arg1: i32) -> (i32, i32, i32) {
    %c0_i32 = arith.constant 0 : i32
    %c0_i32_0 = arith.constant 0 : i32
    %c0_i32_1 = arith.constant 0 : i32
    return %arg0, %c0_i32, %c0_i32_0 : i32, i32, i32
  }
  func.func @transform_4(%arg0: i32, %arg1: i32) -> (i32, i32) {
    %c0_i32 = arith.constant 0 : i32
    %c0_i32_0 = arith.constant 0 : i32
    %c0_i32_1 = arith.constant 0 : i32
    return %c0_i32, %c0_i32_0 : i32, i32
  }
  func.func @transform_5(%arg0: i32, %arg1: i32) -> (i32, i32) {
    %c0_i32 = arith.constant 0 : i32
    %c0_i32_0 = arith.constant 0 : i32
    %c0_i32_1 = arith.constant 0 : i32
    return %c0_i32, %c0_i32_0 : i32, i32
  }
  func.func @transform_6(%arg0: i32, %arg1: i32) -> (i32, i32) {
    %c0_i32 = arith.constant 0 : i32
    %c0_i32_0 = arith.constant 0 : i32
    %c0_i32_1 = arith.constant 0 : i32
    return %c0_i32, %c0_i32_0 : i32, i32
  }
  func.func @transform_7(%arg0: i32, %arg1: i32) -> (i32, i32) {
    %c0_i32 = arith.constant 0 : i32
    %c0_i32_0 = arith.constant 0 : i32
    %c0_i32_1 = arith.constant 0 : i32
    return %c0_i32, %c0_i32_0 : i32, i32
  }
  func.func @transform_8(%arg0: i32, %arg1: i32) -> (i32, i32) {
    %c0_i32 = arith.constant 0 : i32
    %c0_i32_0 = arith.constant 0 : i32
    %c0_i32_1 = arith.constant 0 : i32
    return %c0_i32, %c0_i32_0 : i32, i32
  }
  func.func @transform_9(%arg0: i32, %arg1: i32) -> (i32, i32) {
    %c0_i32 = arith.constant 0 : i32
    %c0_i32_0 = arith.constant 0 : i32
    %c0_i32_1 = arith.constant 0 : i32
    return %c0_i32, %c0_i32_0 : i32, i32
  }
  func.func @transform_10(%arg0: i32, %arg1: i32) -> (i32, i32) {
    %c0_i32 = arith.constant 0 : i32
    %c0_i32_0 = arith.constant 0 : i32
    %c0_i32_1 = arith.constant 0 : i32
    return %c0_i32, %c0_i32_0 : i32, i32
  }
  func.func @transform_11(%arg0: i32, %arg1: i32) -> (i32, i32) {
    %c0_i32 = arith.constant 0 : i32
    %c0_i32_0 = arith.constant 0 : i32
    %c0_i32_1 = arith.constant 0 : i32
    return %c0_i32, %c0_i32_0 : i32, i32
  }
  func.func @transform_12(%arg0: i32, %arg1: i32) -> (i32, i32) {
    %c0_i32 = arith.constant 0 : i32
    %c0_i32_0 = arith.constant 0 : i32
    %c0_i32_1 = arith.constant 0 : i32
    return %c0_i32, %c0_i32_0 : i32, i32
  }
  func.func @transform_13(%arg0: i32, %arg1: i32) -> (i32, i32) {
    %c0_i32 = arith.constant 0 : i32
    %c0_i32_0 = arith.constant 0 : i32
    %c0_i32_1 = arith.constant 0 : i32
    return %c0_i32, %c0_i32_0 : i32, i32
  }
  func.func @transform_14(%arg0: i32, %arg1: i32) -> (i32, i32) {
    %c0_i32 = arith.constant 0 : i32
    %c0_i32_0 = arith.constant 0 : i32
    %c0_i32_1 = arith.constant 0 : i32
    return %c0_i32, %c0_i32_0 : i32, i32
  }
  func.func @transform_15(%arg0: i32, %arg1: i32) -> (i32, i32) {
    %c0_i32 = arith.constant 0 : i32
    %c0_i32_0 = arith.constant 0 : i32
    %c0_i32_1 = arith.constant 0 : i32
    return %c0_i32, %c0_i32_0 : i32, i32
  }
  func.func @transform_16(%arg0: i32, %arg1: i32) -> (i32, i32, i32) {
    %c0_i32 = arith.constant 0 : i32
    %c0_i32_0 = arith.constant 0 : i32
    return %arg0, %arg1, %c0_i32 : i32, i32, i32
  }
}

module attributes {stable_mosaic.version = 11 : i64} {
  func.func @_self_attn_kernel(%arg0: i32, %arg1: i32, %arg2: memref<1x8x32xf32, #tpu.memory_space<vmem>>, %arg3: memref<1x1x8xi8, #tpu.memory_space<vmem>>, %arg4: memref<1x32xf32, #tpu.memory_space<vmem>>, %arg5: memref<1x32xf32, #tpu.memory_space<vmem>>, %arg6: memref<32x96xbf16, #tpu.memory_space<vmem>>, %arg7: memref<1x96xf32, #tpu.memory_space<vmem>>, %arg8: memref<32x32xbf16, #tpu.memory_space<vmem>>, %arg9: memref<1x32xf32, #tpu.memory_space<vmem>>, %arg10: memref<1x8x32xf32, #tpu.memory_space<vmem>>, %arg11: memref<8x64xbf16, #tpu.memory_space<vmem>>) attributes {dimension_semantics = [#tpu.dimension_semantics<parallel>, #tpu.dimension_semantics<arbitrary>], iteration_bounds = array<i64: 2, 1>, scalar_prefetch = 0 : i64, scratch_operands = 1 : i64, tpu.core_type = #tpu.core_type<tc>, window_params = [{transform_indices = @transform_0, window_bounds = array<i64: 1, 8, 32>}, {transform_indices = @transform_1, window_bounds = array<i64: 1, 1, 8>}, {pipeline_mode = #tpu.pipeline_mode<synchronous>, transform_indices = @transform_2, window_bounds = array<i64: 1, 32>}, {pipeline_mode = #tpu.pipeline_mode<synchronous>, transform_indices = @transform_3, window_bounds = array<i64: 1, 32>}, {pipeline_mode = #tpu.pipeline_mode<synchronous>, transform_indices = @transform_4, window_bounds = array<i64: 32, 96>}, {pipeline_mode = #tpu.pipeline_mode<synchronous>, transform_indices = @transform_5, window_bounds = array<i64: 1, 96>}, {pipeline_mode = #tpu.pipeline_mode<synchronous>, transform_indices = @transform_6, window_bounds = array<i64: 32, 32>}, {pipeline_mode = #tpu.pipeline_mode<synchronous>, transform_indices = @transform_7, window_bounds = array<i64: 1, 32>}, {transform_indices = @transform_8, window_bounds = array<i64: 1, 8, 32>}]} {
    %c8_i32 = arith.constant 8 : i32
    %0 = arith.muli %arg1, %c8_i32 : i32
    %1 = tpu.assume_multiple %0, 8 : i32
    %c0_i32 = arith.constant 0 : i32
    %2 = arith.cmpi eq, %arg1, %c0_i32 : i32
    %3 = arith.extui %2 : i1 to i32
    %c0_i32_0 = arith.constant 0 : i32
    %4 = arith.cmpi ne, %3, %c0_i32_0 : i32
    scf.if %4 {
      %c0_52 = arith.constant 0 : index
      %c0_53 = arith.constant 0 : index
      %c0_54 = arith.constant 0 : index
      %147 = vector.load %arg2[%c0_52, %c0_53, %c0_54] : memref<1x8x32xf32, #tpu.memory_space<vmem>>, vector<1x8x32xf32>
      %148 = vector.shape_cast %147 : vector<1x8x32xf32> to vector<8x32xf32>
      %c0_55 = arith.constant 0 : index
      %c0_56 = arith.constant 0 : index
      %149 = vector.load %arg4[%c0_55, %c0_56] : memref<1x32xf32, #tpu.memory_space<vmem>>, vector<1x32xf32>
      %c0_57 = arith.constant 0 : index
      %c0_58 = arith.constant 0 : index
      %150 = vector.load %arg5[%c0_57, %c0_58] : memref<1x32xf32, #tpu.memory_space<vmem>>, vector<1x32xf32>
      %cst_59 = arith.constant dense<0.000000e+00> : vector<8xf32>
      %151 = vector.multi_reduction <add>, %148, %cst_59 [1] : vector<8x32xf32> to vector<8xf32>
      %152 = vector.shape_cast %151 : vector<8xf32> to vector<8x1xf32>
      %cst_60 = arith.constant 3.200000e+01 : f32
      %153 = vector.broadcast %cst_60 : f32 to vector<8x1xf32>
      %154 = arith.divf %152, %153 : vector<8x1xf32>
      %155 = vector.broadcast %154 : vector<8x1xf32> to vector<8x32xf32>
      %156 = arith.subf %148, %155 : vector<8x32xf32>
      %157 = arith.mulf %156, %156 : vector<8x32xf32>
      %cst_61 = arith.constant dense<0.000000e+00> : vector<8xf32>
      %158 = vector.multi_reduction <add>, %157, %cst_61 [1] : vector<8x32xf32> to vector<8xf32>
      %159 = vector.shape_cast %158 : vector<8xf32> to vector<8x1xf32>
      %cst_62 = arith.constant 3.200000e+01 : f32
      %160 = vector.broadcast %cst_62 : f32 to vector<8x1xf32>
      %161 = arith.divf %159, %160 : vector<8x1xf32>
      %162 = vector.broadcast %154 : vector<8x1xf32> to vector<8x32xf32>
      %163 = arith.subf %148, %162 : vector<8x32xf32>
      %cst_63 = arith.constant 9.99999974E-6 : f32
      %164 = vector.broadcast %cst_63 : f32 to vector<8x1xf32>
      %165 = arith.addf %161, %164 : vector<8x1xf32>
      %166 = math.rsqrt %165 : vector<8x1xf32>
      %167 = vector.broadcast %166 : vector<8x1xf32> to vector<8x32xf32>
      %168 = arith.mulf %163, %167 : vector<8x32xf32>
      %169 = vector.broadcast %149 : vector<1x32xf32> to vector<8x32xf32>
      %170 = arith.mulf %168, %169 : vector<8x32xf32>
      %171 = vector.broadcast %150 : vector<1x32xf32> to vector<8x32xf32>
      %172 = arith.addf %170, %171 : vector<8x32xf32>
      %173 = arith.truncf %172 : vector<8x32xf32> to vector<8x32xbf16>
      %c0_64 = arith.constant 0 : index
      %c32 = arith.constant 32 : index
      %174 = vector.load %arg6[%c0_64, %c32] : memref<32x96xbf16, #tpu.memory_space<vmem>>, vector<32x64xbf16>
      %cst_65 = arith.constant dense<0.000000e+00> : vector<8x64xf32>
      %175 = tpu.matmul %173, %174, %cst_65 {dimension_numbers = #tpu.dot_dimension_numbers<[1], [0], [0], [1], [0, 0, 1, 1], [], []>} : vector<8x32xbf16>, vector<32x64xbf16>, vector<8x64xf32> -> vector<8x64xf32>
      %c0_66 = arith.constant 0 : index
      %c32_67 = arith.constant 32 : index
      %176 = vector.load %arg7[%c0_66, %c32_67] : memref<1x96xf32, #tpu.memory_space<vmem>>, vector<1x64xf32>
      %177 = vector.broadcast %176 : vector<1x64xf32> to vector<8x64xf32>
      %178 = arith.addf %175, %177 : vector<8x64xf32>
      %179 = arith.truncf %178 : vector<8x64xf32> to vector<8x64xbf16>
      %c0_68 = arith.constant 0 : index
      %c0_69 = arith.constant 0 : index
      %180 = vector.load %arg11[%c0_68, %c0_69] : memref<8x64xbf16, #tpu.memory_space<vmem>>, vector<8x64xbf16>
      tpu.vector_store %arg11[%c0_68, %c0_69], %179 {strides = array<i32>} : memref<8x64xbf16, #tpu.memory_space<vmem>>, vector<8x64xbf16>,
    } else {
    }
    %c0 = arith.constant 0 : index
    %5 = arith.index_cast %1 : i32 to index
    %c0_1 = arith.constant 0 : index
    %6 = vector.load %arg2[%c0, %5, %c0_1] : memref<1x8x32xf32, #tpu.memory_space<vmem>>, vector<1x8x32xf32>
    %7 = vector.shape_cast %6 : vector<1x8x32xf32> to vector<8x32xf32>
    %c0_2 = arith.constant 0 : index
    %c0_3 = arith.constant 0 : index
    %8 = vector.load %arg4[%c0_2, %c0_3] : memref<1x32xf32, #tpu.memory_space<vmem>>, vector<1x32xf32>
    %c0_4 = arith.constant 0 : index
    %c0_5 = arith.constant 0 : index
    %9 = vector.load %arg5[%c0_4, %c0_5] : memref<1x32xf32, #tpu.memory_space<vmem>>, vector<1x32xf32>
    %cst = arith.constant dense<0.000000e+00> : vector<8xf32>
    %10 = vector.multi_reduction <add>, %7, %cst [1] : vector<8x32xf32> to vector<8xf32>
    %11 = vector.shape_cast %10 : vector<8xf32> to vector<8x1xf32>
    %cst_6 = arith.constant 3.200000e+01 : f32
    %12 = vector.broadcast %cst_6 : f32 to vector<8x1xf32>
    %13 = arith.divf %11, %12 : vector<8x1xf32>
    %14 = vector.broadcast %13 : vector<8x1xf32> to vector<8x32xf32>
    %15 = arith.subf %7, %14 : vector<8x32xf32>
    %16 = arith.mulf %15, %15 : vector<8x32xf32>
    %cst_7 = arith.constant dense<0.000000e+00> : vector<8xf32>
    %17 = vector.multi_reduction <add>, %16, %cst_7 [1] : vector<8x32xf32> to vector<8xf32>
    %18 = vector.shape_cast %17 : vector<8xf32> to vector<8x1xf32>
    %cst_8 = arith.constant 3.200000e+01 : f32
    %19 = vector.broadcast %cst_8 : f32 to vector<8x1xf32>
    %20 = arith.divf %18, %19 : vector<8x1xf32>
    %21 = vector.broadcast %13 : vector<8x1xf32> to vector<8x32xf32>
    %22 = arith.subf %7, %21 : vector<8x32xf32>
    %cst_9 = arith.constant 9.99999974E-6 : f32
    %23 = vector.broadcast %cst_9 : f32 to vector<8x1xf32>
    %24 = arith.addf %20, %23 : vector<8x1xf32>
    %25 = math.rsqrt %24 : vector<8x1xf32>
    %26 = vector.broadcast %25 : vector<8x1xf32> to vector<8x32xf32>
    %27 = arith.mulf %22, %26 : vector<8x32xf32>
    %28 = vector.broadcast %8 : vector<1x32xf32> to vector<8x32xf32>
    %29 = arith.mulf %27, %28 : vector<8x32xf32>
    %30 = vector.broadcast %9 : vector<1x32xf32> to vector<8x32xf32>
    %31 = arith.addf %29, %30 : vector<8x32xf32>
    %32 = arith.truncf %31 : vector<8x32xf32> to vector<8x32xbf16>
    %c0_10 = arith.constant 0 : index
    %c0_11 = arith.constant 0 : index
    %33 = vector.load %arg6[%c0_10, %c0_11] : memref<32x96xbf16, #tpu.memory_space<vmem>>, vector<32x32xbf16>
    %cst_12 = arith.constant dense<0.000000e+00> : vector<8x32xf32>
    %34 = tpu.matmul %32, %33, %cst_12 {dimension_numbers = #tpu.dot_dimension_numbers<[1], [0], [0], [1], [0, 0, 1, 1], [], []>} : vector<8x32xbf16>, vector<32x32xbf16>, vector<8x32xf32> -> vector<8x32xf32>
    %c0_13 = arith.constant 0 : index
    %c0_14 = arith.constant 0 : index
    %35 = vector.load %arg7[%c0_13, %c0_14] : memref<1x96xf32, #tpu.memory_space<vmem>>, vector<1x32xf32>
    %36 = vector.broadcast %35 : vector<1x32xf32> to vector<8x32xf32>
    %37 = arith.addf %34, %36 : vector<8x32xf32>
    %38 = arith.truncf %37 : vector<8x32xf32> to vector<8x32xbf16>
    %c0_15 = arith.constant 0 : index
    %c0_16 = arith.constant 0 : index
    %39 = vector.load %arg11[%c0_15, %c0_16] : memref<8x64xbf16, #tpu.memory_space<vmem>>, vector<8x64xbf16>
    %40 = vector.extract_strided_slice %39 {offsets = [0, 0], sizes = [8, 32], strides = [1, 1]} : vector<8x64xbf16> to vector<8x32xbf16>
    %41 = vector.extract_strided_slice %39 {offsets = [0, 32], sizes = [8, 32], strides = [1, 1]} : vector<8x64xbf16> to vector<8x32xbf16>
    %42 = tpu.iota {dimensions = array<i32: 0>} : vector<8x8xi32>
    %43 = vector.broadcast %1 : i32 to vector<8x8xi32>
    %44 = arith.addi %43, %42 : vector<8x8xi32>
    %45 = tpu.iota {dimensions = array<i32: 1>} : vector<8x8xi32>
    %46 = arith.cmpi sge, %44, %45 : vector<8x8xi32>
    %c0_17 = arith.constant 0 : index
    %c0_18 = arith.constant 0 : index
    %c0_19 = arith.constant 0 : index
    %47 = vector.load %arg3[%c0_17, %c0_18, %c0_19] : memref<1x1x8xi8, #tpu.memory_space<vmem>>, vector<1x1x8xi8>
    %48 = vector.shape_cast %47 : vector<1x1x8xi8> to vector<1x8xi8>
    %c0_i8 = arith.constant 0 : i8
    %49 = vector.broadcast %c0_i8 : i8 to vector<1x8xi8>
    %50 = arith.cmpi ne, %48, %49 : vector<1x8xi8>
    %51 = vector.broadcast %50 : vector<1x8xi1> to vector<8x8xi1>
    %52 = arith.andi %46, %51 : vector<8x8xi1>
    %c0_20 = arith.constant 0 : index
    %c0_21 = arith.constant 0 : index
    %53 = vector.load %arg8[%c0_20, %c0_21] : memref<32x32xbf16, #tpu.memory_space<vmem>>, vector<32x32xbf16>
    %54 = vector.extract_strided_slice %38 {offsets = [0, 0], sizes = [8, 8], strides = [1, 1]} : vector<8x32xbf16> to vector<8x8xbf16>
    %55 = vector.extract_strided_slice %40 {offsets = [0, 0], sizes = [8, 8], strides = [1, 1]} : vector<8x32xbf16> to vector<8x8xbf16>
    %cst_22 = arith.constant dense<0.000000e+00> : vector<8x8xf32>
    %56 = tpu.matmul %54, %55, %cst_22 {dimension_numbers = #tpu.dot_dimension_numbers<[1], [1], [0], [0], [0, 0, 1, 0], [], []>} : vector<8x8xbf16>, vector<8x8xbf16>, vector<8x8xf32> -> vector<8x8xf32>
    %cst_23 = arith.constant 0.353553385 : f32
    %57 = vector.broadcast %cst_23 : f32 to vector<8x8xf32>
    %58 = arith.mulf %56, %57 : vector<8x8xf32>
    %cst_24 = arith.constant -1.000000e+09 : f32
    %59 = vector.broadcast %cst_24 : f32 to vector<8x8xf32>
    %60 = arith.select %52, %58, %59 : vector<8x8xi1>, vector<8x8xf32>
    %cst_25 = arith.constant dense<0xFF800000> : vector<8xf32>
    %61 = vector.multi_reduction <maximumf>, %60, %cst_25 [1] : vector<8x8xf32> to vector<8xf32>
    %62 = vector.shape_cast %61 : vector<8xf32> to vector<8x1xf32>
    %63 = vector.broadcast %62 : vector<8x1xf32> to vector<8x8xf32>
    %64 = arith.subf %60, %63 : vector<8x8xf32>
    %65 = math.exp %64 : vector<8x8xf32>
    %cst_26 = arith.constant dense<0.000000e+00> : vector<8xf32>
    %66 = vector.multi_reduction <add>, %65, %cst_26 [1] : vector<8x8xf32> to vector<8xf32>
    %67 = vector.shape_cast %66 : vector<8xf32> to vector<8x1xf32>
    %68 = arith.truncf %65 : vector<8x8xf32> to vector<8x8xbf16>
    %69 = vector.extract_strided_slice %41 {offsets = [0, 0], sizes = [8, 8], strides = [1, 1]} : vector<8x32xbf16> to vector<8x8xbf16>
    %cst_27 = arith.constant dense<0.000000e+00> : vector<8x8xf32>
    %70 = tpu.matmul %68, %69, %cst_27 {dimension_numbers = #tpu.dot_dimension_numbers<[1], [0], [0], [1], [0, 0, 1, 1], [], []>} : vector<8x8xbf16>, vector<8x8xbf16>, vector<8x8xf32> -> vector<8x8xf32>
    %71 = tpu.reciprocal %67 {approx = true} : vector<8x1xf32> -> vector<8x1xf32>
    %72 = vector.broadcast %71 : vector<8x1xf32> to vector<8x8xf32>
    %73 = arith.mulf %70, %72 : vector<8x8xf32>
    %74 = arith.truncf %73 : vector<8x8xf32> to vector<8x8xbf16>
    %75 = vector.extract_strided_slice %38 {offsets = [0, 8], sizes = [8, 8], strides = [1, 1]} : vector<8x32xbf16> to vector<8x8xbf16>
    %76 = vector.extract_strided_slice %40 {offsets = [0, 8], sizes = [8, 8], strides = [1, 1]} : vector<8x32xbf16> to vector<8x8xbf16>
    %cst_28 = arith.constant dense<0.000000e+00> : vector<8x8xf32>
    %77 = tpu.matmul %75, %76, %cst_28 {dimension_numbers = #tpu.dot_dimension_numbers<[1], [1], [0], [0], [0, 0, 1, 0], [], []>} : vector<8x8xbf16>, vector<8x8xbf16>, vector<8x8xf32> -> vector<8x8xf32>
    %cst_29 = arith.constant 0.353553385 : f32
    %78 = vector.broadcast %cst_29 : f32 to vector<8x8xf32>
    %79 = arith.mulf %77, %78 : vector<8x8xf32>
    %cst_30 = arith.constant -1.000000e+09 : f32
    %80 = vector.broadcast %cst_30 : f32 to vector<8x8xf32>
    %81 = arith.select %52, %79, %80 : vector<8x8xi1>, vector<8x8xf32>
    %cst_31 = arith.constant dense<0xFF800000> : vector<8xf32>
    %82 = vector.multi_reduction <maximumf>, %81, %cst_31 [1] : vector<8x8xf32> to vector<8xf32>
    %83 = vector.shape_cast %82 : vector<8xf32> to vector<8x1xf32>
    %84 = vector.broadcast %83 : vector<8x1xf32> to vector<8x8xf32>
    %85 = arith.subf %81, %84 : vector<8x8xf32>
    %86 = math.exp %85 : vector<8x8xf32>
    %cst_32 = arith.constant dense<0.000000e+00> : vector<8xf32>
    %87 = vector.multi_reduction <add>, %86, %cst_32 [1] : vector<8x8xf32> to vector<8xf32>
    %88 = vector.shape_cast %87 : vector<8xf32> to vector<8x1xf32>
    %89 = arith.truncf %86 : vector<8x8xf32> to vector<8x8xbf16>
    %90 = vector.extract_strided_slice %41 {offsets = [0, 8], sizes = [8, 8], strides = [1, 1]} : vector<8x32xbf16> to vector<8x8xbf16>
    %cst_33 = arith.constant dense<0.000000e+00> : vector<8x8xf32>
    %91 = tpu.matmul %89, %90, %cst_33 {dimension_numbers = #tpu.dot_dimension_numbers<[1], [0], [0], [1], [0, 0, 1, 1], [], []>} : vector<8x8xbf16>, vector<8x8xbf16>, vector<8x8xf32> -> vector<8x8xf32>
    %92 = tpu.reciprocal %88 {approx = true} : vector<8x1xf32> -> vector<8x1xf32>
    %93 = vector.broadcast %92 : vector<8x1xf32> to vector<8x8xf32>
    %94 = arith.mulf %91, %93 : vector<8x8xf32>
    %95 = arith.truncf %94 : vector<8x8xf32> to vector<8x8xbf16>
    %96 = vector.extract_strided_slice %38 {offsets = [0, 16], sizes = [8, 8], strides = [1, 1]} : vector<8x32xbf16> to vector<8x8xbf16>
    %97 = vector.extract_strided_slice %40 {offsets = [0, 16], sizes = [8, 8], strides = [1, 1]} : vector<8x32xbf16> to vector<8x8xbf16>
    %cst_34 = arith.constant dense<0.000000e+00> : vector<8x8xf32>
    %98 = tpu.matmul %96, %97, %cst_34 {dimension_numbers = #tpu.dot_dimension_numbers<[1], [1], [0], [0], [0, 0, 1, 0], [], []>} : vector<8x8xbf16>, vector<8x8xbf16>, vector<8x8xf32> -> vector<8x8xf32>
    %cst_35 = arith.constant 0.353553385 : f32
    %99 = vector.broadcast %cst_35 : f32 to vector<8x8xf32>
    %100 = arith.mulf %98, %99 : vector<8x8xf32>
    %cst_36 = arith.constant -1.000000e+09 : f32
    %101 = vector.broadcast %cst_36 : f32 to vector<8x8xf32>
    %102 = arith.select %52, %100, %101 : vector<8x8xi1>, vector<8x8xf32>
    %cst_37 = arith.constant dense<0xFF800000> : vector<8xf32>
    %103 = vector.multi_reduction <maximumf>, %102, %cst_37 [1] : vector<8x8xf32> to vector<8xf32>
    %104 = vector.shape_cast %103 : vector<8xf32> to vector<8x1xf32>
    %105 = vector.broadcast %104 : vector<8x1xf32> to vector<8x8xf32>
    %106 = arith.subf %102, %105 : vector<8x8xf32>
    %107 = math.exp %106 : vector<8x8xf32>
    %cst_38 = arith.constant dense<0.000000e+00> : vector<8xf32>
    %108 = vector.multi_reduction <add>, %107, %cst_38 [1] : vector<8x8xf32> to vector<8xf32>
    %109 = vector.shape_cast %108 : vector<8xf32> to vector<8x1xf32>
    %110 = arith.truncf %107 : vector<8x8xf32> to vector<8x8xbf16>
    %111 = vector.extract_strided_slice %41 {offsets = [0, 16], sizes = [8, 8], strides = [1, 1]} : vector<8x32xbf16> to vector<8x8xbf16>
    %cst_39 = arith.constant dense<0.000000e+00> : vector<8x8xf32>
    %112 = tpu.matmul %110, %111, %cst_39 {dimension_numbers = #tpu.dot_dimension_numbers<[1], [0], [0], [1], [0, 0, 1, 1], [], []>} : vector<8x8xbf16>, vector<8x8xbf16>, vector<8x8xf32> -> vector<8x8xf32>
    %113 = tpu.reciprocal %109 {approx = true} : vector<8x1xf32> -> vector<8x1xf32>
    %114 = vector.broadcast %113 : vector<8x1xf32> to vector<8x8xf32>
    %115 = arith.mulf %112, %114 : vector<8x8xf32>
    %116 = arith.truncf %115 : vector<8x8xf32> to vector<8x8xbf16>
    %117 = vector.extract_strided_slice %38 {offsets = [0, 24], sizes = [8, 8], strides = [1, 1]} : vector<8x32xbf16> to vector<8x8xbf16>
    %118 = vector.extract_strided_slice %40 {offsets = [0, 24], sizes = [8, 8], strides = [1, 1]} : vector<8x32xbf16> to vector<8x8xbf16>
    %cst_40 = arith.constant dense<0.000000e+00> : vector<8x8xf32>
    %119 = tpu.matmul %117, %118, %cst_40 {dimension_numbers = #tpu.dot_dimension_numbers<[1], [1], [0], [0], [0, 0, 1, 0], [], []>} : vector<8x8xbf16>, vector<8x8xbf16>, vector<8x8xf32> -> vector<8x8xf32>
    %cst_41 = arith.constant 0.353553385 : f32
    %120 = vector.broadcast %cst_41 : f32 to vector<8x8xf32>
    %121 = arith.mulf %119, %120 : vector<8x8xf32>
    %cst_42 = arith.constant -1.000000e+09 : f32
    %122 = vector.broadcast %cst_42 : f32 to vector<8x8xf32>
    %123 = arith.select %52, %121, %122 : vector<8x8xi1>, vector<8x8xf32>
    %cst_43 = arith.constant dense<0xFF800000> : vector<8xf32>
    %124 = vector.multi_reduction <maximumf>, %123, %cst_43 [1] : vector<8x8xf32> to vector<8xf32>
    %125 = vector.shape_cast %124 : vector<8xf32> to vector<8x1xf32>
    %126 = vector.broadcast %125 : vector<8x1xf32> to vector<8x8xf32>
    %127 = arith.subf %123, %126 : vector<8x8xf32>
    %128 = math.exp %127 : vector<8x8xf32>
    %cst_44 = arith.constant dense<0.000000e+00> : vector<8xf32>
    %129 = vector.multi_reduction <add>, %128, %cst_44 [1] : vector<8x8xf32> to vector<8xf32>
    %130 = vector.shape_cast %129 : vector<8xf32> to vector<8x1xf32>
    %131 = arith.truncf %128 : vector<8x8xf32> to vector<8x8xbf16>
    %132 = vector.extract_strided_slice %41 {offsets = [0, 24], sizes = [8, 8], strides = [1, 1]} : vector<8x32xbf16> to vector<8x8xbf16>
    %cst_45 = arith.constant dense<0.000000e+00> : vector<8x8xf32>
    %133 = tpu.matmul %131, %132, %cst_45 {dimension_numbers = #tpu.dot_dimension_numbers<[1], [0], [0], [1], [0, 0, 1, 1], [], []>} : vector<8x8xbf16>, vector<8x8xbf16>, vector<8x8xf32> -> vector<8x8xf32>
    %134 = tpu.reciprocal %130 {approx = true} : vector<8x1xf32> -> vector<8x1xf32>
    %135 = vector.broadcast %134 : vector<8x1xf32> to vector<8x8xf32>
    %136 = arith.mulf %133, %135 : vector<8x8xf32>
    %137 = arith.truncf %136 : vector<8x8xf32> to vector<8x8xbf16>
    %138 = tpu.concatenate %74, %95, %116, %137 in 1 : vector<8x8xbf16>, vector<8x8xbf16>, vector<8x8xbf16>, vector<8x8xbf16> -> vector<8x32xbf16>
    %cst_46 = arith.constant dense<0.000000e+00> : vector<8x32xf32>
    %139 = tpu.matmul %138, %53, %cst_46 {dimension_numbers = #tpu.dot_dimension_numbers<[1], [0], [0], [1], [0, 0, 1, 1], [], []>} : vector<8x32xbf16>, vector<32x32xbf16>, vector<8x32xf32> -> vector<8x32xf32>
    %c0_47 = arith.constant 0 : index
    %c0_48 = arith.constant 0 : index
    %140 = vector.load %arg9[%c0_47, %c0_48] : memref<1x32xf32, #tpu.memory_space<vmem>>, vector<1x32xf32>
    %141 = vector.broadcast %140 : vector<1x32xf32> to vector<8x32xf32>
    %142 = arith.addf %139, %141 : vector<8x32xf32>
    %143 = arith.addf %7, %142 : vector<8x32xf32>
    %c0_49 = arith.constant 0 : index
    %c0_50 = arith.constant 0 : index
    %c0_51 = arith.constant 0 : index
    %144 = vector.load %arg10[%c0_49, %c0_50, %c0_51] : memref<1x8x32xf32, #tpu.memory_space<vmem>>, vector<1x8x32xf32>
    %145 = vector.shape_cast %144 : vector<1x8x32xf32> to vector<8x32xf32>
    %146 = vector.shape_cast %143 : vector<8x32xf32> to vector<1x8x32xf32>
    tpu.vector_store %arg10[%c0_49, %c0_50, %c0_51], %146 {strides = array<i32>} : memref<1x8x32xf32, #tpu.memory_space<vmem>>, vector<1x8x32xf32>,
    return
  }
  func.func @transform_0(%arg0: i32, %arg1: i32) -> (i32, i32, i32) {
    %c0_i32 = arith.constant 0 : i32
    %c0_i32_0 = arith.constant 0 : i32
    %c0_i32_1 = arith.constant 0 : i32
    return %arg0, %c0_i32, %c0_i32_0 : i32, i32, i32
  }
  func.func @transform_1(%arg0: i32, %arg1: i32) -> (i32, i32, i32) {
    %c0_i32 = arith.constant 0 : i32
    %c0_i32_0 = arith.constant 0 : i32
    %c0_i32_1 = arith.constant 0 : i32
    return %arg0, %c0_i32, %c0_i32_0 : i32, i32, i32
  }
  func.func @transform_2(%arg0: i32, %arg1: i32) -> (i32, i32) {
    %c0_i32 = arith.constant 0 : i32
    %c0_i32_0 = arith.constant 0 : i32
    %c0_i32_1 = arith.constant 0 : i32
    return %c0_i32, %c0_i32_0 : i32, i32
  }
  func.func @transform_3(%arg0: i32, %arg1: i32) -> (i32, i32) {
    %c0_i32 = arith.constant 0 : i32
    %c0_i32_0 = arith.constant 0 : i32
    %c0_i32_1 = arith.constant 0 : i32
    return %c0_i32, %c0_i32_0 : i32, i32
  }
  func.func @transform_4(%arg0: i32, %arg1: i32) -> (i32, i32) {
    %c0_i32 = arith.constant 0 : i32
    %c0_i32_0 = arith.constant 0 : i32
    %c0_i32_1 = arith.constant 0 : i32
    return %c0_i32, %c0_i32_0 : i32, i32
  }
  func.func @transform_5(%arg0: i32, %arg1: i32) -> (i32, i32) {
    %c0_i32 = arith.constant 0 : i32
    %c0_i32_0 = arith.constant 0 : i32
    %c0_i32_1 = arith.constant 0 : i32
    return %c0_i32, %c0_i32_0 : i32, i32
  }
  func.func @transform_6(%arg0: i32, %arg1: i32) -> (i32, i32) {
    %c0_i32 = arith.constant 0 : i32
    %c0_i32_0 = arith.constant 0 : i32
    %c0_i32_1 = arith.constant 0 : i32
    return %c0_i32, %c0_i32_0 : i32, i32
  }
  func.func @transform_7(%arg0: i32, %arg1: i32) -> (i32, i32) {
    %c0_i32 = arith.constant 0 : i32
    %c0_i32_0 = arith.constant 0 : i32
    %c0_i32_1 = arith.constant 0 : i32
    return %c0_i32, %c0_i32_0 : i32, i32
  }
  func.func @transform_8(%arg0: i32, %arg1: i32) -> (i32, i32, i32) {
    %c0_i32 = arith.constant 0 : i32
    %c0_i32_0 = arith.constant 0 : i32
    return %arg0, %arg1, %c0_i32 : i32, i32, i32
  }
}

module attributes {stable_mosaic.version = 11 : i64} {
  func.func @_ffn_kernel(%arg0: i32, %arg1: memref<8x32xf32, #tpu.memory_space<vmem>>, %arg2: memref<1x32xf32, #tpu.memory_space<vmem>>, %arg3: memref<1x32xf32, #tpu.memory_space<vmem>>, %arg4: memref<32x64xbf16, #tpu.memory_space<vmem>>, %arg5: memref<1x64xf32, #tpu.memory_space<vmem>>, %arg6: memref<64x32xbf16, #tpu.memory_space<vmem>>, %arg7: memref<1x32xf32, #tpu.memory_space<vmem>>, %arg8: memref<8x32xf32, #tpu.memory_space<vmem>>) attributes {dimension_semantics = [#tpu.dimension_semantics<parallel>], iteration_bounds = array<i64: 2>, scalar_prefetch = 0 : i64, scratch_operands = 0 : i64, tpu.core_type = #tpu.core_type<tc>, window_params = [{transform_indices = @transform_0, window_bounds = array<i64: 8, 32>}, {pipeline_mode = #tpu.pipeline_mode<synchronous>, transform_indices = @transform_1, window_bounds = array<i64: 1, 32>}, {pipeline_mode = #tpu.pipeline_mode<synchronous>, transform_indices = @transform_2, window_bounds = array<i64: 1, 32>}, {pipeline_mode = #tpu.pipeline_mode<synchronous>, transform_indices = @transform_3, window_bounds = array<i64: 32, 64>}, {pipeline_mode = #tpu.pipeline_mode<synchronous>, transform_indices = @transform_4, window_bounds = array<i64: 1, 64>}, {pipeline_mode = #tpu.pipeline_mode<synchronous>, transform_indices = @transform_5, window_bounds = array<i64: 64, 32>}, {pipeline_mode = #tpu.pipeline_mode<synchronous>, transform_indices = @transform_6, window_bounds = array<i64: 1, 32>}, {transform_indices = @transform_7, window_bounds = array<i64: 8, 32>}]} {
    %c0 = arith.constant 0 : index
    %c0_0 = arith.constant 0 : index
    %0 = vector.load %arg1[%c0, %c0_0] : memref<8x32xf32, #tpu.memory_space<vmem>>, vector<8x32xf32>
    %c0_1 = arith.constant 0 : index
    %c0_2 = arith.constant 0 : index
    %1 = vector.load %arg2[%c0_1, %c0_2] : memref<1x32xf32, #tpu.memory_space<vmem>>, vector<1x32xf32>
    %c0_3 = arith.constant 0 : index
    %c0_4 = arith.constant 0 : index
    %2 = vector.load %arg3[%c0_3, %c0_4] : memref<1x32xf32, #tpu.memory_space<vmem>>, vector<1x32xf32>
    %cst = arith.constant dense<0.000000e+00> : vector<8xf32>
    %3 = vector.multi_reduction <add>, %0, %cst [1] : vector<8x32xf32> to vector<8xf32>
    %4 = vector.shape_cast %3 : vector<8xf32> to vector<8x1xf32>
    %cst_5 = arith.constant 3.200000e+01 : f32
    %5 = vector.broadcast %cst_5 : f32 to vector<8x1xf32>
    %6 = arith.divf %4, %5 : vector<8x1xf32>
    %7 = vector.broadcast %6 : vector<8x1xf32> to vector<8x32xf32>
    %8 = arith.subf %0, %7 : vector<8x32xf32>
    %9 = arith.mulf %8, %8 : vector<8x32xf32>
    %cst_6 = arith.constant dense<0.000000e+00> : vector<8xf32>
    %10 = vector.multi_reduction <add>, %9, %cst_6 [1] : vector<8x32xf32> to vector<8xf32>
    %11 = vector.shape_cast %10 : vector<8xf32> to vector<8x1xf32>
    %cst_7 = arith.constant 3.200000e+01 : f32
    %12 = vector.broadcast %cst_7 : f32 to vector<8x1xf32>
    %13 = arith.divf %11, %12 : vector<8x1xf32>
    %14 = vector.broadcast %6 : vector<8x1xf32> to vector<8x32xf32>
    %15 = arith.subf %0, %14 : vector<8x32xf32>
    %cst_8 = arith.constant 9.99999974E-6 : f32
    %16 = vector.broadcast %cst_8 : f32 to vector<8x1xf32>
    %17 = arith.addf %13, %16 : vector<8x1xf32>
    %18 = math.rsqrt %17 : vector<8x1xf32>
    %19 = vector.broadcast %18 : vector<8x1xf32> to vector<8x32xf32>
    %20 = arith.mulf %15, %19 : vector<8x32xf32>
    %21 = vector.broadcast %1 : vector<1x32xf32> to vector<8x32xf32>
    %22 = arith.mulf %20, %21 : vector<8x32xf32>
    %23 = vector.broadcast %2 : vector<1x32xf32> to vector<8x32xf32>
    %24 = arith.addf %22, %23 : vector<8x32xf32>
    %25 = arith.truncf %24 : vector<8x32xf32> to vector<8x32xbf16>
    %c0_9 = arith.constant 0 : index
    %c0_10 = arith.constant 0 : index
    %26 = vector.load %arg4[%c0_9, %c0_10] : memref<32x64xbf16, #tpu.memory_space<vmem>>, vector<32x64xbf16>
    %cst_11 = arith.constant dense<0.000000e+00> : vector<8x64xf32>
    %27 = tpu.matmul %25, %26, %cst_11 {dimension_numbers = #tpu.dot_dimension_numbers<[1], [0], [0], [1], [0, 0, 1, 1], [], []>} : vector<8x32xbf16>, vector<32x64xbf16>, vector<8x64xf32> -> vector<8x64xf32>
    %c0_12 = arith.constant 0 : index
    %c0_13 = arith.constant 0 : index
    %28 = vector.load %arg5[%c0_12, %c0_13] : memref<1x64xf32, #tpu.memory_space<vmem>>, vector<1x64xf32>
    %29 = vector.broadcast %28 : vector<1x64xf32> to vector<8x64xf32>
    %30 = arith.addf %27, %29 : vector<8x64xf32>
    %cst_14 = arith.constant 0.000000e+00 : f32
    %31 = vector.broadcast %cst_14 : f32 to vector<8x64xf32>
    %32 = arith.maximumf %30, %31 : vector<8x64xf32>
    %33 = arith.truncf %32 : vector<8x64xf32> to vector<8x64xbf16>
    %c0_15 = arith.constant 0 : index
    %c0_16 = arith.constant 0 : index
    %34 = vector.load %arg6[%c0_15, %c0_16] : memref<64x32xbf16, #tpu.memory_space<vmem>>, vector<64x32xbf16>
    %cst_17 = arith.constant dense<0.000000e+00> : vector<8x32xf32>
    %35 = tpu.matmul %33, %34, %cst_17 {dimension_numbers = #tpu.dot_dimension_numbers<[1], [0], [0], [1], [0, 0, 1, 1], [], []>} : vector<8x64xbf16>, vector<64x32xbf16>, vector<8x32xf32> -> vector<8x32xf32>
    %c0_18 = arith.constant 0 : index
    %c0_19 = arith.constant 0 : index
    %36 = vector.load %arg7[%c0_18, %c0_19] : memref<1x32xf32, #tpu.memory_space<vmem>>, vector<1x32xf32>
    %37 = vector.broadcast %36 : vector<1x32xf32> to vector<8x32xf32>
    %38 = arith.addf %35, %37 : vector<8x32xf32>
    %39 = arith.addf %0, %38 : vector<8x32xf32>
    %c0_20 = arith.constant 0 : index
    %c0_21 = arith.constant 0 : index
    %40 = vector.load %arg8[%c0_20, %c0_21] : memref<8x32xf32, #tpu.memory_space<vmem>>, vector<8x32xf32>
    tpu.vector_store %arg8[%c0_20, %c0_21], %39 {strides = array<i32>} : memref<8x32xf32, #tpu.memory_space<vmem>>, vector<8x32xf32>,
    return
  }
  func.func @transform_0(%arg0: i32) -> (i32, i32) {
    %c0_i32 = arith.constant 0 : i32
    %c0_i32_0 = arith.constant 0 : i32
    return %arg0, %c0_i32 : i32, i32
  }
  func.func @transform_1(%arg0: i32) -> (i32, i32) {
    %c0_i32 = arith.constant 0 : i32
    %c0_i32_0 = arith.constant 0 : i32
    %c0_i32_1 = arith.constant 0 : i32
    return %c0_i32, %c0_i32_0 : i32, i32
  }
  func.func @transform_2(%arg0: i32) -> (i32, i32) {
    %c0_i32 = arith.constant 0 : i32
    %c0_i32_0 = arith.constant 0 : i32
    %c0_i32_1 = arith.constant 0 : i32
    return %c0_i32, %c0_i32_0 : i32, i32
  }
  func.func @transform_3(%arg0: i32) -> (i32, i32) {
    %c0_i32 = arith.constant 0 : i32
    %c0_i32_0 = arith.constant 0 : i32
    %c0_i32_1 = arith.constant 0 : i32
    return %c0_i32, %c0_i32_0 : i32, i32
  }
  func.func @transform_4(%arg0: i32) -> (i32, i32) {
    %c0_i32 = arith.constant 0 : i32
    %c0_i32_0 = arith.constant 0 : i32
    %c0_i32_1 = arith.constant 0 : i32
    return %c0_i32, %c0_i32_0 : i32, i32
  }
  func.func @transform_5(%arg0: i32) -> (i32, i32) {
    %c0_i32 = arith.constant 0 : i32
    %c0_i32_0 = arith.constant 0 : i32
    %c0_i32_1 = arith.constant 0 : i32
    return %c0_i32, %c0_i32_0 : i32, i32
  }
  func.func @transform_6(%arg0: i32) -> (i32, i32) {
    %c0_i32 = arith.constant 0 : i32
    %c0_i32_0 = arith.constant 0 : i32
    %c0_i32_1 = arith.constant 0 : i32
    return %c0_i32, %c0_i32_0 : i32, i32
  }
  func.func @transform_7(%arg0: i32) -> (i32, i32) {
    %c0_i32 = arith.constant 0 : i32
    %c0_i32_0 = arith.constant 0 : i32
    return %arg0, %c0_i32 : i32, i32
  }
}

module attributes {stable_mosaic.version = 11 : i64} {
  func.func @_self_attn_kernel(%arg0: i32, %arg1: i32, %arg2: memref<1x8x32xf32, #tpu.memory_space<vmem>>, %arg3: memref<1x1x8xi8, #tpu.memory_space<vmem>>, %arg4: memref<1x32xf32, #tpu.memory_space<vmem>>, %arg5: memref<1x32xf32, #tpu.memory_space<vmem>>, %arg6: memref<32x96xbf16, #tpu.memory_space<vmem>>, %arg7: memref<1x96xf32, #tpu.memory_space<vmem>>, %arg8: memref<32x32xbf16, #tpu.memory_space<vmem>>, %arg9: memref<1x32xf32, #tpu.memory_space<vmem>>, %arg10: memref<1x8x32xf32, #tpu.memory_space<vmem>>, %arg11: memref<8x64xbf16, #tpu.memory_space<vmem>>) attributes {dimension_semantics = [#tpu.dimension_semantics<parallel>, #tpu.dimension_semantics<arbitrary>], iteration_bounds = array<i64: 2, 1>, scalar_prefetch = 0 : i64, scratch_operands = 1 : i64, tpu.core_type = #tpu.core_type<tc>, window_params = [{transform_indices = @transform_0, window_bounds = array<i64: 1, 8, 32>}, {transform_indices = @transform_1, window_bounds = array<i64: 1, 1, 8>}, {pipeline_mode = #tpu.pipeline_mode<synchronous>, transform_indices = @transform_2, window_bounds = array<i64: 1, 32>}, {pipeline_mode = #tpu.pipeline_mode<synchronous>, transform_indices = @transform_3, window_bounds = array<i64: 1, 32>}, {pipeline_mode = #tpu.pipeline_mode<synchronous>, transform_indices = @transform_4, window_bounds = array<i64: 32, 96>}, {pipeline_mode = #tpu.pipeline_mode<synchronous>, transform_indices = @transform_5, window_bounds = array<i64: 1, 96>}, {pipeline_mode = #tpu.pipeline_mode<synchronous>, transform_indices = @transform_6, window_bounds = array<i64: 32, 32>}, {pipeline_mode = #tpu.pipeline_mode<synchronous>, transform_indices = @transform_7, window_bounds = array<i64: 1, 32>}, {transform_indices = @transform_8, window_bounds = array<i64: 1, 8, 32>}]} {
    %c8_i32 = arith.constant 8 : i32
    %0 = arith.muli %arg1, %c8_i32 : i32
    %1 = tpu.assume_multiple %0, 8 : i32
    %c0_i32 = arith.constant 0 : i32
    %2 = arith.cmpi eq, %arg1, %c0_i32 : i32
    %3 = arith.extui %2 : i1 to i32
    %c0_i32_0 = arith.constant 0 : i32
    %4 = arith.cmpi ne, %3, %c0_i32_0 : i32
    scf.if %4 {
      %c0_52 = arith.constant 0 : index
      %c0_53 = arith.constant 0 : index
      %c0_54 = arith.constant 0 : index
      %147 = vector.load %arg2[%c0_52, %c0_53, %c0_54] : memref<1x8x32xf32, #tpu.memory_space<vmem>>, vector<1x8x32xf32>
      %148 = vector.shape_cast %147 : vector<1x8x32xf32> to vector<8x32xf32>
      %c0_55 = arith.constant 0 : index
      %c0_56 = arith.constant 0 : index
      %149 = vector.load %arg4[%c0_55, %c0_56] : memref<1x32xf32, #tpu.memory_space<vmem>>, vector<1x32xf32>
      %c0_57 = arith.constant 0 : index
      %c0_58 = arith.constant 0 : index
      %150 = vector.load %arg5[%c0_57, %c0_58] : memref<1x32xf32, #tpu.memory_space<vmem>>, vector<1x32xf32>
      %cst_59 = arith.constant dense<0.000000e+00> : vector<8xf32>
      %151 = vector.multi_reduction <add>, %148, %cst_59 [1] : vector<8x32xf32> to vector<8xf32>
      %152 = vector.shape_cast %151 : vector<8xf32> to vector<8x1xf32>
      %cst_60 = arith.constant 3.200000e+01 : f32
      %153 = vector.broadcast %cst_60 : f32 to vector<8x1xf32>
      %154 = arith.divf %152, %153 : vector<8x1xf32>
      %155 = vector.broadcast %154 : vector<8x1xf32> to vector<8x32xf32>
      %156 = arith.subf %148, %155 : vector<8x32xf32>
      %157 = arith.mulf %156, %156 : vector<8x32xf32>
      %cst_61 = arith.constant dense<0.000000e+00> : vector<8xf32>
      %158 = vector.multi_reduction <add>, %157, %cst_61 [1] : vector<8x32xf32> to vector<8xf32>
      %159 = vector.shape_cast %158 : vector<8xf32> to vector<8x1xf32>
      %cst_62 = arith.constant 3.200000e+01 : f32
      %160 = vector.broadcast %cst_62 : f32 to vector<8x1xf32>
      %161 = arith.divf %159, %160 : vector<8x1xf32>
      %162 = vector.broadcast %154 : vector<8x1xf32> to vector<8x32xf32>
      %163 = arith.subf %148, %162 : vector<8x32xf32>
      %cst_63 = arith.constant 9.99999974E-6 : f32
      %164 = vector.broadcast %cst_63 : f32 to vector<8x1xf32>
      %165 = arith.addf %161, %164 : vector<8x1xf32>
      %166 = math.rsqrt %165 : vector<8x1xf32>
      %167 = vector.broadcast %166 : vector<8x1xf32> to vector<8x32xf32>
      %168 = arith.mulf %163, %167 : vector<8x32xf32>
      %169 = vector.broadcast %149 : vector<1x32xf32> to vector<8x32xf32>
      %170 = arith.mulf %168, %169 : vector<8x32xf32>
      %171 = vector.broadcast %150 : vector<1x32xf32> to vector<8x32xf32>
      %172 = arith.addf %170, %171 : vector<8x32xf32>
      %173 = arith.truncf %172 : vector<8x32xf32> to vector<8x32xbf16>
      %c0_64 = arith.constant 0 : index
      %c32 = arith.constant 32 : index
      %174 = vector.load %arg6[%c0_64, %c32] : memref<32x96xbf16, #tpu.memory_space<vmem>>, vector<32x64xbf16>
      %cst_65 = arith.constant dense<0.000000e+00> : vector<8x64xf32>
      %175 = tpu.matmul %173, %174, %cst_65 {dimension_numbers = #tpu.dot_dimension_numbers<[1], [0], [0], [1], [0, 0, 1, 1], [], []>} : vector<8x32xbf16>, vector<32x64xbf16>, vector<8x64xf32> -> vector<8x64xf32>
      %c0_66 = arith.constant 0 : index
      %c32_67 = arith.constant 32 : index
      %176 = vector.load %arg7[%c0_66, %c32_67] : memref<1x96xf32, #tpu.memory_space<vmem>>, vector<1x64xf32>
      %177 = vector.broadcast %176 : vector<1x64xf32> to vector<8x64xf32>
      %178 = arith.addf %175, %177 : vector<8x64xf32>
      %179 = arith.truncf %178 : vector<8x64xf32> to vector<8x64xbf16>
      %c0_68 = arith.constant 0 : index
      %c0_69 = arith.constant 0 : index
      %180 = vector.load %arg11[%c0_68, %c0_69] : memref<8x64xbf16, #tpu.memory_space<vmem>>, vector<8x64xbf16>
      tpu.vector_store %arg11[%c0_68, %c0_69], %179 {strides = array<i32>} : memref<8x64xbf16, #tpu.memory_space<vmem>>, vector<8x64xbf16>,
    } else {
    }
    %c0 = arith.constant 0 : index
    %5 = arith.index_cast %1 : i32 to index
    %c0_1 = arith.constant 0 : index
    %6 = vector.load %arg2[%c0, %5, %c0_1] : memref<1x8x32xf32, #tpu.memory_space<vmem>>, vector<1x8x32xf32>
    %7 = vector.shape_cast %6 : vector<1x8x32xf32> to vector<8x32xf32>
    %c0_2 = arith.constant 0 : index
    %c0_3 = arith.constant 0 : index
    %8 = vector.load %arg4[%c0_2, %c0_3] : memref<1x32xf32, #tpu.memory_space<vmem>>, vector<1x32xf32>
    %c0_4 = arith.constant 0 : index
    %c0_5 = arith.constant 0 : index
    %9 = vector.load %arg5[%c0_4, %c0_5] : memref<1x32xf32, #tpu.memory_space<vmem>>, vector<1x32xf32>
    %cst = arith.constant dense<0.000000e+00> : vector<8xf32>
    %10 = vector.multi_reduction <add>, %7, %cst [1] : vector<8x32xf32> to vector<8xf32>
    %11 = vector.shape_cast %10 : vector<8xf32> to vector<8x1xf32>
    %cst_6 = arith.constant 3.200000e+01 : f32
    %12 = vector.broadcast %cst_6 : f32 to vector<8x1xf32>
    %13 = arith.divf %11, %12 : vector<8x1xf32>
    %14 = vector.broadcast %13 : vector<8x1xf32> to vector<8x32xf32>
    %15 = arith.subf %7, %14 : vector<8x32xf32>
    %16 = arith.mulf %15, %15 : vector<8x32xf32>
    %cst_7 = arith.constant dense<0.000000e+00> : vector<8xf32>
    %17 = vector.multi_reduction <add>, %16, %cst_7 [1] : vector<8x32xf32> to vector<8xf32>
    %18 = vector.shape_cast %17 : vector<8xf32> to vector<8x1xf32>
    %cst_8 = arith.constant 3.200000e+01 : f32
    %19 = vector.broadcast %cst_8 : f32 to vector<8x1xf32>
    %20 = arith.divf %18, %19 : vector<8x1xf32>
    %21 = vector.broadcast %13 : vector<8x1xf32> to vector<8x32xf32>
    %22 = arith.subf %7, %21 : vector<8x32xf32>
    %cst_9 = arith.constant 9.99999974E-6 : f32
    %23 = vector.broadcast %cst_9 : f32 to vector<8x1xf32>
    %24 = arith.addf %20, %23 : vector<8x1xf32>
    %25 = math.rsqrt %24 : vector<8x1xf32>
    %26 = vector.broadcast %25 : vector<8x1xf32> to vector<8x32xf32>
    %27 = arith.mulf %22, %26 : vector<8x32xf32>
    %28 = vector.broadcast %8 : vector<1x32xf32> to vector<8x32xf32>
    %29 = arith.mulf %27, %28 : vector<8x32xf32>
    %30 = vector.broadcast %9 : vector<1x32xf32> to vector<8x32xf32>
    %31 = arith.addf %29, %30 : vector<8x32xf32>
    %32 = arith.truncf %31 : vector<8x32xf32> to vector<8x32xbf16>
    %c0_10 = arith.constant 0 : index
    %c0_11 = arith.constant 0 : index
    %33 = vector.load %arg6[%c0_10, %c0_11] : memref<32x96xbf16, #tpu.memory_space<vmem>>, vector<32x32xbf16>
    %cst_12 = arith.constant dense<0.000000e+00> : vector<8x32xf32>
    %34 = tpu.matmul %32, %33, %cst_12 {dimension_numbers = #tpu.dot_dimension_numbers<[1], [0], [0], [1], [0, 0, 1, 1], [], []>} : vector<8x32xbf16>, vector<32x32xbf16>, vector<8x32xf32> -> vector<8x32xf32>
    %c0_13 = arith.constant 0 : index
    %c0_14 = arith.constant 0 : index
    %35 = vector.load %arg7[%c0_13, %c0_14] : memref<1x96xf32, #tpu.memory_space<vmem>>, vector<1x32xf32>
    %36 = vector.broadcast %35 : vector<1x32xf32> to vector<8x32xf32>
    %37 = arith.addf %34, %36 : vector<8x32xf32>
    %38 = arith.truncf %37 : vector<8x32xf32> to vector<8x32xbf16>
    %c0_15 = arith.constant 0 : index
    %c0_16 = arith.constant 0 : index
    %39 = vector.load %arg11[%c0_15, %c0_16] : memref<8x64xbf16, #tpu.memory_space<vmem>>, vector<8x64xbf16>
    %40 = vector.extract_strided_slice %39 {offsets = [0, 0], sizes = [8, 32], strides = [1, 1]} : vector<8x64xbf16> to vector<8x32xbf16>
    %41 = vector.extract_strided_slice %39 {offsets = [0, 32], sizes = [8, 32], strides = [1, 1]} : vector<8x64xbf16> to vector<8x32xbf16>
    %42 = tpu.iota {dimensions = array<i32: 0>} : vector<8x8xi32>
    %43 = vector.broadcast %1 : i32 to vector<8x8xi32>
    %44 = arith.addi %43, %42 : vector<8x8xi32>
    %45 = tpu.iota {dimensions = array<i32: 1>} : vector<8x8xi32>
    %46 = arith.cmpi sge, %44, %45 : vector<8x8xi32>
    %c0_17 = arith.constant 0 : index
    %c0_18 = arith.constant 0 : index
    %c0_19 = arith.constant 0 : index
    %47 = vector.load %arg3[%c0_17, %c0_18, %c0_19] : memref<1x1x8xi8, #tpu.memory_space<vmem>>, vector<1x1x8xi8>
    %48 = vector.shape_cast %47 : vector<1x1x8xi8> to vector<1x8xi8>
    %c0_i8 = arith.constant 0 : i8
    %49 = vector.broadcast %c0_i8 : i8 to vector<1x8xi8>
    %50 = arith.cmpi ne, %48, %49 : vector<1x8xi8>
    %51 = vector.broadcast %50 : vector<1x8xi1> to vector<8x8xi1>
    %52 = arith.andi %46, %51 : vector<8x8xi1>
    %c0_20 = arith.constant 0 : index
    %c0_21 = arith.constant 0 : index
    %53 = vector.load %arg8[%c0_20, %c0_21] : memref<32x32xbf16, #tpu.memory_space<vmem>>, vector<32x32xbf16>
    %54 = vector.extract_strided_slice %38 {offsets = [0, 0], sizes = [8, 8], strides = [1, 1]} : vector<8x32xbf16> to vector<8x8xbf16>
    %55 = vector.extract_strided_slice %40 {offsets = [0, 0], sizes = [8, 8], strides = [1, 1]} : vector<8x32xbf16> to vector<8x8xbf16>
    %cst_22 = arith.constant dense<0.000000e+00> : vector<8x8xf32>
    %56 = tpu.matmul %54, %55, %cst_22 {dimension_numbers = #tpu.dot_dimension_numbers<[1], [1], [0], [0], [0, 0, 1, 0], [], []>} : vector<8x8xbf16>, vector<8x8xbf16>, vector<8x8xf32> -> vector<8x8xf32>
    %cst_23 = arith.constant 0.353553385 : f32
    %57 = vector.broadcast %cst_23 : f32 to vector<8x8xf32>
    %58 = arith.mulf %56, %57 : vector<8x8xf32>
    %cst_24 = arith.constant -1.000000e+09 : f32
    %59 = vector.broadcast %cst_24 : f32 to vector<8x8xf32>
    %60 = arith.select %52, %58, %59 : vector<8x8xi1>, vector<8x8xf32>
    %cst_25 = arith.constant dense<0xFF800000> : vector<8xf32>
    %61 = vector.multi_reduction <maximumf>, %60, %cst_25 [1] : vector<8x8xf32> to vector<8xf32>
    %62 = vector.shape_cast %61 : vector<8xf32> to vector<8x1xf32>
    %63 = vector.broadcast %62 : vector<8x1xf32> to vector<8x8xf32>
    %64 = arith.subf %60, %63 : vector<8x8xf32>
    %65 = math.exp %64 : vector<8x8xf32>
    %cst_26 = arith.constant dense<0.000000e+00> : vector<8xf32>
    %66 = vector.multi_reduction <add>, %65, %cst_26 [1] : vector<8x8xf32> to vector<8xf32>
    %67 = vector.shape_cast %66 : vector<8xf32> to vector<8x1xf32>
    %68 = arith.truncf %65 : vector<8x8xf32> to vector<8x8xbf16>
    %69 = vector.extract_strided_slice %41 {offsets = [0, 0], sizes = [8, 8], strides = [1, 1]} : vector<8x32xbf16> to vector<8x8xbf16>
    %cst_27 = arith.constant dense<0.000000e+00> : vector<8x8xf32>
    %70 = tpu.matmul %68, %69, %cst_27 {dimension_numbers = #tpu.dot_dimension_numbers<[1], [0], [0], [1], [0, 0, 1, 1], [], []>} : vector<8x8xbf16>, vector<8x8xbf16>, vector<8x8xf32> -> vector<8x8xf32>
    %71 = tpu.reciprocal %67 {approx = true} : vector<8x1xf32> -> vector<8x1xf32>
    %72 = vector.broadcast %71 : vector<8x1xf32> to vector<8x8xf32>
    %73 = arith.mulf %70, %72 : vector<8x8xf32>
    %74 = arith.truncf %73 : vector<8x8xf32> to vector<8x8xbf16>
    %75 = vector.extract_strided_slice %38 {offsets = [0, 8], sizes = [8, 8], strides = [1, 1]} : vector<8x32xbf16> to vector<8x8xbf16>
    %76 = vector.extract_strided_slice %40 {offsets = [0, 8], sizes = [8, 8], strides = [1, 1]} : vector<8x32xbf16> to vector<8x8xbf16>
    %cst_28 = arith.constant dense<0.000000e+00> : vector<8x8xf32>
    %77 = tpu.matmul %75, %76, %cst_28 {dimension_numbers = #tpu.dot_dimension_numbers<[1], [1], [0], [0], [0, 0, 1, 0], [], []>} : vector<8x8xbf16>, vector<8x8xbf16>, vector<8x8xf32> -> vector<8x8xf32>
    %cst_29 = arith.constant 0.353553385 : f32
    %78 = vector.broadcast %cst_29 : f32 to vector<8x8xf32>
    %79 = arith.mulf %77, %78 : vector<8x8xf32>
    %cst_30 = arith.constant -1.000000e+09 : f32
    %80 = vector.broadcast %cst_30 : f32 to vector<8x8xf32>
    %81 = arith.select %52, %79, %80 : vector<8x8xi1>, vector<8x8xf32>
    %cst_31 = arith.constant dense<0xFF800000> : vector<8xf32>
    %82 = vector.multi_reduction <maximumf>, %81, %cst_31 [1] : vector<8x8xf32> to vector<8xf32>
    %83 = vector.shape_cast %82 : vector<8xf32> to vector<8x1xf32>
    %84 = vector.broadcast %83 : vector<8x1xf32> to vector<8x8xf32>
    %85 = arith.subf %81, %84 : vector<8x8xf32>
    %86 = math.exp %85 : vector<8x8xf32>
    %cst_32 = arith.constant dense<0.000000e+00> : vector<8xf32>
    %87 = vector.multi_reduction <add>, %86, %cst_32 [1] : vector<8x8xf32> to vector<8xf32>
    %88 = vector.shape_cast %87 : vector<8xf32> to vector<8x1xf32>
    %89 = arith.truncf %86 : vector<8x8xf32> to vector<8x8xbf16>
    %90 = vector.extract_strided_slice %41 {offsets = [0, 8], sizes = [8, 8], strides = [1, 1]} : vector<8x32xbf16> to vector<8x8xbf16>
    %cst_33 = arith.constant dense<0.000000e+00> : vector<8x8xf32>
    %91 = tpu.matmul %89, %90, %cst_33 {dimension_numbers = #tpu.dot_dimension_numbers<[1], [0], [0], [1], [0, 0, 1, 1], [], []>} : vector<8x8xbf16>, vector<8x8xbf16>, vector<8x8xf32> -> vector<8x8xf32>
    %92 = tpu.reciprocal %88 {approx = true} : vector<8x1xf32> -> vector<8x1xf32>
    %93 = vector.broadcast %92 : vector<8x1xf32> to vector<8x8xf32>
    %94 = arith.mulf %91, %93 : vector<8x8xf32>
    %95 = arith.truncf %94 : vector<8x8xf32> to vector<8x8xbf16>
    %96 = vector.extract_strided_slice %38 {offsets = [0, 16], sizes = [8, 8], strides = [1, 1]} : vector<8x32xbf16> to vector<8x8xbf16>
    %97 = vector.extract_strided_slice %40 {offsets = [0, 16], sizes = [8, 8], strides = [1, 1]} : vector<8x32xbf16> to vector<8x8xbf16>
    %cst_34 = arith.constant dense<0.000000e+00> : vector<8x8xf32>
    %98 = tpu.matmul %96, %97, %cst_34 {dimension_numbers = #tpu.dot_dimension_numbers<[1], [1], [0], [0], [0, 0, 1, 0], [], []>} : vector<8x8xbf16>, vector<8x8xbf16>, vector<8x8xf32> -> vector<8x8xf32>
    %cst_35 = arith.constant 0.353553385 : f32
    %99 = vector.broadcast %cst_35 : f32 to vector<8x8xf32>
    %100 = arith.mulf %98, %99 : vector<8x8xf32>
    %cst_36 = arith.constant -1.000000e+09 : f32
    %101 = vector.broadcast %cst_36 : f32 to vector<8x8xf32>
    %102 = arith.select %52, %100, %101 : vector<8x8xi1>, vector<8x8xf32>
    %cst_37 = arith.constant dense<0xFF800000> : vector<8xf32>
    %103 = vector.multi_reduction <maximumf>, %102, %cst_37 [1] : vector<8x8xf32> to vector<8xf32>
    %104 = vector.shape_cast %103 : vector<8xf32> to vector<8x1xf32>
    %105 = vector.broadcast %104 : vector<8x1xf32> to vector<8x8xf32>
    %106 = arith.subf %102, %105 : vector<8x8xf32>
    %107 = math.exp %106 : vector<8x8xf32>
    %cst_38 = arith.constant dense<0.000000e+00> : vector<8xf32>
    %108 = vector.multi_reduction <add>, %107, %cst_38 [1] : vector<8x8xf32> to vector<8xf32>
    %109 = vector.shape_cast %108 : vector<8xf32> to vector<8x1xf32>
    %110 = arith.truncf %107 : vector<8x8xf32> to vector<8x8xbf16>
    %111 = vector.extract_strided_slice %41 {offsets = [0, 16], sizes = [8, 8], strides = [1, 1]} : vector<8x32xbf16> to vector<8x8xbf16>
    %cst_39 = arith.constant dense<0.000000e+00> : vector<8x8xf32>
    %112 = tpu.matmul %110, %111, %cst_39 {dimension_numbers = #tpu.dot_dimension_numbers<[1], [0], [0], [1], [0, 0, 1, 1], [], []>} : vector<8x8xbf16>, vector<8x8xbf16>, vector<8x8xf32> -> vector<8x8xf32>
    %113 = tpu.reciprocal %109 {approx = true} : vector<8x1xf32> -> vector<8x1xf32>
    %114 = vector.broadcast %113 : vector<8x1xf32> to vector<8x8xf32>
    %115 = arith.mulf %112, %114 : vector<8x8xf32>
    %116 = arith.truncf %115 : vector<8x8xf32> to vector<8x8xbf16>
    %117 = vector.extract_strided_slice %38 {offsets = [0, 24], sizes = [8, 8], strides = [1, 1]} : vector<8x32xbf16> to vector<8x8xbf16>
    %118 = vector.extract_strided_slice %40 {offsets = [0, 24], sizes = [8, 8], strides = [1, 1]} : vector<8x32xbf16> to vector<8x8xbf16>
    %cst_40 = arith.constant dense<0.000000e+00> : vector<8x8xf32>
    %119 = tpu.matmul %117, %118, %cst_40 {dimension_numbers = #tpu.dot_dimension_numbers<[1], [1], [0], [0], [0, 0, 1, 0], [], []>} : vector<8x8xbf16>, vector<8x8xbf16>, vector<8x8xf32> -> vector<8x8xf32>
    %cst_41 = arith.constant 0.353553385 : f32
    %120 = vector.broadcast %cst_41 : f32 to vector<8x8xf32>
    %121 = arith.mulf %119, %120 : vector<8x8xf32>
    %cst_42 = arith.constant -1.000000e+09 : f32
    %122 = vector.broadcast %cst_42 : f32 to vector<8x8xf32>
    %123 = arith.select %52, %121, %122 : vector<8x8xi1>, vector<8x8xf32>
    %cst_43 = arith.constant dense<0xFF800000> : vector<8xf32>
    %124 = vector.multi_reduction <maximumf>, %123, %cst_43 [1] : vector<8x8xf32> to vector<8xf32>
    %125 = vector.shape_cast %124 : vector<8xf32> to vector<8x1xf32>
    %126 = vector.broadcast %125 : vector<8x1xf32> to vector<8x8xf32>
    %127 = arith.subf %123, %126 : vector<8x8xf32>
    %128 = math.exp %127 : vector<8x8xf32>
    %cst_44 = arith.constant dense<0.000000e+00> : vector<8xf32>
    %129 = vector.multi_reduction <add>, %128, %cst_44 [1] : vector<8x8xf32> to vector<8xf32>
    %130 = vector.shape_cast %129 : vector<8xf32> to vector<8x1xf32>
    %131 = arith.truncf %128 : vector<8x8xf32> to vector<8x8xbf16>
    %132 = vector.extract_strided_slice %41 {offsets = [0, 24], sizes = [8, 8], strides = [1, 1]} : vector<8x32xbf16> to vector<8x8xbf16>
    %cst_45 = arith.constant dense<0.000000e+00> : vector<8x8xf32>
    %133 = tpu.matmul %131, %132, %cst_45 {dimension_numbers = #tpu.dot_dimension_numbers<[1], [0], [0], [1], [0, 0, 1, 1], [], []>} : vector<8x8xbf16>, vector<8x8xbf16>, vector<8x8xf32> -> vector<8x8xf32>
    %134 = tpu.reciprocal %130 {approx = true} : vector<8x1xf32> -> vector<8x1xf32>
    %135 = vector.broadcast %134 : vector<8x1xf32> to vector<8x8xf32>
    %136 = arith.mulf %133, %135 : vector<8x8xf32>
    %137 = arith.truncf %136 : vector<8x8xf32> to vector<8x8xbf16>
    %138 = tpu.concatenate %74, %95, %116, %137 in 1 : vector<8x8xbf16>, vector<8x8xbf16>, vector<8x8xbf16>, vector<8x8xbf16> -> vector<8x32xbf16>
    %cst_46 = arith.constant dense<0.000000e+00> : vector<8x32xf32>
    %139 = tpu.matmul %138, %53, %cst_46 {dimension_numbers = #tpu.dot_dimension_numbers<[1], [0], [0], [1], [0, 0, 1, 1], [], []>} : vector<8x32xbf16>, vector<32x32xbf16>, vector<8x32xf32> -> vector<8x32xf32>
    %c0_47 = arith.constant 0 : index
    %c0_48 = arith.constant 0 : index
    %140 = vector.load %arg9[%c0_47, %c0_48] : memref<1x32xf32, #tpu.memory_space<vmem>>, vector<1x32xf32>
    %141 = vector.broadcast %140 : vector<1x32xf32> to vector<8x32xf32>
    %142 = arith.addf %139, %141 : vector<8x32xf32>
    %143 = arith.addf %7, %142 : vector<8x32xf32>
    %c0_49 = arith.constant 0 : index
    %c0_50 = arith.constant 0 : index
    %c0_51 = arith.constant 0 : index
    %144 = vector.load %arg10[%c0_49, %c0_50, %c0_51] : memref<1x8x32xf32, #tpu.memory_space<vmem>>, vector<1x8x32xf32>
    %145 = vector.shape_cast %144 : vector<1x8x32xf32> to vector<8x32xf32>
    %146 = vector.shape_cast %143 : vector<8x32xf32> to vector<1x8x32xf32>
    tpu.vector_store %arg10[%c0_49, %c0_50, %c0_51], %146 {strides = array<i32>} : memref<1x8x32xf32, #tpu.memory_space<vmem>>, vector<1x8x32xf32>,
    return
  }
  func.func @transform_0(%arg0: i32, %arg1: i32) -> (i32, i32, i32) {
    %c0_i32 = arith.constant 0 : i32
    %c0_i32_0 = arith.constant 0 : i32
    %c0_i32_1 = arith.constant 0 : i32
    return %arg0, %c0_i32, %c0_i32_0 : i32, i32, i32
  }
  func.func @transform_1(%arg0: i32, %arg1: i32) -> (i32, i32, i32) {
    %c0_i32 = arith.constant 0 : i32
    %c0_i32_0 = arith.constant 0 : i32
    %c0_i32_1 = arith.constant 0 : i32
    return %arg0, %c0_i32, %c0_i32_0 : i32, i32, i32
  }
  func.func @transform_2(%arg0: i32, %arg1: i32) -> (i32, i32) {
    %c0_i32 = arith.constant 0 : i32
    %c0_i32_0 = arith.constant 0 : i32
    %c0_i32_1 = arith.constant 0 : i32
    return %c0_i32, %c0_i32_0 : i32, i32
  }
  func.func @transform_3(%arg0: i32, %arg1: i32) -> (i32, i32) {
    %c0_i32 = arith.constant 0 : i32
    %c0_i32_0 = arith.constant 0 : i32
    %c0_i32_1 = arith.constant 0 : i32
    return %c0_i32, %c0_i32_0 : i32, i32
  }
  func.func @transform_4(%arg0: i32, %arg1: i32) -> (i32, i32) {
    %c0_i32 = arith.constant 0 : i32
    %c0_i32_0 = arith.constant 0 : i32
    %c0_i32_1 = arith.constant 0 : i32
    return %c0_i32, %c0_i32_0 : i32, i32
  }
  func.func @transform_5(%arg0: i32, %arg1: i32) -> (i32, i32) {
    %c0_i32 = arith.constant 0 : i32
    %c0_i32_0 = arith.constant 0 : i32
    %c0_i32_1 = arith.constant 0 : i32
    return %c0_i32, %c0_i32_0 : i32, i32
  }
  func.func @transform_6(%arg0: i32, %arg1: i32) -> (i32, i32) {
    %c0_i32 = arith.constant 0 : i32
    %c0_i32_0 = arith.constant 0 : i32
    %c0_i32_1 = arith.constant 0 : i32
    return %c0_i32, %c0_i32_0 : i32, i32
  }
  func.func @transform_7(%arg0: i32, %arg1: i32) -> (i32, i32) {
    %c0_i32 = arith.constant 0 : i32
    %c0_i32_0 = arith.constant 0 : i32
    %c0_i32_1 = arith.constant 0 : i32
    return %c0_i32, %c0_i32_0 : i32, i32
  }
  func.func @transform_8(%arg0: i32, %arg1: i32) -> (i32, i32, i32) {
    %c0_i32 = arith.constant 0 : i32
    %c0_i32_0 = arith.constant 0 : i32
    return %arg0, %arg1, %c0_i32 : i32, i32, i32
  }
}

module attributes {stable_mosaic.version = 11 : i64} {
  func.func @_cross_attn_kernel(%arg0: i32, %arg1: i32, %arg2: memref<1x8x32xf32, #tpu.memory_space<vmem>>, %arg3: memref<1x8x32xf32, #tpu.memory_space<vmem>>, %arg4: memref<1x8x32xf32, #tpu.memory_space<vmem>>, %arg5: memref<1x1x8xi8, #tpu.memory_space<vmem>>, %arg6: memref<1x32xf32, #tpu.memory_space<vmem>>, %arg7: memref<1x32xf32, #tpu.memory_space<vmem>>, %arg8: memref<32x64xbf16, #tpu.memory_space<vmem>>, %arg9: memref<1x64xf32, #tpu.memory_space<vmem>>, %arg10: memref<32x64xbf16, #tpu.memory_space<vmem>>, %arg11: memref<1x64xf32, #tpu.memory_space<vmem>>, %arg12: memref<32x64xbf16, #tpu.memory_space<vmem>>, %arg13: memref<1x64xf32, #tpu.memory_space<vmem>>, %arg14: memref<32x32xbf16, #tpu.memory_space<vmem>>, %arg15: memref<1x32xf32, #tpu.memory_space<vmem>>, %arg16: memref<32x32xbf16, #tpu.memory_space<vmem>>, %arg17: memref<1x32xf32, #tpu.memory_space<vmem>>, %arg18: memref<1x8x32xf32, #tpu.memory_space<vmem>>, %arg19: memref<1x4x8x8xbf16, #tpu.memory_space<vmem>>, %arg20: memref<8x64xbf16, #tpu.memory_space<vmem>>, %arg21: memref<8x64xbf16, #tpu.memory_space<vmem>>) attributes {dimension_semantics = [#tpu.dimension_semantics<parallel>, #tpu.dimension_semantics<arbitrary>], iteration_bounds = array<i64: 2, 1>, scalar_prefetch = 0 : i64, scratch_operands = 2 : i64, tpu.core_type = #tpu.core_type<tc>, window_params = [{transform_indices = @transform_0, window_bounds = array<i64: 1, 8, 32>}, {transform_indices = @transform_1, window_bounds = array<i64: 1, 8, 32>}, {transform_indices = @transform_2, window_bounds = array<i64: 1, 8, 32>}, {transform_indices = @transform_3, window_bounds = array<i64: 1, 1, 8>}, {pipeline_mode = #tpu.pipeline_mode<synchronous>, transform_indices = @transform_4, window_bounds = array<i64: 1, 32>}, {pipeline_mode = #tpu.pipeline_mode<synchronous>, transform_indices = @transform_5, window_bounds = array<i64: 1, 32>}, {pipeline_mode = #tpu.pipeline_mode<synchronous>, transform_indices = @transform_6, window_bounds = array<i64: 32, 64>}, {pipeline_mode = #tpu.pipeline_mode<synchronous>, transform_indices = @transform_7, window_bounds = array<i64: 1, 64>}, {pipeline_mode = #tpu.pipeline_mode<synchronous>, transform_indices = @transform_8, window_bounds = array<i64: 32, 64>}, {pipeline_mode = #tpu.pipeline_mode<synchronous>, transform_indices = @transform_9, window_bounds = array<i64: 1, 64>}, {pipeline_mode = #tpu.pipeline_mode<synchronous>, transform_indices = @transform_10, window_bounds = array<i64: 32, 64>}, {pipeline_mode = #tpu.pipeline_mode<synchronous>, transform_indices = @transform_11, window_bounds = array<i64: 1, 64>}, {pipeline_mode = #tpu.pipeline_mode<synchronous>, transform_indices = @transform_12, window_bounds = array<i64: 32, 32>}, {pipeline_mode = #tpu.pipeline_mode<synchronous>, transform_indices = @transform_13, window_bounds = array<i64: 1, 32>}, {pipeline_mode = #tpu.pipeline_mode<synchronous>, transform_indices = @transform_14, window_bounds = array<i64: 32, 32>}, {pipeline_mode = #tpu.pipeline_mode<synchronous>, transform_indices = @transform_15, window_bounds = array<i64: 1, 32>}, {transform_indices = @transform_16, window_bounds = array<i64: 1, 8, 32>}, {transform_indices = @transform_17, window_bounds = array<i64: 1, 4, 8, 8>}]} {
    %c0 = arith.constant 0 : index
    %c0_0 = arith.constant 0 : index
    %c0_1 = arith.constant 0 : index
    %0 = vector.load %arg2[%c0, %c0_0, %c0_1] : memref<1x8x32xf32, #tpu.memory_space<vmem>>, vector<1x8x32xf32>
    %1 = vector.shape_cast %0 : vector<1x8x32xf32> to vector<8x32xf32>
    %c0_i32 = arith.constant 0 : i32
    %2 = arith.cmpi eq, %arg1, %c0_i32 : i32
    %3 = arith.extui %2 : i1 to i32
    %c0_i32_2 = arith.constant 0 : i32
    %4 = arith.cmpi ne, %3, %c0_i32_2 : i32
    scf.if %4 {
      %c0_98 = arith.constant 0 : index
      %c0_99 = arith.constant 0 : index
      %c0_100 = arith.constant 0 : index
      %275 = vector.load %arg3[%c0_98, %c0_99, %c0_100] : memref<1x8x32xf32, #tpu.memory_space<vmem>>, vector<1x8x32xf32>
      %276 = vector.shape_cast %275 : vector<1x8x32xf32> to vector<8x32xf32>
      %277 = arith.truncf %276 : vector<8x32xf32> to vector<8x32xbf16>
      %c0_101 = arith.constant 0 : index
      %c0_102 = arith.constant 0 : index
      %278 = vector.load %arg10[%c0_101, %c0_102] : memref<32x64xbf16, #tpu.memory_space<vmem>>, vector<32x64xbf16>
      %cst_103 = arith.constant dense<0.000000e+00> : vector<8x64xf32>
      %279 = tpu.matmul %277, %278, %cst_103 {dimension_numbers = #tpu.dot_dimension_numbers<[1], [0], [0], [1], [0, 0, 1, 1], [], []>} : vector<8x32xbf16>, vector<32x64xbf16>, vector<8x64xf32> -> vector<8x64xf32>
      %c0_104 = arith.constant 0 : index
      %c0_105 = arith.constant 0 : index
      %280 = vector.load %arg11[%c0_104, %c0_105] : memref<1x64xf32, #tpu.memory_space<vmem>>, vector<1x64xf32>
      %281 = vector.broadcast %280 : vector<1x64xf32> to vector<8x64xf32>
      %282 = arith.addf %279, %281 : vector<8x64xf32>
      %283 = arith.truncf %282 : vector<8x64xf32> to vector<8x64xbf16>
      %c0_106 = arith.constant 0 : index
      %c0_107 = arith.constant 0 : index
      %284 = vector.load %arg20[%c0_106, %c0_107] : memref<8x64xbf16, #tpu.memory_space<vmem>>, vector<8x64xbf16>
      tpu.vector_store %arg20[%c0_106, %c0_107], %283 {strides = array<i32>} : memref<8x64xbf16, #tpu.memory_space<vmem>>, vector<8x64xbf16>,
      %c0_108 = arith.constant 0 : index
      %c0_109 = arith.constant 0 : index
      %c0_110 = arith.constant 0 : index
      %285 = vector.load %arg4[%c0_108, %c0_109, %c0_110] : memref<1x8x32xf32, #tpu.memory_space<vmem>>, vector<1x8x32xf32>
      %286 = vector.shape_cast %285 : vector<1x8x32xf32> to vector<8x32xf32>
      %287 = arith.truncf %286 : vector<8x32xf32> to vector<8x32xbf16>
      %c0_111 = arith.constant 0 : index
      %c0_112 = arith.constant 0 : index
      %288 = vector.load %arg12[%c0_111, %c0_112] : memref<32x64xbf16, #tpu.memory_space<vmem>>, vector<32x64xbf16>
      %cst_113 = arith.constant dense<0.000000e+00> : vector<8x64xf32>
      %289 = tpu.matmul %287, %288, %cst_113 {dimension_numbers = #tpu.dot_dimension_numbers<[1], [0], [0], [1], [0, 0, 1, 1], [], []>} : vector<8x32xbf16>, vector<32x64xbf16>, vector<8x64xf32> -> vector<8x64xf32>
      %c0_114 = arith.constant 0 : index
      %c0_115 = arith.constant 0 : index
      %290 = vector.load %arg13[%c0_114, %c0_115] : memref<1x64xf32, #tpu.memory_space<vmem>>, vector<1x64xf32>
      %291 = vector.broadcast %290 : vector<1x64xf32> to vector<8x64xf32>
      %292 = arith.addf %289, %291 : vector<8x64xf32>
      %293 = arith.truncf %292 : vector<8x64xf32> to vector<8x64xbf16>
      %c0_116 = arith.constant 0 : index
      %c0_117 = arith.constant 0 : index
      %294 = vector.load %arg21[%c0_116, %c0_117] : memref<8x64xbf16, #tpu.memory_space<vmem>>, vector<8x64xbf16>
      tpu.vector_store %arg21[%c0_116, %c0_117], %293 {strides = array<i32>} : memref<8x64xbf16, #tpu.memory_space<vmem>>, vector<8x64xbf16>,
    } else {
    }
    %c0_3 = arith.constant 0 : index
    %c0_4 = arith.constant 0 : index
    %5 = vector.load %arg6[%c0_3, %c0_4] : memref<1x32xf32, #tpu.memory_space<vmem>>, vector<1x32xf32>
    %c0_5 = arith.constant 0 : index
    %c0_6 = arith.constant 0 : index
    %6 = vector.load %arg7[%c0_5, %c0_6] : memref<1x32xf32, #tpu.memory_space<vmem>>, vector<1x32xf32>
    %cst = arith.constant dense<0.000000e+00> : vector<8xf32>
    %7 = vector.multi_reduction <add>, %1, %cst [1] : vector<8x32xf32> to vector<8xf32>
    %8 = vector.shape_cast %7 : vector<8xf32> to vector<8x1xf32>
    %cst_7 = arith.constant 3.200000e+01 : f32
    %9 = vector.broadcast %cst_7 : f32 to vector<8x1xf32>
    %10 = arith.divf %8, %9 : vector<8x1xf32>
    %11 = vector.broadcast %10 : vector<8x1xf32> to vector<8x32xf32>
    %12 = arith.subf %1, %11 : vector<8x32xf32>
    %13 = arith.mulf %12, %12 : vector<8x32xf32>
    %cst_8 = arith.constant dense<0.000000e+00> : vector<8xf32>
    %14 = vector.multi_reduction <add>, %13, %cst_8 [1] : vector<8x32xf32> to vector<8xf32>
    %15 = vector.shape_cast %14 : vector<8xf32> to vector<8x1xf32>
    %cst_9 = arith.constant 3.200000e+01 : f32
    %16 = vector.broadcast %cst_9 : f32 to vector<8x1xf32>
    %17 = arith.divf %15, %16 : vector<8x1xf32>
    %18 = vector.broadcast %10 : vector<8x1xf32> to vector<8x32xf32>
    %19 = arith.subf %1, %18 : vector<8x32xf32>
    %cst_10 = arith.constant 9.99999974E-6 : f32
    %20 = vector.broadcast %cst_10 : f32 to vector<8x1xf32>
    %21 = arith.addf %17, %20 : vector<8x1xf32>
    %22 = math.rsqrt %21 : vector<8x1xf32>
    %23 = vector.broadcast %22 : vector<8x1xf32> to vector<8x32xf32>
    %24 = arith.mulf %19, %23 : vector<8x32xf32>
    %25 = vector.broadcast %5 : vector<1x32xf32> to vector<8x32xf32>
    %26 = arith.mulf %24, %25 : vector<8x32xf32>
    %27 = vector.broadcast %6 : vector<1x32xf32> to vector<8x32xf32>
    %28 = arith.addf %26, %27 : vector<8x32xf32>
    %29 = arith.truncf %28 : vector<8x32xf32> to vector<8x32xbf16>
    %c0_11 = arith.constant 0 : index
    %c0_12 = arith.constant 0 : index
    %30 = vector.load %arg8[%c0_11, %c0_12] : memref<32x64xbf16, #tpu.memory_space<vmem>>, vector<32x64xbf16>
    %cst_13 = arith.constant dense<0.000000e+00> : vector<8x64xf32>
    %31 = tpu.matmul %29, %30, %cst_13 {dimension_numbers = #tpu.dot_dimension_numbers<[1], [0], [0], [1], [0, 0, 1, 1], [], []>} : vector<8x32xbf16>, vector<32x64xbf16>, vector<8x64xf32> -> vector<8x64xf32>
    %c0_14 = arith.constant 0 : index
    %c0_15 = arith.constant 0 : index
    %32 = vector.load %arg9[%c0_14, %c0_15] : memref<1x64xf32, #tpu.memory_space<vmem>>, vector<1x64xf32>
    %33 = vector.broadcast %32 : vector<1x64xf32> to vector<8x64xf32>
    %34 = arith.addf %31, %33 : vector<8x64xf32>
    %35 = arith.truncf %34 : vector<8x64xf32> to vector<8x64xbf16>
    %36 = vector.extract_strided_slice %35 {offsets = [0, 0], sizes = [8, 32], strides = [1, 1]} : vector<8x64xbf16> to vector<8x32xbf16>
    %37 = vector.extract_strided_slice %35 {offsets = [0, 32], sizes = [8, 32], strides = [1, 1]} : vector<8x64xbf16> to vector<8x32xbf16>
    %c0_16 = arith.constant 0 : index
    %c0_17 = arith.constant 0 : index
    %38 = vector.load %arg20[%c0_16, %c0_17] : memref<8x64xbf16, #tpu.memory_space<vmem>>, vector<8x64xbf16>
    %39 = vector.extract_strided_slice %38 {offsets = [0, 0], sizes = [8, 32], strides = [1, 1]} : vector<8x64xbf16> to vector<8x32xbf16>
    %40 = vector.extract_strided_slice %38 {offsets = [0, 32], sizes = [8, 32], strides = [1, 1]} : vector<8x64xbf16> to vector<8x32xbf16>
    %c0_18 = arith.constant 0 : index
    %c0_19 = arith.constant 0 : index
    %41 = vector.load %arg21[%c0_18, %c0_19] : memref<8x64xbf16, #tpu.memory_space<vmem>>, vector<8x64xbf16>
    %42 = vector.extract_strided_slice %41 {offsets = [0, 0], sizes = [8, 32], strides = [1, 1]} : vector<8x64xbf16> to vector<8x32xbf16>
    %43 = vector.extract_strided_slice %41 {offsets = [0, 32], sizes = [8, 32], strides = [1, 1]} : vector<8x64xbf16> to vector<8x32xbf16>
    %c0_20 = arith.constant 0 : index
    %c0_21 = arith.constant 0 : index
    %c0_22 = arith.constant 0 : index
    %44 = vector.load %arg5[%c0_20, %c0_21, %c0_22] : memref<1x1x8xi8, #tpu.memory_space<vmem>>, vector<1x1x8xi8>
    %45 = vector.shape_cast %44 : vector<1x1x8xi8> to vector<1x8xi8>
    %c0_i8 = arith.constant 0 : i8
    %46 = vector.broadcast %c0_i8 : i8 to vector<1x8xi8>
    %47 = arith.cmpi ne, %45, %46 : vector<1x8xi8>
    %c0_23 = arith.constant 0 : index
    %c0_24 = arith.constant 0 : index
    %48 = vector.load %arg14[%c0_23, %c0_24] : memref<32x32xbf16, #tpu.memory_space<vmem>>, vector<32x32xbf16>
    %49 = vector.extract_strided_slice %36 {offsets = [0, 0], sizes = [8, 8], strides = [1, 1]} : vector<8x32xbf16> to vector<8x8xbf16>
    %50 = vector.extract_strided_slice %39 {offsets = [0, 0], sizes = [8, 8], strides = [1, 1]} : vector<8x32xbf16> to vector<8x8xbf16>
    %cst_25 = arith.constant dense<0.000000e+00> : vector<8x8xf32>
    %51 = tpu.matmul %49, %50, %cst_25 {dimension_numbers = #tpu.dot_dimension_numbers<[1], [1], [0], [0], [0, 0, 1, 0], [], []>} : vector<8x8xbf16>, vector<8x8xbf16>, vector<8x8xf32> -> vector<8x8xf32>
    %cst_26 = arith.constant 0.353553385 : f32
    %52 = vector.broadcast %cst_26 : f32 to vector<8x8xf32>
    %53 = arith.mulf %51, %52 : vector<8x8xf32>
    %cst_27 = arith.constant -1.000000e+09 : f32
    %54 = vector.shape_cast %47 : vector<1x8xi1> to vector<1x8xi1>
    %55 = vector.broadcast %54 : vector<1x8xi1> to vector<8x8xi1>
    %56 = vector.broadcast %cst_27 : f32 to vector<8x8xf32>
    %57 = arith.select %55, %53, %56 : vector<8x8xi1>, vector<8x8xf32>
    %cst_28 = arith.constant dense<0xFF800000> : vector<8xf32>
    %58 = vector.multi_reduction <maximumf>, %57, %cst_28 [1] : vector<8x8xf32> to vector<8xf32>
    %59 = vector.shape_cast %58 : vector<8xf32> to vector<8x1xf32>
    %60 = vector.broadcast %59 : vector<8x1xf32> to vector<8x8xf32>
    %61 = arith.subf %57, %60 : vector<8x8xf32>
    %62 = math.exp %61 : vector<8x8xf32>
    %cst_29 = arith.constant dense<0.000000e+00> : vector<8xf32>
    %63 = vector.multi_reduction <add>, %62, %cst_29 [1] : vector<8x8xf32> to vector<8xf32>
    %64 = vector.shape_cast %63 : vector<8xf32> to vector<8x1xf32>
    %65 = arith.truncf %62 : vector<8x8xf32> to vector<8x8xbf16>
    %66 = vector.extract_strided_slice %40 {offsets = [0, 0], sizes = [8, 8], strides = [1, 1]} : vector<8x32xbf16> to vector<8x8xbf16>
    %cst_30 = arith.constant dense<0.000000e+00> : vector<8x8xf32>
    %67 = tpu.matmul %65, %66, %cst_30 {dimension_numbers = #tpu.dot_dimension_numbers<[1], [0], [0], [1], [0, 0, 1, 1], [], []>} : vector<8x8xbf16>, vector<8x8xbf16>, vector<8x8xf32> -> vector<8x8xf32>
    %68 = tpu.reciprocal %64 {approx = true} : vector<8x1xf32> -> vector<8x1xf32>
    %69 = vector.broadcast %68 : vector<8x1xf32> to vector<8x8xf32>
    %70 = arith.mulf %67, %69 : vector<8x8xf32>
    %71 = vector.broadcast %64 : vector<8x1xf32> to vector<8x8xf32>
    %72 = arith.divf %62, %71 : vector<8x8xf32>
    %73 = arith.truncf %72 : vector<8x8xf32> to vector<8x8xbf16>
    %c0_31 = arith.constant 0 : index
    %c0_32 = arith.constant 0 : index
    %c0_33 = arith.constant 0 : index
    %c0_34 = arith.constant 0 : index
    %74 = vector.load %arg19[%c0_31, %c0_32, %c0_33, %c0_34] : memref<1x4x8x8xbf16, #tpu.memory_space<vmem>>, vector<1x1x8x8xbf16>
    %75 = vector.shape_cast %74 : vector<1x1x8x8xbf16> to vector<8x8xbf16>
    %76 = vector.shape_cast %73 : vector<8x8xbf16> to vector<1x1x8x8xbf16>
    tpu.vector_store %arg19[%c0_31, %c0_32, %c0_33, %c0_34], %76 {strides = array<i32>} : memref<1x4x8x8xbf16, #tpu.memory_space<vmem>>, vector<1x1x8x8xbf16>,
    %77 = arith.truncf %70 : vector<8x8xf32> to vector<8x8xbf16>
    %78 = vector.extract_strided_slice %36 {offsets = [0, 8], sizes = [8, 8], strides = [1, 1]} : vector<8x32xbf16> to vector<8x8xbf16>
    %79 = vector.extract_strided_slice %39 {offsets = [0, 8], sizes = [8, 8], strides = [1, 1]} : vector<8x32xbf16> to vector<8x8xbf16>
    %cst_35 = arith.constant dense<0.000000e+00> : vector<8x8xf32>
    %80 = tpu.matmul %78, %79, %cst_35 {dimension_numbers = #tpu.dot_dimension_numbers<[1], [1], [0], [0], [0, 0, 1, 0], [], []>} : vector<8x8xbf16>, vector<8x8xbf16>, vector<8x8xf32> -> vector<8x8xf32>
    %cst_36 = arith.constant 0.353553385 : f32
    %81 = vector.broadcast %cst_36 : f32 to vector<8x8xf32>
    %82 = arith.mulf %80, %81 : vector<8x8xf32>
    %cst_37 = arith.constant -1.000000e+09 : f32
    %83 = vector.shape_cast %47 : vector<1x8xi1> to vector<1x8xi1>
    %84 = vector.broadcast %83 : vector<1x8xi1> to vector<8x8xi1>
    %85 = vector.broadcast %cst_37 : f32 to vector<8x8xf32>
    %86 = arith.select %84, %82, %85 : vector<8x8xi1>, vector<8x8xf32>
    %cst_38 = arith.constant dense<0xFF800000> : vector<8xf32>
    %87 = vector.multi_reduction <maximumf>, %86, %cst_38 [1] : vector<8x8xf32> to vector<8xf32>
    %88 = vector.shape_cast %87 : vector<8xf32> to vector<8x1xf32>
    %89 = vector.broadcast %88 : vector<8x1xf32> to vector<8x8xf32>
    %90 = arith.subf %86, %89 : vector<8x8xf32>
    %91 = math.exp %90 : vector<8x8xf32>
    %cst_39 = arith.constant dense<0.000000e+00> : vector<8xf32>
    %92 = vector.multi_reduction <add>, %91, %cst_39 [1] : vector<8x8xf32> to vector<8xf32>
    %93 = vector.shape_cast %92 : vector<8xf32> to vector<8x1xf32>
    %94 = arith.truncf %91 : vector<8x8xf32> to vector<8x8xbf16>
    %95 = vector.extract_strided_slice %40 {offsets = [0, 8], sizes = [8, 8], strides = [1, 1]} : vector<8x32xbf16> to vector<8x8xbf16>
    %cst_40 = arith.constant dense<0.000000e+00> : vector<8x8xf32>
    %96 = tpu.matmul %94, %95, %cst_40 {dimension_numbers = #tpu.dot_dimension_numbers<[1], [0], [0], [1], [0, 0, 1, 1], [], []>} : vector<8x8xbf16>, vector<8x8xbf16>, vector<8x8xf32> -> vector<8x8xf32>
    %97 = tpu.reciprocal %93 {approx = true} : vector<8x1xf32> -> vector<8x1xf32>
    %98 = vector.broadcast %97 : vector<8x1xf32> to vector<8x8xf32>
    %99 = arith.mulf %96, %98 : vector<8x8xf32>
    %100 = vector.broadcast %93 : vector<8x1xf32> to vector<8x8xf32>
    %101 = arith.divf %91, %100 : vector<8x8xf32>
    %102 = arith.truncf %101 : vector<8x8xf32> to vector<8x8xbf16>
    %c0_41 = arith.constant 0 : index
    %c1 = arith.constant 1 : index
    %c0_42 = arith.constant 0 : index
    %c0_43 = arith.constant 0 : index
    %103 = vector.load %arg19[%c0_41, %c1, %c0_42, %c0_43] : memref<1x4x8x8xbf16, #tpu.memory_space<vmem>>, vector<1x1x8x8xbf16>
    %104 = vector.shape_cast %103 : vector<1x1x8x8xbf16> to vector<8x8xbf16>
    %105 = vector.shape_cast %102 : vector<8x8xbf16> to vector<1x1x8x8xbf16>
    tpu.vector_store %arg19[%c0_41, %c1, %c0_42, %c0_43], %105 {strides = array<i32>} : memref<1x4x8x8xbf16, #tpu.memory_space<vmem>>, vector<1x1x8x8xbf16>,
    %106 = arith.truncf %99 : vector<8x8xf32> to vector<8x8xbf16>
    %107 = vector.extract_strided_slice %36 {offsets = [0, 16], sizes = [8, 8], strides = [1, 1]} : vector<8x32xbf16> to vector<8x8xbf16>
    %108 = vector.extract_strided_slice %39 {offsets = [0, 16], sizes = [8, 8], strides = [1, 1]} : vector<8x32xbf16> to vector<8x8xbf16>
    %cst_44 = arith.constant dense<0.000000e+00> : vector<8x8xf32>
    %109 = tpu.matmul %107, %108, %cst_44 {dimension_numbers = #tpu.dot_dimension_numbers<[1], [1], [0], [0], [0, 0, 1, 0], [], []>} : vector<8x8xbf16>, vector<8x8xbf16>, vector<8x8xf32> -> vector<8x8xf32>
    %cst_45 = arith.constant 0.353553385 : f32
    %110 = vector.broadcast %cst_45 : f32 to vector<8x8xf32>
    %111 = arith.mulf %109, %110 : vector<8x8xf32>
    %cst_46 = arith.constant -1.000000e+09 : f32
    %112 = vector.shape_cast %47 : vector<1x8xi1> to vector<1x8xi1>
    %113 = vector.broadcast %112 : vector<1x8xi1> to vector<8x8xi1>
    %114 = vector.broadcast %cst_46 : f32 to vector<8x8xf32>
    %115 = arith.select %113, %111, %114 : vector<8x8xi1>, vector<8x8xf32>
    %cst_47 = arith.constant dense<0xFF800000> : vector<8xf32>
    %116 = vector.multi_reduction <maximumf>, %115, %cst_47 [1] : vector<8x8xf32> to vector<8xf32>
    %117 = vector.shape_cast %116 : vector<8xf32> to vector<8x1xf32>
    %118 = vector.broadcast %117 : vector<8x1xf32> to vector<8x8xf32>
    %119 = arith.subf %115, %118 : vector<8x8xf32>
    %120 = math.exp %119 : vector<8x8xf32>
    %cst_48 = arith.constant dense<0.000000e+00> : vector<8xf32>
    %121 = vector.multi_reduction <add>, %120, %cst_48 [1] : vector<8x8xf32> to vector<8xf32>
    %122 = vector.shape_cast %121 : vector<8xf32> to vector<8x1xf32>
    %123 = arith.truncf %120 : vector<8x8xf32> to vector<8x8xbf16>
    %124 = vector.extract_strided_slice %40 {offsets = [0, 16], sizes = [8, 8], strides = [1, 1]} : vector<8x32xbf16> to vector<8x8xbf16>
    %cst_49 = arith.constant dense<0.000000e+00> : vector<8x8xf32>
    %125 = tpu.matmul %123, %124, %cst_49 {dimension_numbers = #tpu.dot_dimension_numbers<[1], [0], [0], [1], [0, 0, 1, 1], [], []>} : vector<8x8xbf16>, vector<8x8xbf16>, vector<8x8xf32> -> vector<8x8xf32>
    %126 = tpu.reciprocal %122 {approx = true} : vector<8x1xf32> -> vector<8x1xf32>
    %127 = vector.broadcast %126 : vector<8x1xf32> to vector<8x8xf32>
    %128 = arith.mulf %125, %127 : vector<8x8xf32>
    %129 = vector.broadcast %122 : vector<8x1xf32> to vector<8x8xf32>
    %130 = arith.divf %120, %129 : vector<8x8xf32>
    %131 = arith.truncf %130 : vector<8x8xf32> to vector<8x8xbf16>
    %c0_50 = arith.constant 0 : index
    %c2 = arith.constant 2 : index
    %c0_51 = arith.constant 0 : index
    %c0_52 = arith.constant 0 : index
    %132 = vector.load %arg19[%c0_50, %c2, %c0_51, %c0_52] : memref<1x4x8x8xbf16, #tpu.memory_space<vmem>>, vector<1x1x8x8xbf16>
    %133 = vector.shape_cast %132 : vector<1x1x8x8xbf16> to vector<8x8xbf16>
    %134 = vector.shape_cast %131 : vector<8x8xbf16> to vector<1x1x8x8xbf16>
    tpu.vector_store %arg19[%c0_50, %c2, %c0_51, %c0_52], %134 {strides = array<i32>} : memref<1x4x8x8xbf16, #tpu.memory_space<vmem>>, vector<1x1x8x8xbf16>,
    %135 = arith.truncf %128 : vector<8x8xf32> to vector<8x8xbf16>
    %136 = vector.extract_strided_slice %36 {offsets = [0, 24], sizes = [8, 8], strides = [1, 1]} : vector<8x32xbf16> to vector<8x8xbf16>
    %137 = vector.extract_strided_slice %39 {offsets = [0, 24], sizes = [8, 8], strides = [1, 1]} : vector<8x32xbf16> to vector<8x8xbf16>
    %cst_53 = arith.constant dense<0.000000e+00> : vector<8x8xf32>
    %138 = tpu.matmul %136, %137, %cst_53 {dimension_numbers = #tpu.dot_dimension_numbers<[1], [1], [0], [0], [0, 0, 1, 0], [], []>} : vector<8x8xbf16>, vector<8x8xbf16>, vector<8x8xf32> -> vector<8x8xf32>
    %cst_54 = arith.constant 0.353553385 : f32
    %139 = vector.broadcast %cst_54 : f32 to vector<8x8xf32>
    %140 = arith.mulf %138, %139 : vector<8x8xf32>
    %cst_55 = arith.constant -1.000000e+09 : f32
    %141 = vector.shape_cast %47 : vector<1x8xi1> to vector<1x8xi1>
    %142 = vector.broadcast %141 : vector<1x8xi1> to vector<8x8xi1>
    %143 = vector.broadcast %cst_55 : f32 to vector<8x8xf32>
    %144 = arith.select %142, %140, %143 : vector<8x8xi1>, vector<8x8xf32>
    %cst_56 = arith.constant dense<0xFF800000> : vector<8xf32>
    %145 = vector.multi_reduction <maximumf>, %144, %cst_56 [1] : vector<8x8xf32> to vector<8xf32>
    %146 = vector.shape_cast %145 : vector<8xf32> to vector<8x1xf32>
    %147 = vector.broadcast %146 : vector<8x1xf32> to vector<8x8xf32>
    %148 = arith.subf %144, %147 : vector<8x8xf32>
    %149 = math.exp %148 : vector<8x8xf32>
    %cst_57 = arith.constant dense<0.000000e+00> : vector<8xf32>
    %150 = vector.multi_reduction <add>, %149, %cst_57 [1] : vector<8x8xf32> to vector<8xf32>
    %151 = vector.shape_cast %150 : vector<8xf32> to vector<8x1xf32>
    %152 = arith.truncf %149 : vector<8x8xf32> to vector<8x8xbf16>
    %153 = vector.extract_strided_slice %40 {offsets = [0, 24], sizes = [8, 8], strides = [1, 1]} : vector<8x32xbf16> to vector<8x8xbf16>
    %cst_58 = arith.constant dense<0.000000e+00> : vector<8x8xf32>
    %154 = tpu.matmul %152, %153, %cst_58 {dimension_numbers = #tpu.dot_dimension_numbers<[1], [0], [0], [1], [0, 0, 1, 1], [], []>} : vector<8x8xbf16>, vector<8x8xbf16>, vector<8x8xf32> -> vector<8x8xf32>
    %155 = tpu.reciprocal %151 {approx = true} : vector<8x1xf32> -> vector<8x1xf32>
    %156 = vector.broadcast %155 : vector<8x1xf32> to vector<8x8xf32>
    %157 = arith.mulf %154, %156 : vector<8x8xf32>
    %158 = vector.broadcast %151 : vector<8x1xf32> to vector<8x8xf32>
    %159 = arith.divf %149, %158 : vector<8x8xf32>
    %160 = arith.truncf %159 : vector<8x8xf32> to vector<8x8xbf16>
    %c0_59 = arith.constant 0 : index
    %c3 = arith.constant 3 : index
    %c0_60 = arith.constant 0 : index
    %c0_61 = arith.constant 0 : index
    %161 = vector.load %arg19[%c0_59, %c3, %c0_60, %c0_61] : memref<1x4x8x8xbf16, #tpu.memory_space<vmem>>, vector<1x1x8x8xbf16>
    %162 = vector.shape_cast %161 : vector<1x1x8x8xbf16> to vector<8x8xbf16>
    %163 = vector.shape_cast %160 : vector<8x8xbf16> to vector<1x1x8x8xbf16>
    tpu.vector_store %arg19[%c0_59, %c3, %c0_60, %c0_61], %163 {strides = array<i32>} : memref<1x4x8x8xbf16, #tpu.memory_space<vmem>>, vector<1x1x8x8xbf16>,
    %164 = arith.truncf %157 : vector<8x8xf32> to vector<8x8xbf16>
    %165 = tpu.concatenate %77, %106, %135, %164 in 1 : vector<8x8xbf16>, vector<8x8xbf16>, vector<8x8xbf16>, vector<8x8xbf16> -> vector<8x32xbf16>
    %cst_62 = arith.constant dense<0.000000e+00> : vector<8x32xf32>
    %166 = tpu.matmul %165, %48, %cst_62 {dimension_numbers = #tpu.dot_dimension_numbers<[1], [0], [0], [1], [0, 0, 1, 1], [], []>} : vector<8x32xbf16>, vector<32x32xbf16>, vector<8x32xf32> -> vector<8x32xf32>
    %c0_63 = arith.constant 0 : index
    %c0_64 = arith.constant 0 : index
    %167 = vector.load %arg15[%c0_63, %c0_64] : memref<1x32xf32, #tpu.memory_space<vmem>>, vector<1x32xf32>
    %168 = vector.broadcast %167 : vector<1x32xf32> to vector<8x32xf32>
    %169 = arith.addf %166, %168 : vector<8x32xf32>
    %c0_65 = arith.constant 0 : index
    %c0_66 = arith.constant 0 : index
    %170 = vector.load %arg16[%c0_65, %c0_66] : memref<32x32xbf16, #tpu.memory_space<vmem>>, vector<32x32xbf16>
    %171 = vector.extract_strided_slice %37 {offsets = [0, 0], sizes = [8, 8], strides = [1, 1]} : vector<8x32xbf16> to vector<8x8xbf16>
    %172 = vector.extract_strided_slice %42 {offsets = [0, 0], sizes = [8, 8], strides = [1, 1]} : vector<8x32xbf16> to vector<8x8xbf16>
    %cst_67 = arith.constant dense<0.000000e+00> : vector<8x8xf32>
    %173 = tpu.matmul %171, %172, %cst_67 {dimension_numbers = #tpu.dot_dimension_numbers<[1], [1], [0], [0], [0, 0, 1, 0], [], []>} : vector<8x8xbf16>, vector<8x8xbf16>, vector<8x8xf32> -> vector<8x8xf32>
    %cst_68 = arith.constant 0.353553385 : f32
    %174 = vector.broadcast %cst_68 : f32 to vector<8x8xf32>
    %175 = arith.mulf %173, %174 : vector<8x8xf32>
    %cst_69 = arith.constant -1.000000e+09 : f32
    %176 = vector.shape_cast %47 : vector<1x8xi1> to vector<1x8xi1>
    %177 = vector.broadcast %176 : vector<1x8xi1> to vector<8x8xi1>
    %178 = vector.broadcast %cst_69 : f32 to vector<8x8xf32>
    %179 = arith.select %177, %175, %178 : vector<8x8xi1>, vector<8x8xf32>
    %cst_70 = arith.constant dense<0xFF800000> : vector<8xf32>
    %180 = vector.multi_reduction <maximumf>, %179, %cst_70 [1] : vector<8x8xf32> to vector<8xf32>
    %181 = vector.shape_cast %180 : vector<8xf32> to vector<8x1xf32>
    %182 = vector.broadcast %181 : vector<8x1xf32> to vector<8x8xf32>
    %183 = arith.subf %179, %182 : vector<8x8xf32>
    %184 = math.exp %183 : vector<8x8xf32>
    %cst_71 = arith.constant dense<0.000000e+00> : vector<8xf32>
    %185 = vector.multi_reduction <add>, %184, %cst_71 [1] : vector<8x8xf32> to vector<8xf32>
    %186 = vector.shape_cast %185 : vector<8xf32> to vector<8x1xf32>
    %187 = arith.truncf %184 : vector<8x8xf32> to vector<8x8xbf16>
    %188 = vector.extract_strided_slice %43 {offsets = [0, 0], sizes = [8, 8], strides = [1, 1]} : vector<8x32xbf16> to vector<8x8xbf16>
    %cst_72 = arith.constant dense<0.000000e+00> : vector<8x8xf32>
    %189 = tpu.matmul %187, %188, %cst_72 {dimension_numbers = #tpu.dot_dimension_numbers<[1], [0], [0], [1], [0, 0, 1, 1], [], []>} : vector<8x8xbf16>, vector<8x8xbf16>, vector<8x8xf32> -> vector<8x8xf32>
    %190 = tpu.reciprocal %186 {approx = true} : vector<8x1xf32> -> vector<8x1xf32>
    %191 = vector.broadcast %190 : vector<8x1xf32> to vector<8x8xf32>
    %192 = arith.mulf %189, %191 : vector<8x8xf32>
    %193 = arith.truncf %192 : vector<8x8xf32> to vector<8x8xbf16>
    %194 = vector.extract_strided_slice %37 {offsets = [0, 8], sizes = [8, 8], strides = [1, 1]} : vector<8x32xbf16> to vector<8x8xbf16>
    %195 = vector.extract_strided_slice %42 {offsets = [0, 8], sizes = [8, 8], strides = [1, 1]} : vector<8x32xbf16> to vector<8x8xbf16>
    %cst_73 = arith.constant dense<0.000000e+00> : vector<8x8xf32>
    %196 = tpu.matmul %194, %195, %cst_73 {dimension_numbers = #tpu.dot_dimension_numbers<[1], [1], [0], [0], [0, 0, 1, 0], [], []>} : vector<8x8xbf16>, vector<8x8xbf16>, vector<8x8xf32> -> vector<8x8xf32>
    %cst_74 = arith.constant 0.353553385 : f32
    %197 = vector.broadcast %cst_74 : f32 to vector<8x8xf32>
    %198 = arith.mulf %196, %197 : vector<8x8xf32>
    %cst_75 = arith.constant -1.000000e+09 : f32
    %199 = vector.shape_cast %47 : vector<1x8xi1> to vector<1x8xi1>
    %200 = vector.broadcast %199 : vector<1x8xi1> to vector<8x8xi1>
    %201 = vector.broadcast %cst_75 : f32 to vector<8x8xf32>
    %202 = arith.select %200, %198, %201 : vector<8x8xi1>, vector<8x8xf32>
    %cst_76 = arith.constant dense<0xFF800000> : vector<8xf32>
    %203 = vector.multi_reduction <maximumf>, %202, %cst_76 [1] : vector<8x8xf32> to vector<8xf32>
    %204 = vector.shape_cast %203 : vector<8xf32> to vector<8x1xf32>
    %205 = vector.broadcast %204 : vector<8x1xf32> to vector<8x8xf32>
    %206 = arith.subf %202, %205 : vector<8x8xf32>
    %207 = math.exp %206 : vector<8x8xf32>
    %cst_77 = arith.constant dense<0.000000e+00> : vector<8xf32>
    %208 = vector.multi_reduction <add>, %207, %cst_77 [1] : vector<8x8xf32> to vector<8xf32>
    %209 = vector.shape_cast %208 : vector<8xf32> to vector<8x1xf32>
    %210 = arith.truncf %207 : vector<8x8xf32> to vector<8x8xbf16>
    %211 = vector.extract_strided_slice %43 {offsets = [0, 8], sizes = [8, 8], strides = [1, 1]} : vector<8x32xbf16> to vector<8x8xbf16>
    %cst_78 = arith.constant dense<0.000000e+00> : vector<8x8xf32>
    %212 = tpu.matmul %210, %211, %cst_78 {dimension_numbers = #tpu.dot_dimension_numbers<[1], [0], [0], [1], [0, 0, 1, 1], [], []>} : vector<8x8xbf16>, vector<8x8xbf16>, vector<8x8xf32> -> vector<8x8xf32>
    %213 = tpu.reciprocal %209 {approx = true} : vector<8x1xf32> -> vector<8x1xf32>
    %214 = vector.broadcast %213 : vector<8x1xf32> to vector<8x8xf32>
    %215 = arith.mulf %212, %214 : vector<8x8xf32>
    %216 = arith.truncf %215 : vector<8x8xf32> to vector<8x8xbf16>
    %217 = vector.extract_strided_slice %37 {offsets = [0, 16], sizes = [8, 8], strides = [1, 1]} : vector<8x32xbf16> to vector<8x8xbf16>
    %218 = vector.extract_strided_slice %42 {offsets = [0, 16], sizes = [8, 8], strides = [1, 1]} : vector<8x32xbf16> to vector<8x8xbf16>
    %cst_79 = arith.constant dense<0.000000e+00> : vector<8x8xf32>
    %219 = tpu.matmul %217, %218, %cst_79 {dimension_numbers = #tpu.dot_dimension_numbers<[1], [1], [0], [0], [0, 0, 1, 0], [], []>} : vector<8x8xbf16>, vector<8x8xbf16>, vector<8x8xf32> -> vector<8x8xf32>
    %cst_80 = arith.constant 0.353553385 : f32
    %220 = vector.broadcast %cst_80 : f32 to vector<8x8xf32>
    %221 = arith.mulf %219, %220 : vector<8x8xf32>
    %cst_81 = arith.constant -1.000000e+09 : f32
    %222 = vector.shape_cast %47 : vector<1x8xi1> to vector<1x8xi1>
    %223 = vector.broadcast %222 : vector<1x8xi1> to vector<8x8xi1>
    %224 = vector.broadcast %cst_81 : f32 to vector<8x8xf32>
    %225 = arith.select %223, %221, %224 : vector<8x8xi1>, vector<8x8xf32>
    %cst_82 = arith.constant dense<0xFF800000> : vector<8xf32>
    %226 = vector.multi_reduction <maximumf>, %225, %cst_82 [1] : vector<8x8xf32> to vector<8xf32>
    %227 = vector.shape_cast %226 : vector<8xf32> to vector<8x1xf32>
    %228 = vector.broadcast %227 : vector<8x1xf32> to vector<8x8xf32>
    %229 = arith.subf %225, %228 : vector<8x8xf32>
    %230 = math.exp %229 : vector<8x8xf32>
    %cst_83 = arith.constant dense<0.000000e+00> : vector<8xf32>
    %231 = vector.multi_reduction <add>, %230, %cst_83 [1] : vector<8x8xf32> to vector<8xf32>
    %232 = vector.shape_cast %231 : vector<8xf32> to vector<8x1xf32>
    %233 = arith.truncf %230 : vector<8x8xf32> to vector<8x8xbf16>
    %234 = vector.extract_strided_slice %43 {offsets = [0, 16], sizes = [8, 8], strides = [1, 1]} : vector<8x32xbf16> to vector<8x8xbf16>
    %cst_84 = arith.constant dense<0.000000e+00> : vector<8x8xf32>
    %235 = tpu.matmul %233, %234, %cst_84 {dimension_numbers = #tpu.dot_dimension_numbers<[1], [0], [0], [1], [0, 0, 1, 1], [], []>} : vector<8x8xbf16>, vector<8x8xbf16>, vector<8x8xf32> -> vector<8x8xf32>
    %236 = tpu.reciprocal %232 {approx = true} : vector<8x1xf32> -> vector<8x1xf32>
    %237 = vector.broadcast %236 : vector<8x1xf32> to vector<8x8xf32>
    %238 = arith.mulf %235, %237 : vector<8x8xf32>
    %239 = arith.truncf %238 : vector<8x8xf32> to vector<8x8xbf16>
    %240 = vector.extract_strided_slice %37 {offsets = [0, 24], sizes = [8, 8], strides = [1, 1]} : vector<8x32xbf16> to vector<8x8xbf16>
    %241 = vector.extract_strided_slice %42 {offsets = [0, 24], sizes = [8, 8], strides = [1, 1]} : vector<8x32xbf16> to vector<8x8xbf16>
    %cst_85 = arith.constant dense<0.000000e+00> : vector<8x8xf32>
    %242 = tpu.matmul %240, %241, %cst_85 {dimension_numbers = #tpu.dot_dimension_numbers<[1], [1], [0], [0], [0, 0, 1, 0], [], []>} : vector<8x8xbf16>, vector<8x8xbf16>, vector<8x8xf32> -> vector<8x8xf32>
    %cst_86 = arith.constant 0.353553385 : f32
    %243 = vector.broadcast %cst_86 : f32 to vector<8x8xf32>
    %244 = arith.mulf %242, %243 : vector<8x8xf32>
    %cst_87 = arith.constant -1.000000e+09 : f32
    %245 = vector.shape_cast %47 : vector<1x8xi1> to vector<1x8xi1>
    %246 = vector.broadcast %245 : vector<1x8xi1> to vector<8x8xi1>
    %247 = vector.broadcast %cst_87 : f32 to vector<8x8xf32>
    %248 = arith.select %246, %244, %247 : vector<8x8xi1>, vector<8x8xf32>
    %cst_88 = arith.constant dense<0xFF800000> : vector<8xf32>
    %249 = vector.multi_reduction <maximumf>, %248, %cst_88 [1] : vector<8x8xf32> to vector<8xf32>
    %250 = vector.shape_cast %249 : vector<8xf32> to vector<8x1xf32>
    %251 = vector.broadcast %250 : vector<8x1xf32> to vector<8x8xf32>
    %252 = arith.subf %248, %251 : vector<8x8xf32>
    %253 = math.exp %252 : vector<8x8xf32>
    %cst_89 = arith.constant dense<0.000000e+00> : vector<8xf32>
    %254 = vector.multi_reduction <add>, %253, %cst_89 [1] : vector<8x8xf32> to vector<8xf32>
    %255 = vector.shape_cast %254 : vector<8xf32> to vector<8x1xf32>
    %256 = arith.truncf %253 : vector<8x8xf32> to vector<8x8xbf16>
    %257 = vector.extract_strided_slice %43 {offsets = [0, 24], sizes = [8, 8], strides = [1, 1]} : vector<8x32xbf16> to vector<8x8xbf16>
    %cst_90 = arith.constant dense<0.000000e+00> : vector<8x8xf32>
    %258 = tpu.matmul %256, %257, %cst_90 {dimension_numbers = #tpu.dot_dimension_numbers<[1], [0], [0], [1], [0, 0, 1, 1], [], []>} : vector<8x8xbf16>, vector<8x8xbf16>, vector<8x8xf32> -> vector<8x8xf32>
    %259 = tpu.reciprocal %255 {approx = true} : vector<8x1xf32> -> vector<8x1xf32>
    %260 = vector.broadcast %259 : vector<8x1xf32> to vector<8x8xf32>
    %261 = arith.mulf %258, %260 : vector<8x8xf32>
    %262 = arith.truncf %261 : vector<8x8xf32> to vector<8x8xbf16>
    %263 = tpu.concatenate %193, %216, %239, %262 in 1 : vector<8x8xbf16>, vector<8x8xbf16>, vector<8x8xbf16>, vector<8x8xbf16> -> vector<8x32xbf16>
    %cst_91 = arith.constant dense<0.000000e+00> : vector<8x32xf32>
    %264 = tpu.matmul %263, %170, %cst_91 {dimension_numbers = #tpu.dot_dimension_numbers<[1], [0], [0], [1], [0, 0, 1, 1], [], []>} : vector<8x32xbf16>, vector<32x32xbf16>, vector<8x32xf32> -> vector<8x32xf32>
    %c0_92 = arith.constant 0 : index
    %c0_93 = arith.constant 0 : index
    %265 = vector.load %arg17[%c0_92, %c0_93] : memref<1x32xf32, #tpu.memory_space<vmem>>, vector<1x32xf32>
    %266 = vector.broadcast %265 : vector<1x32xf32> to vector<8x32xf32>
    %267 = arith.addf %264, %266 : vector<8x32xf32>
    %268 = arith.addf %169, %267 : vector<8x32xf32>
    %cst_94 = arith.constant 5.000000e-01 : f32
    %269 = vector.broadcast %cst_94 : f32 to vector<8x32xf32>
    %270 = arith.mulf %269, %268 : vector<8x32xf32>
    %271 = arith.addf %1, %270 : vector<8x32xf32>
    %c0_95 = arith.constant 0 : index
    %c0_96 = arith.constant 0 : index
    %c0_97 = arith.constant 0 : index
    %272 = vector.load %arg18[%c0_95, %c0_96, %c0_97] : memref<1x8x32xf32, #tpu.memory_space<vmem>>, vector<1x8x32xf32>
    %273 = vector.shape_cast %272 : vector<1x8x32xf32> to vector<8x32xf32>
    %274 = vector.shape_cast %271 : vector<8x32xf32> to vector<1x8x32xf32>
    tpu.vector_store %arg18[%c0_95, %c0_96, %c0_97], %274 {strides = array<i32>} : memref<1x8x32xf32, #tpu.memory_space<vmem>>, vector<1x8x32xf32>,
    return
  }
  func.func @transform_0(%arg0: i32, %arg1: i32) -> (i32, i32, i32) {
    %c0_i32 = arith.constant 0 : i32
    %c0_i32_0 = arith.constant 0 : i32
    return %arg0, %arg1, %c0_i32 : i32, i32, i32
  }
  func.func @transform_1(%arg0: i32, %arg1: i32) -> (i32, i32, i32) {
    %c0_i32 = arith.constant 0 : i32
    %c0_i32_0 = arith.constant 0 : i32
    %c0_i32_1 = arith.constant 0 : i32
    return %arg0, %c0_i32, %c0_i32_0 : i32, i32, i32
  }
  func.func @transform_2(%arg0: i32, %arg1: i32) -> (i32, i32, i32) {
    %c0_i32 = arith.constant 0 : i32
    %c0_i32_0 = arith.constant 0 : i32
    %c0_i32_1 = arith.constant 0 : i32
    return %arg0, %c0_i32, %c0_i32_0 : i32, i32, i32
  }
  func.func @transform_3(%arg0: i32, %arg1: i32) -> (i32, i32, i32) {
    %c0_i32 = arith.constant 0 : i32
    %c0_i32_0 = arith.constant 0 : i32
    %c0_i32_1 = arith.constant 0 : i32
    return %arg0, %c0_i32, %c0_i32_0 : i32, i32, i32
  }
  func.func @transform_4(%arg0: i32, %arg1: i32) -> (i32, i32) {
    %c0_i32 = arith.constant 0 : i32
    %c0_i32_0 = arith.constant 0 : i32
    %c0_i32_1 = arith.constant 0 : i32
    return %c0_i32, %c0_i32_0 : i32, i32
  }
  func.func @transform_5(%arg0: i32, %arg1: i32) -> (i32, i32) {
    %c0_i32 = arith.constant 0 : i32
    %c0_i32_0 = arith.constant 0 : i32
    %c0_i32_1 = arith.constant 0 : i32
    return %c0_i32, %c0_i32_0 : i32, i32
  }
  func.func @transform_6(%arg0: i32, %arg1: i32) -> (i32, i32) {
    %c0_i32 = arith.constant 0 : i32
    %c0_i32_0 = arith.constant 0 : i32
    %c0_i32_1 = arith.constant 0 : i32
    return %c0_i32, %c0_i32_0 : i32, i32
  }
  func.func @transform_7(%arg0: i32, %arg1: i32) -> (i32, i32) {
    %c0_i32 = arith.constant 0 : i32
    %c0_i32_0 = arith.constant 0 : i32
    %c0_i32_1 = arith.constant 0 : i32
    return %c0_i32, %c0_i32_0 : i32, i32
  }
  func.func @transform_8(%arg0: i32, %arg1: i32) -> (i32, i32) {
    %c0_i32 = arith.constant 0 : i32
    %c0_i32_0 = arith.constant 0 : i32
    %c0_i32_1 = arith.constant 0 : i32
    return %c0_i32, %c0_i32_0 : i32, i32
  }
  func.func @transform_9(%arg0: i32, %arg1: i32) -> (i32, i32) {
    %c0_i32 = arith.constant 0 : i32
    %c0_i32_0 = arith.constant 0 : i32
    %c0_i32_1 = arith.constant 0 : i32
    return %c0_i32, %c0_i32_0 : i32, i32
  }
  func.func @transform_10(%arg0: i32, %arg1: i32) -> (i32, i32) {
    %c0_i32 = arith.constant 0 : i32
    %c0_i32_0 = arith.constant 0 : i32
    %c0_i32_1 = arith.constant 0 : i32
    return %c0_i32, %c0_i32_0 : i32, i32
  }
  func.func @transform_11(%arg0: i32, %arg1: i32) -> (i32, i32) {
    %c0_i32 = arith.constant 0 : i32
    %c0_i32_0 = arith.constant 0 : i32
    %c0_i32_1 = arith.constant 0 : i32
    return %c0_i32, %c0_i32_0 : i32, i32
  }
  func.func @transform_12(%arg0: i32, %arg1: i32) -> (i32, i32) {
    %c0_i32 = arith.constant 0 : i32
    %c0_i32_0 = arith.constant 0 : i32
    %c0_i32_1 = arith.constant 0 : i32
    return %c0_i32, %c0_i32_0 : i32, i32
  }
  func.func @transform_13(%arg0: i32, %arg1: i32) -> (i32, i32) {
    %c0_i32 = arith.constant 0 : i32
    %c0_i32_0 = arith.constant 0 : i32
    %c0_i32_1 = arith.constant 0 : i32
    return %c0_i32, %c0_i32_0 : i32, i32
  }
  func.func @transform_14(%arg0: i32, %arg1: i32) -> (i32, i32) {
    %c0_i32 = arith.constant 0 : i32
    %c0_i32_0 = arith.constant 0 : i32
    %c0_i32_1 = arith.constant 0 : i32
    return %c0_i32, %c0_i32_0 : i32, i32
  }
  func.func @transform_15(%arg0: i32, %arg1: i32) -> (i32, i32) {
    %c0_i32 = arith.constant 0 : i32
    %c0_i32_0 = arith.constant 0 : i32
    %c0_i32_1 = arith.constant 0 : i32
    return %c0_i32, %c0_i32_0 : i32, i32
  }
  func.func @transform_16(%arg0: i32, %arg1: i32) -> (i32, i32, i32) {
    %c0_i32 = arith.constant 0 : i32
    %c0_i32_0 = arith.constant 0 : i32
    return %arg0, %arg1, %c0_i32 : i32, i32, i32
  }
  func.func @transform_17(%arg0: i32, %arg1: i32) -> (i32, i32, i32, i32) {
    %c0_i32 = arith.constant 0 : i32
    %c0_i32_0 = arith.constant 0 : i32
    %c0_i32_1 = arith.constant 0 : i32
    return %arg0, %c0_i32, %arg1, %c0_i32_0 : i32, i32, i32, i32
  }
}

module attributes {stable_mosaic.version = 11 : i64} {
  func.func @_ffn_kernel(%arg0: i32, %arg1: memref<8x32xf32, #tpu.memory_space<vmem>>, %arg2: memref<1x32xf32, #tpu.memory_space<vmem>>, %arg3: memref<1x32xf32, #tpu.memory_space<vmem>>, %arg4: memref<32x64xbf16, #tpu.memory_space<vmem>>, %arg5: memref<1x64xf32, #tpu.memory_space<vmem>>, %arg6: memref<64x32xbf16, #tpu.memory_space<vmem>>, %arg7: memref<1x32xf32, #tpu.memory_space<vmem>>, %arg8: memref<8x32xf32, #tpu.memory_space<vmem>>) attributes {dimension_semantics = [#tpu.dimension_semantics<parallel>], iteration_bounds = array<i64: 2>, scalar_prefetch = 0 : i64, scratch_operands = 0 : i64, tpu.core_type = #tpu.core_type<tc>, window_params = [{transform_indices = @transform_0, window_bounds = array<i64: 8, 32>}, {pipeline_mode = #tpu.pipeline_mode<synchronous>, transform_indices = @transform_1, window_bounds = array<i64: 1, 32>}, {pipeline_mode = #tpu.pipeline_mode<synchronous>, transform_indices = @transform_2, window_bounds = array<i64: 1, 32>}, {pipeline_mode = #tpu.pipeline_mode<synchronous>, transform_indices = @transform_3, window_bounds = array<i64: 32, 64>}, {pipeline_mode = #tpu.pipeline_mode<synchronous>, transform_indices = @transform_4, window_bounds = array<i64: 1, 64>}, {pipeline_mode = #tpu.pipeline_mode<synchronous>, transform_indices = @transform_5, window_bounds = array<i64: 64, 32>}, {pipeline_mode = #tpu.pipeline_mode<synchronous>, transform_indices = @transform_6, window_bounds = array<i64: 1, 32>}, {transform_indices = @transform_7, window_bounds = array<i64: 8, 32>}]} {
    %c0 = arith.constant 0 : index
    %c0_0 = arith.constant 0 : index
    %0 = vector.load %arg1[%c0, %c0_0] : memref<8x32xf32, #tpu.memory_space<vmem>>, vector<8x32xf32>
    %c0_1 = arith.constant 0 : index
    %c0_2 = arith.constant 0 : index
    %1 = vector.load %arg2[%c0_1, %c0_2] : memref<1x32xf32, #tpu.memory_space<vmem>>, vector<1x32xf32>
    %c0_3 = arith.constant 0 : index
    %c0_4 = arith.constant 0 : index
    %2 = vector.load %arg3[%c0_3, %c0_4] : memref<1x32xf32, #tpu.memory_space<vmem>>, vector<1x32xf32>
    %cst = arith.constant dense<0.000000e+00> : vector<8xf32>
    %3 = vector.multi_reduction <add>, %0, %cst [1] : vector<8x32xf32> to vector<8xf32>
    %4 = vector.shape_cast %3 : vector<8xf32> to vector<8x1xf32>
    %cst_5 = arith.constant 3.200000e+01 : f32
    %5 = vector.broadcast %cst_5 : f32 to vector<8x1xf32>
    %6 = arith.divf %4, %5 : vector<8x1xf32>
    %7 = vector.broadcast %6 : vector<8x1xf32> to vector<8x32xf32>
    %8 = arith.subf %0, %7 : vector<8x32xf32>
    %9 = arith.mulf %8, %8 : vector<8x32xf32>
    %cst_6 = arith.constant dense<0.000000e+00> : vector<8xf32>
    %10 = vector.multi_reduction <add>, %9, %cst_6 [1] : vector<8x32xf32> to vector<8xf32>
    %11 = vector.shape_cast %10 : vector<8xf32> to vector<8x1xf32>
    %cst_7 = arith.constant 3.200000e+01 : f32
    %12 = vector.broadcast %cst_7 : f32 to vector<8x1xf32>
    %13 = arith.divf %11, %12 : vector<8x1xf32>
    %14 = vector.broadcast %6 : vector<8x1xf32> to vector<8x32xf32>
    %15 = arith.subf %0, %14 : vector<8x32xf32>
    %cst_8 = arith.constant 9.99999974E-6 : f32
    %16 = vector.broadcast %cst_8 : f32 to vector<8x1xf32>
    %17 = arith.addf %13, %16 : vector<8x1xf32>
    %18 = math.rsqrt %17 : vector<8x1xf32>
    %19 = vector.broadcast %18 : vector<8x1xf32> to vector<8x32xf32>
    %20 = arith.mulf %15, %19 : vector<8x32xf32>
    %21 = vector.broadcast %1 : vector<1x32xf32> to vector<8x32xf32>
    %22 = arith.mulf %20, %21 : vector<8x32xf32>
    %23 = vector.broadcast %2 : vector<1x32xf32> to vector<8x32xf32>
    %24 = arith.addf %22, %23 : vector<8x32xf32>
    %25 = arith.truncf %24 : vector<8x32xf32> to vector<8x32xbf16>
    %c0_9 = arith.constant 0 : index
    %c0_10 = arith.constant 0 : index
    %26 = vector.load %arg4[%c0_9, %c0_10] : memref<32x64xbf16, #tpu.memory_space<vmem>>, vector<32x64xbf16>
    %cst_11 = arith.constant dense<0.000000e+00> : vector<8x64xf32>
    %27 = tpu.matmul %25, %26, %cst_11 {dimension_numbers = #tpu.dot_dimension_numbers<[1], [0], [0], [1], [0, 0, 1, 1], [], []>} : vector<8x32xbf16>, vector<32x64xbf16>, vector<8x64xf32> -> vector<8x64xf32>
    %c0_12 = arith.constant 0 : index
    %c0_13 = arith.constant 0 : index
    %28 = vector.load %arg5[%c0_12, %c0_13] : memref<1x64xf32, #tpu.memory_space<vmem>>, vector<1x64xf32>
    %29 = vector.broadcast %28 : vector<1x64xf32> to vector<8x64xf32>
    %30 = arith.addf %27, %29 : vector<8x64xf32>
    %cst_14 = arith.constant 0.000000e+00 : f32
    %31 = vector.broadcast %cst_14 : f32 to vector<8x64xf32>
    %32 = arith.maximumf %30, %31 : vector<8x64xf32>
    %33 = arith.truncf %32 : vector<8x64xf32> to vector<8x64xbf16>
    %c0_15 = arith.constant 0 : index
    %c0_16 = arith.constant 0 : index
    %34 = vector.load %arg6[%c0_15, %c0_16] : memref<64x32xbf16, #tpu.memory_space<vmem>>, vector<64x32xbf16>
    %cst_17 = arith.constant dense<0.000000e+00> : vector<8x32xf32>
    %35 = tpu.matmul %33, %34, %cst_17 {dimension_numbers = #tpu.dot_dimension_numbers<[1], [0], [0], [1], [0, 0, 1, 1], [], []>} : vector<8x64xbf16>, vector<64x32xbf16>, vector<8x32xf32> -> vector<8x32xf32>
    %c0_18 = arith.constant 0 : index
    %c0_19 = arith.constant 0 : index
    %36 = vector.load %arg7[%c0_18, %c0_19] : memref<1x32xf32, #tpu.memory_space<vmem>>, vector<1x32xf32>
    %37 = vector.broadcast %36 : vector<1x32xf32> to vector<8x32xf32>
    %38 = arith.addf %35, %37 : vector<8x32xf32>
    %39 = arith.addf %0, %38 : vector<8x32xf32>
    %c0_20 = arith.constant 0 : index
    %c0_21 = arith.constant 0 : index
    %40 = vector.load %arg8[%c0_20, %c0_21] : memref<8x32xf32, #tpu.memory_space<vmem>>, vector<8x32xf32>
    tpu.vector_store %arg8[%c0_20, %c0_21], %39 {strides = array<i32>} : memref<8x32xf32, #tpu.memory_space<vmem>>, vector<8x32xf32>,
    return
  }
  func.func @transform_0(%arg0: i32) -> (i32, i32) {
    %c0_i32 = arith.constant 0 : i32
    %c0_i32_0 = arith.constant 0 : i32
    return %arg0, %c0_i32 : i32, i32
  }
  func.func @transform_1(%arg0: i32) -> (i32, i32) {
    %c0_i32 = arith.constant 0 : i32
    %c0_i32_0 = arith.constant 0 : i32
    %c0_i32_1 = arith.constant 0 : i32
    return %c0_i32, %c0_i32_0 : i32, i32
  }
  func.func @transform_2(%arg0: i32) -> (i32, i32) {
    %c0_i32 = arith.constant 0 : i32
    %c0_i32_0 = arith.constant 0 : i32
    %c0_i32_1 = arith.constant 0 : i32
    return %c0_i32, %c0_i32_0 : i32, i32
  }
  func.func @transform_3(%arg0: i32) -> (i32, i32) {
    %c0_i32 = arith.constant 0 : i32
    %c0_i32_0 = arith.constant 0 : i32
    %c0_i32_1 = arith.constant 0 : i32
    return %c0_i32, %c0_i32_0 : i32, i32
  }
  func.func @transform_4(%arg0: i32) -> (i32, i32) {
    %c0_i32 = arith.constant 0 : i32
    %c0_i32_0 = arith.constant 0 : i32
    %c0_i32_1 = arith.constant 0 : i32
    return %c0_i32, %c0_i32_0 : i32, i32
  }
  func.func @transform_5(%arg0: i32) -> (i32, i32) {
    %c0_i32 = arith.constant 0 : i32
    %c0_i32_0 = arith.constant 0 : i32
    %c0_i32_1 = arith.constant 0 : i32
    return %c0_i32, %c0_i32_0 : i32, i32
  }
  func.func @transform_6(%arg0: i32) -> (i32, i32) {
    %c0_i32 = arith.constant 0 : i32
    %c0_i32_0 = arith.constant 0 : i32
    %c0_i32_1 = arith.constant 0 : i32
    return %c0_i32, %c0_i32_0 : i32, i32
  }
  func.func @transform_7(%arg0: i32) -> (i32, i32) {
    %c0_i32 = arith.constant 0 : i32
    %c0_i32_0 = arith.constant 0 : i32
    return %arg0, %c0_i32 : i32, i32
  }
}

</mosaic_0001>

<llo_original>
// kernel: decoder.8
$region0: #{decoder.8}
  #allocation0 [shape = 'u32[]', space=smem, size = 0x4, offset = 0x4, fixed_abs, tag = 'smem constant byte address 0x4 - core index']
  #allocation1 [shape = 'u32[72,128]{1,0:T(1,128)}', space=vmem, size = 0x9000, scoped, tag = 'internal scratch']
  %s0 = inlined_call_operand.vmem [shape: f32[16,32], index: 0, kind: input, shape index: {}]
  %s1 = inlined_call_operand.vmem [shape: f32[1,32], index: 1, kind: input, shape index: {}]
  %s2 = inlined_call_operand.vmem [shape: f32[1,32], index: 2, kind: input, shape index: {}]
  %s3 = inlined_call_operand.vmem [shape: bf16[32,64], index: 3, kind: input, shape index: {}]
  %s4 = inlined_call_operand.vmem [shape: f32[1,64], index: 4, kind: input, shape index: {}]
  %s5 = inlined_call_operand.vmem [shape: bf16[64,32], index: 5, kind: input, shape index: {}]
  %s6 = inlined_call_operand.vmem [shape: f32[1,32], index: 6, kind: input, shape index: {}]
  %s7 = inlined_call_operand.vmem [shape: f32[16,32], index: 7, kind: output, shape index: {}]
  %s8 = sld [smem:[#allocation0]]
  $region61: #{decoder.8} parent=0
    _
  %s10 = ssub.s32 1, %s8
  %s11 = scalar_select 0, %s10, %s8
  loop: start=0, step=1, limit=4
  $region2: #{decoder.8} parent=0 // loop_pre_header
    _
  $region3: #{decoder.8} parent=0 // loop_header
    %s13 = sphi 0, %s17
    %p14 = scmp.ge.s32.totalorder %s13, 4
    %s23 = sphi 0, %s25
    %s26 = sphi 0, %s23
    %s27 = sphi 0, %s26
    %s43 = sphi 0, %s27
    %s47 = sphi 0, %s47
    %s49 = sphi 0, %s47
    %s50 = sphi 0, %s49
    %s64 = sphi 0, %s50
    %s68 = sphi 0, %s68
    %s70 = sphi 0, %s68
    %s71 = sphi 0, %s70
    %s85 = sphi 0, %s71
    %s89 = sphi 0, %s89
    %s91 = sphi 0, %s89
    %s92 = sphi 0, %s91
    %s106 = sphi 0, %s92
    %s110 = sphi 0, %s110
    %s112 = sphi 0, %s110
    %s113 = sphi 0, %s112
    %s127 = sphi 0, %s113
    %s131 = sphi 0, %s131
    %s133 = sphi 0, %s131
    %s134 = sphi 0, %s133
    %s148 = sphi 0, %s134
    %s152 = sphi 0, %s152
    %s154 = sphi 0, %s152
    %s155 = sphi 0, %s154
    %s169 = sphi 0, %s155
    %s175 = sphi 0, %s177
    %s178 = sphi 0, %s175
    %s179 = sphi 0, %s178
    %s195 = sphi 0, %s179
  $region4: #{decoder.8} parent=0 // loop_header_branch
    %16 = sbr.rel (%p14) target = $region8
  $region5: #{decoder.8} parent=0 // loop_body
    %s18 = ssub.s32 %s13, 1
    %s19 = ssub.s32 %s13, 2
    %s20 = sadd.s32 %s13, 1
    %s21 = ssub.s32 %s13, %s20
    %p22 = scmp.eq.s32.totalorder %s21, 0
    %s24 = sadd.s32 %s23, 1
    %s25 = scalar_select %p22, %s23, %s24
    %p28 = pneg %p22
    %p29 = scmp.eq.s32.totalorder %s13, 1
    %p30 = por %p28, %p29
    %p31 = scmp.ne.s32.totalorder %s23, %s26
    %p32 = scmp.eq.s32.totalorder %s13, 0
    %p33 = por %p31, %p32
    %p34 = scmp.ne.s32.totalorder %s23, %s26
    %p35 = scmp.eq.s32.totalorder %s18, 1
    %p36 = por %p34, %p35
    %p37 = scmp.ne.s32.totalorder %s26, %s27
    %p38 = scmp.eq.s32.totalorder %s18, 0
    %p39 = por %p37, %p38
    %p40 = scmp.ne.s32.totalorder %s26, %s27
    %p41 = scmp.eq.s32.totalorder %s19, 1
    %p42 = por %p40, %p41
    %p44 = scmp.ne.s32.totalorder %s27, %s43
    %p45 = scmp.eq.s32.totalorder %s19, 0
    %p46 = por %p44, %p45
    %s48 = sadd.s32 %s47, 1
    %p51 = scmp.eq.s32.totalorder %s13, 1
    %p52 = scmp.ne.s32.totalorder %s47, %s49
    %p53 = scmp.eq.s32.totalorder %s13, 0
    %p54 = por %p52, %p53
    %p55 = scmp.ne.s32.totalorder %s47, %s49
    %p56 = scmp.eq.s32.totalorder %s18, 1
    %p57 = por %p55, %p56
    %p58 = scmp.ne.s32.totalorder %s49, %s50
    %p59 = scmp.eq.s32.totalorder %s18, 0
    %p60 = por %p58, %p59
    %p61 = scmp.ne.s32.totalorder %s49, %s50
    %p62 = scmp.eq.s32.totalorder %s19, 1
    %p63 = por %p61, %p62
    %p65 = scmp.ne.s32.totalorder %s50, %s64
    %p66 = scmp.eq.s32.totalorder %s19, 0
    %p67 = por %p65, %p66
    %s69 = sadd.s32 %s68, 1
    %p72 = scmp.eq.s32.totalorder %s13, 1
    %p73 = scmp.ne.s32.totalorder %s68, %s70
    %p74 = scmp.eq.s32.totalorder %s13, 0
    %p75 = por %p73, %p74
    %p76 = scmp.ne.s32.totalorder %s68, %s70
    %p77 = scmp.eq.s32.totalorder %s18, 1
    %p78 = por %p76, %p77
    %p79 = scmp.ne.s32.totalorder %s70, %s71
    %p80 = scmp.eq.s32.totalorder %s18, 0
    %p81 = por %p79, %p80
    %p82 = scmp.ne.s32.totalorder %s70, %s71
    %p83 = scmp.eq.s32.totalorder %s19, 1
    %p84 = por %p82, %p83
    %p86 = scmp.ne.s32.totalorder %s71, %s85
    %p87 = scmp.eq.s32.totalorder %s19, 0
    %p88 = por %p86, %p87
    %s90 = sadd.s32 %s89, 1
    %p93 = scmp.eq.s32.totalorder %s13, 1
    %p94 = scmp.ne.s32.totalorder %s89, %s91
    %p95 = scmp.eq.s32.totalorder %s13, 0
    %p96 = por %p94, %p95
    %p97 = scmp.ne.s32.totalorder %s89, %s91
    %p98 = scmp.eq.s32.totalorder %s18, 1
    %p99 = por %p97, %p98
    %p100 = scmp.ne.s32.totalorder %s91, %s92
    %p101 = scmp.eq.s32.totalorder %s18, 0
    %p102 = por %p100, %p101
    %p103 = scmp.ne.s32.totalorder %s91, %s92
    %p104 = scmp.eq.s32.totalorder %s19, 1
    %p105 = por %p103, %p104
    %p107 = scmp.ne.s32.totalorder %s92, %s106
    %p108 = scmp.eq.s32.totalorder %s19, 0
    %p109 = por %p107, %p108
    %s111 = sadd.s32 %s110, 1
    %p114 = scmp.eq.s32.totalorder %s13, 1
    %p115 = scmp.ne.s32.totalorder %s110, %s112
    %p116 = scmp.eq.s32.totalorder %s13, 0
    %p117 = por %p115, %p116
    %p118 = scmp.ne.s32.totalorder %s110, %s112
    %p119 = scmp.eq.s32.totalorder %s18, 1
    %p120 = por %p118, %p119
    %p121 = scmp.ne.s32.totalorder %s112, %s113
    %p122 = scmp.eq.s32.totalorder %s18, 0
    %p123 = por %p121, %p122
    %p124 = scmp.ne.s32.totalorder %s112, %s113
    %p125 = scmp.eq.s32.totalorder %s19, 1
    %p126 = por %p124, %p125
    %p128 = scmp.ne.s32.totalorder %s113, %s127
    %p129 = scmp.eq.s32.totalorder %s19, 0
    %p130 = por %p128, %p129
    %s132 = sadd.s32 %s131, 1
    %p135 = scmp.eq.s32.totalorder %s13, 1
    %p136 = scmp.ne.s32.totalorder %s131, %s133
    %p137 = scmp.eq.s32.totalorder %s13, 0
    %p138 = por %p136, %p137
    %p139 = scmp.ne.s32.totalorder %s131, %s133
    %p140 = scmp.eq.s32.totalorder %s18, 1
    %p141 = por %p139, %p140
    %p142 = scmp.ne.s32.totalorder %s133, %s134
    %p143 = scmp.eq.s32.totalorder %s18, 0
    %p144 = por %p142, %p143
    %p145 = scmp.ne.s32.totalorder %s133, %s134
    %p146 = scmp.eq.s32.totalorder %s19, 1
    %p147 = por %p145, %p146
    %p149 = scmp.ne.s32.totalorder %s134, %s148
    %p150 = scmp.eq.s32.totalorder %s19, 0
    %p151 = por %p149, %p150
    %s153 = sadd.s32 %s152, 1
    %p156 = scmp.eq.s32.totalorder %s13, 1
    %p157 = scmp.ne.s32.totalorder %s152, %s154
    %p158 = scmp.eq.s32.totalorder %s13, 0
    %p159 = por %p157, %p158
    %p160 = scmp.ne.s32.totalorder %s152, %s154
    %p161 = scmp.eq.s32.totalorder %s18, 1
    %p162 = por %p160, %p161
    %p163 = scmp.ne.s32.totalorder %s154, %s155
    %p164 = scmp.eq.s32.totalorder %s18, 0
    %p165 = por %p163, %p164
    %p166 = scmp.ne.s32.totalorder %s154, %s155
    %p167 = scmp.eq.s32.totalorder %s19, 1
    %p168 = por %p166, %p167
    %p170 = scmp.ne.s32.totalorder %s155, %s169
    %p171 = scmp.eq.s32.totalorder %s19, 0
    %p172 = por %p170, %p171
    %s173 = ssub.s32 %s13, %s20
    %p174 = scmp.eq.s32.totalorder %s173, 0
    %s176 = sadd.s32 %s175, 1
    %s177 = scalar_select %p174, %s175, %s176
    %p180 = pneg %p174
    %p181 = scmp.eq.s32.totalorder %s13, 1
    %p182 = por %p180, %p181
    %p183 = scmp.ne.s32.totalorder %s175, %s178
    %p184 = scmp.eq.s32.totalorder %s13, 0
    %p185 = por %p183, %p184
    %p186 = scmp.ne.s32.totalorder %s175, %s178
    %p187 = scmp.eq.s32.totalorder %s18, 1
    %p188 = por %p186, %p187
    %p189 = scmp.ne.s32.totalorder %s178, %s179
    %p190 = scmp.eq.s32.totalorder %s18, 0
    %p191 = por %p189, %p190
    %p192 = scmp.ne.s32.totalorder %s178, %s179
    %p193 = scmp.eq.s32.totalorder %s19, 1
    %p194 = por %p192, %p193
    %p196 = scmp.ne.s32.totalorder %s179, %s195
    %p197 = scmp.eq.s32.totalorder %s19, 0
    %p198 = por %p196, %p197
    %p199 = scmp.le.s32.totalorder 1, %s13
    %p200 = scmp.lt.s32.totalorder %s13, 3
    %p201 = pnand %p199, %p200
    %p202 = pneg %p201
    // Predicated region
    $region9: #{decoder.8} parent=5 // pred_check
      _
    $region10: #{decoder.8} parent=5 // pred_check_branch
      %204 = sbr.rel (%p201) target = $region12
    $region11: #{decoder.8} parent=5 // pred_region
      %s205 = ssub.s32 %s13, 1
      // Predicated region
      $region13: #{decoder.8} parent=11 // pred_check
        %p206 = pneg %p60
      $region14: #{decoder.8} parent=11 // pred_check_branch
        %208 = sbr.rel (%p206) target = $region16
      $region15: #{decoder.8} parent=11 // pred_region
        _
      $region16: #{decoder.8} parent=11 // pred_fallthru
        _
      // Predicated region
      $region17: #{decoder.8} parent=11 // pred_check
        %p209 = pneg %p81
      $region18: #{decoder.8} parent=11 // pred_check_branch
        %211 = sbr.rel (%p209) target = $region20
      $region19: #{decoder.8} parent=11 // pred_region
        _
      $region20: #{decoder.8} parent=11 // pred_fallthru
        _
      // Predicated region
      $region21: #{decoder.8} parent=11 // pred_check
        %p212 = pneg %p102
      $region22: #{decoder.8} parent=11 // pred_check_branch
        %214 = sbr.rel (%p212) target = $region24
      $region23: #{decoder.8} parent=11 // pred_region
        _
      $region24: #{decoder.8} parent=11 // pred_fallthru
        _
      // Predicated region
      $region25: #{decoder.8} parent=11 // pred_check
        %p215 = pneg %p123
      $region26: #{decoder.8} parent=11 // pred_check_branch
        %217 = sbr.rel (%p215) target = $region28
      $region27: #{decoder.8} parent=11 // pred_region
        _
      $region28: #{decoder.8} parent=11 // pred_fallthru
        _
      // Predicated region
      $region29: #{decoder.8} parent=11 // pred_check
        %p218 = pneg %p144
      $region30: #{decoder.8} parent=11 // pred_check_branch
        %220 = sbr.rel (%p218) target = $region32
      $region31: #{decoder.8} parent=11 // pred_region
        _
      $region32: #{decoder.8} parent=11 // pred_fallthru
        _
      // Predicated region
      $region33: #{decoder.8} parent=11 // pred_check
        %p221 = pneg %p165
      $region34: #{decoder.8} parent=11 // pred_check_branch
        %223 = sbr.rel (%p221) target = $region36
      $region35: #{decoder.8} parent=11 // pred_region
        _
      $region36: #{decoder.8} parent=11 // pred_fallthru
        _
    $region12: #{decoder.8} parent=5 // pred_fallthru
      _
    %p224 = scmp.lt.s32.totalorder %s13, 2
    // Predicated region
    $region37: #{decoder.8} parent=5 // pred_check
      %p225 = pneg %p224
    $region38: #{decoder.8} parent=5 // pred_check_branch
      %227 = sbr.rel (%p225) target = $region40
    $region39: #{decoder.8} parent=5 // pred_region
      // Predicated region
      $region41: #{decoder.8} parent=39 // pred_check
        %p228 = pneg %p33
      $region42: #{decoder.8} parent=39 // pred_check_branch
        %230 = sbr.rel (%p228) target = $region44
      $region43: #{decoder.8} parent=39 // pred_region
        %p231 = scmp.lt.s32.totalorder %s13, 1
        %s232 = scalar_select %p231, %s13, 1
        %s233 = smul.addr %s232, 8
        %s234 = scalar_lea.vmem %s0, %s233
      $region44: #{decoder.8} parent=39 // pred_fallthru
        _
    $region40: #{decoder.8} parent=5 // pred_fallthru
      _
    %p235 = scmp.le.s32.totalorder 1, %s13
    %p236 = scmp.lt.s32.totalorder %s13, 3
    %p237 = pnand %p235, %p236
    %p238 = pneg %p237
    // Predicated region
    $region45: #{decoder.8} parent=5 // pred_check
      _
    $region46: #{decoder.8} parent=5 // pred_check_branch
      %240 = sbr.rel (%p237) target = $region48
    $region47: #{decoder.8} parent=5 // pred_region
      %s241 = ssub.s32 %s13, 1
      %p242 = scmp.lt.s32.totalorder %s18, 1
      %s243 = scalar_select %p242, %s18, 1
      %s244 = smul.addr %s243, 8
      %s245 = scalar_lea.vmem %s0, %s244
      %p246 = pneg %p39
      %p247 = pneg %p36
      %p248 = pneg %p60
      %p249 = pneg %p57
      %p250 = pneg %p81
      %p251 = pneg %p78
      %p252 = pneg %p102
      %p253 = pneg %p99
      %p254 = pneg %p123
      %p255 = pneg %p120
      %p256 = pneg %p144
      %p257 = pneg %p141
      %p258 = pneg %p165
      %p259 = pneg %p162
      %p260 = pneg %p191
      %p261 = pneg %p188
      %p262 = scmp.lt.s32.totalorder %s18, 1
      %s263 = scalar_select %p262, %s18, 1
      %s264 = smul.addr %s263, 8
      %s265 = scalar_lea.vmem %s7, %s264
      %p266 = scmp.lt.s32.totalorder %s18, 1
      %s267 = scalar_select %p266, %s18, 1
      %s268 = smul.addr %s267, 8
      %s269 = scalar_lea.vmem %s0, %s268
      %p270 = scmp.lt.s32.totalorder %s18, 1
      %s271 = scalar_select %p270, %s18, 1
      %s272 = smul.addr %s271, 8
      %s273 = scalar_lea.vmem %s7, %s272
      %v275 = vld [vmem:[%s269] sm:$0xff]
      %v276 = vld [vmem:[%s1] sm:$0x1]
      %v277 = vld [vmem:[%s2] sm:$0x1]
      %vm278 = vcmask 261120
      %v279 = vsel %vm278, %v275, 0.0
      %280 = vadd.xlane.f32.xlu0 %v279
      %v281 = vpop.xlane.xlu0 %280
      %v282 = vrcp.pop 32.0
      %v283 = vmul.f32 32.0, %v282
      %v284 = vsub.f32 1.0, %v283
      %v285 = vmul.f32 %v282, %v284
      %v286 = vadd.f32 %v282, %v285
      %vm287 = vweird.f32 %v282
      %v288 = vsel %vm287, %v282, %v286
      %v289 = vmul.f32 %v281, %v288
      %v290 = vsub.f32 %v275, %v289
      %v291 = vmul.f32 %v290, %v290
      %v292 = vsel %vm278, %v291, 0.0
      %293 = vadd.xlane.f32.xlu0 %v292
      %v294 = vpop.xlane.xlu0 %293
      %v295 = vmul.f32 %v294, %v288
      %v296 = vadd.f32 %v295, 1e-05
      %v297 = vrsqrt.pop %v296
      %v298 = vmul.f32 %v297, %v296
      %v299 = vmul.f32 %v298, %v297
      %v300 = vmul.f32 0.5, %v299
      %v301 = vsub.f32 1.5, %v300
      %v302 = vmul.f32 %v297, %v301
      %vm303 = vweird.f32 %v296
      %vm304 = vweird.f32 %v297
      %vm305 = vmor %vm303, %vm304
      %v306 = vsel %vm305, %v297, %v302
      %v307 = vmul.f32 %v290, %v306
      %v309 = vperm.slane %v276, 0
      %v311 = vmul.f32 %v307, %v309
      %v313 = vperm.slane %v277, 0
      %v315 = vadd.f32 %v311, %v313
      %v316 = vpack.c.bf16 %v315, %v315
      %v317 = vld [vmem:[%s3] sm:$0xf]
      %v318 = vld [vmem:[%s3 + $0x4] sm:$0xf]
      %v319 = vld [vmem:[%s3 + $0x8] sm:$0xf]
      %v320 = vld [vmem:[%s3 + $0xc] sm:$0xf]
      %v321 = vld [vmem:[%s4] sm:$0x1]
      %v323 = vperm.slane %v321, 0
      %v329 = vunpack.c.l.b16 %v317
      %v330 = vunpack.c.l.b16 %v318
      %v331 = vunpack.c.l.b16 %v319
      %v332 = vunpack.c.l.b16 %v320
      %v333 = vpack.c.b16 %v330, %v329
      %v334 = vpack.c.b16 %v332, %v331
      %v338 = vsel %vm278, %v316, 0
      %340 = vmatpush.bf16.msra.mxu0 0
      %341 = vmatpush.bf16.msra.mxu0 0
      %342 = vmatpush.bf16.msra.mxu0 0
      %343 = vmatpush.bf16.msra.mxu0 0
      %344 = vmatpush.bf16.msra.mxu0 0
      %345 = vmatpush.bf16.msra.mxu0 0
      %346 = vmatpush.bf16.msra.mxu0 %v334
      %347 = vmatpush.bf16.msra.mxu0 %v333
      %348 = vmatmul.bf16.gmra.mxu0 %v338
      %v349 = vpop.f32.mrf.mxu0
      %v350 = vadd.f32 %v323, %v349
      %v351 = vpop.f32.mrf.mxu0
      %352 = vdwg.mxu0
      %v353 = vmax.f32 %v350, 0.0
      %v354 = vpack.c.bf16 %v353, %v353
      %v355 = vld [vmem:[%s5] sm:$0xf]
      %v356 = vld [vmem:[%s5 + $0x4] sm:$0xf]
      %v357 = vld [vmem:[%s5 + $0x8] sm:$0xf]
      %v358 = vld [vmem:[%s5 + $0xc] sm:$0xf]
      %v359 = vld [vmem:[%s5 + $0x10] sm:$0xf]
      %v360 = vld [vmem:[%s5 + $0x14] sm:$0xf]
      %v361 = vld [vmem:[%s5 + $0x18] sm:$0xf]
      %v362 = vld [vmem:[%s5 + $0x1c] sm:$0xf]
      %v363 = vld [vmem:[%s6] sm:$0x1]
      %v365 = vperm.slane %v363, 0
      %v375 = vunpack.c.l.b16 %v355
      %v376 = vunpack.c.l.b16 %v356
      %v377 = vunpack.c.l.b16 %v357
      %v378 = vunpack.c.l.b16 %v358
      %v379 = vunpack.c.l.b16 %v359
      %v380 = vunpack.c.l.b16 %v360
      %v381 = vunpack.c.l.b16 %v361
      %v382 = vunpack.c.l.b16 %v362
      %v383 = vpack.c.b16 %v376, %v375
      %v384 = vpack.c.b16 %v378, %v377
      %v385 = vpack.c.b16 %v380, %v379
      %v386 = vpack.c.b16 %v382, %v381
      %vm391 = vcmask 523264
      %v393 = vsel %vm391, %v354, 0
      %395 = vmatpush.bf16.msra.mxu0 0
      %396 = vmatpush.bf16.msra.mxu0 0
      %397 = vmatpush.bf16.msra.mxu0 0
      %398 = vmatpush.bf16.msra.mxu0 0
      %399 = vmatpush.bf16.msra.mxu0 %v386
      %400 = vmatpush.bf16.msra.mxu0 %v385
      %401 = vmatpush.bf16.msra.mxu0 %v384
      %402 = vmatpush.bf16.msra.mxu0 %v383
      %403 = vmatmul.bf16.gmra.mxu0 %v393
      %v404 = vpop.f32.mrf.mxu0
      %v405 = vadd.f32 %v365, %v404
      %v406 = vpop.f32.mrf.mxu0
      %407 = vdwg.mxu0
      %v408 = vadd.f32 %v275, %v405
      %409 = vst.msk [vmem:[%s273] sm:$0xff] %vm278, %v408
      %p410 = scmp.lt.s32.totalorder %s18, 1
      %s411 = scalar_select %p410, %s18, 1
      %s412 = smul.addr %s411, 8
      %s413 = scalar_lea.vmem %s7, %s412
      // Predicated region
      $region49: #{decoder.8} parent=47 // pred_check
        %p414 = pneg %p188
      $region50: #{decoder.8} parent=47 // pred_check_branch
        %416 = sbr.rel (%p414) target = $region52
      $region51: #{decoder.8} parent=47 // pred_region
        _
      $region52: #{decoder.8} parent=47 // pred_fallthru
        _
    $region48: #{decoder.8} parent=5 // pred_fallthru
      _
    %p417 = scmp.le.s32.totalorder 2, %s13
    // Predicated region
    $region53: #{decoder.8} parent=5 // pred_check
      %p418 = pneg %p417
    $region54: #{decoder.8} parent=5 // pred_check_branch
      %420 = sbr.rel (%p418) target = $region56
    $region55: #{decoder.8} parent=5 // pred_region
      %s421 = ssub.s32 %s13, 2
      // Predicated region
      $region57: #{decoder.8} parent=55 // pred_check
        %p422 = pneg %p194
      $region58: #{decoder.8} parent=55 // pred_check_branch
        %424 = sbr.rel (%p422) target = $region60
      $region59: #{decoder.8} parent=55 // pred_region
        %p425 = scmp.lt.s32.totalorder %s19, 1
        %s426 = scalar_select %p425, %s19, 1
        %s427 = smul.addr %s426, 8
        %s428 = scalar_lea.vmem %s7, %s427
      $region60: #{decoder.8} parent=55 // pred_fallthru
        _
    $region56: #{decoder.8} parent=5 // pred_fallthru
      _
  $region6: #{decoder.8} parent=0 // loop_footer
    %s17 = sadd.s32 1, %s13
  $region7: #{decoder.8} parent=0 // loop_footer_branch
    %12 = sbr.rel target = $region3
  $region8: #{decoder.8} parent=0 // loop_exit
    _

// kernel: decoder.6
$region0: #{decoder.6}
  #allocation0 [shape = 'u32[]', space=smem, size = 0x4, offset = 0x4, fixed_abs, tag = 'smem constant byte address 0x4 - core index']
  #allocation1 [shape = 'u32[72,128]{1,0:T(1,128)}', space=vmem, size = 0x9000, scoped, tag = 'internal scratch']
  #allocation2 [shape = 'bf16[8,64]{1,0:T(8,128)(2,1)}', space=vmem, size = 0x800, scoped, tag = 'scratch operand']
  %s0 = inlined_call_operand.hbm [shape: f32[2,8,32], index: 0, kind: input, shape index: {}]
  %s1 = inlined_call_operand.vmem [shape: s8[2,1,8], index: 1, kind: input, shape index: {}]
  %s2 = inlined_call_operand.vmem [shape: f32[1,32], index: 2, kind: input, shape index: {}]
  %s3 = inlined_call_operand.vmem [shape: f32[1,32], index: 3, kind: input, shape index: {}]
  %s4 = inlined_call_operand.hbm [shape: bf16[32,96], index: 4, kind: input, shape index: {}]
  %s5 = inlined_call_operand.vmem [shape: f32[1,96], index: 5, kind: input, shape index: {}]
  %s6 = inlined_call_operand.hbm [shape: bf16[32,32], index: 6, kind: input, shape index: {}]
  %s7 = inlined_call_operand.hbm [shape: f32[1,32], index: 7, kind: input, shape index: {}]
  %s8 = inlined_call_operand.vmem [shape: f32[2,8,32], index: 8, kind: output, shape index: {}]
  %s9 = sld [smem:[#allocation0]]
  $region85: #{decoder.6} parent=0
    _
  %s11 = ssub.s32 1, %s9
  %s12 = scalar_select 0, %s11, %s9
  $region1: #{decoder.6} parent=0
    #allocation3 [shape = 'u8[8192]{0}', space=vmem, size = 0x2000, scoped, tag = 'input window, operand 0']
    #allocation4 [shape = 's32[2]{0}', space=sflag, size = 0x8, scoped, tag = 'scoped memory for decoder.6']
    #allocation5 [shape = 'u8[8192]{0}', space=vmem, size = 0x2000, scoped, tag = 'input window, operand 4, single buffered']
    #allocation6 [shape = 's32[1]{0}', space=sflag, size = 0x4, scoped, tag = 'scoped memory for decoder.6']
    #allocation7 [shape = 'u8[8192]{0}', space=vmem, size = 0x2000, scoped, tag = 'input window, operand 6, single buffered']
    #allocation8 [shape = 'u8[512]{0}', space=vmem, size = 0x400, scoped, tag = 'input window, operand 7, single buffered']
    #allocation9 [shape = 's32[1]{0}', space=sflag, size = 0x4, scoped, tag = 'scoped memory for decoder.6']
    %13 = vsyncpa [#allocation4], 0
    %s14 = scalar_lea.sflag [#allocation4], 1
    %15 = vsyncpa %s14, 0
    %16 = vsyncpa [#allocation6], 0
    %17 = vsyncpa [#allocation9], 0
    loop: start=0, step=1, limit=4
    $region2: #{decoder.6} parent=1 // loop_pre_header
      _
    $region3: #{decoder.6} parent=1 // loop_header
      %s19 = sphi 0, %s23
      %p20 = scmp.ge.s32.totalorder %s19, 4
      %s26 = sphi 0, %s38
      %s27 = sphi 0, %s34
      %s28 = sphi 0, %s26
      %s29 = sphi 0, %s27
      %s30 = sphi 0, %s28
      %s31 = sphi 0, %s29
      %s41 = sphi 0, %s43
      %s44 = sphi 0, %s41
      %s45 = sphi 0, %s44
      %s61 = sphi 0, %s45
      %s67 = sphi 0, %s69
      %s70 = sphi 0, %s67
      %s71 = sphi 0, %s70
      %s87 = sphi 0, %s71
      %s91 = sphi 0, %s91
      %s93 = sphi 0, %s91
      %s94 = sphi 0, %s93
      %s108 = sphi 0, %s94
      %s112 = sphi 0, %s112
      %s114 = sphi 0, %s112
      %s115 = sphi 0, %s114
      %s129 = sphi 0, %s115
      %s133 = sphi 0, %s133
      %s135 = sphi 0, %s133
      %s136 = sphi 0, %s135
      %s150 = sphi 0, %s136
      %s154 = sphi 0, %s154
      %s156 = sphi 0, %s154
      %s157 = sphi 0, %s156
      %s171 = sphi 0, %s157
      %s175 = sphi 0, %s175
      %s177 = sphi 0, %s175
      %s178 = sphi 0, %s177
      %s192 = sphi 0, %s178
      %s196 = sphi 0, %s196
      %s198 = sphi 0, %s196
      %s199 = sphi 0, %s198
      %s213 = sphi 0, %s199
      %s221 = sphi 0, %s223
      %s224 = sphi 0, %s221
      %s225 = sphi 0, %s224
      %s241 = sphi 0, %s225
    $region4: #{decoder.6} parent=1 // loop_header_branch
      %22 = sbr.rel (%p20) target = $region8
    $region5: #{decoder.6} parent=1 // loop_body
      %s24 = ssub.s32 %s19, 1
      %s25 = ssub.s32 %s19, 2
      %s32 = sadd.s32 1, %s27
      %p33 = scmp.ge.s32.totalorder %s32, 1
      %s34 = scalar_select %p33, 0, %s32
      %s35 = sadd.s32 1, %s26
      %s36 = scalar_select %p33, %s35, %s26
      %p37 = scmp.ge.s32.totalorder %s36, 2
      %s38 = scalar_select %p37, 0, %s36
      %s39 = ssub.s32 %s26, %s38
      %p40 = scmp.eq.s32.totalorder %s39, 0
      %s42 = sadd.s32 %s41, 1
      %s43 = scalar_select %p40, %s41, %s42
      %p46 = pneg %p40
      %p47 = scmp.eq.s32.totalorder %s19, 1
      %p48 = por %p46, %p47
      %p49 = scmp.ne.s32.totalorder %s41, %s44
      %p50 = scmp.eq.s32.totalorder %s19, 0
      %p51 = por %p49, %p50
      %p52 = scmp.ne.s32.totalorder %s41, %s44
      %p53 = scmp.eq.s32.totalorder %s24, 1
      %p54 = por %p52, %p53
      %p55 = scmp.ne.s32.totalorder %s44, %s45
      %p56 = scmp.eq.s32.totalorder %s24, 0
      %p57 = por %p55, %p56
      %p58 = scmp.ne.s32.totalorder %s44, %s45
      %p59 = scmp.eq.s32.totalorder %s25, 1
      %p60 = por %p58, %p59
      %p62 = scmp.ne.s32.totalorder %s45, %s61
      %p63 = scmp.eq.s32.totalorder %s25, 0
      %p64 = por %p62, %p63
      %s65 = ssub.s32 %s26, %s38
      %p66 = scmp.eq.s32.totalorder %s65, 0
      %s68 = sadd.s32 %s67, 1
      %s69 = scalar_select %p66, %s67, %s68
      %p72 = pneg %p66
      %p73 = scmp.eq.s32.totalorder %s19, 1
      %p74 = por %p72, %p73
      %p75 = scmp.ne.s32.totalorder %s67, %s70
      %p76 = scmp.eq.s32.totalorder %s19, 0
      %p77 = por %p75, %p76
      %p78 = scmp.ne.s32.totalorder %s67, %s70
      %p79 = scmp.eq.s32.totalorder %s24, 1
      %p80 = por %p78, %p79
      %p81 = scmp.ne.s32.totalorder %s70, %s71
      %p82 = scmp.eq.s32.totalorder %s24, 0
      %p83 = por %p81, %p82
      %p84 = scmp.ne.s32.totalorder %s70, %s71
      %p85 = scmp.eq.s32.totalorder %s25, 1
      %p86 = por %p84, %p85
      %p88 = scmp.ne.s32.totalorder %s71, %s87
      %p89 = scmp.eq.s32.totalorder %s25, 0
      %p90 = por %p88, %p89
      %s92 = sadd.s32 %s91, 1
      %p95 = scmp.eq.s32.totalorder %s19, 1
      %p96 = scmp.ne.s32.totalorder %s91, %s93
      %p97 = scmp.eq.s32.totalorder %s19, 0
      %p98 = por %p96, %p97
      %p99 = scmp.ne.s32.totalorder %s91, %s93
      %p100 = scmp.eq.s32.totalorder %s24, 1
      %p101 = por %p99, %p100
      %p102 = scmp.ne.s32.totalorder %s93, %s94
      %p103 = scmp.eq.s32.totalorder %s24, 0
      %p104 = por %p102, %p103
      %p105 = scmp.ne.s32.totalorder %s93, %s94
      %p106 = scmp.eq.s32.totalorder %s25, 1
      %p107 = por %p105, %p106
      %p109 = scmp.ne.s32.totalorder %s94, %s108
      %p110 = scmp.eq.s32.totalorder %s25, 0
      %p111 = por %p109, %p110
      %s113 = sadd.s32 %s112, 1
      %p116 = scmp.eq.s32.totalorder %s19, 1
      %p117 = scmp.ne.s32.totalorder %s112, %s114
      %p118 = scmp.eq.s32.totalorder %s19, 0
      %p119 = por %p117, %p118
      %p120 = scmp.ne.s32.totalorder %s112, %s114
      %p121 = scmp.eq.s32.totalorder %s24, 1
      %p122 = por %p120, %p121
      %p123 = scmp.ne.s32.totalorder %s114, %s115
      %p124 = scmp.eq.s32.totalorder %s24, 0
      %p125 = por %p123, %p124
      %p126 = scmp.ne.s32.totalorder %s114, %s115
      %p127 = scmp.eq.s32.totalorder %s25, 1
      %p128 = por %p126, %p127
      %p130 = scmp.ne.s32.totalorder %s115, %s129
      %p131 = scmp.eq.s32.totalorder %s25, 0
      %p132 = por %p130, %p131
      %s134 = sadd.s32 %s133, 1
      %p137 = scmp.eq.s32.totalorder %s19, 1
      %p138 = scmp.ne.s32.totalorder %s133, %s135
      %p139 = scmp.eq.s32.totalorder %s19, 0
      %p140 = por %p138, %p139
      %p141 = scmp.ne.s32.totalorder %s133, %s135
      %p142 = scmp.eq.s32.totalorder %s24, 1
      %p143 = por %p141, %p142
      %p144 = scmp.ne.s32.totalorder %s135, %s136
      %p145 = scmp.eq.s32.totalorder %s24, 0
      %p146 = por %p144, %p145
      %p147 = scmp.ne.s32.totalorder %s135, %s136
      %p148 = scmp.eq.s32.totalorder %s25, 1
      %p149 = por %p147, %p148
      %p151 = scmp.ne.s32.totalorder %s136, %s150
      %p152 = scmp.eq.s32.totalorder %s25, 0
      %p153 = por %p151, %p152
      %s155 = sadd.s32 %s154, 1
      %p158 = scmp.eq.s32.totalorder %s19, 1
      %p159 = scmp.ne.s32.totalorder %s154, %s156
      %p160 = scmp.eq.s32.totalorder %s19, 0
      %p161 = por %p159, %p160
      %p162 = scmp.ne.s32.totalorder %s154, %s156
      %p163 = scmp.eq.s32.totalorder %s24, 1
      %p164 = por %p162, %p163
      %p165 = scmp.ne.s32.totalorder %s156, %s157
      %p166 = scmp.eq.s32.totalorder %s24, 0
      %p167 = por %p165, %p166
      %p168 = scmp.ne.s32.totalorder %s156, %s157
      %p169 = scmp.eq.s32.totalorder %s25, 1
      %p170 = por %p168, %p169
      %p172 = scmp.ne.s32.totalorder %s157, %s171
      %p173 = scmp.eq.s32.totalorder %s25, 0
      %p174 = por %p172, %p173
      %s176 = sadd.s32 %s175, 1
      %p179 = scmp.eq.s32.totalorder %s19, 1
      %p180 = scmp.ne.s32.totalorder %s175, %s177
      %p181 = scmp.eq.s32.totalorder %s19, 0
      %p182 = por %p180, %p181
      %p183 = scmp.ne.s32.totalorder %s175, %s177
      %p184 = scmp.eq.s32.totalorder %s24, 1
      %p185 = por %p183, %p184
      %p186 = scmp.ne.s32.totalorder %s177, %s178
      %p187 = scmp.eq.s32.totalorder %s24, 0
      %p188 = por %p186, %p187
      %p189 = scmp.ne.s32.totalorder %s177, %s178
      %p190 = scmp.eq.s32.totalorder %s25, 1
      %p191 = por %p189, %p190
      %p193 = scmp.ne.s32.totalorder %s178, %s192
      %p194 = scmp.eq.s32.totalorder %s25, 0
      %p195 = por %p193, %p194
      %s197 = sadd.s32 %s196, 1
      %p200 = scmp.eq.s32.totalorder %s19, 1
      %p201 = scmp.ne.s32.totalorder %s196, %s198
      %p202 = scmp.eq.s32.totalorder %s19, 0
      %p203 = por %p201, %p202
      %p204 = scmp.ne.s32.totalorder %s196, %s198
      %p205 = scmp.eq.s32.totalorder %s24, 1
      %p206 = por %p204, %p205
      %p207 = scmp.ne.s32.totalorder %s198, %s199
      %p208 = scmp.eq.s32.totalorder %s24, 0
      %p209 = por %p207, %p208
      %p210 = scmp.ne.s32.totalorder %s198, %s199
      %p211 = scmp.eq.s32.totalorder %s25, 1
      %p212 = por %p210, %p211
      %p214 = scmp.ne.s32.totalorder %s199, %s213
      %p215 = scmp.eq.s32.totalorder %s25, 0
      %p216 = por %p214, %p215
      %s217 = ssub.s32 %s26, %s38
      %s218 = ssub.s32 %s27, %s34
      %s219 = sor.u32 %s217, %s218
      %p220 = scmp.eq.s32.totalorder %s219, 0
      %s222 = sadd.s32 %s221, 1
      %s223 = scalar_select %p220, %s221, %s222
      %p226 = pneg %p220
      %p227 = scmp.eq.s32.totalorder %s19, 1
      %p228 = por %p226, %p227
      %p229 = scmp.ne.s32.totalorder %s221, %s224
      %p230 = scmp.eq.s32.totalorder %s19, 0
      %p231 = por %p229, %p230
      %p232 = scmp.ne.s32.totalorder %s221, %s224
      %p233 = scmp.eq.s32.totalorder %s24, 1
      %p234 = por %p232, %p233
      %p235 = scmp.ne.s32.totalorder %s224, %s225
      %p236 = scmp.eq.s32.totalorder %s24, 0
      %p237 = por %p235, %p236
      %p238 = scmp.ne.s32.totalorder %s224, %s225
      %p239 = scmp.eq.s32.totalorder %s25, 1
      %p240 = por %p238, %p239
      %p242 = scmp.ne.s32.totalorder %s225, %s241
      %p243 = scmp.eq.s32.totalorder %s25, 0
      %p244 = por %p242, %p243
      %p245 = scmp.le.s32.totalorder 1, %s19
      %p246 = scmp.lt.s32.totalorder %s19, 3
      %p247 = pnand %p245, %p246
      %p248 = pneg %p247
      // Predicated region
      $region9: #{decoder.6} parent=5 // pred_check
        _
      $region10: #{decoder.6} parent=5 // pred_check_branch
        %250 = sbr.rel (%p247) target = $region12
      $region11: #{decoder.6} parent=5 // pred_region
        %s251 = ssub.s32 %s19, 1
        // Predicated region
        $region13: #{decoder.6} parent=11 // pred_check
          %p252 = pneg %p104
        $region14: #{decoder.6} parent=11 // pred_check_branch
          %254 = sbr.rel (%p252) target = $region16
        $region15: #{decoder.6} parent=11 // pred_region
          _
        $region16: #{decoder.6} parent=11 // pred_fallthru
          _
        // Predicated region
        $region17: #{decoder.6} parent=11 // pred_check
          %p255 = pneg %p125
        $region18: #{decoder.6} parent=11 // pred_check_branch
          %257 = sbr.rel (%p255) target = $region20
        $region19: #{decoder.6} parent=11 // pred_region
          _
        $region20: #{decoder.6} parent=11 // pred_fallthru
          _
        // Predicated region
        $region21: #{decoder.6} parent=11 // pred_check
          %p258 = pneg %p146
        $region22: #{decoder.6} parent=11 // pred_check_branch
          %260 = sbr.rel (%p258) target = $region24
        $region23: #{decoder.6} parent=11 // pred_region
          %262 = vsyncadd [#allocation6], 0
          %s263 = sshll.u32 %s4, 4
          %s264 = int_to_ptr.hbm [resolvable:$true] %s263
          %s265 = sshll.u32 [#allocation5], 4
          %s266 = int_to_ptr.vmem [resolvable:$true] %s265
          %271 = dma.hbm_to_vmem [thread:$0]  %s264, 256, %s266, [#allocation6], 64, 64, 4
        $region24: #{decoder.6} parent=11 // pred_fallthru
          _
        // Predicated region
        $region25: #{decoder.6} parent=11 // pred_check
          %p272 = pneg %p167
        $region26: #{decoder.6} parent=11 // pred_check_branch
          %274 = sbr.rel (%p272) target = $region28
        $region27: #{decoder.6} parent=11 // pred_region
          _
        $region28: #{decoder.6} parent=11 // pred_fallthru
          _
        // Predicated region
        $region29: #{decoder.6} parent=11 // pred_check
          %p275 = pneg %p188
        $region30: #{decoder.6} parent=11 // pred_check_branch
          %277 = sbr.rel (%p275) target = $region32
        $region31: #{decoder.6} parent=11 // pred_region
          %279 = vsyncadd [#allocation6], 0
          %s280 = sshll.u32 %s6, 4
          %s281 = int_to_ptr.hbm [resolvable:$true] %s280
          %s282 = sshll.u32 [#allocation7], 4
          %s283 = int_to_ptr.vmem [resolvable:$true] %s282
          %288 = dma.hbm_to_vmem [thread:$0]  %s281, 256, %s283, [#allocation6], 64, 64, 4
        $region32: #{decoder.6} parent=11 // pred_fallthru
          _
        // Predicated region
        $region33: #{decoder.6} parent=11 // pred_check
          %p289 = pneg %p209
        $region34: #{decoder.6} parent=11 // pred_check_branch
          %291 = sbr.rel (%p289) target = $region36
        $region35: #{decoder.6} parent=11 // pred_region
          %293 = vsyncadd [#allocation9], 0
          %s295 = sshll.u32 %s7, 4
          %s296 = int_to_ptr.hbm [resolvable:$true] %s295
          %s297 = sshll.u32 [#allocation8], 4
          %s298 = int_to_ptr.vmem [resolvable:$true] %s297
          %300 = dma.hbm_to_vmem [thread:$0]  %s296, 16, %s298, [#allocation9]
        $region36: #{decoder.6} parent=11 // pred_fallthru
          _
      $region12: #{decoder.6} parent=5 // pred_fallthru
        _
      %p301 = scmp.lt.s32.totalorder %s19, 2
      // Predicated region
      $region37: #{decoder.6} parent=5 // pred_check
        %p302 = pneg %p301
      $region38: #{decoder.6} parent=5 // pred_check_branch
        %304 = sbr.rel (%p302) target = $region40
      $region39: #{decoder.6} parent=5 // pred_region
        // Predicated region
        $region41: #{decoder.6} parent=39 // pred_check
          %p305 = pneg %p51
        $region42: #{decoder.6} parent=39 // pred_check_branch
          %307 = sbr.rel (%p305) target = $region44
        $region43: #{decoder.6} parent=39 // pred_region
          %s308 = sand.u32 %s41, 1
          %s309 = scalar_lea.sflag [#allocation4], %s308
          %s310 = sand.u32 %s41, 1
          %s311 = smul.addr %s310, 8
          %s312 = scalar_lea.vmem [#allocation3], %s311
          %314 = vsyncadd %s309, 0
          %s315 = smul.addr %s26, 8
          %s316 = scalar_lea.hbm %s0, %s315
          %s318 = sshll.u32 %s316, 4
          %s319 = int_to_ptr.hbm [resolvable:$true] %s318
          %s320 = sshll.u32 %s312, 4
          %s321 = int_to_ptr.vmem [resolvable:$true] %s320
          %323 = dma.hbm_to_vmem [thread:$0]  %s319, 128, %s321, %s309
        $region44: #{decoder.6} parent=39 // pred_fallthru
          _
        // Predicated region
        $region45: #{decoder.6} parent=39 // pred_check
          %p324 = pneg %p77
        $region46: #{decoder.6} parent=39 // pred_check_branch
          %326 = sbr.rel (%p324) target = $region48
        $region47: #{decoder.6} parent=39 // pred_region
          %p327 = scmp.lt.s32.totalorder %s26, 1
          %s328 = scalar_select %p327, %s26, 1
          %s329 = scalar_lea.vmem %s1, %s328
        $region48: #{decoder.6} parent=39 // pred_fallthru
          _
      $region40: #{decoder.6} parent=5 // pred_fallthru
        _
      %p330 = scmp.le.s32.totalorder 1, %s19
      %p331 = scmp.lt.s32.totalorder %s19, 3
      %p332 = pnand %p330, %p331
      %p333 = pneg %p332
      // Predicated region
      $region49: #{decoder.6} parent=5 // pred_check
        _
      $region50: #{decoder.6} parent=5 // pred_check_branch
        %335 = sbr.rel (%p332) target = $region52
      $region51: #{decoder.6} parent=5 // pred_region
        %s336 = ssub.s32 %s19, 1
        %s337 = sand.u32 %s44, 1
        %s338 = scalar_lea.sflag [#allocation4], %s337
        %s339 = sand.u32 %s44, 1
        %s340 = smul.addr %s339, 8
        %s341 = scalar_lea.vmem [#allocation3], %s340
        // Predicated region
        $region53: #{decoder.6} parent=51 // pred_check
          %p342 = pneg %p57
        $region54: #{decoder.6} parent=51 // pred_check_branch
          %344 = sbr.rel (%p342) target = $region56
        $region55: #{decoder.6} parent=51 // pred_region
          %346 = dma.done %s338, 128
        $region56: #{decoder.6} parent=51 // pred_fallthru
          _
        // Predicated region
        $region57: #{decoder.6} parent=51 // pred_check
          %p347 = pneg %p146
        $region58: #{decoder.6} parent=51 // pred_check_branch
          %349 = sbr.rel (%p347) target = $region60
        $region59: #{decoder.6} parent=51 // pred_region
          %351 = dma.done [#allocation6], 256
        $region60: #{decoder.6} parent=51 // pred_fallthru
          _
        // Predicated region
        $region61: #{decoder.6} parent=51 // pred_check
          %p352 = pneg %p188
        $region62: #{decoder.6} parent=51 // pred_check_branch
          %354 = sbr.rel (%p352) target = $region64
        $region63: #{decoder.6} parent=51 // pred_region
          %356 = dma.done [#allocation6], 256
        $region64: #{decoder.6} parent=51 // pred_fallthru
          _
        // Predicated region
        $region65: #{decoder.6} parent=51 // pred_check
          %p357 = pneg %p209
        $region66: #{decoder.6} parent=51 // pred_check_branch
          %359 = sbr.rel (%p357) target = $region68
        $region67: #{decoder.6} parent=51 // pred_region
          %361 = dma.done [#allocation9], 16
        $region68: #{decoder.6} parent=51 // pred_fallthru
          _
        %s362 = sand.u32 %s44, 1
        %s363 = scalar_lea.sflag [#allocation4], %s362
        %s364 = sand.u32 %s44, 1
        %s365 = smul.addr %s364, 8
        %s366 = scalar_lea.vmem [#allocation3], %s365
        %p367 = pneg %p57
        %p368 = pneg %p54
        %p369 = scmp.lt.s32.totalorder %s28, 1
        %s370 = scalar_select %p369, %s28, 1
        %s371 = scalar_lea.vmem %s1, %s370
        %p372 = pneg %p83
        %p373 = pneg %p80
        %p374 = pneg %p104
        %p375 = pneg %p101
        %p376 = pneg %p125
        %p377 = pneg %p122
        %p378 = pneg %p146
        %p379 = pneg %p143
        %p380 = pneg %p167
        %p381 = pneg %p164
        %p382 = pneg %p188
        %p383 = pneg %p185
        %p384 = pneg %p209
        %p385 = pneg %p206
        %p386 = pneg %p237
        %p387 = pneg %p234
        %p388 = scmp.lt.s32.totalorder %s28, 1
        %s389 = scalar_select %p388, %s28, 1
        %p390 = scmp.lt.s32.totalorder %s29, 0
        %s391 = scalar_select %p390, %s29, 0
        %s392 = sadd.s32 %s391, %s389
        %s393 = smul.addr %s392, 8
        %s394 = scalar_lea.vmem %s8, %s393
        %p395 = scmp.lt.s32.totalorder %s28, 1
        %s396 = scalar_select %p395, %s28, 1
        %s397 = scalar_lea.vmem %s1, %s396
        %p398 = scmp.lt.s32.totalorder %s28, 1
        %s399 = scalar_select %p398, %s28, 1
        %p400 = scmp.lt.s32.totalorder %s29, 0
        %s401 = scalar_select %p400, %s29, 0
        %s402 = sadd.s32 %s401, %s399
        %s403 = smul.addr %s402, 8
        %s404 = scalar_lea.vmem %s8, %s403
        %s408 = smul.u32 %s29, 8
        %p409 = scmp.eq.s32.totalorder %s29, 0
        // Predicated region
        $region69: #{decoder.6} parent=51 // pred_check
          %p410 = pneg %p409
        $region70: #{decoder.6} parent=51 // pred_check_branch
          %412 = sbr.rel (%p410) target = $region72
        $region71: #{decoder.6} parent=51 // pred_region
          %v413 = vld [vmem:[%s341] sm:$0xff]
          %v414 = vld [vmem:[%s2] sm:$0x1]
          %v415 = vld [vmem:[%s3] sm:$0x1]
          %vm416 = vcmask 261120
          %v417 = vsel %vm416, %v413, 0.0
          %418 = vadd.xlane.f32.xlu0 %v417
          %v419 = vpop.xlane.xlu0 %418
          %v420 = vrcp.pop 32.0
          %v421 = vmul.f32 32.0, %v420
          %v422 = vsub.f32 1.0, %v421
          %v423 = vmul.f32 %v420, %v422
          %v424 = vadd.f32 %v420, %v423
          %vm425 = vweird.f32 %v420
          %v426 = vsel %vm425, %v420, %v424
          %v427 = vmul.f32 %v419, %v426
          %v428 = vsub.f32 %v413, %v427
          %v429 = vmul.f32 %v428, %v428
          %v430 = vsel %vm416, %v429, 0.0
          %431 = vadd.xlane.f32.xlu0 %v430
          %v432 = vpop.xlane.xlu0 %431
          %v433 = vmul.f32 %v432, %v426
          %v434 = vadd.f32 %v433, 1e-05
          %v435 = vrsqrt.pop %v434
          %v436 = vmul.f32 %v435, %v434
          %v437 = vmul.f32 %v436, %v435
          %v438 = vmul.f32 0.5, %v437
          %v439 = vsub.f32 1.5, %v438
          %v440 = vmul.f32 %v435, %v439
          %vm441 = vweird.f32 %v434
          %vm442 = vweird.f32 %v435
          %vm443 = vmor %vm441, %vm442
          %v444 = vsel %vm443, %v435, %v440
          %v445 = vmul.f32 %v428, %v444
          %v447 = vperm.slane %v414, 0
          %v449 = vmul.f32 %v445, %v447
          %v451 = vperm.slane %v415, 0
          %v453 = vadd.f32 %v449, %v451
          %v454 = vpack.c.bf16 %v453, %v453
          %v455 = vld [vmem:[#allocation5] sm:$0xf]
          %v456 = vld [vmem:[#allocation5 + $0x4] sm:$0xf]
          %v457 = vld [vmem:[#allocation5 + $0x8] sm:$0xf]
          %v458 = vld [vmem:[#allocation5 + $0xc] sm:$0xf]
          %v459 = vld [vmem:[%s5] sm:$0x1]
          %v461 = vperm.slane %v459, 0
          %v466 = vunpack.c.l.b16 %v455
          %v467 = vunpack.c.l.b16 %v456
          %v468 = vunpack.c.l.b16 %v457
          %v469 = vunpack.c.l.b16 %v458
          %v470 = vpack.c.b16 %v467, %v466
          %v471 = vpack.c.b16 %v469, %v468
          %472 = vrot.lane.b32.xlu0 %v470, 96
          %v473 = vpop.permute.xlu0 %472
          %474 = vrot.lane.b32.xlu0 %v471, 96
          %v475 = vpop.permute.xlu0 %474
          %478 = vrot.lane.b32.xlu0 %v461, 96
          %v479 = vpop.permute.xlu0 %478
          %v482 = vsel %vm416, %v454, 0
          %484 = vmatpush.bf16.msra.mxu0 0
          %485 = vmatpush.bf16.msra.mxu0 0
          %486 = vmatpush.bf16.msra.mxu0 0
          %487 = vmatpush.bf16.msra.mxu0 0
          %488 = vmatpush.bf16.msra.mxu0 0
          %489 = vmatpush.bf16.msra.mxu0 0
          %490 = vmatpush.bf16.msra.mxu0 %v475
          %491 = vmatpush.bf16.msra.mxu0 %v473
          %492 = vmatmul.bf16.gmra.mxu0 %v482
          %v493 = vpop.f32.mrf.mxu0
          %v494 = vadd.f32 %v479, %v493
          %v495 = vpop.f32.mrf.mxu0
          %496 = vdwg.mxu0
          %v497 = vpack.c.bf16 %v494, %v494
          %vm498 = vcmask 519168
          %499 = vst.msk [vmem:[#allocation2] sm:$0xf] %vm498, %v497
        $region72: #{decoder.6} parent=51 // pred_fallthru
          _
        %s500 = scalar_lea.vmem %s341, %s408 [#allocation3]
        %v501 = vld [vmem:[%s500] sm:$0xff]
        %v502 = vld [vmem:[%s2] sm:$0x1]
        %v503 = vld [vmem:[%s3] sm:$0x1]
        %vm504 = vcmask 261120
        %v505 = vsel %vm504, %v501, 0.0
        %506 = vadd.xlane.f32.xlu0 %v505
        %v507 = vpop.xlane.xlu0 %506
        %v508 = vrcp.pop 32.0
        %v509 = vmul.f32 32.0, %v508
        %v510 = vsub.f32 1.0, %v509
        %v511 = vmul.f32 %v508, %v510
        %v512 = vadd.f32 %v508, %v511
        %vm513 = vweird.f32 %v508
        %v514 = vsel %vm513, %v508, %v512
        %v515 = vmul.f32 %v507, %v514
        %v516 = vsub.f32 %v501, %v515
        %v517 = vmul.f32 %v516, %v516
        %v518 = vsel %vm504, %v517, 0.0
        %519 = vadd.xlane.f32.xlu0 %v518
        %v520 = vpop.xlane.xlu0 %519
        %v521 = vmul.f32 %v520, %v514
        %v522 = vadd.f32 %v521, 1e-05
        %v523 = vrsqrt.pop %v522
        %v524 = vmul.f32 %v523, %v522
        %v525 = vmul.f32 %v524, %v523
        %v526 = vmul.f32 0.5, %v525
        %v527 = vsub.f32 1.5, %v526
        %v528 = vmul.f32 %v523, %v527
        %vm529 = vweird.f32 %v522
        %vm530 = vweird.f32 %v523
        %vm531 = vmor %vm529, %vm530
        %v532 = vsel %vm531, %v523, %v528
        %v533 = vmul.f32 %v516, %v532
        %v535 = vperm.slane %v502, 0
        %v537 = vmul.f32 %v533, %v535
        %v539 = vperm.slane %v503, 0
        %v541 = vadd.f32 %v537, %v539
        %v542 = vpack.c.bf16 %v541, %v541
        %v543 = vld [vmem:[#allocation5] sm:$0xf]
        %v544 = vld [vmem:[#allocation5 + $0x4] sm:$0xf]
        %v545 = vld [vmem:[#allocation5 + $0x8] sm:$0xf]
        %v546 = vld [vmem:[#allocation5 + $0xc] sm:$0xf]
        %v547 = vld [vmem:[%s5] sm:$0x1]
        %v549 = vperm.slane %v547, 0
        %v555 = vunpack.c.l.b16 %v543
        %v556 = vunpack.c.l.b16 %v544
        %v557 = vunpack.c.l.b16 %v545
        %v558 = vunpack.c.l.b16 %v546
        %v559 = vpack.c.b16 %v556, %v555
        %v560 = vpack.c.b16 %v558, %v557
        %v564 = vsel %vm504, %v542, 0
        %566 = vmatpush.bf16.msra.mxu0 0
        %567 = vmatpush.bf16.msra.mxu0 0
        %568 = vmatpush.bf16.msra.mxu0 0
        %569 = vmatpush.bf16.msra.mxu0 0
        %570 = vmatpush.bf16.msra.mxu0 0
        %571 = vmatpush.bf16.msra.mxu0 0
        %572 = vmatpush.bf16.msra.mxu0 %v560
        %573 = vmatpush.bf16.msra.mxu0 %v559
        %574 = vmatmul.bf16.gmra.mxu0 %v564
        %v575 = vpop.f32.mrf.mxu0
        %v576 = vadd.f32 %v549, %v575
        %v577 = vpop.f32.mrf.mxu0
        %578 = vdwg.mxu0
        %v579 = vpack.c.bf16 %v576, %v576
        %v580 = vld [vmem:[#allocation2] sm:$0xf]
        %v581 = vlaneseq
        %v582 = vshrl.u32 %v581, 7
        %v583 = vstv %s408
        %v584 = vadd.s32 %v583, %v582
        %v585 = vlaneseq
        %v586 = vand.u32 %v585, 127
        %vm587 = vcmp.ge.s32.totalorder %v584, %v586
        %v588 = vld [vmem:[%s397] sm:$0x1]
        %vm589 = vnez %v588
        %v590 = vsel %vm589, 16843009, 0
        %v591 = vunpack.c.0.s8 %v590
        %vm592 = vcmp.ne.s32.totalorder %v591, 0
        %v593 = vsel %vm592, 1, 0
        %v594 = vperm.slane %v593, 0
        %vm595 = vcmp.eq.s32.totalorder %v594, 1
        %vm596 = vmand %vm587, %vm595
        %v597 = vld [vmem:[#allocation7] sm:$0xf]
        %v598 = vld [vmem:[#allocation7 + $0x4] sm:$0xf]
        %v599 = vld [vmem:[#allocation7 + $0x8] sm:$0xf]
        %v600 = vld [vmem:[#allocation7 + $0xc] sm:$0xf]
        %vm601 = vcmask 64512
        %v603 = vsel %vm601, %v579, 0
        %v606 = vsel %vm601, %v580, 0
        %608 = vmatpush.bf16.xpose.msra.mxu0 0
        %609 = vmatpush.bf16.xpose.msra.mxu0 0
        %610 = vmatpush.bf16.xpose.msra.mxu0 0
        %611 = vmatpush.bf16.xpose.msra.mxu0 0
        %612 = vmatpush.bf16.xpose.msra.mxu0 0
        %613 = vmatpush.bf16.xpose.msra.mxu0 0
        %614 = vmatpush.bf16.xpose.msra.mxu0 0
        %615 = vmatpush.bf16.xpose.msra.mxu0 %v606
        %616 = vmatmul.bf16.gmra.mxu0 %v603
        %v617 = vpop.f32.mrf.mxu0
        %v618 = vadd.f32 0.0, %v617
        %v619 = vpop.f32.mrf.mxu0
        %620 = vdwg.mxu0
        %v621 = vmul.f32 %v618, 0.35355338
        %v622 = vsel %vm596, %v621, -1e+09
        %v623 = vsel %vm601, %v622, -inf
        %624 = vmax.xlane.f32.xlu0 %v623
        %v625 = vpop.xlane.xlu0 %624
        %v626 = vsub.f32 %v622, %v625
        %v627 = vmul.f32 %v626, 1.442695
        %v628 = vpow.pop %v627
        %v629 = vsel %vm601, %v628, 0.0
        %630 = vadd.xlane.f32.xlu0 %v629
        %v631 = vpop.xlane.xlu0 %630
        %v632 = vpack.c.bf16 %v628, %v628
        %v634 = vunpack.c.l.b16 %v580
        %v635 = vpack.c.b16 %v634, %v634
        %636 = vrot.lane.b32.xlu0 %v635, 96
        %v637 = vpop.permute.xlu0 %636
        %v639 = vsel %vm601, %v632, 0
        %vm641 = vcmask 1043456
        %v643 = vsel %vm641, %v637, 0
        %645 = vmatpush.bf16.msra.mxu0 0
        %646 = vmatpush.bf16.msra.mxu0 0
        %647 = vmatpush.bf16.msra.mxu0 0
        %648 = vmatpush.bf16.msra.mxu0 0
        %649 = vmatpush.bf16.msra.mxu0 0
        %650 = vmatpush.bf16.msra.mxu0 0
        %651 = vmatpush.bf16.msra.mxu0 0
        %652 = vmatpush.bf16.msra.mxu0 %v643
        %653 = vmatmul.bf16.gmra.mxu0 %v639
        %v654 = vpop.f32.mrf.mxu0
        %v655 = vadd.f32 0.0, %v654
        %v656 = vpop.f32.mrf.mxu0
        %657 = vdwg.mxu0
        %v658 = vrcp.pop %v631
        %v659 = vmul.f32 %v655, %v658
        %v660 = vpack.c.bf16 %v659, %v659
        %v662 = vunpack.c.l.b16 %v579
        %v663 = vpack.c.b16 %v662, %v662
        %664 = vrot.lane.b32.xlu0 %v663, 120
        %v665 = vpop.permute.xlu0 %664
        %666 = vrot.lane.b32.xlu0 %v635, 120
        %v667 = vpop.permute.xlu0 %666
        %v669 = vsel %vm601, %v665, 0
        %v672 = vsel %vm601, %v667, 0
        %674 = vmatpush.bf16.xpose.msra.mxu0 0
        %675 = vmatpush.bf16.xpose.msra.mxu0 0
        %676 = vmatpush.bf16.xpose.msra.mxu0 0
        %677 = vmatpush.bf16.xpose.msra.mxu0 0
        %678 = vmatpush.bf16.xpose.msra.mxu0 0
        %679 = vmatpush.bf16.xpose.msra.mxu0 0
        %680 = vmatpush.bf16.xpose.msra.mxu0 0
        %681 = vmatpush.bf16.xpose.msra.mxu0 %v672
        %682 = vmatmul.bf16.gmra.mxu0 %v669
        %v683 = vpop.f32.mrf.mxu0
        %v684 = vadd.f32 0.0, %v683
        %v685 = vpop.f32.mrf.mxu0
        %686 = vdwg.mxu0
        %v687 = vmul.f32 %v684, 0.35355338
        %v688 = vsel %vm596, %v687, -1e+09
        %v689 = vsel %vm601, %v688, -inf
        %690 = vmax.xlane.f32.xlu0 %v689
        %v691 = vpop.xlane.xlu0 %690
        %v692 = vsub.f32 %v688, %v691
        %v693 = vmul.f32 %v692, 1.442695
        %v694 = vpow.pop %v693
        %v695 = vsel %vm601, %v694, 0.0
        %696 = vadd.xlane.f32.xlu0 %v695
        %v697 = vpop.xlane.xlu0 %696
        %v698 = vpack.c.bf16 %v694, %v694
        %699 = vrot.lane.b32.xlu0 %v635, 88
        %v700 = vpop.permute.xlu0 %699
        %v702 = vsel %vm601, %v698, 0
        %v705 = vsel %vm641, %v700, 0
        %707 = vmatpush.bf16.msra.mxu0 0
        %708 = vmatpush.bf16.msra.mxu0 0
        %709 = vmatpush.bf16.msra.mxu0 0
        %710 = vmatpush.bf16.msra.mxu0 0
        %711 = vmatpush.bf16.msra.mxu0 0
        %712 = vmatpush.bf16.msra.mxu0 0
        %713 = vmatpush.bf16.msra.mxu0 0
        %714 = vmatpush.bf16.msra.mxu0 %v705
        %715 = vmatmul.bf16.gmra.mxu0 %v702
        %v716 = vpop.f32.mrf.mxu0
        %v717 = vadd.f32 0.0, %v716
        %v718 = vpop.f32.mrf.mxu0
        %719 = vdwg.mxu0
        %v720 = vrcp.pop %v697
        %v721 = vmul.f32 %v717, %v720
        %v722 = vpack.c.bf16 %v721, %v721
        %723 = vrot.lane.b32.xlu0 %v663, 112
        %v724 = vpop.permute.xlu0 %723
        %725 = vrot.lane.b32.xlu0 %v635, 112
        %v726 = vpop.permute.xlu0 %725
        %v728 = vsel %vm601, %v724, 0
        %v731 = vsel %vm601, %v726, 0
        %733 = vmatpush.bf16.xpose.msra.mxu0 0
        %734 = vmatpush.bf16.xpose.msra.mxu0 0
        %735 = vmatpush.bf16.xpose.msra.mxu0 0
        %736 = vmatpush.bf16.xpose.msra.mxu0 0
        %737 = vmatpush.bf16.xpose.msra.mxu0 0
        %738 = vmatpush.bf16.xpose.msra.mxu0 0
        %739 = vmatpush.bf16.xpose.msra.mxu0 0
        %740 = vmatpush.bf16.xpose.msra.mxu0 %v731
        %741 = vmatmul.bf16.gmra.mxu0 %v728
        %v742 = vpop.f32.mrf.mxu0
        %v743 = vadd.f32 0.0, %v742
        %v744 = vpop.f32.mrf.mxu0
        %745 = vdwg.mxu0
        %v746 = vmul.f32 %v743, 0.35355338
        %v747 = vsel %vm596, %v746, -1e+09
        %v748 = vsel %vm601, %v747, -inf
        %749 = vmax.xlane.f32.xlu0 %v748
        %v750 = vpop.xlane.xlu0 %749
        %v751 = vsub.f32 %v747, %v750
        %v752 = vmul.f32 %v751, 1.442695
        %v753 = vpow.pop %v752
        %v754 = vsel %vm601, %v753, 0.0
        %755 = vadd.xlane.f32.xlu0 %v754
        %v756 = vpop.xlane.xlu0 %755
        %v757 = vpack.c.bf16 %v753, %v753
        %758 = vrot.lane.b32.xlu0 %v635, 80
        %v759 = vpop.permute.xlu0 %758
        %v761 = vsel %vm601, %v757, 0
        %v764 = vsel %vm641, %v759, 0
        %766 = vmatpush.bf16.msra.mxu0 0
        %767 = vmatpush.bf16.msra.mxu0 0
        %768 = vmatpush.bf16.msra.mxu0 0
        %769 = vmatpush.bf16.msra.mxu0 0
        %770 = vmatpush.bf16.msra.mxu0 0
        %771 = vmatpush.bf16.msra.mxu0 0
        %772 = vmatpush.bf16.msra.mxu0 0
        %773 = vmatpush.bf16.msra.mxu0 %v764
        %774 = vmatmul.bf16.gmra.mxu0 %v761
        %v775 = vpop.f32.mrf.mxu0
        %v776 = vadd.f32 0.0, %v775
        %v777 = vpop.f32.mrf.mxu0
        %778 = vdwg.mxu0
        %v779 = vrcp.pop %v756
        %v780 = vmul.f32 %v776, %v779
        %v781 = vpack.c.bf16 %v780, %v780
        %782 = vrot.lane.b32.xlu0 %v663, 104
        %v783 = vpop.permute.xlu0 %782
        %784 = vrot.lane.b32.xlu0 %v635, 104
        %v785 = vpop.permute.xlu0 %784
        %v787 = vsel %vm601, %v783, 0
        %v790 = vsel %vm601, %v785, 0
        %792 = vmatpush.bf16.xpose.msra.mxu0 0
        %793 = vmatpush.bf16.xpose.msra.mxu0 0
        %794 = vmatpush.bf16.xpose.msra.mxu0 0
        %795 = vmatpush.bf16.xpose.msra.mxu0 0
        %796 = vmatpush.bf16.xpose.msra.mxu0 0
        %797 = vmatpush.bf16.xpose.msra.mxu0 0
        %798 = vmatpush.bf16.xpose.msra.mxu0 0
        %799 = vmatpush.bf16.xpose.msra.mxu0 %v790
        %800 = vmatmul.bf16.gmra.mxu0 %v787
        %v801 = vpop.f32.mrf.mxu0
        %v802 = vadd.f32 0.0, %v801
        %v803 = vpop.f32.mrf.mxu0
        %804 = vdwg.mxu0
        %v805 = vmul.f32 %v802, 0.35355338
        %v806 = vsel %vm596, %v805, -1e+09
        %v807 = vsel %vm601, %v806, -inf
        %808 = vmax.xlane.f32.xlu0 %v807
        %v809 = vpop.xlane.xlu0 %808
        %v810 = vsub.f32 %v806, %v809
        %v811 = vmul.f32 %v810, 1.442695
        %v812 = vpow.pop %v811
        %v813 = vsel %vm601, %v812, 0.0
        %814 = vadd.xlane.f32.xlu0 %v813
        %v815 = vpop.xlane.xlu0 %814
        %v816 = vpack.c.bf16 %v812, %v812
        %817 = vrot.lane.b32.xlu0 %v635, 72
        %v818 = vpop.permute.xlu0 %817
        %v820 = vsel %vm601, %v816, 0
        %v823 = vsel %vm641, %v818, 0
        %825 = vmatpush.bf16.msra.mxu0 0
        %826 = vmatpush.bf16.msra.mxu0 0
        %827 = vmatpush.bf16.msra.mxu0 0
        %828 = vmatpush.bf16.msra.mxu0 0
        %829 = vmatpush.bf16.msra.mxu0 0
        %830 = vmatpush.bf16.msra.mxu0 0
        %831 = vmatpush.bf16.msra.mxu0 0
        %832 = vmatpush.bf16.msra.mxu0 %v823
        %833 = vmatmul.bf16.gmra.mxu0 %v820
        %v834 = vpop.f32.mrf.mxu0
        %v835 = vadd.f32 0.0, %v834
        %v836 = vpop.f32.mrf.mxu0
        %837 = vdwg.mxu0
        %v838 = vrcp.pop %v815
        %v839 = vmul.f32 %v835, %v838
        %v840 = vpack.c.bf16 %v839, %v839
        %v842 = vunpack.c.l.b16 %v722
        %v843 = vpack.c.b16 %v842, %v842
        %844 = vrot.lane.b32.xlu0 %v843, 8
        %v845 = vpop.permute.xlu0 %844
        %v847 = vunpack.c.l.b16 %v781
        %v848 = vpack.c.b16 %v847, %v847
        %849 = vrot.lane.b32.xlu0 %v848, 16
        %v850 = vpop.permute.xlu0 %849
        %v852 = vunpack.c.l.b16 %v840
        %v853 = vpack.c.b16 %v852, %v852
        %854 = vrot.lane.b32.xlu0 %v853, 24
        %v855 = vpop.permute.xlu0 %854
        %v858 = vsel %vm601, %v660, %v845
        %vm859 = vcmask 130048
        %v861 = vsel %vm859, %v858, %v850
        %vm862 = vcmask 195584
        %v864 = vsel %vm862, %v861, %v855
        %v865 = vld [vmem:[#allocation8] sm:$0x1]
        %v867 = vperm.slane %v865, 0
        %v873 = vunpack.c.l.b16 %v597
        %v874 = vunpack.c.l.b16 %v598
        %v875 = vunpack.c.l.b16 %v599
        %v876 = vunpack.c.l.b16 %v600
        %v877 = vpack.c.b16 %v874, %v873
        %v878 = vpack.c.b16 %v876, %v875
        %v881 = vsel %vm504, %v864, 0
        %883 = vmatpush.bf16.msra.mxu0 0
        %884 = vmatpush.bf16.msra.mxu0 0
        %885 = vmatpush.bf16.msra.mxu0 0
        %886 = vmatpush.bf16.msra.mxu0 0
        %887 = vmatpush.bf16.msra.mxu0 0
        %888 = vmatpush.bf16.msra.mxu0 0
        %889 = vmatpush.bf16.msra.mxu0 %v878
        %890 = vmatpush.bf16.msra.mxu0 %v877
        %891 = vmatmul.bf16.gmra.mxu0 %v881
        %v892 = vpop.f32.mrf.mxu0
        %v893 = vadd.f32 %v867, %v892
        %v894 = vpop.f32.mrf.mxu0
        %895 = vdwg.mxu0
        %v896 = vadd.f32 %v501, %v893
        %897 = vst.msk [vmem:[%s404] sm:$0xff] %vm504, %v896
        %p898 = scmp.lt.s32.totalorder %s28, 1
        %s899 = scalar_select %p898, %s28, 1
        %p900 = scmp.lt.s32.totalorder %s29, 0
        %s901 = scalar_select %p900, %s29, 0
        %s902 = sadd.s32 %s901, %s899
        %s903 = smul.addr %s902, 8
        %s904 = scalar_lea.vmem %s8, %s903
        // Predicated region
        $region73: #{decoder.6} parent=51 // pred_check
          %p905 = pneg %p234
        $region74: #{decoder.6} parent=51 // pred_check_branch
          %907 = sbr.rel (%p905) target = $region76
        $region75: #{decoder.6} parent=51 // pred_region
          _
        $region76: #{decoder.6} parent=51 // pred_fallthru
          _
      $region52: #{decoder.6} parent=5 // pred_fallthru
        _
      %p908 = scmp.le.s32.totalorder 2, %s19
      // Predicated region
      $region77: #{decoder.6} parent=5 // pred_check
        %p909 = pneg %p908
      $region78: #{decoder.6} parent=5 // pred_check_branch
        %911 = sbr.rel (%p909) target = $region80
      $region79: #{decoder.6} parent=5 // pred_region
        %s912 = ssub.s32 %s19, 2
        // Predicated region
        $region81: #{decoder.6} parent=79 // pred_check
          %p913 = pneg %p240
        $region82: #{decoder.6} parent=79 // pred_check_branch
          %915 = sbr.rel (%p913) target = $region84
        $region83: #{decoder.6} parent=79 // pred_region
          %p916 = scmp.lt.s32.totalorder %s30, 1
          %s917 = scalar_select %p916, %s30, 1
          %p918 = scmp.lt.s32.totalorder %s31, 0
          %s919 = scalar_select %p918, %s31, 0
          %s920 = sadd.s32 %s919, %s917
          %s921 = smul.addr %s920, 8
          %s922 = scalar_lea.vmem %s8, %s921
        $region84: #{decoder.6} parent=79 // pred_fallthru
          _
      $region80: #{decoder.6} parent=5 // pred_fallthru
        _
    $region6: #{decoder.6} parent=1 // loop_footer
      %s23 = sadd.s32 1, %s19
    $region7: #{decoder.6} parent=1 // loop_footer_branch
      %18 = sbr.rel target = $region3
    $region8: #{decoder.6} parent=1 // loop_exit
      _
    %923 = vsyncpa [#allocation4], 1
    %s924 = scalar_lea.sflag [#allocation4], 1
    %925 = vsyncpa %s924, 1
    %926 = vsyncpa [#allocation6], 1
    %927 = vsyncpa [#allocation9], 1

// kernel: decoder.7
$region0: #{decoder.7}
  #allocation0 [shape = 'u32[]', space=smem, size = 0x4, offset = 0x4, fixed_abs, tag = 'smem constant byte address 0x4 - core index']
  #allocation1 [shape = 'u32[72,128]{1,0:T(1,128)}', space=vmem, size = 0x9000, scoped, tag = 'internal scratch']
  #allocation2 [shape = 'bf16[8,64]{1,0:T(8,128)(2,1)}', space=vmem, size = 0x800, scoped, tag = 'scratch operand']
  #allocation3 [shape = 'bf16[8,64]{1,0:T(8,128)(2,1)}', space=vmem, size = 0x800, scoped, tag = 'scratch operand']
  %s0 = inlined_call_operand.vmem [shape: f32[2,8,32], index: 0, kind: input, shape index: {}]
  %s1 = inlined_call_operand.vmem [shape: f32[2,8,32], index: 1, kind: input, shape index: {}]
  %s2 = inlined_call_operand.hbm [shape: f32[2,8,32], index: 2, kind: input, shape index: {}]
  %s3 = inlined_call_operand.vmem [shape: s8[2,1,8], index: 3, kind: input, shape index: {}]
  %s4 = inlined_call_operand.hbm [shape: f32[1,32], index: 4, kind: input, shape index: {}]
  %s5 = inlined_call_operand.hbm [shape: f32[1,32], index: 5, kind: input, shape index: {}]
  %s6 = inlined_call_operand.hbm [shape: bf16[32,64], index: 6, kind: input, shape index: {}]
  %s7 = inlined_call_operand.hbm [shape: f32[1,64], index: 7, kind: input, shape index: {}]
  %s8 = inlined_call_operand.hbm [shape: bf16[32,64], index: 8, kind: input, shape index: {}]
  %s9 = inlined_call_operand.hbm [shape: f32[1,64], index: 9, kind: input, shape index: {}]
  %s10 = inlined_call_operand.hbm [shape: bf16[32,64], index: 10, kind: input, shape index: {}]
  %s11 = inlined_call_operand.hbm [shape: f32[1,64], index: 11, kind: input, shape index: {}]
  %s12 = inlined_call_operand.hbm [shape: bf16[32,32], index: 12, kind: input, shape index: {}]
  %s13 = inlined_call_operand.hbm [shape: f32[1,32], index: 13, kind: input, shape index: {}]
  %s14 = inlined_call_operand.hbm [shape: bf16[32,32], index: 14, kind: input, shape index: {}]
  %s15 = inlined_call_operand.hbm [shape: f32[1,32], index: 15, kind: input, shape index: {}]
  %s16 = inlined_call_operand.vmem [shape: f32[2,8,32], index: 16, kind: output, shape index: {}]
  %s17 = sld [smem:[#allocation0]]
  $region153: #{decoder.7} parent=0
    _
  %s19 = ssub.s32 1, %s17
  %s20 = scalar_select 0, %s19, %s17
  $region1: #{decoder.7} parent=0
    #allocation4 [shape = 'u8[8192]{0}', space=vmem, size = 0x2000, scoped, tag = 'input window, operand 2']
    #allocation5 [shape = 's32[2]{0}', space=sflag, size = 0x8, scoped, tag = 'scoped memory for decoder.7']
    #allocation6 [shape = 'u8[512]{0}', space=vmem, size = 0x400, scoped, tag = 'input window, operand 4, single buffered']
    #allocation7 [shape = 's32[1]{0}', space=sflag, size = 0x4, scoped, tag = 'scoped memory for decoder.7']
    #allocation8 [shape = 'u8[512]{0}', space=vmem, size = 0x400, scoped, tag = 'input window, operand 5, single buffered']
    #allocation9 [shape = 'u8[8192]{0}', space=vmem, size = 0x2000, scoped, tag = 'input window, operand 6, single buffered']
    #allocation10 [shape = 's32[1]{0}', space=sflag, size = 0x4, scoped, tag = 'scoped memory for decoder.7']
    #allocation11 [shape = 'u8[512]{0}', space=vmem, size = 0x400, scoped, tag = 'input window, operand 7, single buffered']
    #allocation12 [shape = 'u8[8192]{0}', space=vmem, size = 0x2000, scoped, tag = 'input window, operand 8, single buffered']
    #allocation13 [shape = 's32[1]{0}', space=sflag, size = 0x4, scoped, tag = 'scoped memory for decoder.7']
    #allocation14 [shape = 'u8[512]{0}', space=vmem, size = 0x400, scoped, tag = 'input window, operand 9, single buffered']
    #allocation15 [shape = 'u8[8192]{0}', space=vmem, size = 0x2000, scoped, tag = 'input window, operand 10, single buffered']
    #allocation16 [shape = 's32[1]{0}', space=sflag, size = 0x4, scoped, tag = 'scoped memory for decoder.7']
    #allocation17 [shape = 'u8[512]{0}', space=vmem, size = 0x400, scoped, tag = 'input window, operand 11, single buffered']
    #allocation18 [shape = 'u8[8192]{0}', space=vmem, size = 0x2000, scoped, tag = 'input window, operand 12, single buffered']
    #allocation19 [shape = 's32[1]{0}', space=sflag, size = 0x4, scoped, tag = 'scoped memory for decoder.7']
    #allocation20 [shape = 'u8[512]{0}', space=vmem, size = 0x400, scoped, tag = 'input window, operand 13, single buffered']
    #allocation21 [shape = 'u8[8192]{0}', space=vmem, size = 0x2000, scoped, tag = 'input window, operand 14, single buffered']
    #allocation22 [shape = 's32[1]{0}', space=sflag, size = 0x4, scoped, tag = 'scoped memory for decoder.7']
    #allocation23 [shape = 'u8[512]{0}', space=vmem, size = 0x400, scoped, tag = 'input window, operand 15, single buffered']
    %21 = vsyncpa [#allocation5], 0
    %s22 = scalar_lea.sflag [#allocation5], 1
    %23 = vsyncpa %s22, 0
    %24 = vsyncpa [#allocation7], 0
    %25 = vsyncpa [#allocation10], 0
    %26 = vsyncpa [#allocation13], 0
    %27 = vsyncpa [#allocation16], 0
    %28 = vsyncpa [#allocation19], 0
    %29 = vsyncpa [#allocation22], 0
    loop: start=0, step=1, limit=4
    $region2: #{decoder.7} parent=1 // loop_pre_header
      _
    $region3: #{decoder.7} parent=1 // loop_header
      %s31 = sphi 0, %s35
      %p32 = scmp.ge.s32.totalorder %s31, 4
      %s38 = sphi 0, %s50
      %s39 = sphi 0, %s46
      %s40 = sphi 0, %s38
      %s41 = sphi 0, %s39
      %s42 = sphi 0, %s40
      %s43 = sphi 0, %s41
      %s55 = sphi 0, %s57
      %s58 = sphi 0, %s55
      %s59 = sphi 0, %s58
      %s75 = sphi 0, %s59
      %s81 = sphi 0, %s83
      %s84 = sphi 0, %s81
      %s85 = sphi 0, %s84
      %s101 = sphi 0, %s85
      %s107 = sphi 0, %s109
      %s110 = sphi 0, %s107
      %s111 = sphi 0, %s110
      %s127 = sphi 0, %s111
      %s133 = sphi 0, %s135
      %s136 = sphi 0, %s133
      %s137 = sphi 0, %s136
      %s153 = sphi 0, %s137
      %s157 = sphi 0, %s157
      %s159 = sphi 0, %s157
      %s160 = sphi 0, %s159
      %s174 = sphi 0, %s160
      %s178 = sphi 0, %s178
      %s180 = sphi 0, %s178
      %s181 = sphi 0, %s180
      %s195 = sphi 0, %s181
      %s199 = sphi 0, %s199
      %s201 = sphi 0, %s199
      %s202 = sphi 0, %s201
      %s216 = sphi 0, %s202
      %s220 = sphi 0, %s220
      %s222 = sphi 0, %s220
      %s223 = sphi 0, %s222
      %s237 = sphi 0, %s223
      %s241 = sphi 0, %s241
      %s243 = sphi 0, %s241
      %s244 = sphi 0, %s243
      %s258 = sphi 0, %s244
      %s262 = sphi 0, %s262
      %s264 = sphi 0, %s262
      %s265 = sphi 0, %s264
      %s279 = sphi 0, %s265
      %s283 = sphi 0, %s283
      %s285 = sphi 0, %s283
      %s286 = sphi 0, %s285
      %s300 = sphi 0, %s286
      %s304 = sphi 0, %s304
      %s306 = sphi 0, %s304
      %s307 = sphi 0, %s306
      %s321 = sphi 0, %s307
      %s325 = sphi 0, %s325
      %s327 = sphi 0, %s325
      %s328 = sphi 0, %s327
      %s342 = sphi 0, %s328
      %s346 = sphi 0, %s346
      %s348 = sphi 0, %s346
      %s349 = sphi 0, %s348
      %s363 = sphi 0, %s349
      %s367 = sphi 0, %s367
      %s369 = sphi 0, %s367
      %s370 = sphi 0, %s369
      %s384 = sphi 0, %s370
      %s388 = sphi 0, %s388
      %s390 = sphi 0, %s388
      %s391 = sphi 0, %s390
      %s405 = sphi 0, %s391
      %s413 = sphi 0, %s415
      %s416 = sphi 0, %s413
      %s417 = sphi 0, %s416
      %s433 = sphi 0, %s417
    $region4: #{decoder.7} parent=1 // loop_header_branch
      %34 = sbr.rel (%p32) target = $region8
    $region5: #{decoder.7} parent=1 // loop_body
      %s36 = ssub.s32 %s31, 1
      %s37 = ssub.s32 %s31, 2
      %s44 = sadd.s32 1, %s39
      %p45 = scmp.ge.s32.totalorder %s44, 1
      %s46 = scalar_select %p45, 0, %s44
      %s47 = sadd.s32 1, %s38
      %s48 = scalar_select %p45, %s47, %s38
      %p49 = scmp.ge.s32.totalorder %s48, 2
      %s50 = scalar_select %p49, 0, %s48
      %s51 = ssub.s32 %s38, %s50
      %s52 = ssub.s32 %s39, %s46
      %s53 = sor.u32 %s51, %s52
      %p54 = scmp.eq.s32.totalorder %s53, 0
      %s56 = sadd.s32 %s55, 1
      %s57 = scalar_select %p54, %s55, %s56
      %p60 = pneg %p54
      %p61 = scmp.eq.s32.totalorder %s31, 1
      %p62 = por %p60, %p61
      %p63 = scmp.ne.s32.totalorder %s55, %s58
      %p64 = scmp.eq.s32.totalorder %s31, 0
      %p65 = por %p63, %p64
      %p66 = scmp.ne.s32.totalorder %s55, %s58
      %p67 = scmp.eq.s32.totalorder %s36, 1
      %p68 = por %p66, %p67
      %p69 = scmp.ne.s32.totalorder %s58, %s59
      %p70 = scmp.eq.s32.totalorder %s36, 0
      %p71 = por %p69, %p70
      %p72 = scmp.ne.s32.totalorder %s58, %s59
      %p73 = scmp.eq.s32.totalorder %s37, 1
      %p74 = por %p72, %p73
      %p76 = scmp.ne.s32.totalorder %s59, %s75
      %p77 = scmp.eq.s32.totalorder %s37, 0
      %p78 = por %p76, %p77
      %s79 = ssub.s32 %s38, %s50
      %p80 = scmp.eq.s32.totalorder %s79, 0
      %s82 = sadd.s32 %s81, 1
      %s83 = scalar_select %p80, %s81, %s82
      %p86 = pneg %p80
      %p87 = scmp.eq.s32.totalorder %s31, 1
      %p88 = por %p86, %p87
      %p89 = scmp.ne.s32.totalorder %s81, %s84
      %p90 = scmp.eq.s32.totalorder %s31, 0
      %p91 = por %p89, %p90
      %p92 = scmp.ne.s32.totalorder %s81, %s84
      %p93 = scmp.eq.s32.totalorder %s36, 1
      %p94 = por %p92, %p93
      %p95 = scmp.ne.s32.totalorder %s84, %s85
      %p96 = scmp.eq.s32.totalorder %s36, 0
      %p97 = por %p95, %p96
      %p98 = scmp.ne.s32.totalorder %s84, %s85
      %p99 = scmp.eq.s32.totalorder %s37, 1
      %p100 = por %p98, %p99
      %p102 = scmp.ne.s32.totalorder %s85, %s101
      %p103 = scmp.eq.s32.totalorder %s37, 0
      %p104 = por %p102, %p103
      %s105 = ssub.s32 %s38, %s50
      %p106 = scmp.eq.s32.totalorder %s105, 0
      %s108 = sadd.s32 %s107, 1
      %s109 = scalar_select %p106, %s107, %s108
      %p112 = pneg %p106
      %p113 = scmp.eq.s32.totalorder %s31, 1
      %p114 = por %p112, %p113
      %p115 = scmp.ne.s32.totalorder %s107, %s110
      %p116 = scmp.eq.s32.totalorder %s31, 0
      %p117 = por %p115, %p116
      %p118 = scmp.ne.s32.totalorder %s107, %s110
      %p119 = scmp.eq.s32.totalorder %s36, 1
      %p120 = por %p118, %p119
      %p121 = scmp.ne.s32.totalorder %s110, %s111
      %p122 = scmp.eq.s32.totalorder %s36, 0
      %p123 = por %p121, %p122
      %p124 = scmp.ne.s32.totalorder %s110, %s111
      %p125 = scmp.eq.s32.totalorder %s37, 1
      %p126 = por %p124, %p125
      %p128 = scmp.ne.s32.totalorder %s111, %s127
      %p129 = scmp.eq.s32.totalorder %s37, 0
      %p130 = por %p128, %p129
      %s131 = ssub.s32 %s38, %s50
      %p132 = scmp.eq.s32.totalorder %s131, 0
      %s134 = sadd.s32 %s133, 1
      %s135 = scalar_select %p132, %s133, %s134
      %p138 = pneg %p132
      %p139 = scmp.eq.s32.totalorder %s31, 1
      %p140 = por %p138, %p139
      %p141 = scmp.ne.s32.totalorder %s133, %s136
      %p142 = scmp.eq.s32.totalorder %s31, 0
      %p143 = por %p141, %p142
      %p144 = scmp.ne.s32.totalorder %s133, %s136
      %p145 = scmp.eq.s32.totalorder %s36, 1
      %p146 = por %p144, %p145
      %p147 = scmp.ne.s32.totalorder %s136, %s137
      %p148 = scmp.eq.s32.totalorder %s36, 0
      %p149 = por %p147, %p148
      %p150 = scmp.ne.s32.totalorder %s136, %s137
      %p151 = scmp.eq.s32.totalorder %s37, 1
      %p152 = por %p150, %p151
      %p154 = scmp.ne.s32.totalorder %s137, %s153
      %p155 = scmp.eq.s32.totalorder %s37, 0
      %p156 = por %p154, %p155
      %s158 = sadd.s32 %s157, 1
      %p161 = scmp.eq.s32.totalorder %s31, 1
      %p162 = scmp.ne.s32.totalorder %s157, %s159
      %p163 = scmp.eq.s32.totalorder %s31, 0
      %p164 = por %p162, %p163
      %p165 = scmp.ne.s32.totalorder %s157, %s159
      %p166 = scmp.eq.s32.totalorder %s36, 1
      %p167 = por %p165, %p166
      %p168 = scmp.ne.s32.totalorder %s159, %s160
      %p169 = scmp.eq.s32.totalorder %s36, 0
      %p170 = por %p168, %p169
      %p171 = scmp.ne.s32.totalorder %s159, %s160
      %p172 = scmp.eq.s32.totalorder %s37, 1
      %p173 = por %p171, %p172
      %p175 = scmp.ne.s32.totalorder %s160, %s174
      %p176 = scmp.eq.s32.totalorder %s37, 0
      %p177 = por %p175, %p176
      %s179 = sadd.s32 %s178, 1
      %p182 = scmp.eq.s32.totalorder %s31, 1
      %p183 = scmp.ne.s32.totalorder %s178, %s180
      %p184 = scmp.eq.s32.totalorder %s31, 0
      %p185 = por %p183, %p184
      %p186 = scmp.ne.s32.totalorder %s178, %s180
      %p187 = scmp.eq.s32.totalorder %s36, 1
      %p188 = por %p186, %p187
      %p189 = scmp.ne.s32.totalorder %s180, %s181
      %p190 = scmp.eq.s32.totalorder %s36, 0
      %p191 = por %p189, %p190
      %p192 = scmp.ne.s32.totalorder %s180, %s181
      %p193 = scmp.eq.s32.totalorder %s37, 1
      %p194 = por %p192, %p193
      %p196 = scmp.ne.s32.totalorder %s181, %s195
      %p197 = scmp.eq.s32.totalorder %s37, 0
      %p198 = por %p196, %p197
      %s200 = sadd.s32 %s199, 1
      %p203 = scmp.eq.s32.totalorder %s31, 1
      %p204 = scmp.ne.s32.totalorder %s199, %s201
      %p205 = scmp.eq.s32.totalorder %s31, 0
      %p206 = por %p204, %p205
      %p207 = scmp.ne.s32.totalorder %s199, %s201
      %p208 = scmp.eq.s32.totalorder %s36, 1
      %p209 = por %p207, %p208
      %p210 = scmp.ne.s32.totalorder %s201, %s202
      %p211 = scmp.eq.s32.totalorder %s36, 0
      %p212 = por %p210, %p211
      %p213 = scmp.ne.s32.totalorder %s201, %s202
      %p214 = scmp.eq.s32.totalorder %s37, 1
      %p215 = por %p213, %p214
      %p217 = scmp.ne.s32.totalorder %s202, %s216
      %p218 = scmp.eq.s32.totalorder %s37, 0
      %p219 = por %p217, %p218
      %s221 = sadd.s32 %s220, 1
      %p224 = scmp.eq.s32.totalorder %s31, 1
      %p225 = scmp.ne.s32.totalorder %s220, %s222
      %p226 = scmp.eq.s32.totalorder %s31, 0
      %p227 = por %p225, %p226
      %p228 = scmp.ne.s32.totalorder %s220, %s222
      %p229 = scmp.eq.s32.totalorder %s36, 1
      %p230 = por %p228, %p229
      %p231 = scmp.ne.s32.totalorder %s222, %s223
      %p232 = scmp.eq.s32.totalorder %s36, 0
      %p233 = por %p231, %p232
      %p234 = scmp.ne.s32.totalorder %s222, %s223
      %p235 = scmp.eq.s32.totalorder %s37, 1
      %p236 = por %p234, %p235
      %p238 = scmp.ne.s32.totalorder %s223, %s237
      %p239 = scmp.eq.s32.totalorder %s37, 0
      %p240 = por %p238, %p239
      %s242 = sadd.s32 %s241, 1
      %p245 = scmp.eq.s32.totalorder %s31, 1
      %p246 = scmp.ne.s32.totalorder %s241, %s243
      %p247 = scmp.eq.s32.totalorder %s31, 0
      %p248 = por %p246, %p247
      %p249 = scmp.ne.s32.totalorder %s241, %s243
      %p250 = scmp.eq.s32.totalorder %s36, 1
      %p251 = por %p249, %p250
      %p252 = scmp.ne.s32.totalorder %s243, %s244
      %p253 = scmp.eq.s32.totalorder %s36, 0
      %p254 = por %p252, %p253
      %p255 = scmp.ne.s32.totalorder %s243, %s244
      %p256 = scmp.eq.s32.totalorder %s37, 1
      %p257 = por %p255, %p256
      %p259 = scmp.ne.s32.totalorder %s244, %s258
      %p260 = scmp.eq.s32.totalorder %s37, 0
      %p261 = por %p259, %p260
      %s263 = sadd.s32 %s262, 1
      %p266 = scmp.eq.s32.totalorder %s31, 1
      %p267 = scmp.ne.s32.totalorder %s262, %s264
      %p268 = scmp.eq.s32.totalorder %s31, 0
      %p269 = por %p267, %p268
      %p270 = scmp.ne.s32.totalorder %s262, %s264
      %p271 = scmp.eq.s32.totalorder %s36, 1
      %p272 = por %p270, %p271
      %p273 = scmp.ne.s32.totalorder %s264, %s265
      %p274 = scmp.eq.s32.totalorder %s36, 0
      %p275 = por %p273, %p274
      %p276 = scmp.ne.s32.totalorder %s264, %s265
      %p277 = scmp.eq.s32.totalorder %s37, 1
      %p278 = por %p276, %p277
      %p280 = scmp.ne.s32.totalorder %s265, %s279
      %p281 = scmp.eq.s32.totalorder %s37, 0
      %p282 = por %p280, %p281
      %s284 = sadd.s32 %s283, 1
      %p287 = scmp.eq.s32.totalorder %s31, 1
      %p288 = scmp.ne.s32.totalorder %s283, %s285
      %p289 = scmp.eq.s32.totalorder %s31, 0
      %p290 = por %p288, %p289
      %p291 = scmp.ne.s32.totalorder %s283, %s285
      %p292 = scmp.eq.s32.totalorder %s36, 1
      %p293 = por %p291, %p292
      %p294 = scmp.ne.s32.totalorder %s285, %s286
      %p295 = scmp.eq.s32.totalorder %s36, 0
      %p296 = por %p294, %p295
      %p297 = scmp.ne.s32.totalorder %s285, %s286
      %p298 = scmp.eq.s32.totalorder %s37, 1
      %p299 = por %p297, %p298
      %p301 = scmp.ne.s32.totalorder %s286, %s300
      %p302 = scmp.eq.s32.totalorder %s37, 0
      %p303 = por %p301, %p302
      %s305 = sadd.s32 %s304, 1
      %p308 = scmp.eq.s32.totalorder %s31, 1
      %p309 = scmp.ne.s32.totalorder %s304, %s306
      %p310 = scmp.eq.s32.totalorder %s31, 0
      %p311 = por %p309, %p310
      %p312 = scmp.ne.s32.totalorder %s304, %s306
      %p313 = scmp.eq.s32.totalorder %s36, 1
      %p314 = por %p312, %p313
      %p315 = scmp.ne.s32.totalorder %s306, %s307
      %p316 = scmp.eq.s32.totalorder %s36, 0
      %p317 = por %p315, %p316
      %p318 = scmp.ne.s32.totalorder %s306, %s307
      %p319 = scmp.eq.s32.totalorder %s37, 1
      %p320 = por %p318, %p319
      %p322 = scmp.ne.s32.totalorder %s307, %s321
      %p323 = scmp.eq.s32.totalorder %s37, 0
      %p324 = por %p322, %p323
      %s326 = sadd.s32 %s325, 1
      %p329 = scmp.eq.s32.totalorder %s31, 1
      %p330 = scmp.ne.s32.totalorder %s325, %s327
      %p331 = scmp.eq.s32.totalorder %s31, 0
      %p332 = por %p330, %p331
      %p333 = scmp.ne.s32.totalorder %s325, %s327
      %p334 = scmp.eq.s32.totalorder %s36, 1
      %p335 = por %p333, %p334
      %p336 = scmp.ne.s32.totalorder %s327, %s328
      %p337 = scmp.eq.s32.totalorder %s36, 0
      %p338 = por %p336, %p337
      %p339 = scmp.ne.s32.totalorder %s327, %s328
      %p340 = scmp.eq.s32.totalorder %s37, 1
      %p341 = por %p339, %p340
      %p343 = scmp.ne.s32.totalorder %s328, %s342
      %p344 = scmp.eq.s32.totalorder %s37, 0
      %p345 = por %p343, %p344
      %s347 = sadd.s32 %s346, 1
      %p350 = scmp.eq.s32.totalorder %s31, 1
      %p351 = scmp.ne.s32.totalorder %s346, %s348
      %p352 = scmp.eq.s32.totalorder %s31, 0
      %p353 = por %p351, %p352
      %p354 = scmp.ne.s32.totalorder %s346, %s348
      %p355 = scmp.eq.s32.totalorder %s36, 1
      %p356 = por %p354, %p355
      %p357 = scmp.ne.s32.totalorder %s348, %s349
      %p358 = scmp.eq.s32.totalorder %s36, 0
      %p359 = por %p357, %p358
      %p360 = scmp.ne.s32.totalorder %s348, %s349
      %p361 = scmp.eq.s32.totalorder %s37, 1
      %p362 = por %p360, %p361
      %p364 = scmp.ne.s32.totalorder %s349, %s363
      %p365 = scmp.eq.s32.totalorder %s37, 0
      %p366 = por %p364, %p365
      %s368 = sadd.s32 %s367, 1
      %p371 = scmp.eq.s32.totalorder %s31, 1
      %p372 = scmp.ne.s32.totalorder %s367, %s369
      %p373 = scmp.eq.s32.totalorder %s31, 0
      %p374 = por %p372, %p373
      %p375 = scmp.ne.s32.totalorder %s367, %s369
      %p376 = scmp.eq.s32.totalorder %s36, 1
      %p377 = por %p375, %p376
      %p378 = scmp.ne.s32.totalorder %s369, %s370
      %p379 = scmp.eq.s32.totalorder %s36, 0
      %p380 = por %p378, %p379
      %p381 = scmp.ne.s32.totalorder %s369, %s370
      %p382 = scmp.eq.s32.totalorder %s37, 1
      %p383 = por %p381, %p382
      %p385 = scmp.ne.s32.totalorder %s370, %s384
      %p386 = scmp.eq.s32.totalorder %s37, 0
      %p387 = por %p385, %p386
      %s389 = sadd.s32 %s388, 1
      %p392 = scmp.eq.s32.totalorder %s31, 1
      %p393 = scmp.ne.s32.totalorder %s388, %s390
      %p394 = scmp.eq.s32.totalorder %s31, 0
      %p395 = por %p393, %p394
      %p396 = scmp.ne.s32.totalorder %s388, %s390
      %p397 = scmp.eq.s32.totalorder %s36, 1
      %p398 = por %p396, %p397
      %p399 = scmp.ne.s32.totalorder %s390, %s391
      %p400 = scmp.eq.s32.totalorder %s36, 0
      %p401 = por %p399, %p400
      %p402 = scmp.ne.s32.totalorder %s390, %s391
      %p403 = scmp.eq.s32.totalorder %s37, 1
      %p404 = por %p402, %p403
      %p406 = scmp.ne.s32.totalorder %s391, %s405
      %p407 = scmp.eq.s32.totalorder %s37, 0
      %p408 = por %p406, %p407
      %s409 = ssub.s32 %s38, %s50
      %s410 = ssub.s32 %s39, %s46
      %s411 = sor.u32 %s409, %s410
      %p412 = scmp.eq.s32.totalorder %s411, 0
      %s414 = sadd.s32 %s413, 1
      %s415 = scalar_select %p412, %s413, %s414
      %p418 = pneg %p412
      %p419 = scmp.eq.s32.totalorder %s31, 1
      %p420 = por %p418, %p419
      %p421 = scmp.ne.s32.totalorder %s413, %s416
      %p422 = scmp.eq.s32.totalorder %s31, 0
      %p423 = por %p421, %p422
      %p424 = scmp.ne.s32.totalorder %s413, %s416
      %p425 = scmp.eq.s32.totalorder %s36, 1
      %p426 = por %p424, %p425
      %p427 = scmp.ne.s32.totalorder %s416, %s417
      %p428 = scmp.eq.s32.totalorder %s36, 0
      %p429 = por %p427, %p428
      %p430 = scmp.ne.s32.totalorder %s416, %s417
      %p431 = scmp.eq.s32.totalorder %s37, 1
      %p432 = por %p430, %p431
      %p434 = scmp.ne.s32.totalorder %s417, %s433
      %p435 = scmp.eq.s32.totalorder %s37, 0
      %p436 = por %p434, %p435
      %p437 = scmp.le.s32.totalorder 1, %s31
      %p438 = scmp.lt.s32.totalorder %s31, 3
      %p439 = pnand %p437, %p438
      %p440 = pneg %p439
      // Predicated region
      $region9: #{decoder.7} parent=5 // pred_check
        _
      $region10: #{decoder.7} parent=5 // pred_check_branch
        %442 = sbr.rel (%p439) target = $region12
      $region11: #{decoder.7} parent=5 // pred_region
        %s443 = ssub.s32 %s31, 1
        // Predicated region
        $region13: #{decoder.7} parent=11 // pred_check
          %p444 = pneg %p170
        $region14: #{decoder.7} parent=11 // pred_check_branch
          %446 = sbr.rel (%p444) target = $region16
        $region15: #{decoder.7} parent=11 // pred_region
          %448 = vsyncadd [#allocation7], 0
          %s450 = sshll.u32 %s4, 4
          %s451 = int_to_ptr.hbm [resolvable:$true] %s450
          %s452 = sshll.u32 [#allocation6], 4
          %s453 = int_to_ptr.vmem [resolvable:$true] %s452
          %455 = dma.hbm_to_vmem [thread:$0]  %s451, 16, %s453, [#allocation7]
        $region16: #{decoder.7} parent=11 // pred_fallthru
          _
        // Predicated region
        $region17: #{decoder.7} parent=11 // pred_check
          %p456 = pneg %p191
        $region18: #{decoder.7} parent=11 // pred_check_branch
          %458 = sbr.rel (%p456) target = $region20
        $region19: #{decoder.7} parent=11 // pred_region
          %460 = vsyncadd [#allocation7], 0
          %s462 = sshll.u32 %s5, 4
          %s463 = int_to_ptr.hbm [resolvable:$true] %s462
          %s464 = sshll.u32 [#allocation8], 4
          %s465 = int_to_ptr.vmem [resolvable:$true] %s464
          %467 = dma.hbm_to_vmem [thread:$0]  %s463, 16, %s465, [#allocation7]
        $region20: #{decoder.7} parent=11 // pred_fallthru
          _
        // Predicated region
        $region21: #{decoder.7} parent=11 // pred_check
          %p468 = pneg %p212
        $region22: #{decoder.7} parent=11 // pred_check_branch
          %470 = sbr.rel (%p468) target = $region24
        $region23: #{decoder.7} parent=11 // pred_region
          %472 = vsyncadd [#allocation10], 0
          %s473 = sshll.u32 %s6, 4
          %s474 = int_to_ptr.hbm [resolvable:$true] %s473
          %s475 = sshll.u32 [#allocation9], 4
          %s476 = int_to_ptr.vmem [resolvable:$true] %s475
          %481 = dma.hbm_to_vmem [thread:$0]  %s474, 256, %s476, [#allocation10], 64, 64, 4
        $region24: #{decoder.7} parent=11 // pred_fallthru
          _
        // Predicated region
        $region25: #{decoder.7} parent=11 // pred_check
          %p482 = pneg %p233
        $region26: #{decoder.7} parent=11 // pred_check_branch
          %484 = sbr.rel (%p482) target = $region28
        $region27: #{decoder.7} parent=11 // pred_region
          %486 = vsyncadd [#allocation10], 0
          %s488 = sshll.u32 %s7, 4
          %s489 = int_to_ptr.hbm [resolvable:$true] %s488
          %s490 = sshll.u32 [#allocation11], 4
          %s491 = int_to_ptr.vmem [resolvable:$true] %s490
          %493 = dma.hbm_to_vmem [thread:$0]  %s489, 16, %s491, [#allocation10]
        $region28: #{decoder.7} parent=11 // pred_fallthru
          _
        // Predicated region
        $region29: #{decoder.7} parent=11 // pred_check
          %p494 = pneg %p254
        $region30: #{decoder.7} parent=11 // pred_check_branch
          %496 = sbr.rel (%p494) target = $region32
        $region31: #{decoder.7} parent=11 // pred_region
          %498 = vsyncadd [#allocation13], 0
          %s499 = sshll.u32 %s8, 4
          %s500 = int_to_ptr.hbm [resolvable:$true] %s499
          %s501 = sshll.u32 [#allocation12], 4
          %s502 = int_to_ptr.vmem [resolvable:$true] %s501
          %507 = dma.hbm_to_vmem [thread:$0]  %s500, 256, %s502, [#allocation13], 64, 64, 4
        $region32: #{decoder.7} parent=11 // pred_fallthru
          _
        // Predicated region
        $region33: #{decoder.7} parent=11 // pred_check
          %p508 = pneg %p275
        $region34: #{decoder.7} parent=11 // pred_check_branch
          %510 = sbr.rel (%p508) target = $region36
        $region35: #{decoder.7} parent=11 // pred_region
          %512 = vsyncadd [#allocation13], 0
          %s514 = sshll.u32 %s9, 4
          %s515 = int_to_ptr.hbm [resolvable:$true] %s514
          %s516 = sshll.u32 [#allocation14], 4
          %s517 = int_to_ptr.vmem [resolvable:$true] %s516
          %519 = dma.hbm_to_vmem [thread:$0]  %s515, 16, %s517, [#allocation13]
        $region36: #{decoder.7} parent=11 // pred_fallthru
          _
        // Predicated region
        $region37: #{decoder.7} parent=11 // pred_check
          %p520 = pneg %p296
        $region38: #{decoder.7} parent=11 // pred_check_branch
          %522 = sbr.rel (%p520) target = $region40
        $region39: #{decoder.7} parent=11 // pred_region
          %524 = vsyncadd [#allocation16], 0
          %s525 = sshll.u32 %s10, 4
          %s526 = int_to_ptr.hbm [resolvable:$true] %s525
          %s527 = sshll.u32 [#allocation15], 4
          %s528 = int_to_ptr.vmem [resolvable:$true] %s527
          %533 = dma.hbm_to_vmem [thread:$0]  %s526, 256, %s528, [#allocation16], 64, 64, 4
        $region40: #{decoder.7} parent=11 // pred_fallthru
          _
        // Predicated region
        $region41: #{decoder.7} parent=11 // pred_check
          %p534 = pneg %p317
        $region42: #{decoder.7} parent=11 // pred_check_branch
          %536 = sbr.rel (%p534) target = $region44
        $region43: #{decoder.7} parent=11 // pred_region
          %538 = vsyncadd [#allocation16], 0
          %s540 = sshll.u32 %s11, 4
          %s541 = int_to_ptr.hbm [resolvable:$true] %s540
          %s542 = sshll.u32 [#allocation17], 4
          %s543 = int_to_ptr.vmem [resolvable:$true] %s542
          %545 = dma.hbm_to_vmem [thread:$0]  %s541, 16, %s543, [#allocation16]
        $region44: #{decoder.7} parent=11 // pred_fallthru
          _
        // Predicated region
        $region45: #{decoder.7} parent=11 // pred_check
          %p546 = pneg %p338
        $region46: #{decoder.7} parent=11 // pred_check_branch
          %548 = sbr.rel (%p546) target = $region48
        $region47: #{decoder.7} parent=11 // pred_region
          %550 = vsyncadd [#allocation19], 0
          %s551 = sshll.u32 %s12, 4
          %s552 = int_to_ptr.hbm [resolvable:$true] %s551
          %s553 = sshll.u32 [#allocation18], 4
          %s554 = int_to_ptr.vmem [resolvable:$true] %s553
          %559 = dma.hbm_to_vmem [thread:$0]  %s552, 256, %s554, [#allocation19], 64, 64, 4
        $region48: #{decoder.7} parent=11 // pred_fallthru
          _
        // Predicated region
        $region49: #{decoder.7} parent=11 // pred_check
          %p560 = pneg %p359
        $region50: #{decoder.7} parent=11 // pred_check_branch
          %562 = sbr.rel (%p560) target = $region52
        $region51: #{decoder.7} parent=11 // pred_region
          %564 = vsyncadd [#allocation19], 0
          %s566 = sshll.u32 %s13, 4
          %s567 = int_to_ptr.hbm [resolvable:$true] %s566
          %s568 = sshll.u32 [#allocation20], 4
          %s569 = int_to_ptr.vmem [resolvable:$true] %s568
          %571 = dma.hbm_to_vmem [thread:$0]  %s567, 16, %s569, [#allocation19]
        $region52: #{decoder.7} parent=11 // pred_fallthru
          _
        // Predicated region
        $region53: #{decoder.7} parent=11 // pred_check
          %p572 = pneg %p380
        $region54: #{decoder.7} parent=11 // pred_check_branch
          %574 = sbr.rel (%p572) target = $region56
        $region55: #{decoder.7} parent=11 // pred_region
          %576 = vsyncadd [#allocation22], 0
          %s577 = sshll.u32 %s14, 4
          %s578 = int_to_ptr.hbm [resolvable:$true] %s577
          %s579 = sshll.u32 [#allocation21], 4
          %s580 = int_to_ptr.vmem [resolvable:$true] %s579
          %585 = dma.hbm_to_vmem [thread:$0]  %s578, 256, %s580, [#allocation22], 64, 64, 4
        $region56: #{decoder.7} parent=11 // pred_fallthru
          _
        // Predicated region
        $region57: #{decoder.7} parent=11 // pred_check
          %p586 = pneg %p401
        $region58: #{decoder.7} parent=11 // pred_check_branch
          %588 = sbr.rel (%p586) target = $region60
        $region59: #{decoder.7} parent=11 // pred_region
          %590 = vsyncadd [#allocation22], 0
          %s592 = sshll.u32 %s15, 4
          %s593 = int_to_ptr.hbm [resolvable:$true] %s592
          %s594 = sshll.u32 [#allocation23], 4
          %s595 = int_to_ptr.vmem [resolvable:$true] %s594
          %597 = dma.hbm_to_vmem [thread:$0]  %s593, 16, %s595, [#allocation22]
        $region60: #{decoder.7} parent=11 // pred_fallthru
          _
      $region12: #{decoder.7} parent=5 // pred_fallthru
        _
      %p598 = scmp.lt.s32.totalorder %s31, 2
      // Predicated region
      $region61: #{decoder.7} parent=5 // pred_check
        %p599 = pneg %p598
      $region62: #{decoder.7} parent=5 // pred_check_branch
        %601 = sbr.rel (%p599) target = $region64
      $region63: #{decoder.7} parent=5 // pred_region
        // Predicated region
        $region65: #{decoder.7} parent=63 // pred_check
          %p602 = pneg %p65
        $region66: #{decoder.7} parent=63 // pred_check_branch
          %604 = sbr.rel (%p602) target = $region68
        $region67: #{decoder.7} parent=63 // pred_region
          %p605 = scmp.lt.s32.totalorder %s38, 1
          %s606 = scalar_select %p605, %s38, 1
          %p607 = scmp.lt.s32.totalorder %s39, 0
          %s608 = scalar_select %p607, %s39, 0
          %s609 = sadd.s32 %s608, %s606
          %s610 = smul.addr %s609, 8
          %s611 = scalar_lea.vmem %s0, %s610
        $region68: #{decoder.7} parent=63 // pred_fallthru
          _
        // Predicated region
        $region69: #{decoder.7} parent=63 // pred_check
          %p612 = pneg %p91
        $region70: #{decoder.7} parent=63 // pred_check_branch
          %614 = sbr.rel (%p612) target = $region72
        $region71: #{decoder.7} parent=63 // pred_region
          %p615 = scmp.lt.s32.totalorder %s38, 1
          %s616 = scalar_select %p615, %s38, 1
          %s617 = smul.addr %s616, 8
          %s618 = scalar_lea.vmem %s1, %s617
        $region72: #{decoder.7} parent=63 // pred_fallthru
          _
        // Predicated region
        $region73: #{decoder.7} parent=63 // pred_check
          %p619 = pneg %p117
        $region74: #{decoder.7} parent=63 // pred_check_branch
          %621 = sbr.rel (%p619) target = $region76
        $region75: #{decoder.7} parent=63 // pred_region
          %s622 = sand.u32 %s107, 1
          %s623 = scalar_lea.sflag [#allocation5], %s622
          %s624 = sand.u32 %s107, 1
          %s625 = smul.addr %s624, 8
          %s626 = scalar_lea.vmem [#allocation4], %s625
          %628 = vsyncadd %s623, 0
          %s629 = smul.addr %s38, 8
          %s630 = scalar_lea.hbm %s2, %s629
          %s632 = sshll.u32 %s630, 4
          %s633 = int_to_ptr.hbm [resolvable:$true] %s632
          %s634 = sshll.u32 %s626, 4
          %s635 = int_to_ptr.vmem [resolvable:$true] %s634
          %637 = dma.hbm_to_vmem [thread:$0]  %s633, 128, %s635, %s623
        $region76: #{decoder.7} parent=63 // pred_fallthru
          _
        // Predicated region
        $region77: #{decoder.7} parent=63 // pred_check
          %p638 = pneg %p143
        $region78: #{decoder.7} parent=63 // pred_check_branch
          %640 = sbr.rel (%p638) target = $region80
        $region79: #{decoder.7} parent=63 // pred_region
          %p641 = scmp.lt.s32.totalorder %s38, 1
          %s642 = scalar_select %p641, %s38, 1
          %s643 = scalar_lea.vmem %s3, %s642
        $region80: #{decoder.7} parent=63 // pred_fallthru
          _
      $region64: #{decoder.7} parent=5 // pred_fallthru
        _
      %p644 = scmp.le.s32.totalorder 1, %s31
      %p645 = scmp.lt.s32.totalorder %s31, 3
      %p646 = pnand %p644, %p645
      %p647 = pneg %p646
      // Predicated region
      $region81: #{decoder.7} parent=5 // pred_check
        _
      $region82: #{decoder.7} parent=5 // pred_check_branch
        %649 = sbr.rel (%p646) target = $region84
      $region83: #{decoder.7} parent=5 // pred_region
        %s650 = ssub.s32 %s31, 1
        %s651 = sand.u32 %s110, 1
        %s652 = scalar_lea.sflag [#allocation5], %s651
        %s653 = sand.u32 %s110, 1
        %s654 = smul.addr %s653, 8
        %s655 = scalar_lea.vmem [#allocation4], %s654
        // Predicated region
        $region85: #{decoder.7} parent=83 // pred_check
          %p656 = pneg %p123
        $region86: #{decoder.7} parent=83 // pred_check_branch
          %658 = sbr.rel (%p656) target = $region88
        $region87: #{decoder.7} parent=83 // pred_region
          %660 = dma.done %s652, 128
        $region88: #{decoder.7} parent=83 // pred_fallthru
          _
        // Predicated region
        $region89: #{decoder.7} parent=83 // pred_check
          %p661 = pneg %p170
        $region90: #{decoder.7} parent=83 // pred_check_branch
          %663 = sbr.rel (%p661) target = $region92
        $region91: #{decoder.7} parent=83 // pred_region
          %665 = dma.done [#allocation7], 16
        $region92: #{decoder.7} parent=83 // pred_fallthru
          _
        // Predicated region
        $region93: #{decoder.7} parent=83 // pred_check
          %p666 = pneg %p191
        $region94: #{decoder.7} parent=83 // pred_check_branch
          %668 = sbr.rel (%p666) target = $region96
        $region95: #{decoder.7} parent=83 // pred_region
          %670 = dma.done [#allocation7], 16
        $region96: #{decoder.7} parent=83 // pred_fallthru
          _
        // Predicated region
        $region97: #{decoder.7} parent=83 // pred_check
          %p671 = pneg %p212
        $region98: #{decoder.7} parent=83 // pred_check_branch
          %673 = sbr.rel (%p671) target = $region100
        $region99: #{decoder.7} parent=83 // pred_region
          %675 = dma.done [#allocation10], 256
        $region100: #{decoder.7} parent=83 // pred_fallthru
          _
        // Predicated region
        $region101: #{decoder.7} parent=83 // pred_check
          %p676 = pneg %p233
        $region102: #{decoder.7} parent=83 // pred_check_branch
          %678 = sbr.rel (%p676) target = $region104
        $region103: #{decoder.7} parent=83 // pred_region
          %680 = dma.done [#allocation10], 16
        $region104: #{decoder.7} parent=83 // pred_fallthru
          _
        // Predicated region
        $region105: #{decoder.7} parent=83 // pred_check
          %p681 = pneg %p254
        $region106: #{decoder.7} parent=83 // pred_check_branch
          %683 = sbr.rel (%p681) target = $region108
        $region107: #{decoder.7} parent=83 // pred_region
          %685 = dma.done [#allocation13], 256
        $region108: #{decoder.7} parent=83 // pred_fallthru
          _
        // Predicated region
        $region109: #{decoder.7} parent=83 // pred_check
          %p686 = pneg %p275
        $region110: #{decoder.7} parent=83 // pred_check_branch
          %688 = sbr.rel (%p686) target = $region112
        $region111: #{decoder.7} parent=83 // pred_region
          %690 = dma.done [#allocation13], 16
        $region112: #{decoder.7} parent=83 // pred_fallthru
          _
        // Predicated region
        $region113: #{decoder.7} parent=83 // pred_check
          %p691 = pneg %p296
        $region114: #{decoder.7} parent=83 // pred_check_branch
          %693 = sbr.rel (%p691) target = $region116
        $region115: #{decoder.7} parent=83 // pred_region
          %695 = dma.done [#allocation16], 256
        $region116: #{decoder.7} parent=83 // pred_fallthru
          _
        // Predicated region
        $region117: #{decoder.7} parent=83 // pred_check
          %p696 = pneg %p317
        $region118: #{decoder.7} parent=83 // pred_check_branch
          %698 = sbr.rel (%p696) target = $region120
        $region119: #{decoder.7} parent=83 // pred_region
          %700 = dma.done [#allocation16], 16
        $region120: #{decoder.7} parent=83 // pred_fallthru
          _
        // Predicated region
        $region121: #{decoder.7} parent=83 // pred_check
          %p701 = pneg %p338
        $region122: #{decoder.7} parent=83 // pred_check_branch
          %703 = sbr.rel (%p701) target = $region124
        $region123: #{decoder.7} parent=83 // pred_region
          %705 = dma.done [#allocation19], 256
        $region124: #{decoder.7} parent=83 // pred_fallthru
          _
        // Predicated region
        $region125: #{decoder.7} parent=83 // pred_check
          %p706 = pneg %p359
        $region126: #{decoder.7} parent=83 // pred_check_branch
          %708 = sbr.rel (%p706) target = $region128
        $region127: #{decoder.7} parent=83 // pred_region
          %710 = dma.done [#allocation19], 16
        $region128: #{decoder.7} parent=83 // pred_fallthru
          _
        // Predicated region
        $region129: #{decoder.7} parent=83 // pred_check
          %p711 = pneg %p380
        $region130: #{decoder.7} parent=83 // pred_check_branch
          %713 = sbr.rel (%p711) target = $region132
        $region131: #{decoder.7} parent=83 // pred_region
          %715 = dma.done [#allocation22], 256
        $region132: #{decoder.7} parent=83 // pred_fallthru
          _
        // Predicated region
        $region133: #{decoder.7} parent=83 // pred_check
          %p716 = pneg %p401
        $region134: #{decoder.7} parent=83 // pred_check_branch
          %718 = sbr.rel (%p716) target = $region136
        $region135: #{decoder.7} parent=83 // pred_region
          %720 = dma.done [#allocation22], 16
        $region136: #{decoder.7} parent=83 // pred_fallthru
          _
        %p721 = scmp.lt.s32.totalorder %s40, 1
        %s722 = scalar_select %p721, %s40, 1
        %p723 = scmp.lt.s32.totalorder %s41, 0
        %s724 = scalar_select %p723, %s41, 0
        %s725 = sadd.s32 %s724, %s722
        %s726 = smul.addr %s725, 8
        %s727 = scalar_lea.vmem %s0, %s726
        %p728 = pneg %p71
        %p729 = pneg %p68
        %p730 = scmp.lt.s32.totalorder %s40, 1
        %s731 = scalar_select %p730, %s40, 1
        %s732 = smul.addr %s731, 8
        %s733 = scalar_lea.vmem %s1, %s732
        %p734 = pneg %p97
        %p735 = pneg %p94
        %s736 = sand.u32 %s110, 1
        %s737 = scalar_lea.sflag [#allocation5], %s736
        %s738 = sand.u32 %s110, 1
        %s739 = smul.addr %s738, 8
        %s740 = scalar_lea.vmem [#allocation4], %s739
        %p741 = pneg %p123
        %p742 = pneg %p120
        %p743 = scmp.lt.s32.totalorder %s40, 1
        %s744 = scalar_select %p743, %s40, 1
        %s745 = scalar_lea.vmem %s3, %s744
        %p746 = pneg %p149
        %p747 = pneg %p146
        %p748 = pneg %p170
        %p749 = pneg %p167
        %p750 = pneg %p191
        %p751 = pneg %p188
        %p752 = pneg %p212
        %p753 = pneg %p209
        %p754 = pneg %p233
        %p755 = pneg %p230
        %p756 = pneg %p254
        %p757 = pneg %p251
        %p758 = pneg %p275
        %p759 = pneg %p272
        %p760 = pneg %p296
        %p761 = pneg %p293
        %p762 = pneg %p317
        %p763 = pneg %p314
        %p764 = pneg %p338
        %p765 = pneg %p335
        %p766 = pneg %p359
        %p767 = pneg %p356
        %p768 = pneg %p380
        %p769 = pneg %p377
        %p770 = pneg %p401
        %p771 = pneg %p398
        %p772 = pneg %p429
        %p773 = pneg %p426
        %p774 = scmp.lt.s32.totalorder %s40, 1
        %s775 = scalar_select %p774, %s40, 1
        %p776 = scmp.lt.s32.totalorder %s41, 0
        %s777 = scalar_select %p776, %s41, 0
        %s778 = sadd.s32 %s777, %s775
        %s779 = smul.addr %s778, 8
        %s780 = scalar_lea.vmem %s16, %s779
        %p781 = scmp.lt.s32.totalorder %s40, 1
        %s782 = scalar_select %p781, %s40, 1
        %p783 = scmp.lt.s32.totalorder %s41, 0
        %s784 = scalar_select %p783, %s41, 0
        %s785 = sadd.s32 %s784, %s782
        %s786 = smul.addr %s785, 8
        %s787 = scalar_lea.vmem %s0, %s786
        %p788 = scmp.lt.s32.totalorder %s40, 1
        %s789 = scalar_select %p788, %s40, 1
        %s790 = smul.addr %s789, 8
        %s791 = scalar_lea.vmem %s1, %s790
        %p792 = scmp.lt.s32.totalorder %s40, 1
        %s793 = scalar_select %p792, %s40, 1
        %s794 = scalar_lea.vmem %s3, %s793
        %p795 = scmp.lt.s32.totalorder %s40, 1
        %s796 = scalar_select %p795, %s40, 1
        %p797 = scmp.lt.s32.totalorder %s41, 0
        %s798 = scalar_select %p797, %s41, 0
        %s799 = sadd.s32 %s798, %s796
        %s800 = smul.addr %s799, 8
        %s801 = scalar_lea.vmem %s16, %s800
        %v805 = vld [vmem:[%s787] sm:$0xff]
        %p806 = scmp.eq.s32.totalorder %s41, 0
        // Predicated region
        $region137: #{decoder.7} parent=83 // pred_check
          %p807 = pneg %p806
        $region138: #{decoder.7} parent=83 // pred_check_branch
          %809 = sbr.rel (%p807) target = $region140
        $region139: #{decoder.7} parent=83 // pred_region
          %v810 = vld [vmem:[%s791] sm:$0xff]
          %v811 = vpack.c.bf16 %v810, %v810
          %v812 = vld [vmem:[#allocation12] sm:$0xf]
          %v813 = vld [vmem:[#allocation12 + $0x4] sm:$0xf]
          %v814 = vld [vmem:[#allocation12 + $0x8] sm:$0xf]
          %v815 = vld [vmem:[#allocation12 + $0xc] sm:$0xf]
          %v816 = vld [vmem:[#allocation14] sm:$0x1]
          %v818 = vperm.slane %v816, 0
          %v824 = vunpack.c.l.b16 %v812
          %v825 = vunpack.c.l.b16 %v813
          %v826 = vunpack.c.l.b16 %v814
          %v827 = vunpack.c.l.b16 %v815
          %v828 = vpack.c.b16 %v825, %v824
          %v829 = vpack.c.b16 %v827, %v826
          %vm832 = vcmask 261120
          %v834 = vsel %vm832, %v811, 0
          %836 = vmatpush.bf16.msra.mxu0 0
          %837 = vmatpush.bf16.msra.mxu0 0
          %838 = vmatpush.bf16.msra.mxu0 0
          %839 = vmatpush.bf16.msra.mxu0 0
          %840 = vmatpush.bf16.msra.mxu0 0
          %841 = vmatpush.bf16.msra.mxu0 0
          %842 = vmatpush.bf16.msra.mxu0 %v829
          %843 = vmatpush.bf16.msra.mxu0 %v828
          %844 = vmatmul.bf16.gmra.mxu0 %v834
          %v845 = vpop.f32.mrf.mxu0
          %v846 = vadd.f32 %v818, %v845
          %v847 = vpop.f32.mrf.mxu0
          %848 = vdwg.mxu0
          %v849 = vpack.c.bf16 %v846, %v846
          %vm850 = vcmask 519168
          %851 = vst.msk [vmem:[#allocation2] sm:$0xf] %vm850, %v849
          %v852 = vld [vmem:[%s655] sm:$0xff]
          %v853 = vpack.c.bf16 %v852, %v852
          %v854 = vld [vmem:[#allocation15] sm:$0xf]
          %v855 = vld [vmem:[#allocation15 + $0x4] sm:$0xf]
          %v856 = vld [vmem:[#allocation15 + $0x8] sm:$0xf]
          %v857 = vld [vmem:[#allocation15 + $0xc] sm:$0xf]
          %v858 = vld [vmem:[#allocation17] sm:$0x1]
          %v860 = vperm.slane %v858, 0
          %v866 = vunpack.c.l.b16 %v854
          %v867 = vunpack.c.l.b16 %v855
          %v868 = vunpack.c.l.b16 %v856
          %v869 = vunpack.c.l.b16 %v857
          %v870 = vpack.c.b16 %v867, %v866
          %v871 = vpack.c.b16 %v869, %v868
          %v875 = vsel %vm832, %v853, 0
          %877 = vmatpush.bf16.msra.mxu0 0
          %878 = vmatpush.bf16.msra.mxu0 0
          %879 = vmatpush.bf16.msra.mxu0 0
          %880 = vmatpush.bf16.msra.mxu0 0
          %881 = vmatpush.bf16.msra.mxu0 0
          %882 = vmatpush.bf16.msra.mxu0 0
          %883 = vmatpush.bf16.msra.mxu0 %v871
          %884 = vmatpush.bf16.msra.mxu0 %v870
          %885 = vmatmul.bf16.gmra.mxu0 %v875
          %v886 = vpop.f32.mrf.mxu0
          %v887 = vadd.f32 %v860, %v886
          %v888 = vpop.f32.mrf.mxu0
          %889 = vdwg.mxu0
          %v890 = vpack.c.bf16 %v887, %v887
          %891 = vst.msk [vmem:[#allocation3] sm:$0xf] %vm850, %v890
        $region140: #{decoder.7} parent=83 // pred_fallthru
          _
        %v892 = vld [vmem:[#allocation6] sm:$0x1]
        %v893 = vld [vmem:[#allocation8] sm:$0x1]
        %vm894 = vcmask 261120
        %v895 = vsel %vm894, %v805, 0.0
        %896 = vadd.xlane.f32.xlu0 %v895
        %v897 = vpop.xlane.xlu0 %896
        %v898 = vrcp.pop 32.0
        %v899 = vmul.f32 32.0, %v898
        %v900 = vsub.f32 1.0, %v899
        %v901 = vmul.f32 %v898, %v900
        %v902 = vadd.f32 %v898, %v901
        %vm903 = vweird.f32 %v898
        %v904 = vsel %vm903, %v898, %v902
        %v905 = vmul.f32 %v897, %v904
        %v906 = vsub.f32 %v805, %v905
        %v907 = vmul.f32 %v906, %v906
        %v908 = vsel %vm894, %v907, 0.0
        %909 = vadd.xlane.f32.xlu0 %v908
        %v910 = vpop.xlane.xlu0 %909
        %v911 = vmul.f32 %v910, %v904
        %v912 = vadd.f32 %v911, 1e-05
        %v913 = vrsqrt.pop %v912
        %v914 = vmul.f32 %v913, %v912
        %v915 = vmul.f32 %v914, %v913
        %v916 = vmul.f32 0.5, %v915
        %v917 = vsub.f32 1.5, %v916
        %v918 = vmul.f32 %v913, %v917
        %vm919 = vweird.f32 %v912
        %vm920 = vweird.f32 %v913
        %vm921 = vmor %vm919, %vm920
        %v922 = vsel %vm921, %v913, %v918
        %v923 = vmul.f32 %v906, %v922
        %v925 = vperm.slane %v892, 0
        %v927 = vmul.f32 %v923, %v925
        %v929 = vperm.slane %v893, 0
        %v931 = vadd.f32 %v927, %v929
        %v932 = vpack.c.bf16 %v931, %v931
        %v933 = vld [vmem:[#allocation9] sm:$0xf]
        %v934 = vld [vmem:[#allocation9 + $0x4] sm:$0xf]
        %v935 = vld [vmem:[#allocation9 + $0x8] sm:$0xf]
        %v936 = vld [vmem:[#allocation9 + $0xc] sm:$0xf]
        %v937 = vld [vmem:[#allocation11] sm:$0x1]
        %v939 = vperm.slane %v937, 0
        %v945 = vunpack.c.l.b16 %v933
        %v946 = vunpack.c.l.b16 %v934
        %v947 = vunpack.c.l.b16 %v935
        %v948 = vunpack.c.l.b16 %v936
        %v949 = vpack.c.b16 %v946, %v945
        %v950 = vpack.c.b16 %v948, %v947
        %v954 = vsel %vm894, %v932, 0
        %956 = vmatpush.bf16.msra.mxu0 0
        %957 = vmatpush.bf16.msra.mxu0 0
        %958 = vmatpush.bf16.msra.mxu0 0
        %959 = vmatpush.bf16.msra.mxu0 0
        %960 = vmatpush.bf16.msra.mxu0 0
        %961 = vmatpush.bf16.msra.mxu0 0
        %962 = vmatpush.bf16.msra.mxu0 %v950
        %963 = vmatpush.bf16.msra.mxu0 %v949
        %964 = vmatmul.bf16.gmra.mxu0 %v954
        %v965 = vpop.f32.mrf.mxu0
        %v966 = vadd.f32 %v939, %v965
        %v967 = vpop.f32.mrf.mxu0
        %968 = vdwg.mxu0
        %v969 = vpack.c.bf16 %v966, %v966
        %v970 = vld [vmem:[#allocation2] sm:$0xf]
        %v971 = vld [vmem:[#allocation3] sm:$0xf]
        %v972 = vld [vmem:[%s794] sm:$0x1]
        %vm973 = vnez %v972
        %v974 = vld [vmem:[#allocation18] sm:$0xf]
        %v975 = vld [vmem:[#allocation18 + $0x4] sm:$0xf]
        %v976 = vld [vmem:[#allocation18 + $0x8] sm:$0xf]
        %v977 = vld [vmem:[#allocation18 + $0xc] sm:$0xf]
        %vm978 = vcmask 64512
        %v980 = vsel %vm978, %v969, 0
        %v983 = vsel %vm978, %v970, 0
        %985 = vmatpush.bf16.xpose.msra.mxu0 0
        %986 = vmatpush.bf16.xpose.msra.mxu0 0
        %987 = vmatpush.bf16.xpose.msra.mxu0 0
        %988 = vmatpush.bf16.xpose.msra.mxu0 0
        %989 = vmatpush.bf16.xpose.msra.mxu0 0
        %990 = vmatpush.bf16.xpose.msra.mxu0 0
        %991 = vmatpush.bf16.xpose.msra.mxu0 0
        %992 = vmatpush.bf16.xpose.msra.mxu0 %v983
        %993 = vmatmul.bf16.gmra.mxu0 %v980
        %v994 = vpop.f32.mrf.mxu0
        %v995 = vadd.f32 0.0, %v994
        %v996 = vpop.f32.mrf.mxu0
        %997 = vdwg.mxu0
        %v998 = vmul.f32 %v995, 0.35355338
        %v999 = vsel %vm973, 16843009, 0
        %v1000 = vunpack.c.0.s8 %v999
        %vm1001 = vcmp.ne.s32.totalorder %v1000, 0
        %v1002 = vsel %vm1001, 1, 0
        %v1003 = vperm.slane %v1002, 0
        %vm1004 = vcmp.eq.s32.totalorder %v1003, 1
        %v1005 = vsel %vm1004, %v998, -1e+09
        %v1006 = vsel %vm978, %v1005, -inf
        %1007 = vmax.xlane.f32.xlu0 %v1006
        %v1008 = vpop.xlane.xlu0 %1007
        %v1009 = vsub.f32 %v1005, %v1008
        %v1010 = vmul.f32 %v1009, 1.442695
        %v1011 = vpow.pop %v1010
        %v1012 = vsel %vm978, %v1011, 0.0
        %1013 = vadd.xlane.f32.xlu0 %v1012
        %v1014 = vpop.xlane.xlu0 %1013
        %v1015 = vpack.c.bf16 %v1011, %v1011
        %v1017 = vunpack.c.l.b16 %v970
        %v1018 = vpack.c.b16 %v1017, %v1017
        %1019 = vrot.lane.b32.xlu0 %v1018, 96
        %v1020 = vpop.permute.xlu0 %1019
        %v1022 = vsel %vm978, %v1015, 0
        %vm1024 = vcmask 1043456
        %v1026 = vsel %vm1024, %v1020, 0
        %1028 = vmatpush.bf16.msra.mxu0 0
        %1029 = vmatpush.bf16.msra.mxu0 0
        %1030 = vmatpush.bf16.msra.mxu0 0
        %1031 = vmatpush.bf16.msra.mxu0 0
        %1032 = vmatpush.bf16.msra.mxu0 0
        %1033 = vmatpush.bf16.msra.mxu0 0
        %1034 = vmatpush.bf16.msra.mxu0 0
        %1035 = vmatpush.bf16.msra.mxu0 %v1026
        %1036 = vmatmul.bf16.gmra.mxu0 %v1022
        %v1037 = vpop.f32.mrf.mxu0
        %v1038 = vadd.f32 0.0, %v1037
        %v1039 = vpop.f32.mrf.mxu0
        %1040 = vdwg.mxu0
        %v1041 = vrcp.pop %v1014
        %v1042 = vmul.f32 %v1038, %v1041
        %v1043 = vpack.c.bf16 %v1042, %v1042
        %v1045 = vunpack.c.l.b16 %v969
        %v1046 = vpack.c.b16 %v1045, %v1045
        %1047 = vrot.lane.b32.xlu0 %v1046, 120
        %v1048 = vpop.permute.xlu0 %1047
        %1049 = vrot.lane.b32.xlu0 %v1018, 120
        %v1050 = vpop.permute.xlu0 %1049
        %v1052 = vsel %vm978, %v1048, 0
        %v1055 = vsel %vm978, %v1050, 0
        %1057 = vmatpush.bf16.xpose.msra.mxu0 0
        %1058 = vmatpush.bf16.xpose.msra.mxu0 0
        %1059 = vmatpush.bf16.xpose.msra.mxu0 0
        %1060 = vmatpush.bf16.xpose.msra.mxu0 0
        %1061 = vmatpush.bf16.xpose.msra.mxu0 0
        %1062 = vmatpush.bf16.xpose.msra.mxu0 0
        %1063 = vmatpush.bf16.xpose.msra.mxu0 0
        %1064 = vmatpush.bf16.xpose.msra.mxu0 %v1055
        %1065 = vmatmul.bf16.gmra.mxu0 %v1052
        %v1066 = vpop.f32.mrf.mxu0
        %v1067 = vadd.f32 0.0, %v1066
        %v1068 = vpop.f32.mrf.mxu0
        %1069 = vdwg.mxu0
        %v1070 = vmul.f32 %v1067, 0.35355338
        %v1071 = vsel %vm1004, %v1070, -1e+09
        %v1072 = vsel %vm978, %v1071, -inf
        %1073 = vmax.xlane.f32.xlu0 %v1072
        %v1074 = vpop.xlane.xlu0 %1073
        %v1075 = vsub.f32 %v1071, %v1074
        %v1076 = vmul.f32 %v1075, 1.442695
        %v1077 = vpow.pop %v1076
        %v1078 = vsel %vm978, %v1077, 0.0
        %1079 = vadd.xlane.f32.xlu0 %v1078
        %v1080 = vpop.xlane.xlu0 %1079
        %v1081 = vpack.c.bf16 %v1077, %v1077
        %1082 = vrot.lane.b32.xlu0 %v1018, 88
        %v1083 = vpop.permute.xlu0 %1082
        %v1085 = vsel %vm978, %v1081, 0
        %v1088 = vsel %vm1024, %v1083, 0
        %1090 = vmatpush.bf16.msra.mxu0 0
        %1091 = vmatpush.bf16.msra.mxu0 0
        %1092 = vmatpush.bf16.msra.mxu0 0
        %1093 = vmatpush.bf16.msra.mxu0 0
        %1094 = vmatpush.bf16.msra.mxu0 0
        %1095 = vmatpush.bf16.msra.mxu0 0
        %1096 = vmatpush.bf16.msra.mxu0 0
        %1097 = vmatpush.bf16.msra.mxu0 %v1088
        %1098 = vmatmul.bf16.gmra.mxu0 %v1085
        %v1099 = vpop.f32.mrf.mxu0
        %v1100 = vadd.f32 0.0, %v1099
        %v1101 = vpop.f32.mrf.mxu0
        %1102 = vdwg.mxu0
        %v1103 = vrcp.pop %v1080
        %v1104 = vmul.f32 %v1100, %v1103
        %v1105 = vpack.c.bf16 %v1104, %v1104
        %1106 = vrot.lane.b32.xlu0 %v1046, 112
        %v1107 = vpop.permute.xlu0 %1106
        %1108 = vrot.lane.b32.xlu0 %v1018, 112
        %v1109 = vpop.permute.xlu0 %1108
        %v1111 = vsel %vm978, %v1107, 0
        %v1114 = vsel %vm978, %v1109, 0
        %1116 = vmatpush.bf16.xpose.msra.mxu0 0
        %1117 = vmatpush.bf16.xpose.msra.mxu0 0
        %1118 = vmatpush.bf16.xpose.msra.mxu0 0
        %1119 = vmatpush.bf16.xpose.msra.mxu0 0
        %1120 = vmatpush.bf16.xpose.msra.mxu0 0
        %1121 = vmatpush.bf16.xpose.msra.mxu0 0
        %1122 = vmatpush.bf16.xpose.msra.mxu0 0
        %1123 = vmatpush.bf16.xpose.msra.mxu0 %v1114
        %1124 = vmatmul.bf16.gmra.mxu0 %v1111
        %v1125 = vpop.f32.mrf.mxu0
        %v1126 = vadd.f32 0.0, %v1125
        %v1127 = vpop.f32.mrf.mxu0
        %1128 = vdwg.mxu0
        %v1129 = vmul.f32 %v1126, 0.35355338
        %v1130 = vsel %vm1004, %v1129, -1e+09
        %v1131 = vsel %vm978, %v1130, -inf
        %1132 = vmax.xlane.f32.xlu0 %v1131
        %v1133 = vpop.xlane.xlu0 %1132
        %v1134 = vsub.f32 %v1130, %v1133
        %v1135 = vmul.f32 %v1134, 1.442695
        %v1136 = vpow.pop %v1135
        %v1137 = vsel %vm978, %v1136, 0.0
        %1138 = vadd.xlane.f32.xlu0 %v1137
        %v1139 = vpop.xlane.xlu0 %1138
        %v1140 = vpack.c.bf16 %v1136, %v1136
        %1141 = vrot.lane.b32.xlu0 %v1018, 80
        %v1142 = vpop.permute.xlu0 %1141
        %v1144 = vsel %vm978, %v1140, 0
        %v1147 = vsel %vm1024, %v1142, 0
        %1149 = vmatpush.bf16.msra.mxu0 0
        %1150 = vmatpush.bf16.msra.mxu0 0
        %1151 = vmatpush.bf16.msra.mxu0 0
        %1152 = vmatpush.bf16.msra.mxu0 0
        %1153 = vmatpush.bf16.msra.mxu0 0
        %1154 = vmatpush.bf16.msra.mxu0 0
        %1155 = vmatpush.bf16.msra.mxu0 0
        %1156 = vmatpush.bf16.msra.mxu0 %v1147
        %1157 = vmatmul.bf16.gmra.mxu0 %v1144
        %v1158 = vpop.f32.mrf.mxu0
        %v1159 = vadd.f32 0.0, %v1158
        %v1160 = vpop.f32.mrf.mxu0
        %1161 = vdwg.mxu0
        %v1162 = vrcp.pop %v1139
        %v1163 = vmul.f32 %v1159, %v1162
        %v1164 = vpack.c.bf16 %v1163, %v1163
        %1165 = vrot.lane.b32.xlu0 %v1046, 104
        %v1166 = vpop.permute.xlu0 %1165
        %1167 = vrot.lane.b32.xlu0 %v1018, 104
        %v1168 = vpop.permute.xlu0 %1167
        %v1170 = vsel %vm978, %v1166, 0
        %v1173 = vsel %vm978, %v1168, 0
        %1175 = vmatpush.bf16.xpose.msra.mxu0 0
        %1176 = vmatpush.bf16.xpose.msra.mxu0 0
        %1177 = vmatpush.bf16.xpose.msra.mxu0 0
        %1178 = vmatpush.bf16.xpose.msra.mxu0 0
        %1179 = vmatpush.bf16.xpose.msra.mxu0 0
        %1180 = vmatpush.bf16.xpose.msra.mxu0 0
        %1181 = vmatpush.bf16.xpose.msra.mxu0 0
        %1182 = vmatpush.bf16.xpose.msra.mxu0 %v1173
        %1183 = vmatmul.bf16.gmra.mxu0 %v1170
        %v1184 = vpop.f32.mrf.mxu0
        %v1185 = vadd.f32 0.0, %v1184
        %v1186 = vpop.f32.mrf.mxu0
        %1187 = vdwg.mxu0
        %v1188 = vmul.f32 %v1185, 0.35355338
        %v1189 = vsel %vm1004, %v1188, -1e+09
        %v1190 = vsel %vm978, %v1189, -inf
        %1191 = vmax.xlane.f32.xlu0 %v1190
        %v1192 = vpop.xlane.xlu0 %1191
        %v1193 = vsub.f32 %v1189, %v1192
        %v1194 = vmul.f32 %v1193, 1.442695
        %v1195 = vpow.pop %v1194
        %v1196 = vsel %vm978, %v1195, 0.0
        %1197 = vadd.xlane.f32.xlu0 %v1196
        %v1198 = vpop.xlane.xlu0 %1197
        %v1199 = vpack.c.bf16 %v1195, %v1195
        %1200 = vrot.lane.b32.xlu0 %v1018, 72
        %v1201 = vpop.permute.xlu0 %1200
        %v1203 = vsel %vm978, %v1199, 0
        %v1206 = vsel %vm1024, %v1201, 0
        %1208 = vmatpush.bf16.msra.mxu0 0
        %1209 = vmatpush.bf16.msra.mxu0 0
        %1210 = vmatpush.bf16.msra.mxu0 0
        %1211 = vmatpush.bf16.msra.mxu0 0
        %1212 = vmatpush.bf16.msra.mxu0 0
        %1213 = vmatpush.bf16.msra.mxu0 0
        %1214 = vmatpush.bf16.msra.mxu0 0
        %1215 = vmatpush.bf16.msra.mxu0 %v1206
        %1216 = vmatmul.bf16.gmra.mxu0 %v1203
        %v1217 = vpop.f32.mrf.mxu0
        %v1218 = vadd.f32 0.0, %v1217
        %v1219 = vpop.f32.mrf.mxu0
        %1220 = vdwg.mxu0
        %v1221 = vrcp.pop %v1198
        %v1222 = vmul.f32 %v1218, %v1221
        %v1223 = vpack.c.bf16 %v1222, %v1222
        %v1225 = vunpack.c.l.b16 %v1105
        %v1226 = vpack.c.b16 %v1225, %v1225
        %1227 = vrot.lane.b32.xlu0 %v1226, 8
        %v1228 = vpop.permute.xlu0 %1227
        %v1230 = vunpack.c.l.b16 %v1164
        %v1231 = vpack.c.b16 %v1230, %v1230
        %1232 = vrot.lane.b32.xlu0 %v1231, 16
        %v1233 = vpop.permute.xlu0 %1232
        %v1235 = vunpack.c.l.b16 %v1223
        %v1236 = vpack.c.b16 %v1235, %v1235
        %1237 = vrot.lane.b32.xlu0 %v1236, 24
        %v1238 = vpop.permute.xlu0 %1237
        %v1241 = vsel %vm978, %v1043, %v1228
        %vm1242 = vcmask 130048
        %v1244 = vsel %vm1242, %v1241, %v1233
        %vm1245 = vcmask 195584
        %v1247 = vsel %vm1245, %v1244, %v1238
        %v1248 = vld [vmem:[#allocation20] sm:$0x1]
        %v1250 = vperm.slane %v1248, 0
        %v1256 = vunpack.c.l.b16 %v974
        %v1257 = vunpack.c.l.b16 %v975
        %v1258 = vunpack.c.l.b16 %v976
        %v1259 = vunpack.c.l.b16 %v977
        %v1260 = vpack.c.b16 %v1257, %v1256
        %v1261 = vpack.c.b16 %v1259, %v1258
        %v1264 = vsel %vm894, %v1247, 0
        %1266 = vmatpush.bf16.msra.mxu0 0
        %1267 = vmatpush.bf16.msra.mxu0 0
        %1268 = vmatpush.bf16.msra.mxu0 0
        %1269 = vmatpush.bf16.msra.mxu0 0
        %1270 = vmatpush.bf16.msra.mxu0 0
        %1271 = vmatpush.bf16.msra.mxu0 0
        %1272 = vmatpush.bf16.msra.mxu0 %v1261
        %1273 = vmatpush.bf16.msra.mxu0 %v1260
        %1274 = vmatmul.bf16.gmra.mxu0 %v1264
        %v1275 = vpop.f32.mrf.mxu0
        %v1276 = vadd.f32 %v1250, %v1275
        %v1277 = vpop.f32.mrf.mxu0
        %1278 = vdwg.mxu0
        %v1279 = vld [vmem:[#allocation21] sm:$0xf]
        %v1280 = vld [vmem:[#allocation21 + $0x4] sm:$0xf]
        %v1281 = vld [vmem:[#allocation21 + $0x8] sm:$0xf]
        %v1282 = vld [vmem:[#allocation21 + $0xc] sm:$0xf]
        %1283 = vrot.lane.b32.xlu0 %v1046, 96
        %v1284 = vpop.permute.xlu0 %1283
        %v1286 = vsel %vm978, %v1284, 0
        %v1289 = vsel %vm978, %v971, 0
        %1291 = vmatpush.bf16.xpose.msra.mxu0 0
        %1292 = vmatpush.bf16.xpose.msra.mxu0 0
        %1293 = vmatpush.bf16.xpose.msra.mxu0 0
        %1294 = vmatpush.bf16.xpose.msra.mxu0 0
        %1295 = vmatpush.bf16.xpose.msra.mxu0 0
        %1296 = vmatpush.bf16.xpose.msra.mxu0 0
        %1297 = vmatpush.bf16.xpose.msra.mxu0 0
        %1298 = vmatpush.bf16.xpose.msra.mxu0 %v1289
        %1299 = vmatmul.bf16.gmra.mxu0 %v1286
        %v1300 = vpop.f32.mrf.mxu0
        %v1301 = vadd.f32 0.0, %v1300
        %v1302 = vpop.f32.mrf.mxu0
        %1303 = vdwg.mxu0
        %v1304 = vmul.f32 %v1301, 0.35355338
        %v1305 = vsel %vm1004, %v1304, -1e+09
        %v1306 = vsel %vm978, %v1305, -inf
        %1307 = vmax.xlane.f32.xlu0 %v1306
        %v1308 = vpop.xlane.xlu0 %1307
        %v1309 = vsub.f32 %v1305, %v1308
        %v1310 = vmul.f32 %v1309, 1.442695
        %v1311 = vpow.pop %v1310
        %v1312 = vsel %vm978, %v1311, 0.0
        %1313 = vadd.xlane.f32.xlu0 %v1312
        %v1314 = vpop.xlane.xlu0 %1313
        %v1315 = vpack.c.bf16 %v1311, %v1311
        %v1317 = vunpack.c.l.b16 %v971
        %v1318 = vpack.c.b16 %v1317, %v1317
        %1319 = vrot.lane.b32.xlu0 %v1318, 96
        %v1320 = vpop.permute.xlu0 %1319
        %v1322 = vsel %vm978, %v1315, 0
        %v1325 = vsel %vm1024, %v1320, 0
        %1327 = vmatpush.bf16.msra.mxu0 0
        %1328 = vmatpush.bf16.msra.mxu0 0
        %1329 = vmatpush.bf16.msra.mxu0 0
        %1330 = vmatpush.bf16.msra.mxu0 0
        %1331 = vmatpush.bf16.msra.mxu0 0
        %1332 = vmatpush.bf16.msra.mxu0 0
        %1333 = vmatpush.bf16.msra.mxu0 0
        %1334 = vmatpush.bf16.msra.mxu0 %v1325
        %1335 = vmatmul.bf16.gmra.mxu0 %v1322
        %v1336 = vpop.f32.mrf.mxu0
        %v1337 = vadd.f32 0.0, %v1336
        %v1338 = vpop.f32.mrf.mxu0
        %1339 = vdwg.mxu0
        %v1340 = vrcp.pop %v1314
        %v1341 = vmul.f32 %v1337, %v1340
        %v1342 = vpack.c.bf16 %v1341, %v1341
        %1343 = vrot.lane.b32.xlu0 %v1046, 88
        %v1344 = vpop.permute.xlu0 %1343
        %1345 = vrot.lane.b32.xlu0 %v1318, 120
        %v1346 = vpop.permute.xlu0 %1345
        %v1348 = vsel %vm978, %v1344, 0
        %v1351 = vsel %vm978, %v1346, 0
        %1353 = vmatpush.bf16.xpose.msra.mxu0 0
        %1354 = vmatpush.bf16.xpose.msra.mxu0 0
        %1355 = vmatpush.bf16.xpose.msra.mxu0 0
        %1356 = vmatpush.bf16.xpose.msra.mxu0 0
        %1357 = vmatpush.bf16.xpose.msra.mxu0 0
        %1358 = vmatpush.bf16.xpose.msra.mxu0 0
        %1359 = vmatpush.bf16.xpose.msra.mxu0 0
        %1360 = vmatpush.bf16.xpose.msra.mxu0 %v1351
        %1361 = vmatmul.bf16.gmra.mxu0 %v1348
        %v1362 = vpop.f32.mrf.mxu0
        %v1363 = vadd.f32 0.0, %v1362
        %v1364 = vpop.f32.mrf.mxu0
        %1365 = vdwg.mxu0
        %v1366 = vmul.f32 %v1363, 0.35355338
        %v1367 = vsel %vm1004, %v1366, -1e+09
        %v1368 = vsel %vm978, %v1367, -inf
        %1369 = vmax.xlane.f32.xlu0 %v1368
        %v1370 = vpop.xlane.xlu0 %1369
        %v1371 = vsub.f32 %v1367, %v1370
        %v1372 = vmul.f32 %v1371, 1.442695
        %v1373 = vpow.pop %v1372
        %v1374 = vsel %vm978, %v1373, 0.0
        %1375 = vadd.xlane.f32.xlu0 %v1374
        %v1376 = vpop.xlane.xlu0 %1375
        %v1377 = vpack.c.bf16 %v1373, %v1373
        %1378 = vrot.lane.b32.xlu0 %v1318, 88
        %v1379 = vpop.permute.xlu0 %1378
        %v1381 = vsel %vm978, %v1377, 0
        %v1384 = vsel %vm1024, %v1379, 0
        %1386 = vmatpush.bf16.msra.mxu0 0
        %1387 = vmatpush.bf16.msra.mxu0 0
        %1388 = vmatpush.bf16.msra.mxu0 0
        %1389 = vmatpush.bf16.msra.mxu0 0
        %1390 = vmatpush.bf16.msra.mxu0 0
        %1391 = vmatpush.bf16.msra.mxu0 0
        %1392 = vmatpush.bf16.msra.mxu0 0
        %1393 = vmatpush.bf16.msra.mxu0 %v1384
        %1394 = vmatmul.bf16.gmra.mxu0 %v1381
        %v1395 = vpop.f32.mrf.mxu0
        %v1396 = vadd.f32 0.0, %v1395
        %v1397 = vpop.f32.mrf.mxu0
        %1398 = vdwg.mxu0
        %v1399 = vrcp.pop %v1376
        %v1400 = vmul.f32 %v1396, %v1399
        %v1401 = vpack.c.bf16 %v1400, %v1400
        %1402 = vrot.lane.b32.xlu0 %v1046, 80
        %v1403 = vpop.permute.xlu0 %1402
        %1404 = vrot.lane.b32.xlu0 %v1318, 112
        %v1405 = vpop.permute.xlu0 %1404
        %v1407 = vsel %vm978, %v1403, 0
        %v1410 = vsel %vm978, %v1405, 0
        %1412 = vmatpush.bf16.xpose.msra.mxu0 0
        %1413 = vmatpush.bf16.xpose.msra.mxu0 0
        %1414 = vmatpush.bf16.xpose.msra.mxu0 0
        %1415 = vmatpush.bf16.xpose.msra.mxu0 0
        %1416 = vmatpush.bf16.xpose.msra.mxu0 0
        %1417 = vmatpush.bf16.xpose.msra.mxu0 0
        %1418 = vmatpush.bf16.xpose.msra.mxu0 0
        %1419 = vmatpush.bf16.xpose.msra.mxu0 %v1410
        %1420 = vmatmul.bf16.gmra.mxu0 %v1407
        %v1421 = vpop.f32.mrf.mxu0
        %v1422 = vadd.f32 0.0, %v1421
        %v1423 = vpop.f32.mrf.mxu0
        %1424 = vdwg.mxu0
        %v1425 = vmul.f32 %v1422, 0.35355338
        %v1426 = vsel %vm1004, %v1425, -1e+09
        %v1427 = vsel %vm978, %v1426, -inf
        %1428 = vmax.xlane.f32.xlu0 %v1427
        %v1429 = vpop.xlane.xlu0 %1428
        %v1430 = vsub.f32 %v1426, %v1429
        %v1431 = vmul.f32 %v1430, 1.442695
        %v1432 = vpow.pop %v1431
        %v1433 = vsel %vm978, %v1432, 0.0
        %1434 = vadd.xlane.f32.xlu0 %v1433
        %v1435 = vpop.xlane.xlu0 %1434
        %v1436 = vpack.c.bf16 %v1432, %v1432
        %1437 = vrot.lane.b32.xlu0 %v1318, 80
        %v1438 = vpop.permute.xlu0 %1437
        %v1440 = vsel %vm978, %v1436, 0
        %v1443 = vsel %vm1024, %v1438, 0
        %1445 = vmatpush.bf16.msra.mxu0 0
        %1446 = vmatpush.bf16.msra.mxu0 0
        %1447 = vmatpush.bf16.msra.mxu0 0
        %1448 = vmatpush.bf16.msra.mxu0 0
        %1449 = vmatpush.bf16.msra.mxu0 0
        %1450 = vmatpush.bf16.msra.mxu0 0
        %1451 = vmatpush.bf16.msra.mxu0 0
        %1452 = vmatpush.bf16.msra.mxu0 %v1443
        %1453 = vmatmul.bf16.gmra.mxu0 %v1440
        %v1454 = vpop.f32.mrf.mxu0
        %v1455 = vadd.f32 0.0, %v1454
        %v1456 = vpop.f32.mrf.mxu0
        %1457 = vdwg.mxu0
        %v1458 = vrcp.pop %v1435
        %v1459 = vmul.f32 %v1455, %v1458
        %v1460 = vpack.c.bf16 %v1459, %v1459
        %1461 = vrot.lane.b32.xlu0 %v1046, 72
        %v1462 = vpop.permute.xlu0 %1461
        %1463 = vrot.lane.b32.xlu0 %v1318, 104
        %v1464 = vpop.permute.xlu0 %1463
        %v1466 = vsel %vm978, %v1462, 0
        %v1469 = vsel %vm978, %v1464, 0
        %1471 = vmatpush.bf16.xpose.msra.mxu0 0
        %1472 = vmatpush.bf16.xpose.msra.mxu0 0
        %1473 = vmatpush.bf16.xpose.msra.mxu0 0
        %1474 = vmatpush.bf16.xpose.msra.mxu0 0
        %1475 = vmatpush.bf16.xpose.msra.mxu0 0
        %1476 = vmatpush.bf16.xpose.msra.mxu0 0
        %1477 = vmatpush.bf16.xpose.msra.mxu0 0
        %1478 = vmatpush.bf16.xpose.msra.mxu0 %v1469
        %1479 = vmatmul.bf16.gmra.mxu0 %v1466
        %v1480 = vpop.f32.mrf.mxu0
        %v1481 = vadd.f32 0.0, %v1480
        %v1482 = vpop.f32.mrf.mxu0
        %1483 = vdwg.mxu0
        %v1484 = vmul.f32 %v1481, 0.35355338
        %v1485 = vsel %vm1004, %v1484, -1e+09
        %v1486 = vsel %vm978, %v1485, -inf
        %1487 = vmax.xlane.f32.xlu0 %v1486
        %v1488 = vpop.xlane.xlu0 %1487
        %v1489 = vsub.f32 %v1485, %v1488
        %v1490 = vmul.f32 %v1489, 1.442695
        %v1491 = vpow.pop %v1490
        %v1492 = vsel %vm978, %v1491, 0.0
        %1493 = vadd.xlane.f32.xlu0 %v1492
        %v1494 = vpop.xlane.xlu0 %1493
        %v1495 = vpack.c.bf16 %v1491, %v1491
        %1496 = vrot.lane.b32.xlu0 %v1318, 72
        %v1497 = vpop.permute.xlu0 %1496
        %v1499 = vsel %vm978, %v1495, 0
        %v1502 = vsel %vm1024, %v1497, 0
        %1504 = vmatpush.bf16.msra.mxu0 0
        %1505 = vmatpush.bf16.msra.mxu0 0
        %1506 = vmatpush.bf16.msra.mxu0 0
        %1507 = vmatpush.bf16.msra.mxu0 0
        %1508 = vmatpush.bf16.msra.mxu0 0
        %1509 = vmatpush.bf16.msra.mxu0 0
        %1510 = vmatpush.bf16.msra.mxu0 0
        %1511 = vmatpush.bf16.msra.mxu0 %v1502
        %1512 = vmatmul.bf16.gmra.mxu0 %v1499
        %v1513 = vpop.f32.mrf.mxu0
        %v1514 = vadd.f32 0.0, %v1513
        %v1515 = vpop.f32.mrf.mxu0
        %1516 = vdwg.mxu0
        %v1517 = vrcp.pop %v1494
        %v1518 = vmul.f32 %v1514, %v1517
        %v1519 = vpack.c.bf16 %v1518, %v1518
        %v1521 = vunpack.c.l.b16 %v1401
        %v1522 = vpack.c.b16 %v1521, %v1521
        %1523 = vrot.lane.b32.xlu0 %v1522, 8
        %v1524 = vpop.permute.xlu0 %1523
        %v1526 = vunpack.c.l.b16 %v1460
        %v1527 = vpack.c.b16 %v1526, %v1526
        %1528 = vrot.lane.b32.xlu0 %v1527, 16
        %v1529 = vpop.permute.xlu0 %1528
        %v1531 = vunpack.c.l.b16 %v1519
        %v1532 = vpack.c.b16 %v1531, %v1531
        %1533 = vrot.lane.b32.xlu0 %v1532, 24
        %v1534 = vpop.permute.xlu0 %1533
        %v1537 = vsel %vm978, %v1342, %v1524
        %v1539 = vsel %vm1242, %v1537, %v1529
        %v1541 = vsel %vm1245, %v1539, %v1534
        %v1542 = vld [vmem:[#allocation23] sm:$0x1]
        %v1544 = vperm.slane %v1542, 0
        %v1550 = vunpack.c.l.b16 %v1279
        %v1551 = vunpack.c.l.b16 %v1280
        %v1552 = vunpack.c.l.b16 %v1281
        %v1553 = vunpack.c.l.b16 %v1282
        %v1554 = vpack.c.b16 %v1551, %v1550
        %v1555 = vpack.c.b16 %v1553, %v1552
        %v1558 = vsel %vm894, %v1541, 0
        %1560 = vmatpush.bf16.msra.mxu0 0
        %1561 = vmatpush.bf16.msra.mxu0 0
        %1562 = vmatpush.bf16.msra.mxu0 0
        %1563 = vmatpush.bf16.msra.mxu0 0
        %1564 = vmatpush.bf16.msra.mxu0 0
        %1565 = vmatpush.bf16.msra.mxu0 0
        %1566 = vmatpush.bf16.msra.mxu0 %v1555
        %1567 = vmatpush.bf16.msra.mxu0 %v1554
        %1568 = vmatmul.bf16.gmra.mxu0 %v1558
        %v1569 = vpop.f32.mrf.mxu0
        %v1570 = vadd.f32 %v1544, %v1569
        %v1571 = vpop.f32.mrf.mxu0
        %1572 = vdwg.mxu0
        %v1573 = vadd.f32 %v1276, %v1570
        %v1574 = vmul.f32 %v1573, 0.5
        %v1575 = vadd.f32 %v805, %v1574
        %1576 = vst.msk [vmem:[%s801] sm:$0xff] %vm894, %v1575
        %p1577 = scmp.lt.s32.totalorder %s40, 1
        %s1578 = scalar_select %p1577, %s40, 1
        %p1579 = scmp.lt.s32.totalorder %s41, 0
        %s1580 = scalar_select %p1579, %s41, 0
        %s1581 = sadd.s32 %s1580, %s1578
        %s1582 = smul.addr %s1581, 8
        %s1583 = scalar_lea.vmem %s16, %s1582
        // Predicated region
        $region141: #{decoder.7} parent=83 // pred_check
          %p1584 = pneg %p426
        $region142: #{decoder.7} parent=83 // pred_check_branch
          %1586 = sbr.rel (%p1584) target = $region144
        $region143: #{decoder.7} parent=83 // pred_region
          _
        $region144: #{decoder.7} parent=83 // pred_fallthru
          _
      $region84: #{decoder.7} parent=5 // pred_fallthru
        _
      %p1587 = scmp.le.s32.totalorder 2, %s31
      // Predicated region
      $region145: #{decoder.7} parent=5 // pred_check
        %p1588 = pneg %p1587
      $region146: #{decoder.7} parent=5 // pred_check_branch
        %1590 = sbr.rel (%p1588) target = $region148
      $region147: #{decoder.7} parent=5 // pred_region
        %s1591 = ssub.s32 %s31, 2
        // Predicated region
        $region149: #{decoder.7} parent=147 // pred_check
          %p1592 = pneg %p432
        $region150: #{decoder.7} parent=147 // pred_check_branch
          %1594 = sbr.rel (%p1592) target = $region152
        $region151: #{decoder.7} parent=147 // pred_region
          %p1595 = scmp.lt.s32.totalorder %s42, 1
          %s1596 = scalar_select %p1595, %s42, 1
          %p1597 = scmp.lt.s32.totalorder %s43, 0
          %s1598 = scalar_select %p1597, %s43, 0
          %s1599 = sadd.s32 %s1598, %s1596
          %s1600 = smul.addr %s1599, 8
          %s1601 = scalar_lea.vmem %s16, %s1600
        $region152: #{decoder.7} parent=147 // pred_fallthru
          _
      $region148: #{decoder.7} parent=5 // pred_fallthru
        _
    $region6: #{decoder.7} parent=1 // loop_footer
      %s35 = sadd.s32 1, %s31
    $region7: #{decoder.7} parent=1 // loop_footer_branch
      %30 = sbr.rel target = $region3
    $region8: #{decoder.7} parent=1 // loop_exit
      _
    %1602 = vsyncpa [#allocation5], 1
    %s1603 = scalar_lea.sflag [#allocation5], 1
    %1604 = vsyncpa %s1603, 1
    %1605 = vsyncpa [#allocation7], 1
    %1606 = vsyncpa [#allocation10], 1
    %1607 = vsyncpa [#allocation13], 1
    %1608 = vsyncpa [#allocation16], 1
    %1609 = vsyncpa [#allocation19], 1
    %1610 = vsyncpa [#allocation22], 1

// kernel: decoder.9
$region0: #{decoder.9}
  #allocation0 [shape = 'u32[]', space=smem, size = 0x4, offset = 0x4, fixed_abs, tag = 'smem constant byte address 0x4 - core index']
  #allocation1 [shape = 'u32[72,128]{1,0:T(1,128)}', space=vmem, size = 0x9000, scoped, tag = 'internal scratch']
  #allocation2 [shape = 'bf16[8,64]{1,0:T(8,128)(2,1)}', space=vmem, size = 0x800, scoped, tag = 'scratch operand']
  %s0 = inlined_call_operand.vmem [shape: f32[2,8,32], index: 0, kind: input, shape index: {}]
  %s1 = inlined_call_operand.vmem [shape: s8[2,1,8], index: 1, kind: input, shape index: {}]
  %s2 = inlined_call_operand.hbm [shape: f32[1,32], index: 2, kind: input, shape index: {}]
  %s3 = inlined_call_operand.hbm [shape: f32[1,32], index: 3, kind: input, shape index: {}]
  %s4 = inlined_call_operand.vmem [shape: bf16[32,96], index: 4, kind: input, shape index: {}]
  %s5 = inlined_call_operand.hbm [shape: f32[1,96], index: 5, kind: input, shape index: {}]
  %s6 = inlined_call_operand.vmem [shape: bf16[32,32], index: 6, kind: input, shape index: {}]
  %s7 = inlined_call_operand.hbm [shape: f32[1,32], index: 7, kind: input, shape index: {}]
  %s8 = inlined_call_operand.vmem [shape: f32[2,8,32], index: 8, kind: output, shape index: {}]
  %s9 = sld [smem:[#allocation0]]
  $region85: #{decoder.9} parent=0
    _
  %s11 = ssub.s32 1, %s9
  %s12 = scalar_select 0, %s11, %s9
  $region1: #{decoder.9} parent=0
    #allocation3 [shape = 'u8[512]{0}', space=vmem, size = 0x400, scoped, tag = 'input window, operand 2, single buffered']
    #allocation4 [shape = 's32[2]{0}', space=sflag, size = 0x8, scoped, tag = 'scoped memory for decoder.9']
    #allocation5 [shape = 'u8[512]{0}', space=vmem, size = 0x400, scoped, tag = 'input window, operand 3, single buffered']
    #allocation6 [shape = 's32[1]{0}', space=sflag, size = 0x4, scoped, tag = 'scoped memory for decoder.9']
    #allocation7 [shape = 'u8[512]{0}', space=vmem, size = 0x400, scoped, tag = 'input window, operand 5, single buffered']
    #allocation8 [shape = 'u8[512]{0}', space=vmem, size = 0x400, scoped, tag = 'input window, operand 7, single buffered']
    #allocation9 [shape = 's32[1]{0}', space=sflag, size = 0x4, scoped, tag = 'scoped memory for decoder.9']
    %13 = vsyncpa [#allocation4], 0
    %14 = vsyncpa [#allocation6], 0
    %15 = vsyncpa [#allocation9], 0
    loop: start=0, step=1, limit=4
    $region2: #{decoder.9} parent=1 // loop_pre_header
      _
    $region3: #{decoder.9} parent=1 // loop_header
      %s17 = sphi 0, %s21
      %p18 = scmp.ge.s32.totalorder %s17, 4
      %s24 = sphi 0, %s36
      %s25 = sphi 0, %s32
      %s26 = sphi 0, %s24
      %s27 = sphi 0, %s25
      %s28 = sphi 0, %s26
      %s29 = sphi 0, %s27
      %s39 = sphi 0, %s41
      %s42 = sphi 0, %s39
      %s43 = sphi 0, %s42
      %s59 = sphi 0, %s43
      %s65 = sphi 0, %s67
      %s68 = sphi 0, %s65
      %s69 = sphi 0, %s68
      %s85 = sphi 0, %s69
      %s89 = sphi 0, %s89
      %s91 = sphi 0, %s89
      %s92 = sphi 0, %s91
      %s106 = sphi 0, %s92
      %s110 = sphi 0, %s110
      %s112 = sphi 0, %s110
      %s113 = sphi 0, %s112
      %s127 = sphi 0, %s113
      %s131 = sphi 0, %s131
      %s133 = sphi 0, %s131
      %s134 = sphi 0, %s133
      %s148 = sphi 0, %s134
      %s152 = sphi 0, %s152
      %s154 = sphi 0, %s152
      %s155 = sphi 0, %s154
      %s169 = sphi 0, %s155
      %s173 = sphi 0, %s173
      %s175 = sphi 0, %s173
      %s176 = sphi 0, %s175
      %s190 = sphi 0, %s176
      %s194 = sphi 0, %s194
      %s196 = sphi 0, %s194
      %s197 = sphi 0, %s196
      %s211 = sphi 0, %s197
      %s219 = sphi 0, %s221
      %s222 = sphi 0, %s219
      %s223 = sphi 0, %s222
      %s239 = sphi 0, %s223
    $region4: #{decoder.9} parent=1 // loop_header_branch
      %20 = sbr.rel (%p18) target = $region8
    $region5: #{decoder.9} parent=1 // loop_body
      %s22 = ssub.s32 %s17, 1
      %s23 = ssub.s32 %s17, 2
      %s30 = sadd.s32 1, %s25
      %p31 = scmp.ge.s32.totalorder %s30, 1
      %s32 = scalar_select %p31, 0, %s30
      %s33 = sadd.s32 1, %s24
      %s34 = scalar_select %p31, %s33, %s24
      %p35 = scmp.ge.s32.totalorder %s34, 2
      %s36 = scalar_select %p35, 0, %s34
      %s37 = ssub.s32 %s24, %s36
      %p38 = scmp.eq.s32.totalorder %s37, 0
      %s40 = sadd.s32 %s39, 1
      %s41 = scalar_select %p38, %s39, %s40
      %p44 = pneg %p38
      %p45 = scmp.eq.s32.totalorder %s17, 1
      %p46 = por %p44, %p45
      %p47 = scmp.ne.s32.totalorder %s39, %s42
      %p48 = scmp.eq.s32.totalorder %s17, 0
      %p49 = por %p47, %p48
      %p50 = scmp.ne.s32.totalorder %s39, %s42
      %p51 = scmp.eq.s32.totalorder %s22, 1
      %p52 = por %p50, %p51
      %p53 = scmp.ne.s32.totalorder %s42, %s43
      %p54 = scmp.eq.s32.totalorder %s22, 0
      %p55 = por %p53, %p54
      %p56 = scmp.ne.s32.totalorder %s42, %s43
      %p57 = scmp.eq.s32.totalorder %s23, 1
      %p58 = por %p56, %p57
      %p60 = scmp.ne.s32.totalorder %s43, %s59
      %p61 = scmp.eq.s32.totalorder %s23, 0
      %p62 = por %p60, %p61
      %s63 = ssub.s32 %s24, %s36
      %p64 = scmp.eq.s32.totalorder %s63, 0
      %s66 = sadd.s32 %s65, 1
      %s67 = scalar_select %p64, %s65, %s66
      %p70 = pneg %p64
      %p71 = scmp.eq.s32.totalorder %s17, 1
      %p72 = por %p70, %p71
      %p73 = scmp.ne.s32.totalorder %s65, %s68
      %p74 = scmp.eq.s32.totalorder %s17, 0
      %p75 = por %p73, %p74
      %p76 = scmp.ne.s32.totalorder %s65, %s68
      %p77 = scmp.eq.s32.totalorder %s22, 1
      %p78 = por %p76, %p77
      %p79 = scmp.ne.s32.totalorder %s68, %s69
      %p80 = scmp.eq.s32.totalorder %s22, 0
      %p81 = por %p79, %p80
      %p82 = scmp.ne.s32.totalorder %s68, %s69
      %p83 = scmp.eq.s32.totalorder %s23, 1
      %p84 = por %p82, %p83
      %p86 = scmp.ne.s32.totalorder %s69, %s85
      %p87 = scmp.eq.s32.totalorder %s23, 0
      %p88 = por %p86, %p87
      %s90 = sadd.s32 %s89, 1
      %p93 = scmp.eq.s32.totalorder %s17, 1
      %p94 = scmp.ne.s32.totalorder %s89, %s91
      %p95 = scmp.eq.s32.totalorder %s17, 0
      %p96 = por %p94, %p95
      %p97 = scmp.ne.s32.totalorder %s89, %s91
      %p98 = scmp.eq.s32.totalorder %s22, 1
      %p99 = por %p97, %p98
      %p100 = scmp.ne.s32.totalorder %s91, %s92
      %p101 = scmp.eq.s32.totalorder %s22, 0
      %p102 = por %p100, %p101
      %p103 = scmp.ne.s32.totalorder %s91, %s92
      %p104 = scmp.eq.s32.totalorder %s23, 1
      %p105 = por %p103, %p104
      %p107 = scmp.ne.s32.totalorder %s92, %s106
      %p108 = scmp.eq.s32.totalorder %s23, 0
      %p109 = por %p107, %p108
      %s111 = sadd.s32 %s110, 1
      %p114 = scmp.eq.s32.totalorder %s17, 1
      %p115 = scmp.ne.s32.totalorder %s110, %s112
      %p116 = scmp.eq.s32.totalorder %s17, 0
      %p117 = por %p115, %p116
      %p118 = scmp.ne.s32.totalorder %s110, %s112
      %p119 = scmp.eq.s32.totalorder %s22, 1
      %p120 = por %p118, %p119
      %p121 = scmp.ne.s32.totalorder %s112, %s113
      %p122 = scmp.eq.s32.totalorder %s22, 0
      %p123 = por %p121, %p122
      %p124 = scmp.ne.s32.totalorder %s112, %s113
      %p125 = scmp.eq.s32.totalorder %s23, 1
      %p126 = por %p124, %p125
      %p128 = scmp.ne.s32.totalorder %s113, %s127
      %p129 = scmp.eq.s32.totalorder %s23, 0
      %p130 = por %p128, %p129
      %s132 = sadd.s32 %s131, 1
      %p135 = scmp.eq.s32.totalorder %s17, 1
      %p136 = scmp.ne.s32.totalorder %s131, %s133
      %p137 = scmp.eq.s32.totalorder %s17, 0
      %p138 = por %p136, %p137
      %p139 = scmp.ne.s32.totalorder %s131, %s133
      %p140 = scmp.eq.s32.totalorder %s22, 1
      %p141 = por %p139, %p140
      %p142 = scmp.ne.s32.totalorder %s133, %s134
      %p143 = scmp.eq.s32.totalorder %s22, 0
      %p144 = por %p142, %p143
      %p145 = scmp.ne.s32.totalorder %s133, %s134
      %p146 = scmp.eq.s32.totalorder %s23, 1
      %p147 = por %p145, %p146
      %p149 = scmp.ne.s32.totalorder %s134, %s148
      %p150 = scmp.eq.s32.totalorder %s23, 0
      %p151 = por %p149, %p150
      %s153 = sadd.s32 %s152, 1
      %p156 = scmp.eq.s32.totalorder %s17, 1
      %p157 = scmp.ne.s32.totalorder %s152, %s154
      %p158 = scmp.eq.s32.totalorder %s17, 0
      %p159 = por %p157, %p158
      %p160 = scmp.ne.s32.totalorder %s152, %s154
      %p161 = scmp.eq.s32.totalorder %s22, 1
      %p162 = por %p160, %p161
      %p163 = scmp.ne.s32.totalorder %s154, %s155
      %p164 = scmp.eq.s32.totalorder %s22, 0
      %p165 = por %p163, %p164
      %p166 = scmp.ne.s32.totalorder %s154, %s155
      %p167 = scmp.eq.s32.totalorder %s23, 1
      %p168 = por %p166, %p167
      %p170 = scmp.ne.s32.totalorder %s155, %s169
      %p171 = scmp.eq.s32.totalorder %s23, 0
      %p172 = por %p170, %p171
      %s174 = sadd.s32 %s173, 1
      %p177 = scmp.eq.s32.totalorder %s17, 1
      %p178 = scmp.ne.s32.totalorder %s173, %s175
      %p179 = scmp.eq.s32.totalorder %s17, 0
      %p180 = por %p178, %p179
      %p181 = scmp.ne.s32.totalorder %s173, %s175
      %p182 = scmp.eq.s32.totalorder %s22, 1
      %p183 = por %p181, %p182
      %p184 = scmp.ne.s32.totalorder %s175, %s176
      %p185 = scmp.eq.s32.totalorder %s22, 0
      %p186 = por %p184, %p185
      %p187 = scmp.ne.s32.totalorder %s175, %s176
      %p188 = scmp.eq.s32.totalorder %s23, 1
      %p189 = por %p187, %p188
      %p191 = scmp.ne.s32.totalorder %s176, %s190
      %p192 = scmp.eq.s32.totalorder %s23, 0
      %p193 = por %p191, %p192
      %s195 = sadd.s32 %s194, 1
      %p198 = scmp.eq.s32.totalorder %s17, 1
      %p199 = scmp.ne.s32.totalorder %s194, %s196
      %p200 = scmp.eq.s32.totalorder %s17, 0
      %p201 = por %p199, %p200
      %p202 = scmp.ne.s32.totalorder %s194, %s196
      %p203 = scmp.eq.s32.totalorder %s22, 1
      %p204 = por %p202, %p203
      %p205 = scmp.ne.s32.totalorder %s196, %s197
      %p206 = scmp.eq.s32.totalorder %s22, 0
      %p207 = por %p205, %p206
      %p208 = scmp.ne.s32.totalorder %s196, %s197
      %p209 = scmp.eq.s32.totalorder %s23, 1
      %p210 = por %p208, %p209
      %p212 = scmp.ne.s32.totalorder %s197, %s211
      %p213 = scmp.eq.s32.totalorder %s23, 0
      %p214 = por %p212, %p213
      %s215 = ssub.s32 %s24, %s36
      %s216 = ssub.s32 %s25, %s32
      %s217 = sor.u32 %s215, %s216
      %p218 = scmp.eq.s32.totalorder %s217, 0
      %s220 = sadd.s32 %s219, 1
      %s221 = scalar_select %p218, %s219, %s220
      %p224 = pneg %p218
      %p225 = scmp.eq.s32.totalorder %s17, 1
      %p226 = por %p224, %p225
      %p227 = scmp.ne.s32.totalorder %s219, %s222
      %p228 = scmp.eq.s32.totalorder %s17, 0
      %p229 = por %p227, %p228
      %p230 = scmp.ne.s32.totalorder %s219, %s222
      %p231 = scmp.eq.s32.totalorder %s22, 1
      %p232 = por %p230, %p231
      %p233 = scmp.ne.s32.totalorder %s222, %s223
      %p234 = scmp.eq.s32.totalorder %s22, 0
      %p235 = por %p233, %p234
      %p236 = scmp.ne.s32.totalorder %s222, %s223
      %p237 = scmp.eq.s32.totalorder %s23, 1
      %p238 = por %p236, %p237
      %p240 = scmp.ne.s32.totalorder %s223, %s239
      %p241 = scmp.eq.s32.totalorder %s23, 0
      %p242 = por %p240, %p241
      %p243 = scmp.le.s32.totalorder 1, %s17
      %p244 = scmp.lt.s32.totalorder %s17, 3
      %p245 = pnand %p243, %p244
      %p246 = pneg %p245
      // Predicated region
      $region9: #{decoder.9} parent=5 // pred_check
        _
      $region10: #{decoder.9} parent=5 // pred_check_branch
        %248 = sbr.rel (%p245) target = $region12
      $region11: #{decoder.9} parent=5 // pred_region
        %s249 = ssub.s32 %s17, 1
        // Predicated region
        $region13: #{decoder.9} parent=11 // pred_check
          %p250 = pneg %p102
        $region14: #{decoder.9} parent=11 // pred_check_branch
          %252 = sbr.rel (%p250) target = $region16
        $region15: #{decoder.9} parent=11 // pred_region
          %254 = vsyncadd [#allocation4], 0
          %s256 = sshll.u32 %s2, 4
          %s257 = int_to_ptr.hbm [resolvable:$true] %s256
          %s258 = sshll.u32 [#allocation3], 4
          %s259 = int_to_ptr.vmem [resolvable:$true] %s258
          %261 = dma.hbm_to_vmem [thread:$0]  %s257, 16, %s259, [#allocation4]
        $region16: #{decoder.9} parent=11 // pred_fallthru
          _
        // Predicated region
        $region17: #{decoder.9} parent=11 // pred_check
          %p262 = pneg %p123
        $region18: #{decoder.9} parent=11 // pred_check_branch
          %264 = sbr.rel (%p262) target = $region20
        $region19: #{decoder.9} parent=11 // pred_region
          %266 = vsyncadd [#allocation6], 0
          %s268 = sshll.u32 %s3, 4
          %s269 = int_to_ptr.hbm [resolvable:$true] %s268
          %s270 = sshll.u32 [#allocation5], 4
          %s271 = int_to_ptr.vmem [resolvable:$true] %s270
          %273 = dma.hbm_to_vmem [thread:$0]  %s269, 16, %s271, [#allocation6]
        $region20: #{decoder.9} parent=11 // pred_fallthru
          _
        // Predicated region
        $region21: #{decoder.9} parent=11 // pred_check
          %p274 = pneg %p144
        $region22: #{decoder.9} parent=11 // pred_check_branch
          %276 = sbr.rel (%p274) target = $region24
        $region23: #{decoder.9} parent=11 // pred_region
          _
        $region24: #{decoder.9} parent=11 // pred_fallthru
          _
        // Predicated region
        $region25: #{decoder.9} parent=11 // pred_check
          %p277 = pneg %p165
        $region26: #{decoder.9} parent=11 // pred_check_branch
          %279 = sbr.rel (%p277) target = $region28
        $region27: #{decoder.9} parent=11 // pred_region
          %281 = vsyncadd [#allocation6], 0
          %s283 = sshll.u32 %s5, 4
          %s284 = int_to_ptr.hbm [resolvable:$true] %s283
          %s285 = sshll.u32 [#allocation7], 4
          %s286 = int_to_ptr.vmem [resolvable:$true] %s285
          %288 = dma.hbm_to_vmem [thread:$0]  %s284, 16, %s286, [#allocation6]
        $region28: #{decoder.9} parent=11 // pred_fallthru
          _
        // Predicated region
        $region29: #{decoder.9} parent=11 // pred_check
          %p289 = pneg %p186
        $region30: #{decoder.9} parent=11 // pred_check_branch
          %291 = sbr.rel (%p289) target = $region32
        $region31: #{decoder.9} parent=11 // pred_region
          _
        $region32: #{decoder.9} parent=11 // pred_fallthru
          _
        // Predicated region
        $region33: #{decoder.9} parent=11 // pred_check
          %p292 = pneg %p207
        $region34: #{decoder.9} parent=11 // pred_check_branch
          %294 = sbr.rel (%p292) target = $region36
        $region35: #{decoder.9} parent=11 // pred_region
          %296 = vsyncadd [#allocation9], 0
          %s298 = sshll.u32 %s7, 4
          %s299 = int_to_ptr.hbm [resolvable:$true] %s298
          %s300 = sshll.u32 [#allocation8], 4
          %s301 = int_to_ptr.vmem [resolvable:$true] %s300
          %303 = dma.hbm_to_vmem [thread:$0]  %s299, 16, %s301, [#allocation9]
        $region36: #{decoder.9} parent=11 // pred_fallthru
          _
      $region12: #{decoder.9} parent=5 // pred_fallthru
        _
      %p304 = scmp.lt.s32.totalorder %s17, 2
      // Predicated region
      $region37: #{decoder.9} parent=5 // pred_check
        %p305 = pneg %p304
      $region38: #{decoder.9} parent=5 // pred_check_branch
        %307 = sbr.rel (%p305) target = $region40
      $region39: #{decoder.9} parent=5 // pred_region
        // Predicated region
        $region41: #{decoder.9} parent=39 // pred_check
          %p308 = pneg %p49
        $region42: #{decoder.9} parent=39 // pred_check_branch
          %310 = sbr.rel (%p308) target = $region44
        $region43: #{decoder.9} parent=39 // pred_region
          %p311 = scmp.lt.s32.totalorder %s24, 1
          %s312 = scalar_select %p311, %s24, 1
          %s313 = smul.addr %s312, 8
          %s314 = scalar_lea.vmem %s0, %s313
        $region44: #{decoder.9} parent=39 // pred_fallthru
          _
        // Predicated region
        $region45: #{decoder.9} parent=39 // pred_check
          %p315 = pneg %p75
        $region46: #{decoder.9} parent=39 // pred_check_branch
          %317 = sbr.rel (%p315) target = $region48
        $region47: #{decoder.9} parent=39 // pred_region
          %p318 = scmp.lt.s32.totalorder %s24, 1
          %s319 = scalar_select %p318, %s24, 1
          %s320 = scalar_lea.vmem %s1, %s319
        $region48: #{decoder.9} parent=39 // pred_fallthru
          _
      $region40: #{decoder.9} parent=5 // pred_fallthru
        _
      %p321 = scmp.le.s32.totalorder 1, %s17
      %p322 = scmp.lt.s32.totalorder %s17, 3
      %p323 = pnand %p321, %p322
      %p324 = pneg %p323
      // Predicated region
      $region49: #{decoder.9} parent=5 // pred_check
        _
      $region50: #{decoder.9} parent=5 // pred_check_branch
        %326 = sbr.rel (%p323) target = $region52
      $region51: #{decoder.9} parent=5 // pred_region
        %s327 = ssub.s32 %s17, 1
        // Predicated region
        $region53: #{decoder.9} parent=51 // pred_check
          %p328 = pneg %p102
        $region54: #{decoder.9} parent=51 // pred_check_branch
          %330 = sbr.rel (%p328) target = $region56
        $region55: #{decoder.9} parent=51 // pred_region
          %332 = dma.done [#allocation4], 16
        $region56: #{decoder.9} parent=51 // pred_fallthru
          _
        // Predicated region
        $region57: #{decoder.9} parent=51 // pred_check
          %p333 = pneg %p123
        $region58: #{decoder.9} parent=51 // pred_check_branch
          %335 = sbr.rel (%p333) target = $region60
        $region59: #{decoder.9} parent=51 // pred_region
          %337 = dma.done [#allocation6], 16
        $region60: #{decoder.9} parent=51 // pred_fallthru
          _
        // Predicated region
        $region61: #{decoder.9} parent=51 // pred_check
          %p338 = pneg %p165
        $region62: #{decoder.9} parent=51 // pred_check_branch
          %340 = sbr.rel (%p338) target = $region64
        $region63: #{decoder.9} parent=51 // pred_region
          %342 = dma.done [#allocation6], 16
        $region64: #{decoder.9} parent=51 // pred_fallthru
          _
        // Predicated region
        $region65: #{decoder.9} parent=51 // pred_check
          %p343 = pneg %p207
        $region66: #{decoder.9} parent=51 // pred_check_branch
          %345 = sbr.rel (%p343) target = $region68
        $region67: #{decoder.9} parent=51 // pred_region
          %347 = dma.done [#allocation9], 16
        $region68: #{decoder.9} parent=51 // pred_fallthru
          _
        %p348 = scmp.lt.s32.totalorder %s26, 1
        %s349 = scalar_select %p348, %s26, 1
        %s350 = smul.addr %s349, 8
        %s351 = scalar_lea.vmem %s0, %s350
        %p352 = pneg %p55
        %p353 = pneg %p52
        %p354 = scmp.lt.s32.totalorder %s26, 1
        %s355 = scalar_select %p354, %s26, 1
        %s356 = scalar_lea.vmem %s1, %s355
        %p357 = pneg %p81
        %p358 = pneg %p78
        %p359 = pneg %p102
        %p360 = pneg %p99
        %p361 = pneg %p123
        %p362 = pneg %p120
        %p363 = pneg %p144
        %p364 = pneg %p141
        %p365 = pneg %p165
        %p366 = pneg %p162
        %p367 = pneg %p186
        %p368 = pneg %p183
        %p369 = pneg %p207
        %p370 = pneg %p204
        %p371 = pneg %p235
        %p372 = pneg %p232
        %p373 = scmp.lt.s32.totalorder %s26, 1
        %s374 = scalar_select %p373, %s26, 1
        %p375 = scmp.lt.s32.totalorder %s27, 0
        %s376 = scalar_select %p375, %s27, 0
        %s377 = sadd.s32 %s376, %s374
        %s378 = smul.addr %s377, 8
        %s379 = scalar_lea.vmem %s8, %s378
        %p380 = scmp.lt.s32.totalorder %s26, 1
        %s381 = scalar_select %p380, %s26, 1
        %s382 = smul.addr %s381, 8
        %s383 = scalar_lea.vmem %s0, %s382
        %p384 = scmp.lt.s32.totalorder %s26, 1
        %s385 = scalar_select %p384, %s26, 1
        %s386 = scalar_lea.vmem %s1, %s385
        %p387 = scmp.lt.s32.totalorder %s26, 1
        %s388 = scalar_select %p387, %s26, 1
        %p389 = scmp.lt.s32.totalorder %s27, 0
        %s390 = scalar_select %p389, %s27, 0
        %s391 = sadd.s32 %s390, %s388
        %s392 = smul.addr %s391, 8
        %s393 = scalar_lea.vmem %s8, %s392
        %s397 = smul.u32 %s27, 8
        %p398 = scmp.eq.s32.totalorder %s27, 0
        // Predicated region
        $region69: #{decoder.9} parent=51 // pred_check
          %p399 = pneg %p398
        $region70: #{decoder.9} parent=51 // pred_check_branch
          %401 = sbr.rel (%p399) target = $region72
        $region71: #{decoder.9} parent=51 // pred_region
          %v402 = vld [vmem:[%s383] sm:$0xff]
          %v403 = vld [vmem:[#allocation3] sm:$0x1]
          %v404 = vld [vmem:[#allocation5] sm:$0x1]
          %vm405 = vcmask 261120
          %v406 = vsel %vm405, %v402, 0.0
          %407 = vadd.xlane.f32.xlu0 %v406
          %v408 = vpop.xlane.xlu0 %407
          %v409 = vrcp.pop 32.0
          %v410 = vmul.f32 32.0, %v409
          %v411 = vsub.f32 1.0, %v410
          %v412 = vmul.f32 %v409, %v411
          %v413 = vadd.f32 %v409, %v412
          %vm414 = vweird.f32 %v409
          %v415 = vsel %vm414, %v409, %v413
          %v416 = vmul.f32 %v408, %v415
          %v417 = vsub.f32 %v402, %v416
          %v418 = vmul.f32 %v417, %v417
          %v419 = vsel %vm405, %v418, 0.0
          %420 = vadd.xlane.f32.xlu0 %v419
          %v421 = vpop.xlane.xlu0 %420
          %v422 = vmul.f32 %v421, %v415
          %v423 = vadd.f32 %v422, 1e-05
          %v424 = vrsqrt.pop %v423
          %v425 = vmul.f32 %v424, %v423
          %v426 = vmul.f32 %v425, %v424
          %v427 = vmul.f32 0.5, %v426
          %v428 = vsub.f32 1.5, %v427
          %v429 = vmul.f32 %v424, %v428
          %vm430 = vweird.f32 %v423
          %vm431 = vweird.f32 %v424
          %vm432 = vmor %vm430, %vm431
          %v433 = vsel %vm432, %v424, %v429
          %v434 = vmul.f32 %v417, %v433
          %v436 = vperm.slane %v403, 0
          %v438 = vmul.f32 %v434, %v436
          %v440 = vperm.slane %v404, 0
          %v442 = vadd.f32 %v438, %v440
          %v443 = vpack.c.bf16 %v442, %v442
          %v444 = vld [vmem:[%s4] sm:$0xf]
          %v445 = vld [vmem:[%s4 + $0x4] sm:$0xf]
          %v446 = vld [vmem:[%s4 + $0x8] sm:$0xf]
          %v447 = vld [vmem:[%s4 + $0xc] sm:$0xf]
          %v448 = vld [vmem:[#allocation7] sm:$0x1]
          %v450 = vperm.slane %v448, 0
          %v455 = vunpack.c.l.b16 %v444
          %v456 = vunpack.c.l.b16 %v445
          %v457 = vunpack.c.l.b16 %v446
          %v458 = vunpack.c.l.b16 %v447
          %v459 = vpack.c.b16 %v456, %v455
          %v460 = vpack.c.b16 %v458, %v457
          %461 = vrot.lane.b32.xlu0 %v459, 96
          %v462 = vpop.permute.xlu0 %461
          %463 = vrot.lane.b32.xlu0 %v460, 96
          %v464 = vpop.permute.xlu0 %463
          %467 = vrot.lane.b32.xlu0 %v450, 96
          %v468 = vpop.permute.xlu0 %467
          %v471 = vsel %vm405, %v443, 0
          %473 = vmatpush.bf16.msra.mxu0 0
          %474 = vmatpush.bf16.msra.mxu0 0
          %475 = vmatpush.bf16.msra.mxu0 0
          %476 = vmatpush.bf16.msra.mxu0 0
          %477 = vmatpush.bf16.msra.mxu0 0
          %478 = vmatpush.bf16.msra.mxu0 0
          %479 = vmatpush.bf16.msra.mxu0 %v464
          %480 = vmatpush.bf16.msra.mxu0 %v462
          %481 = vmatmul.bf16.gmra.mxu0 %v471
          %v482 = vpop.f32.mrf.mxu0
          %v483 = vadd.f32 %v468, %v482
          %v484 = vpop.f32.mrf.mxu0
          %485 = vdwg.mxu0
          %v486 = vpack.c.bf16 %v483, %v483
          %vm487 = vcmask 519168
          %488 = vst.msk [vmem:[#allocation2] sm:$0xf] %vm487, %v486
        $region72: #{decoder.9} parent=51 // pred_fallthru
          _
        %s489 = scalar_lea.vmem %s383, %s397
        %v490 = vld [vmem:[%s489] sm:$0xff]
        %v491 = vld [vmem:[#allocation3] sm:$0x1]
        %v492 = vld [vmem:[#allocation5] sm:$0x1]
        %vm493 = vcmask 261120
        %v494 = vsel %vm493, %v490, 0.0
        %495 = vadd.xlane.f32.xlu0 %v494
        %v496 = vpop.xlane.xlu0 %495
        %v497 = vrcp.pop 32.0
        %v498 = vmul.f32 32.0, %v497
        %v499 = vsub.f32 1.0, %v498
        %v500 = vmul.f32 %v497, %v499
        %v501 = vadd.f32 %v497, %v500
        %vm502 = vweird.f32 %v497
        %v503 = vsel %vm502, %v497, %v501
        %v504 = vmul.f32 %v496, %v503
        %v505 = vsub.f32 %v490, %v504
        %v506 = vmul.f32 %v505, %v505
        %v507 = vsel %vm493, %v506, 0.0
        %508 = vadd.xlane.f32.xlu0 %v507
        %v509 = vpop.xlane.xlu0 %508
        %v510 = vmul.f32 %v509, %v503
        %v511 = vadd.f32 %v510, 1e-05
        %v512 = vrsqrt.pop %v511
        %v513 = vmul.f32 %v512, %v511
        %v514 = vmul.f32 %v513, %v512
        %v515 = vmul.f32 0.5, %v514
        %v516 = vsub.f32 1.5, %v515
        %v517 = vmul.f32 %v512, %v516
        %vm518 = vweird.f32 %v511
        %vm519 = vweird.f32 %v512
        %vm520 = vmor %vm518, %vm519
        %v521 = vsel %vm520, %v512, %v517
        %v522 = vmul.f32 %v505, %v521
        %v524 = vperm.slane %v491, 0
        %v526 = vmul.f32 %v522, %v524
        %v528 = vperm.slane %v492, 0
        %v530 = vadd.f32 %v526, %v528
        %v531 = vpack.c.bf16 %v530, %v530
        %v532 = vld [vmem:[%s4] sm:$0xf]
        %v533 = vld [vmem:[%s4 + $0x4] sm:$0xf]
        %v534 = vld [vmem:[%s4 + $0x8] sm:$0xf]
        %v535 = vld [vmem:[%s4 + $0xc] sm:$0xf]
        %v536 = vld [vmem:[#allocation7] sm:$0x1]
        %v538 = vperm.slane %v536, 0
        %v544 = vunpack.c.l.b16 %v532
        %v545 = vunpack.c.l.b16 %v533
        %v546 = vunpack.c.l.b16 %v534
        %v547 = vunpack.c.l.b16 %v535
        %v548 = vpack.c.b16 %v545, %v544
        %v549 = vpack.c.b16 %v547, %v546
        %v553 = vsel %vm493, %v531, 0
        %555 = vmatpush.bf16.msra.mxu0 0
        %556 = vmatpush.bf16.msra.mxu0 0
        %557 = vmatpush.bf16.msra.mxu0 0
        %558 = vmatpush.bf16.msra.mxu0 0
        %559 = vmatpush.bf16.msra.mxu0 0
        %560 = vmatpush.bf16.msra.mxu0 0
        %561 = vmatpush.bf16.msra.mxu0 %v549
        %562 = vmatpush.bf16.msra.mxu0 %v548
        %563 = vmatmul.bf16.gmra.mxu0 %v553
        %v564 = vpop.f32.mrf.mxu0
        %v565 = vadd.f32 %v538, %v564
        %v566 = vpop.f32.mrf.mxu0
        %567 = vdwg.mxu0
        %v568 = vpack.c.bf16 %v565, %v565
        %v569 = vld [vmem:[#allocation2] sm:$0xf]
        %v570 = vlaneseq
        %v571 = vshrl.u32 %v570, 7
        %v572 = vstv %s397
        %v573 = vadd.s32 %v572, %v571
        %v574 = vlaneseq
        %v575 = vand.u32 %v574, 127
        %vm576 = vcmp.ge.s32.totalorder %v573, %v575
        %v577 = vld [vmem:[%s386] sm:$0x1]
        %vm578 = vnez %v577
        %v579 = vsel %vm578, 16843009, 0
        %v580 = vunpack.c.0.s8 %v579
        %vm581 = vcmp.ne.s32.totalorder %v580, 0
        %v582 = vsel %vm581, 1, 0
        %v583 = vperm.slane %v582, 0
        %vm584 = vcmp.eq.s32.totalorder %v583, 1
        %vm585 = vmand %vm576, %vm584
        %v586 = vld [vmem:[%s6] sm:$0xf]
        %v587 = vld [vmem:[%s6 + $0x4] sm:$0xf]
        %v588 = vld [vmem:[%s6 + $0x8] sm:$0xf]
        %v589 = vld [vmem:[%s6 + $0xc] sm:$0xf]
        %vm590 = vcmask 64512
        %v592 = vsel %vm590, %v568, 0
        %v595 = vsel %vm590, %v569, 0
        %597 = vmatpush.bf16.xpose.msra.mxu0 0
        %598 = vmatpush.bf16.xpose.msra.mxu0 0
        %599 = vmatpush.bf16.xpose.msra.mxu0 0
        %600 = vmatpush.bf16.xpose.msra.mxu0 0
        %601 = vmatpush.bf16.xpose.msra.mxu0 0
        %602 = vmatpush.bf16.xpose.msra.mxu0 0
        %603 = vmatpush.bf16.xpose.msra.mxu0 0
        %604 = vmatpush.bf16.xpose.msra.mxu0 %v595
        %605 = vmatmul.bf16.gmra.mxu0 %v592
        %v606 = vpop.f32.mrf.mxu0
        %v607 = vadd.f32 0.0, %v606
        %v608 = vpop.f32.mrf.mxu0
        %609 = vdwg.mxu0
        %v610 = vmul.f32 %v607, 0.35355338
        %v611 = vsel %vm585, %v610, -1e+09
        %v612 = vsel %vm590, %v611, -inf
        %613 = vmax.xlane.f32.xlu0 %v612
        %v614 = vpop.xlane.xlu0 %613
        %v615 = vsub.f32 %v611, %v614
        %v616 = vmul.f32 %v615, 1.442695
        %v617 = vpow.pop %v616
        %v618 = vsel %vm590, %v617, 0.0
        %619 = vadd.xlane.f32.xlu0 %v618
        %v620 = vpop.xlane.xlu0 %619
        %v621 = vpack.c.bf16 %v617, %v617
        %v623 = vunpack.c.l.b16 %v569
        %v624 = vpack.c.b16 %v623, %v623
        %625 = vrot.lane.b32.xlu0 %v624, 96
        %v626 = vpop.permute.xlu0 %625
        %v628 = vsel %vm590, %v621, 0
        %vm630 = vcmask 1043456
        %v632 = vsel %vm630, %v626, 0
        %634 = vmatpush.bf16.msra.mxu0 0
        %635 = vmatpush.bf16.msra.mxu0 0
        %636 = vmatpush.bf16.msra.mxu0 0
        %637 = vmatpush.bf16.msra.mxu0 0
        %638 = vmatpush.bf16.msra.mxu0 0
        %639 = vmatpush.bf16.msra.mxu0 0
        %640 = vmatpush.bf16.msra.mxu0 0
        %641 = vmatpush.bf16.msra.mxu0 %v632
        %642 = vmatmul.bf16.gmra.mxu0 %v628
        %v643 = vpop.f32.mrf.mxu0
        %v644 = vadd.f32 0.0, %v643
        %v645 = vpop.f32.mrf.mxu0
        %646 = vdwg.mxu0
        %v647 = vrcp.pop %v620
        %v648 = vmul.f32 %v644, %v647
        %v649 = vpack.c.bf16 %v648, %v648
        %v651 = vunpack.c.l.b16 %v568
        %v652 = vpack.c.b16 %v651, %v651
        %653 = vrot.lane.b32.xlu0 %v652, 120
        %v654 = vpop.permute.xlu0 %653
        %655 = vrot.lane.b32.xlu0 %v624, 120
        %v656 = vpop.permute.xlu0 %655
        %v658 = vsel %vm590, %v654, 0
        %v661 = vsel %vm590, %v656, 0
        %663 = vmatpush.bf16.xpose.msra.mxu0 0
        %664 = vmatpush.bf16.xpose.msra.mxu0 0
        %665 = vmatpush.bf16.xpose.msra.mxu0 0
        %666 = vmatpush.bf16.xpose.msra.mxu0 0
        %667 = vmatpush.bf16.xpose.msra.mxu0 0
        %668 = vmatpush.bf16.xpose.msra.mxu0 0
        %669 = vmatpush.bf16.xpose.msra.mxu0 0
        %670 = vmatpush.bf16.xpose.msra.mxu0 %v661
        %671 = vmatmul.bf16.gmra.mxu0 %v658
        %v672 = vpop.f32.mrf.mxu0
        %v673 = vadd.f32 0.0, %v672
        %v674 = vpop.f32.mrf.mxu0
        %675 = vdwg.mxu0
        %v676 = vmul.f32 %v673, 0.35355338
        %v677 = vsel %vm585, %v676, -1e+09
        %v678 = vsel %vm590, %v677, -inf
        %679 = vmax.xlane.f32.xlu0 %v678
        %v680 = vpop.xlane.xlu0 %679
        %v681 = vsub.f32 %v677, %v680
        %v682 = vmul.f32 %v681, 1.442695
        %v683 = vpow.pop %v682
        %v684 = vsel %vm590, %v683, 0.0
        %685 = vadd.xlane.f32.xlu0 %v684
        %v686 = vpop.xlane.xlu0 %685
        %v687 = vpack.c.bf16 %v683, %v683
        %688 = vrot.lane.b32.xlu0 %v624, 88
        %v689 = vpop.permute.xlu0 %688
        %v691 = vsel %vm590, %v687, 0
        %v694 = vsel %vm630, %v689, 0
        %696 = vmatpush.bf16.msra.mxu0 0
        %697 = vmatpush.bf16.msra.mxu0 0
        %698 = vmatpush.bf16.msra.mxu0 0
        %699 = vmatpush.bf16.msra.mxu0 0
        %700 = vmatpush.bf16.msra.mxu0 0
        %701 = vmatpush.bf16.msra.mxu0 0
        %702 = vmatpush.bf16.msra.mxu0 0
        %703 = vmatpush.bf16.msra.mxu0 %v694
        %704 = vmatmul.bf16.gmra.mxu0 %v691
        %v705 = vpop.f32.mrf.mxu0
        %v706 = vadd.f32 0.0, %v705
        %v707 = vpop.f32.mrf.mxu0
        %708 = vdwg.mxu0
        %v709 = vrcp.pop %v686
        %v710 = vmul.f32 %v706, %v709
        %v711 = vpack.c.bf16 %v710, %v710
        %712 = vrot.lane.b32.xlu0 %v652, 112
        %v713 = vpop.permute.xlu0 %712
        %714 = vrot.lane.b32.xlu0 %v624, 112
        %v715 = vpop.permute.xlu0 %714
        %v717 = vsel %vm590, %v713, 0
        %v720 = vsel %vm590, %v715, 0
        %722 = vmatpush.bf16.xpose.msra.mxu0 0
        %723 = vmatpush.bf16.xpose.msra.mxu0 0
        %724 = vmatpush.bf16.xpose.msra.mxu0 0
        %725 = vmatpush.bf16.xpose.msra.mxu0 0
        %726 = vmatpush.bf16.xpose.msra.mxu0 0
        %727 = vmatpush.bf16.xpose.msra.mxu0 0
        %728 = vmatpush.bf16.xpose.msra.mxu0 0
        %729 = vmatpush.bf16.xpose.msra.mxu0 %v720
        %730 = vmatmul.bf16.gmra.mxu0 %v717
        %v731 = vpop.f32.mrf.mxu0
        %v732 = vadd.f32 0.0, %v731
        %v733 = vpop.f32.mrf.mxu0
        %734 = vdwg.mxu0
        %v735 = vmul.f32 %v732, 0.35355338
        %v736 = vsel %vm585, %v735, -1e+09
        %v737 = vsel %vm590, %v736, -inf
        %738 = vmax.xlane.f32.xlu0 %v737
        %v739 = vpop.xlane.xlu0 %738
        %v740 = vsub.f32 %v736, %v739
        %v741 = vmul.f32 %v740, 1.442695
        %v742 = vpow.pop %v741
        %v743 = vsel %vm590, %v742, 0.0
        %744 = vadd.xlane.f32.xlu0 %v743
        %v745 = vpop.xlane.xlu0 %744
        %v746 = vpack.c.bf16 %v742, %v742
        %747 = vrot.lane.b32.xlu0 %v624, 80
        %v748 = vpop.permute.xlu0 %747
        %v750 = vsel %vm590, %v746, 0
        %v753 = vsel %vm630, %v748, 0
        %755 = vmatpush.bf16.msra.mxu0 0
        %756 = vmatpush.bf16.msra.mxu0 0
        %757 = vmatpush.bf16.msra.mxu0 0
        %758 = vmatpush.bf16.msra.mxu0 0
        %759 = vmatpush.bf16.msra.mxu0 0
        %760 = vmatpush.bf16.msra.mxu0 0
        %761 = vmatpush.bf16.msra.mxu0 0
        %762 = vmatpush.bf16.msra.mxu0 %v753
        %763 = vmatmul.bf16.gmra.mxu0 %v750
        %v764 = vpop.f32.mrf.mxu0
        %v765 = vadd.f32 0.0, %v764
        %v766 = vpop.f32.mrf.mxu0
        %767 = vdwg.mxu0
        %v768 = vrcp.pop %v745
        %v769 = vmul.f32 %v765, %v768
        %v770 = vpack.c.bf16 %v769, %v769
        %771 = vrot.lane.b32.xlu0 %v652, 104
        %v772 = vpop.permute.xlu0 %771
        %773 = vrot.lane.b32.xlu0 %v624, 104
        %v774 = vpop.permute.xlu0 %773
        %v776 = vsel %vm590, %v772, 0
        %v779 = vsel %vm590, %v774, 0
        %781 = vmatpush.bf16.xpose.msra.mxu0 0
        %782 = vmatpush.bf16.xpose.msra.mxu0 0
        %783 = vmatpush.bf16.xpose.msra.mxu0 0
        %784 = vmatpush.bf16.xpose.msra.mxu0 0
        %785 = vmatpush.bf16.xpose.msra.mxu0 0
        %786 = vmatpush.bf16.xpose.msra.mxu0 0
        %787 = vmatpush.bf16.xpose.msra.mxu0 0
        %788 = vmatpush.bf16.xpose.msra.mxu0 %v779
        %789 = vmatmul.bf16.gmra.mxu0 %v776
        %v790 = vpop.f32.mrf.mxu0
        %v791 = vadd.f32 0.0, %v790
        %v792 = vpop.f32.mrf.mxu0
        %793 = vdwg.mxu0
        %v794 = vmul.f32 %v791, 0.35355338
        %v795 = vsel %vm585, %v794, -1e+09
        %v796 = vsel %vm590, %v795, -inf
        %797 = vmax.xlane.f32.xlu0 %v796
        %v798 = vpop.xlane.xlu0 %797
        %v799 = vsub.f32 %v795, %v798
        %v800 = vmul.f32 %v799, 1.442695
        %v801 = vpow.pop %v800
        %v802 = vsel %vm590, %v801, 0.0
        %803 = vadd.xlane.f32.xlu0 %v802
        %v804 = vpop.xlane.xlu0 %803
        %v805 = vpack.c.bf16 %v801, %v801
        %806 = vrot.lane.b32.xlu0 %v624, 72
        %v807 = vpop.permute.xlu0 %806
        %v809 = vsel %vm590, %v805, 0
        %v812 = vsel %vm630, %v807, 0
        %814 = vmatpush.bf16.msra.mxu0 0
        %815 = vmatpush.bf16.msra.mxu0 0
        %816 = vmatpush.bf16.msra.mxu0 0
        %817 = vmatpush.bf16.msra.mxu0 0
        %818 = vmatpush.bf16.msra.mxu0 0
        %819 = vmatpush.bf16.msra.mxu0 0
        %820 = vmatpush.bf16.msra.mxu0 0
        %821 = vmatpush.bf16.msra.mxu0 %v812
        %822 = vmatmul.bf16.gmra.mxu0 %v809
        %v823 = vpop.f32.mrf.mxu0
        %v824 = vadd.f32 0.0, %v823
        %v825 = vpop.f32.mrf.mxu0
        %826 = vdwg.mxu0
        %v827 = vrcp.pop %v804
        %v828 = vmul.f32 %v824, %v827
        %v829 = vpack.c.bf16 %v828, %v828
        %v831 = vunpack.c.l.b16 %v711
        %v832 = vpack.c.b16 %v831, %v831
        %833 = vrot.lane.b32.xlu0 %v832, 8
        %v834 = vpop.permute.xlu0 %833
        %v836 = vunpack.c.l.b16 %v770
        %v837 = vpack.c.b16 %v836, %v836
        %838 = vrot.lane.b32.xlu0 %v837, 16
        %v839 = vpop.permute.xlu0 %838
        %v841 = vunpack.c.l.b16 %v829
        %v842 = vpack.c.b16 %v841, %v841
        %843 = vrot.lane.b32.xlu0 %v842, 24
        %v844 = vpop.permute.xlu0 %843
        %v847 = vsel %vm590, %v649, %v834
        %vm848 = vcmask 130048
        %v850 = vsel %vm848, %v847, %v839
        %vm851 = vcmask 195584
        %v853 = vsel %vm851, %v850, %v844
        %v854 = vld [vmem:[#allocation8] sm:$0x1]
        %v856 = vperm.slane %v854, 0
        %v862 = vunpack.c.l.b16 %v586
        %v863 = vunpack.c.l.b16 %v587
        %v864 = vunpack.c.l.b16 %v588
        %v865 = vunpack.c.l.b16 %v589
        %v866 = vpack.c.b16 %v863, %v862
        %v867 = vpack.c.b16 %v865, %v864
        %v870 = vsel %vm493, %v853, 0
        %872 = vmatpush.bf16.msra.mxu0 0
        %873 = vmatpush.bf16.msra.mxu0 0
        %874 = vmatpush.bf16.msra.mxu0 0
        %875 = vmatpush.bf16.msra.mxu0 0
        %876 = vmatpush.bf16.msra.mxu0 0
        %877 = vmatpush.bf16.msra.mxu0 0
        %878 = vmatpush.bf16.msra.mxu0 %v867
        %879 = vmatpush.bf16.msra.mxu0 %v866
        %880 = vmatmul.bf16.gmra.mxu0 %v870
        %v881 = vpop.f32.mrf.mxu0
        %v882 = vadd.f32 %v856, %v881
        %v883 = vpop.f32.mrf.mxu0
        %884 = vdwg.mxu0
        %v885 = vadd.f32 %v490, %v882
        %886 = vst.msk [vmem:[%s393] sm:$0xff] %vm493, %v885
        %p887 = scmp.lt.s32.totalorder %s26, 1
        %s888 = scalar_select %p887, %s26, 1
        %p889 = scmp.lt.s32.totalorder %s27, 0
        %s890 = scalar_select %p889, %s27, 0
        %s891 = sadd.s32 %s890, %s888
        %s892 = smul.addr %s891, 8
        %s893 = scalar_lea.vmem %s8, %s892
        // Predicated region
        $region73: #{decoder.9} parent=51 // pred_check
          %p894 = pneg %p232
        $region74: #{decoder.9} parent=51 // pred_check_branch
          %896 = sbr.rel (%p894) target = $region76
        $region75: #{decoder.9} parent=51 // pred_region
          _
        $region76: #{decoder.9} parent=51 // pred_fallthru
          _
      $region52: #{decoder.9} parent=5 // pred_fallthru
        _
      %p897 = scmp.le.s32.totalorder 2, %s17
      // Predicated region
      $region77: #{decoder.9} parent=5 // pred_check
        %p898 = pneg %p897
      $region78: #{decoder.9} parent=5 // pred_check_branch
        %900 = sbr.rel (%p898) target = $region80
      $region79: #{decoder.9} parent=5 // pred_region
        %s901 = ssub.s32 %s17, 2
        // Predicated region
        $region81: #{decoder.9} parent=79 // pred_check
          %p902 = pneg %p238
        $region82: #{decoder.9} parent=79 // pred_check_branch
          %904 = sbr.rel (%p902) target = $region84
        $region83: #{decoder.9} parent=79 // pred_region
          %p905 = scmp.lt.s32.totalorder %s28, 1
          %s906 = scalar_select %p905, %s28, 1
          %p907 = scmp.lt.s32.totalorder %s29, 0
          %s908 = scalar_select %p907, %s29, 0
          %s909 = sadd.s32 %s908, %s906
          %s910 = smul.addr %s909, 8
          %s911 = scalar_lea.vmem %s8, %s910
        $region84: #{decoder.9} parent=79 // pred_fallthru
          _
      $region80: #{decoder.9} parent=5 // pred_fallthru
        _
    $region6: #{decoder.9} parent=1 // loop_footer
      %s21 = sadd.s32 1, %s17
    $region7: #{decoder.9} parent=1 // loop_footer_branch
      %16 = sbr.rel target = $region3
    $region8: #{decoder.9} parent=1 // loop_exit
      _
    %912 = vsyncpa [#allocation4], 1
    %s913 = scalar_lea.sflag [#allocation4], 1
    %914 = vsyncpa %s913, 1
    %915 = vsyncpa [#allocation6], 1
    %916 = vsyncpa [#allocation9], 1

// kernel: decoder.11
$region0: #{decoder.11}
  #allocation0 [shape = 'u32[]', space=smem, size = 0x4, offset = 0x4, fixed_abs, tag = 'smem constant byte address 0x4 - core index']
  #allocation1 [shape = 'u32[72,128]{1,0:T(1,128)}', space=vmem, size = 0x9000, scoped, tag = 'internal scratch']
  %s0 = inlined_call_operand.vmem [shape: f32[16,32], index: 0, kind: input, shape index: {}]
  %s1 = inlined_call_operand.vmem [shape: f32[1,32], index: 1, kind: input, shape index: {}]
  %s2 = inlined_call_operand.vmem [shape: f32[1,32], index: 2, kind: input, shape index: {}]
  %s3 = inlined_call_operand.vmem [shape: bf16[32,64], index: 3, kind: input, shape index: {}]
  %s4 = inlined_call_operand.vmem [shape: f32[1,64], index: 4, kind: input, shape index: {}]
  %s5 = inlined_call_operand.vmem [shape: bf16[64,32], index: 5, kind: input, shape index: {}]
  %s6 = inlined_call_operand.vmem [shape: f32[1,32], index: 6, kind: input, shape index: {}]
  %s7 = inlined_call_operand.hbm [shape: f32[16,32], index: 7, kind: output, shape index: {}]
  %s8 = sld [smem:[#allocation0]]
  $region61: #{decoder.11} parent=0
    _
  %s10 = ssub.s32 1, %s8
  %s11 = scalar_select 0, %s10, %s8
  $region1: #{decoder.11} parent=0
    #allocation2 [shape = 'u8[8192]{0}', space=vmem, size = 0x2000, scoped, tag = 'output window, operand 0']
    #allocation3 [shape = 's32[2]{0}', space=sflag, size = 0x8, scoped, tag = 'scoped memory for decoder.11']
    %12 = vsyncpa [#allocation3], 0
    %s13 = scalar_lea.sflag [#allocation3], 1
    %14 = vsyncpa %s13, 0
    loop: start=0, step=1, limit=4
    $region2: #{decoder.11} parent=1 // loop_pre_header
      _
    $region3: #{decoder.11} parent=1 // loop_header
      %s16 = sphi 0, %s20
      %p17 = scmp.ge.s32.totalorder %s16, 4
      %s26 = sphi 0, %s28
      %s29 = sphi 0, %s26
      %s30 = sphi 0, %s29
      %s46 = sphi 0, %s30
      %s50 = sphi 0, %s50
      %s52 = sphi 0, %s50
      %s53 = sphi 0, %s52
      %s67 = sphi 0, %s53
      %s71 = sphi 0, %s71
      %s73 = sphi 0, %s71
      %s74 = sphi 0, %s73
      %s88 = sphi 0, %s74
      %s92 = sphi 0, %s92
      %s94 = sphi 0, %s92
      %s95 = sphi 0, %s94
      %s109 = sphi 0, %s95
      %s113 = sphi 0, %s113
      %s115 = sphi 0, %s113
      %s116 = sphi 0, %s115
      %s130 = sphi 0, %s116
      %s134 = sphi 0, %s134
      %s136 = sphi 0, %s134
      %s137 = sphi 0, %s136
      %s151 = sphi 0, %s137
      %s155 = sphi 0, %s155
      %s157 = sphi 0, %s155
      %s158 = sphi 0, %s157
      %s172 = sphi 0, %s158
      %s178 = sphi 0, %s180
      %s181 = sphi 0, %s178
      %s182 = sphi 0, %s181
      %s198 = sphi 0, %s182
    $region4: #{decoder.11} parent=1 // loop_header_branch
      %19 = sbr.rel (%p17) target = $region8
    $region5: #{decoder.11} parent=1 // loop_body
      %s21 = ssub.s32 %s16, 1
      %s22 = ssub.s32 %s16, 2
      %s23 = sadd.s32 %s16, 1
      %s24 = ssub.s32 %s16, %s23
      %p25 = scmp.eq.s32.totalorder %s24, 0
      %s27 = sadd.s32 %s26, 1
      %s28 = scalar_select %p25, %s26, %s27
      %p31 = pneg %p25
      %p32 = scmp.eq.s32.totalorder %s16, 1
      %p33 = por %p31, %p32
      %p34 = scmp.ne.s32.totalorder %s26, %s29
      %p35 = scmp.eq.s32.totalorder %s16, 0
      %p36 = por %p34, %p35
      %p37 = scmp.ne.s32.totalorder %s26, %s29
      %p38 = scmp.eq.s32.totalorder %s21, 1
      %p39 = por %p37, %p38
      %p40 = scmp.ne.s32.totalorder %s29, %s30
      %p41 = scmp.eq.s32.totalorder %s21, 0
      %p42 = por %p40, %p41
      %p43 = scmp.ne.s32.totalorder %s29, %s30
      %p44 = scmp.eq.s32.totalorder %s22, 1
      %p45 = por %p43, %p44
      %p47 = scmp.ne.s32.totalorder %s30, %s46
      %p48 = scmp.eq.s32.totalorder %s22, 0
      %p49 = por %p47, %p48
      %s51 = sadd.s32 %s50, 1
      %p54 = scmp.eq.s32.totalorder %s16, 1
      %p55 = scmp.ne.s32.totalorder %s50, %s52
      %p56 = scmp.eq.s32.totalorder %s16, 0
      %p57 = por %p55, %p56
      %p58 = scmp.ne.s32.totalorder %s50, %s52
      %p59 = scmp.eq.s32.totalorder %s21, 1
      %p60 = por %p58, %p59
      %p61 = scmp.ne.s32.totalorder %s52, %s53
      %p62 = scmp.eq.s32.totalorder %s21, 0
      %p63 = por %p61, %p62
      %p64 = scmp.ne.s32.totalorder %s52, %s53
      %p65 = scmp.eq.s32.totalorder %s22, 1
      %p66 = por %p64, %p65
      %p68 = scmp.ne.s32.totalorder %s53, %s67
      %p69 = scmp.eq.s32.totalorder %s22, 0
      %p70 = por %p68, %p69
      %s72 = sadd.s32 %s71, 1
      %p75 = scmp.eq.s32.totalorder %s16, 1
      %p76 = scmp.ne.s32.totalorder %s71, %s73
      %p77 = scmp.eq.s32.totalorder %s16, 0
      %p78 = por %p76, %p77
      %p79 = scmp.ne.s32.totalorder %s71, %s73
      %p80 = scmp.eq.s32.totalorder %s21, 1
      %p81 = por %p79, %p80
      %p82 = scmp.ne.s32.totalorder %s73, %s74
      %p83 = scmp.eq.s32.totalorder %s21, 0
      %p84 = por %p82, %p83
      %p85 = scmp.ne.s32.totalorder %s73, %s74
      %p86 = scmp.eq.s32.totalorder %s22, 1
      %p87 = por %p85, %p86
      %p89 = scmp.ne.s32.totalorder %s74, %s88
      %p90 = scmp.eq.s32.totalorder %s22, 0
      %p91 = por %p89, %p90
      %s93 = sadd.s32 %s92, 1
      %p96 = scmp.eq.s32.totalorder %s16, 1
      %p97 = scmp.ne.s32.totalorder %s92, %s94
      %p98 = scmp.eq.s32.totalorder %s16, 0
      %p99 = por %p97, %p98
      %p100 = scmp.ne.s32.totalorder %s92, %s94
      %p101 = scmp.eq.s32.totalorder %s21, 1
      %p102 = por %p100, %p101
      %p103 = scmp.ne.s32.totalorder %s94, %s95
      %p104 = scmp.eq.s32.totalorder %s21, 0
      %p105 = por %p103, %p104
      %p106 = scmp.ne.s32.totalorder %s94, %s95
      %p107 = scmp.eq.s32.totalorder %s22, 1
      %p108 = por %p106, %p107
      %p110 = scmp.ne.s32.totalorder %s95, %s109
      %p111 = scmp.eq.s32.totalorder %s22, 0
      %p112 = por %p110, %p111
      %s114 = sadd.s32 %s113, 1
      %p117 = scmp.eq.s32.totalorder %s16, 1
      %p118 = scmp.ne.s32.totalorder %s113, %s115
      %p119 = scmp.eq.s32.totalorder %s16, 0
      %p120 = por %p118, %p119
      %p121 = scmp.ne.s32.totalorder %s113, %s115
      %p122 = scmp.eq.s32.totalorder %s21, 1
      %p123 = por %p121, %p122
      %p124 = scmp.ne.s32.totalorder %s115, %s116
      %p125 = scmp.eq.s32.totalorder %s21, 0
      %p126 = por %p124, %p125
      %p127 = scmp.ne.s32.totalorder %s115, %s116
      %p128 = scmp.eq.s32.totalorder %s22, 1
      %p129 = por %p127, %p128
      %p131 = scmp.ne.s32.totalorder %s116, %s130
      %p132 = scmp.eq.s32.totalorder %s22, 0
      %p133 = por %p131, %p132
      %s135 = sadd.s32 %s134, 1
      %p138 = scmp.eq.s32.totalorder %s16, 1
      %p139 = scmp.ne.s32.totalorder %s134, %s136
      %p140 = scmp.eq.s32.totalorder %s16, 0
      %p141 = por %p139, %p140
      %p142 = scmp.ne.s32.totalorder %s134, %s136
      %p143 = scmp.eq.s32.totalorder %s21, 1
      %p144 = por %p142, %p143
      %p145 = scmp.ne.s32.totalorder %s136, %s137
      %p146 = scmp.eq.s32.totalorder %s21, 0
      %p147 = por %p145, %p146
      %p148 = scmp.ne.s32.totalorder %s136, %s137
      %p149 = scmp.eq.s32.totalorder %s22, 1
      %p150 = por %p148, %p149
      %p152 = scmp.ne.s32.totalorder %s137, %s151
      %p153 = scmp.eq.s32.totalorder %s22, 0
      %p154 = por %p152, %p153
      %s156 = sadd.s32 %s155, 1
      %p159 = scmp.eq.s32.totalorder %s16, 1
      %p160 = scmp.ne.s32.totalorder %s155, %s157
      %p161 = scmp.eq.s32.totalorder %s16, 0
      %p162 = por %p160, %p161
      %p163 = scmp.ne.s32.totalorder %s155, %s157
      %p164 = scmp.eq.s32.totalorder %s21, 1
      %p165 = por %p163, %p164
      %p166 = scmp.ne.s32.totalorder %s157, %s158
      %p167 = scmp.eq.s32.totalorder %s21, 0
      %p168 = por %p166, %p167
      %p169 = scmp.ne.s32.totalorder %s157, %s158
      %p170 = scmp.eq.s32.totalorder %s22, 1
      %p171 = por %p169, %p170
      %p173 = scmp.ne.s32.totalorder %s158, %s172
      %p174 = scmp.eq.s32.totalorder %s22, 0
      %p175 = por %p173, %p174
      %s176 = ssub.s32 %s16, %s23
      %p177 = scmp.eq.s32.totalorder %s176, 0
      %s179 = sadd.s32 %s178, 1
      %s180 = scalar_select %p177, %s178, %s179
      %p183 = pneg %p177
      %p184 = scmp.eq.s32.totalorder %s16, 1
      %p185 = por %p183, %p184
      %p186 = scmp.ne.s32.totalorder %s178, %s181
      %p187 = scmp.eq.s32.totalorder %s16, 0
      %p188 = por %p186, %p187
      %p189 = scmp.ne.s32.totalorder %s178, %s181
      %p190 = scmp.eq.s32.totalorder %s21, 1
      %p191 = por %p189, %p190
      %p192 = scmp.ne.s32.totalorder %s181, %s182
      %p193 = scmp.eq.s32.totalorder %s21, 0
      %p194 = por %p192, %p193
      %p195 = scmp.ne.s32.totalorder %s181, %s182
      %p196 = scmp.eq.s32.totalorder %s22, 1
      %p197 = por %p195, %p196
      %p199 = scmp.ne.s32.totalorder %s182, %s198
      %p200 = scmp.eq.s32.totalorder %s22, 0
      %p201 = por %p199, %p200
      %p202 = scmp.le.s32.totalorder 1, %s16
      %p203 = scmp.lt.s32.totalorder %s16, 3
      %p204 = pnand %p202, %p203
      %p205 = pneg %p204
      // Predicated region
      $region9: #{decoder.11} parent=5 // pred_check
        _
      $region10: #{decoder.11} parent=5 // pred_check_branch
        %207 = sbr.rel (%p204) target = $region12
      $region11: #{decoder.11} parent=5 // pred_region
        %s208 = ssub.s32 %s16, 1
        // Predicated region
        $region13: #{decoder.11} parent=11 // pred_check
          %p209 = pneg %p63
        $region14: #{decoder.11} parent=11 // pred_check_branch
          %211 = sbr.rel (%p209) target = $region16
        $region15: #{decoder.11} parent=11 // pred_region
          _
        $region16: #{decoder.11} parent=11 // pred_fallthru
          _
        // Predicated region
        $region17: #{decoder.11} parent=11 // pred_check
          %p212 = pneg %p84
        $region18: #{decoder.11} parent=11 // pred_check_branch
          %214 = sbr.rel (%p212) target = $region20
        $region19: #{decoder.11} parent=11 // pred_region
          _
        $region20: #{decoder.11} parent=11 // pred_fallthru
          _
        // Predicated region
        $region21: #{decoder.11} parent=11 // pred_check
          %p215 = pneg %p105
        $region22: #{decoder.11} parent=11 // pred_check_branch
          %217 = sbr.rel (%p215) target = $region24
        $region23: #{decoder.11} parent=11 // pred_region
          _
        $region24: #{decoder.11} parent=11 // pred_fallthru
          _
        // Predicated region
        $region25: #{decoder.11} parent=11 // pred_check
          %p218 = pneg %p126
        $region26: #{decoder.11} parent=11 // pred_check_branch
          %220 = sbr.rel (%p218) target = $region28
        $region27: #{decoder.11} parent=11 // pred_region
          _
        $region28: #{decoder.11} parent=11 // pred_fallthru
          _
        // Predicated region
        $region29: #{decoder.11} parent=11 // pred_check
          %p221 = pneg %p147
        $region30: #{decoder.11} parent=11 // pred_check_branch
          %223 = sbr.rel (%p221) target = $region32
        $region31: #{decoder.11} parent=11 // pred_region
          _
        $region32: #{decoder.11} parent=11 // pred_fallthru
          _
        // Predicated region
        $region33: #{decoder.11} parent=11 // pred_check
          %p224 = pneg %p168
        $region34: #{decoder.11} parent=11 // pred_check_branch
          %226 = sbr.rel (%p224) target = $region36
        $region35: #{decoder.11} parent=11 // pred_region
          _
        $region36: #{decoder.11} parent=11 // pred_fallthru
          _
      $region12: #{decoder.11} parent=5 // pred_fallthru
        _
      %p227 = scmp.lt.s32.totalorder %s16, 2
      // Predicated region
      $region37: #{decoder.11} parent=5 // pred_check
        %p228 = pneg %p227
      $region38: #{decoder.11} parent=5 // pred_check_branch
        %230 = sbr.rel (%p228) target = $region40
      $region39: #{decoder.11} parent=5 // pred_region
        // Predicated region
        $region41: #{decoder.11} parent=39 // pred_check
          %p231 = pneg %p36
        $region42: #{decoder.11} parent=39 // pred_check_branch
          %233 = sbr.rel (%p231) target = $region44
        $region43: #{decoder.11} parent=39 // pred_region
          %p234 = scmp.lt.s32.totalorder %s16, 1
          %s235 = scalar_select %p234, %s16, 1
          %s236 = smul.addr %s235, 8
          %s237 = scalar_lea.vmem %s0, %s236
        $region44: #{decoder.11} parent=39 // pred_fallthru
          _
      $region40: #{decoder.11} parent=5 // pred_fallthru
        _
      %p238 = scmp.le.s32.totalorder 1, %s16
      %p239 = scmp.lt.s32.totalorder %s16, 3
      %p240 = pnand %p238, %p239
      %p241 = pneg %p240
      // Predicated region
      $region45: #{decoder.11} parent=5 // pred_check
        _
      $region46: #{decoder.11} parent=5 // pred_check_branch
        %243 = sbr.rel (%p240) target = $region48
      $region47: #{decoder.11} parent=5 // pred_region
        %s244 = ssub.s32 %s16, 1
        %p245 = scmp.lt.s32.totalorder %s21, 1
        %s246 = scalar_select %p245, %s21, 1
        %s247 = smul.addr %s246, 8
        %s248 = scalar_lea.vmem %s0, %s247
        %p249 = pneg %p42
        %p250 = pneg %p39
        %p251 = pneg %p63
        %p252 = pneg %p60
        %p253 = pneg %p84
        %p254 = pneg %p81
        %p255 = pneg %p105
        %p256 = pneg %p102
        %p257 = pneg %p126
        %p258 = pneg %p123
        %p259 = pneg %p147
        %p260 = pneg %p144
        %p261 = pneg %p168
        %p262 = pneg %p165
        %p263 = pneg %p194
        %p264 = pneg %p191
        %s265 = sand.u32 %s181, 1
        %s266 = scalar_lea.sflag [#allocation3], %s265
        %s267 = sand.u32 %s181, 1
        %s268 = smul.addr %s267, 8
        %s269 = scalar_lea.vmem [#allocation2], %s268
        %p270 = scmp.lt.s32.totalorder %s21, 1
        %s271 = scalar_select %p270, %s21, 1
        %s272 = smul.addr %s271, 8
        %s273 = scalar_lea.vmem %s0, %s272
        %v275 = vld [vmem:[%s273] sm:$0xff]
        %v276 = vld [vmem:[%s1] sm:$0x1]
        %v277 = vld [vmem:[%s2] sm:$0x1]
        %vm278 = vcmask 261120
        %v279 = vsel %vm278, %v275, 0.0
        %280 = vadd.xlane.f32.xlu0 %v279
        %v281 = vpop.xlane.xlu0 %280
        %v282 = vrcp.pop 32.0
        %v283 = vmul.f32 32.0, %v282
        %v284 = vsub.f32 1.0, %v283
        %v285 = vmul.f32 %v282, %v284
        %v286 = vadd.f32 %v282, %v285
        %vm287 = vweird.f32 %v282
        %v288 = vsel %vm287, %v282, %v286
        %v289 = vmul.f32 %v281, %v288
        %v290 = vsub.f32 %v275, %v289
        %v291 = vmul.f32 %v290, %v290
        %v292 = vsel %vm278, %v291, 0.0
        %293 = vadd.xlane.f32.xlu0 %v292
        %v294 = vpop.xlane.xlu0 %293
        %v295 = vmul.f32 %v294, %v288
        %v296 = vadd.f32 %v295, 1e-05
        %v297 = vrsqrt.pop %v296
        %v298 = vmul.f32 %v297, %v296
        %v299 = vmul.f32 %v298, %v297
        %v300 = vmul.f32 0.5, %v299
        %v301 = vsub.f32 1.5, %v300
        %v302 = vmul.f32 %v297, %v301
        %vm303 = vweird.f32 %v296
        %vm304 = vweird.f32 %v297
        %vm305 = vmor %vm303, %vm304
        %v306 = vsel %vm305, %v297, %v302
        %v307 = vmul.f32 %v290, %v306
        %v309 = vperm.slane %v276, 0
        %v311 = vmul.f32 %v307, %v309
        %v313 = vperm.slane %v277, 0
        %v315 = vadd.f32 %v311, %v313
        %v316 = vpack.c.bf16 %v315, %v315
        %v317 = vld [vmem:[%s3] sm:$0xf]
        %v318 = vld [vmem:[%s3 + $0x4] sm:$0xf]
        %v319 = vld [vmem:[%s3 + $0x8] sm:$0xf]
        %v320 = vld [vmem:[%s3 + $0xc] sm:$0xf]
        %v321 = vld [vmem:[%s4] sm:$0x1]
        %v323 = vperm.slane %v321, 0
        %v329 = vunpack.c.l.b16 %v317
        %v330 = vunpack.c.l.b16 %v318
        %v331 = vunpack.c.l.b16 %v319
        %v332 = vunpack.c.l.b16 %v320
        %v333 = vpack.c.b16 %v330, %v329
        %v334 = vpack.c.b16 %v332, %v331
        %v338 = vsel %vm278, %v316, 0
        %340 = vmatpush.bf16.msra.mxu0 0
        %341 = vmatpush.bf16.msra.mxu0 0
        %342 = vmatpush.bf16.msra.mxu0 0
        %343 = vmatpush.bf16.msra.mxu0 0
        %344 = vmatpush.bf16.msra.mxu0 0
        %345 = vmatpush.bf16.msra.mxu0 0
        %346 = vmatpush.bf16.msra.mxu0 %v334
        %347 = vmatpush.bf16.msra.mxu0 %v333
        %348 = vmatmul.bf16.gmra.mxu0 %v338
        %v349 = vpop.f32.mrf.mxu0
        %v350 = vadd.f32 %v323, %v349
        %v351 = vpop.f32.mrf.mxu0
        %352 = vdwg.mxu0
        %v353 = vmax.f32 %v350, 0.0
        %v354 = vpack.c.bf16 %v353, %v353
        %v355 = vld [vmem:[%s5] sm:$0xf]
        %v356 = vld [vmem:[%s5 + $0x4] sm:$0xf]
        %v357 = vld [vmem:[%s5 + $0x8] sm:$0xf]
        %v358 = vld [vmem:[%s5 + $0xc] sm:$0xf]
        %v359 = vld [vmem:[%s5 + $0x10] sm:$0xf]
        %v360 = vld [vmem:[%s5 + $0x14] sm:$0xf]
        %v361 = vld [vmem:[%s5 + $0x18] sm:$0xf]
        %v362 = vld [vmem:[%s5 + $0x1c] sm:$0xf]
        %v363 = vld [vmem:[%s6] sm:$0x1]
        %v365 = vperm.slane %v363, 0
        %v375 = vunpack.c.l.b16 %v355
        %v376 = vunpack.c.l.b16 %v356
        %v377 = vunpack.c.l.b16 %v357
        %v378 = vunpack.c.l.b16 %v358
        %v379 = vunpack.c.l.b16 %v359
        %v380 = vunpack.c.l.b16 %v360
        %v381 = vunpack.c.l.b16 %v361
        %v382 = vunpack.c.l.b16 %v362
        %v383 = vpack.c.b16 %v376, %v375
        %v384 = vpack.c.b16 %v378, %v377
        %v385 = vpack.c.b16 %v380, %v379
        %v386 = vpack.c.b16 %v382, %v381
        %vm391 = vcmask 523264
        %v393 = vsel %vm391, %v354, 0
        %395 = vmatpush.bf16.msra.mxu0 0
        %396 = vmatpush.bf16.msra.mxu0 0
        %397 = vmatpush.bf16.msra.mxu0 0
        %398 = vmatpush.bf16.msra.mxu0 0
        %399 = vmatpush.bf16.msra.mxu0 %v386
        %400 = vmatpush.bf16.msra.mxu0 %v385
        %401 = vmatpush.bf16.msra.mxu0 %v384
        %402 = vmatpush.bf16.msra.mxu0 %v383
        %403 = vmatmul.bf16.gmra.mxu0 %v393
        %v404 = vpop.f32.mrf.mxu0
        %v405 = vadd.f32 %v365, %v404
        %v406 = vpop.f32.mrf.mxu0
        %407 = vdwg.mxu0
        %v408 = vadd.f32 %v275, %v405
        %409 = vst.msk [vmem:[%s269] sm:$0xff] %vm278, %v408
        %s410 = sand.u32 %s181, 1
        %s411 = scalar_lea.sflag [#allocation3], %s410
        %s412 = sand.u32 %s181, 1
        %s413 = smul.addr %s412, 8
        %s414 = scalar_lea.vmem [#allocation2], %s413
        // Predicated region
        $region49: #{decoder.11} parent=47 // pred_check
          %p415 = pneg %p191
        $region50: #{decoder.11} parent=47 // pred_check_branch
          %417 = sbr.rel (%p415) target = $region52
        $region51: #{decoder.11} parent=47 // pred_region
          %419 = vsyncadd %s411, 0
          %s420 = smul.addr %s21, 8
          %s421 = scalar_lea.hbm %s7, %s420
          %s423 = sshll.u32 %s414, 4
          %s424 = int_to_ptr.vmem [resolvable:$true] %s423
          %s425 = sshll.u32 %s421, 4
          %s426 = int_to_ptr.hbm [resolvable:$true] %s425
          %428 = dma.vmem_to_hbm [thread:$0]  %s424, 128, %s426, %s411
        $region52: #{decoder.11} parent=47 // pred_fallthru
          _
      $region48: #{decoder.11} parent=5 // pred_fallthru
        _
      %p429 = scmp.le.s32.totalorder 2, %s16
      // Predicated region
      $region53: #{decoder.11} parent=5 // pred_check
        %p430 = pneg %p429
      $region54: #{decoder.11} parent=5 // pred_check_branch
        %432 = sbr.rel (%p430) target = $region56
      $region55: #{decoder.11} parent=5 // pred_region
        %s433 = ssub.s32 %s16, 2
        // Predicated region
        $region57: #{decoder.11} parent=55 // pred_check
          %p434 = pneg %p197
        $region58: #{decoder.11} parent=55 // pred_check_branch
          %436 = sbr.rel (%p434) target = $region60
        $region59: #{decoder.11} parent=55 // pred_region
          %s437 = sand.u32 %s182, 1
          %s438 = scalar_lea.sflag [#allocation3], %s437
          %s439 = sand.u32 %s182, 1
          %s440 = smul.addr %s439, 8
          %s441 = scalar_lea.vmem [#allocation2], %s440
          %443 = dma.done %s438, 128
        $region60: #{decoder.11} parent=55 // pred_fallthru
          _
      $region56: #{decoder.11} parent=5 // pred_fallthru
        _
    $region6: #{decoder.11} parent=1 // loop_footer
      %s20 = sadd.s32 1, %s16
    $region7: #{decoder.11} parent=1 // loop_footer_branch
      %15 = sbr.rel target = $region3
    $region8: #{decoder.11} parent=1 // loop_exit
      _
    %444 = vsyncpa [#allocation3], 1
    %s445 = scalar_lea.sflag [#allocation3], 1
    %446 = vsyncpa %s445, 1

// kernel: decoder.10
$region0: #{decoder.10}
  #allocation0 [shape = 'u32[]', space=smem, size = 0x4, offset = 0x4, fixed_abs, tag = 'smem constant byte address 0x4 - core index']
  #allocation1 [shape = 'u32[72,128]{1,0:T(1,128)}', space=vmem, size = 0x9000, scoped, tag = 'internal scratch']
  #allocation2 [shape = 'bf16[8,64]{1,0:T(8,128)(2,1)}', space=vmem, size = 0x800, scoped, tag = 'scratch operand']
  #allocation3 [shape = 'bf16[8,64]{1,0:T(8,128)(2,1)}', space=vmem, size = 0x800, scoped, tag = 'scratch operand']
  %s0 = inlined_call_operand.vmem [shape: f32[2,8,32], index: 0, kind: input, shape index: {}]
  %s1 = inlined_call_operand.vmem [shape: f32[2,8,32], index: 1, kind: input, shape index: {}]
  %s2 = inlined_call_operand.hbm [shape: f32[2,8,32], index: 2, kind: input, shape index: {}]
  %s3 = inlined_call_operand.vmem [shape: s8[2,1,8], index: 3, kind: input, shape index: {}]
  %s4 = inlined_call_operand.vmem [shape: f32[1,32], index: 4, kind: input, shape index: {}]
  %s5 = inlined_call_operand.hbm [shape: f32[1,32], index: 5, kind: input, shape index: {}]
  %s6 = inlined_call_operand.hbm [shape: bf16[32,64], index: 6, kind: input, shape index: {}]
  %s7 = inlined_call_operand.hbm [shape: f32[1,64], index: 7, kind: input, shape index: {}]
  %s8 = inlined_call_operand.hbm [shape: bf16[32,64], index: 8, kind: input, shape index: {}]
  %s9 = inlined_call_operand.hbm [shape: f32[1,64], index: 9, kind: input, shape index: {}]
  %s10 = inlined_call_operand.hbm [shape: bf16[32,64], index: 10, kind: input, shape index: {}]
  %s11 = inlined_call_operand.hbm [shape: f32[1,64], index: 11, kind: input, shape index: {}]
  %s12 = inlined_call_operand.hbm [shape: bf16[32,32], index: 12, kind: input, shape index: {}]
  %s13 = inlined_call_operand.hbm [shape: f32[1,32], index: 13, kind: input, shape index: {}]
  %s14 = inlined_call_operand.hbm [shape: bf16[32,32], index: 14, kind: input, shape index: {}]
  %s15 = inlined_call_operand.hbm [shape: f32[1,32], index: 15, kind: input, shape index: {}]
  %s16 = inlined_call_operand.vmem [shape: f32[2,8,32], index: 16, kind: output, shape index: {0}]
  %s17 = inlined_call_operand.hbm [shape: bf16[2,4,8,8], index: 17, kind: output, shape index: {1}]
  %18 = xla_tuple %s16, %s17
  %s19 = sld [smem:[#allocation0]]
  $region157: #{decoder.10} parent=0
    _
  %s21 = ssub.s32 1, %s19
  %s22 = scalar_select 0, %s21, %s19
  $region1: #{decoder.10} parent=0
    #allocation4 [shape = 'u8[8192]{0}', space=vmem, size = 0x2000, scoped, tag = 'input window, operand 2']
    #allocation5 [shape = 's32[2]{0}', space=sflag, size = 0x8, scoped, tag = 'scoped memory for decoder.10']
    #allocation6 [shape = 's32[2]{0}', space=sflag, size = 0x8, scoped, tag = 'scoped memory for decoder.10']
    #allocation7 [shape = 'u8[512]{0}', space=vmem, size = 0x400, scoped, tag = 'input window, operand 5, single buffered']
    #allocation8 [shape = 's32[1]{0}', space=sflag, size = 0x4, scoped, tag = 'scoped memory for decoder.10']
    #allocation9 [shape = 'u8[8192]{0}', space=vmem, size = 0x2000, scoped, tag = 'input window, operand 6, single buffered']
    #allocation10 [shape = 'u8[512]{0}', space=vmem, size = 0x400, scoped, tag = 'input window, operand 7, single buffered']
    #allocation11 [shape = 's32[1]{0}', space=sflag, size = 0x4, scoped, tag = 'scoped memory for decoder.10']
    #allocation12 [shape = 'u8[8192]{0}', space=vmem, size = 0x2000, scoped, tag = 'input window, operand 8, single buffered']
    #allocation13 [shape = 'u8[512]{0}', space=vmem, size = 0x400, scoped, tag = 'input window, operand 9, single buffered']
    #allocation14 [shape = 's32[1]{0}', space=sflag, size = 0x4, scoped, tag = 'scoped memory for decoder.10']
    #allocation15 [shape = 'u8[8192]{0}', space=vmem, size = 0x2000, scoped, tag = 'input window, operand 10, single buffered']
    #allocation16 [shape = 'u8[512]{0}', space=vmem, size = 0x400, scoped, tag = 'input window, operand 11, single buffered']
    #allocation17 [shape = 's32[1]{0}', space=sflag, size = 0x4, scoped, tag = 'scoped memory for decoder.10']
    #allocation18 [shape = 'u8[8192]{0}', space=vmem, size = 0x2000, scoped, tag = 'input window, operand 12, single buffered']
    #allocation19 [shape = 'u8[512]{0}', space=vmem, size = 0x400, scoped, tag = 'input window, operand 13, single buffered']
    #allocation20 [shape = 's32[1]{0}', space=sflag, size = 0x4, scoped, tag = 'scoped memory for decoder.10']
    #allocation21 [shape = 'u8[8192]{0}', space=vmem, size = 0x2000, scoped, tag = 'input window, operand 14, single buffered']
    #allocation22 [shape = 'u8[512]{0}', space=vmem, size = 0x400, scoped, tag = 'input window, operand 15, single buffered']
    #allocation23 [shape = 's32[1]{0}', space=sflag, size = 0x4, scoped, tag = 'scoped memory for decoder.10']
    #allocation24 [shape = 'u8[16384]{0}', space=vmem, size = 0x4000, scoped, tag = 'output window, operand 1']
    %23 = vsyncpa [#allocation5], 0
    %s24 = scalar_lea.sflag [#allocation5], 1
    %25 = vsyncpa %s24, 0
    %26 = vsyncpa [#allocation8], 0
    %27 = vsyncpa [#allocation11], 0
    %28 = vsyncpa [#allocation14], 0
    %29 = vsyncpa [#allocation17], 0
    %30 = vsyncpa [#allocation20], 0
    %31 = vsyncpa [#allocation23], 0
    %32 = vsyncpa [#allocation6], 0
    %s33 = scalar_lea.sflag [#allocation6], 1
    %34 = vsyncpa %s33, 0
    loop: start=0, step=1, limit=4
    $region2: #{decoder.10} parent=1 // loop_pre_header
      _
    $region3: #{decoder.10} parent=1 // loop_header
      %s36 = sphi 0, %s40
      %p37 = scmp.ge.s32.totalorder %s36, 4
      %s43 = sphi 0, %s55
      %s44 = sphi 0, %s51
      %s45 = sphi 0, %s43
      %s46 = sphi 0, %s44
      %s47 = sphi 0, %s45
      %s48 = sphi 0, %s46
      %s60 = sphi 0, %s62
      %s63 = sphi 0, %s60
      %s64 = sphi 0, %s63
      %s80 = sphi 0, %s64
      %s86 = sphi 0, %s88
      %s89 = sphi 0, %s86
      %s90 = sphi 0, %s89
      %s106 = sphi 0, %s90
      %s112 = sphi 0, %s114
      %s115 = sphi 0, %s112
      %s116 = sphi 0, %s115
      %s132 = sphi 0, %s116
      %s138 = sphi 0, %s140
      %s141 = sphi 0, %s138
      %s142 = sphi 0, %s141
      %s158 = sphi 0, %s142
      %s162 = sphi 0, %s162
      %s164 = sphi 0, %s162
      %s165 = sphi 0, %s164
      %s179 = sphi 0, %s165
      %s183 = sphi 0, %s183
      %s185 = sphi 0, %s183
      %s186 = sphi 0, %s185
      %s200 = sphi 0, %s186
      %s204 = sphi 0, %s204
      %s206 = sphi 0, %s204
      %s207 = sphi 0, %s206
      %s221 = sphi 0, %s207
      %s225 = sphi 0, %s225
      %s227 = sphi 0, %s225
      %s228 = sphi 0, %s227
      %s242 = sphi 0, %s228
      %s246 = sphi 0, %s246
      %s248 = sphi 0, %s246
      %s249 = sphi 0, %s248
      %s263 = sphi 0, %s249
      %s267 = sphi 0, %s267
      %s269 = sphi 0, %s267
      %s270 = sphi 0, %s269
      %s284 = sphi 0, %s270
      %s288 = sphi 0, %s288
      %s290 = sphi 0, %s288
      %s291 = sphi 0, %s290
      %s305 = sphi 0, %s291
      %s309 = sphi 0, %s309
      %s311 = sphi 0, %s309
      %s312 = sphi 0, %s311
      %s326 = sphi 0, %s312
      %s330 = sphi 0, %s330
      %s332 = sphi 0, %s330
      %s333 = sphi 0, %s332
      %s347 = sphi 0, %s333
      %s351 = sphi 0, %s351
      %s353 = sphi 0, %s351
      %s354 = sphi 0, %s353
      %s368 = sphi 0, %s354
      %s372 = sphi 0, %s372
      %s374 = sphi 0, %s372
      %s375 = sphi 0, %s374
      %s389 = sphi 0, %s375
      %s393 = sphi 0, %s393
      %s395 = sphi 0, %s393
      %s396 = sphi 0, %s395
      %s410 = sphi 0, %s396
      %s418 = sphi 0, %s420
      %s421 = sphi 0, %s418
      %s422 = sphi 0, %s421
      %s438 = sphi 0, %s422
      %s446 = sphi 0, %s448
      %s449 = sphi 0, %s446
      %s450 = sphi 0, %s449
      %s466 = sphi 0, %s450
    $region4: #{decoder.10} parent=1 // loop_header_branch
      %39 = sbr.rel (%p37) target = $region8
    $region5: #{decoder.10} parent=1 // loop_body
      %s41 = ssub.s32 %s36, 1
      %s42 = ssub.s32 %s36, 2
      %s49 = sadd.s32 1, %s44
      %p50 = scmp.ge.s32.totalorder %s49, 1
      %s51 = scalar_select %p50, 0, %s49
      %s52 = sadd.s32 1, %s43
      %s53 = scalar_select %p50, %s52, %s43
      %p54 = scmp.ge.s32.totalorder %s53, 2
      %s55 = scalar_select %p54, 0, %s53
      %s56 = ssub.s32 %s43, %s55
      %s57 = ssub.s32 %s44, %s51
      %s58 = sor.u32 %s56, %s57
      %p59 = scmp.eq.s32.totalorder %s58, 0
      %s61 = sadd.s32 %s60, 1
      %s62 = scalar_select %p59, %s60, %s61
      %p65 = pneg %p59
      %p66 = scmp.eq.s32.totalorder %s36, 1
      %p67 = por %p65, %p66
      %p68 = scmp.ne.s32.totalorder %s60, %s63
      %p69 = scmp.eq.s32.totalorder %s36, 0
      %p70 = por %p68, %p69
      %p71 = scmp.ne.s32.totalorder %s60, %s63
      %p72 = scmp.eq.s32.totalorder %s41, 1
      %p73 = por %p71, %p72
      %p74 = scmp.ne.s32.totalorder %s63, %s64
      %p75 = scmp.eq.s32.totalorder %s41, 0
      %p76 = por %p74, %p75
      %p77 = scmp.ne.s32.totalorder %s63, %s64
      %p78 = scmp.eq.s32.totalorder %s42, 1
      %p79 = por %p77, %p78
      %p81 = scmp.ne.s32.totalorder %s64, %s80
      %p82 = scmp.eq.s32.totalorder %s42, 0
      %p83 = por %p81, %p82
      %s84 = ssub.s32 %s43, %s55
      %p85 = scmp.eq.s32.totalorder %s84, 0
      %s87 = sadd.s32 %s86, 1
      %s88 = scalar_select %p85, %s86, %s87
      %p91 = pneg %p85
      %p92 = scmp.eq.s32.totalorder %s36, 1
      %p93 = por %p91, %p92
      %p94 = scmp.ne.s32.totalorder %s86, %s89
      %p95 = scmp.eq.s32.totalorder %s36, 0
      %p96 = por %p94, %p95
      %p97 = scmp.ne.s32.totalorder %s86, %s89
      %p98 = scmp.eq.s32.totalorder %s41, 1
      %p99 = por %p97, %p98
      %p100 = scmp.ne.s32.totalorder %s89, %s90
      %p101 = scmp.eq.s32.totalorder %s41, 0
      %p102 = por %p100, %p101
      %p103 = scmp.ne.s32.totalorder %s89, %s90
      %p104 = scmp.eq.s32.totalorder %s42, 1
      %p105 = por %p103, %p104
      %p107 = scmp.ne.s32.totalorder %s90, %s106
      %p108 = scmp.eq.s32.totalorder %s42, 0
      %p109 = por %p107, %p108
      %s110 = ssub.s32 %s43, %s55
      %p111 = scmp.eq.s32.totalorder %s110, 0
      %s113 = sadd.s32 %s112, 1
      %s114 = scalar_select %p111, %s112, %s113
      %p117 = pneg %p111
      %p118 = scmp.eq.s32.totalorder %s36, 1
      %p119 = por %p117, %p118
      %p120 = scmp.ne.s32.totalorder %s112, %s115
      %p121 = scmp.eq.s32.totalorder %s36, 0
      %p122 = por %p120, %p121
      %p123 = scmp.ne.s32.totalorder %s112, %s115
      %p124 = scmp.eq.s32.totalorder %s41, 1
      %p125 = por %p123, %p124
      %p126 = scmp.ne.s32.totalorder %s115, %s116
      %p127 = scmp.eq.s32.totalorder %s41, 0
      %p128 = por %p126, %p127
      %p129 = scmp.ne.s32.totalorder %s115, %s116
      %p130 = scmp.eq.s32.totalorder %s42, 1
      %p131 = por %p129, %p130
      %p133 = scmp.ne.s32.totalorder %s116, %s132
      %p134 = scmp.eq.s32.totalorder %s42, 0
      %p135 = por %p133, %p134
      %s136 = ssub.s32 %s43, %s55
      %p137 = scmp.eq.s32.totalorder %s136, 0
      %s139 = sadd.s32 %s138, 1
      %s140 = scalar_select %p137, %s138, %s139
      %p143 = pneg %p137
      %p144 = scmp.eq.s32.totalorder %s36, 1
      %p145 = por %p143, %p144
      %p146 = scmp.ne.s32.totalorder %s138, %s141
      %p147 = scmp.eq.s32.totalorder %s36, 0
      %p148 = por %p146, %p147
      %p149 = scmp.ne.s32.totalorder %s138, %s141
      %p150 = scmp.eq.s32.totalorder %s41, 1
      %p151 = por %p149, %p150
      %p152 = scmp.ne.s32.totalorder %s141, %s142
      %p153 = scmp.eq.s32.totalorder %s41, 0
      %p154 = por %p152, %p153
      %p155 = scmp.ne.s32.totalorder %s141, %s142
      %p156 = scmp.eq.s32.totalorder %s42, 1
      %p157 = por %p155, %p156
      %p159 = scmp.ne.s32.totalorder %s142, %s158
      %p160 = scmp.eq.s32.totalorder %s42, 0
      %p161 = por %p159, %p160
      %s163 = sadd.s32 %s162, 1
      %p166 = scmp.eq.s32.totalorder %s36, 1
      %p167 = scmp.ne.s32.totalorder %s162, %s164
      %p168 = scmp.eq.s32.totalorder %s36, 0
      %p169 = por %p167, %p168
      %p170 = scmp.ne.s32.totalorder %s162, %s164
      %p171 = scmp.eq.s32.totalorder %s41, 1
      %p172 = por %p170, %p171
      %p173 = scmp.ne.s32.totalorder %s164, %s165
      %p174 = scmp.eq.s32.totalorder %s41, 0
      %p175 = por %p173, %p174
      %p176 = scmp.ne.s32.totalorder %s164, %s165
      %p177 = scmp.eq.s32.totalorder %s42, 1
      %p178 = por %p176, %p177
      %p180 = scmp.ne.s32.totalorder %s165, %s179
      %p181 = scmp.eq.s32.totalorder %s42, 0
      %p182 = por %p180, %p181
      %s184 = sadd.s32 %s183, 1
      %p187 = scmp.eq.s32.totalorder %s36, 1
      %p188 = scmp.ne.s32.totalorder %s183, %s185
      %p189 = scmp.eq.s32.totalorder %s36, 0
      %p190 = por %p188, %p189
      %p191 = scmp.ne.s32.totalorder %s183, %s185
      %p192 = scmp.eq.s32.totalorder %s41, 1
      %p193 = por %p191, %p192
      %p194 = scmp.ne.s32.totalorder %s185, %s186
      %p195 = scmp.eq.s32.totalorder %s41, 0
      %p196 = por %p194, %p195
      %p197 = scmp.ne.s32.totalorder %s185, %s186
      %p198 = scmp.eq.s32.totalorder %s42, 1
      %p199 = por %p197, %p198
      %p201 = scmp.ne.s32.totalorder %s186, %s200
      %p202 = scmp.eq.s32.totalorder %s42, 0
      %p203 = por %p201, %p202
      %s205 = sadd.s32 %s204, 1
      %p208 = scmp.eq.s32.totalorder %s36, 1
      %p209 = scmp.ne.s32.totalorder %s204, %s206
      %p210 = scmp.eq.s32.totalorder %s36, 0
      %p211 = por %p209, %p210
      %p212 = scmp.ne.s32.totalorder %s204, %s206
      %p213 = scmp.eq.s32.totalorder %s41, 1
      %p214 = por %p212, %p213
      %p215 = scmp.ne.s32.totalorder %s206, %s207
      %p216 = scmp.eq.s32.totalorder %s41, 0
      %p217 = por %p215, %p216
      %p218 = scmp.ne.s32.totalorder %s206, %s207
      %p219 = scmp.eq.s32.totalorder %s42, 1
      %p220 = por %p218, %p219
      %p222 = scmp.ne.s32.totalorder %s207, %s221
      %p223 = scmp.eq.s32.totalorder %s42, 0
      %p224 = por %p222, %p223
      %s226 = sadd.s32 %s225, 1
      %p229 = scmp.eq.s32.totalorder %s36, 1
      %p230 = scmp.ne.s32.totalorder %s225, %s227
      %p231 = scmp.eq.s32.totalorder %s36, 0
      %p232 = por %p230, %p231
      %p233 = scmp.ne.s32.totalorder %s225, %s227
      %p234 = scmp.eq.s32.totalorder %s41, 1
      %p235 = por %p233, %p234
      %p236 = scmp.ne.s32.totalorder %s227, %s228
      %p237 = scmp.eq.s32.totalorder %s41, 0
      %p238 = por %p236, %p237
      %p239 = scmp.ne.s32.totalorder %s227, %s228
      %p240 = scmp.eq.s32.totalorder %s42, 1
      %p241 = por %p239, %p240
      %p243 = scmp.ne.s32.totalorder %s228, %s242
      %p244 = scmp.eq.s32.totalorder %s42, 0
      %p245 = por %p243, %p244
      %s247 = sadd.s32 %s246, 1
      %p250 = scmp.eq.s32.totalorder %s36, 1
      %p251 = scmp.ne.s32.totalorder %s246, %s248
      %p252 = scmp.eq.s32.totalorder %s36, 0
      %p253 = por %p251, %p252
      %p254 = scmp.ne.s32.totalorder %s246, %s248
      %p255 = scmp.eq.s32.totalorder %s41, 1
      %p256 = por %p254, %p255
      %p257 = scmp.ne.s32.totalorder %s248, %s249
      %p258 = scmp.eq.s32.totalorder %s41, 0
      %p259 = por %p257, %p258
      %p260 = scmp.ne.s32.totalorder %s248, %s249
      %p261 = scmp.eq.s32.totalorder %s42, 1
      %p262 = por %p260, %p261
      %p264 = scmp.ne.s32.totalorder %s249, %s263
      %p265 = scmp.eq.s32.totalorder %s42, 0
      %p266 = por %p264, %p265
      %s268 = sadd.s32 %s267, 1
      %p271 = scmp.eq.s32.totalorder %s36, 1
      %p272 = scmp.ne.s32.totalorder %s267, %s269
      %p273 = scmp.eq.s32.totalorder %s36, 0
      %p274 = por %p272, %p273
      %p275 = scmp.ne.s32.totalorder %s267, %s269
      %p276 = scmp.eq.s32.totalorder %s41, 1
      %p277 = por %p275, %p276
      %p278 = scmp.ne.s32.totalorder %s269, %s270
      %p279 = scmp.eq.s32.totalorder %s41, 0
      %p280 = por %p278, %p279
      %p281 = scmp.ne.s32.totalorder %s269, %s270
      %p282 = scmp.eq.s32.totalorder %s42, 1
      %p283 = por %p281, %p282
      %p285 = scmp.ne.s32.totalorder %s270, %s284
      %p286 = scmp.eq.s32.totalorder %s42, 0
      %p287 = por %p285, %p286
      %s289 = sadd.s32 %s288, 1
      %p292 = scmp.eq.s32.totalorder %s36, 1
      %p293 = scmp.ne.s32.totalorder %s288, %s290
      %p294 = scmp.eq.s32.totalorder %s36, 0
      %p295 = por %p293, %p294
      %p296 = scmp.ne.s32.totalorder %s288, %s290
      %p297 = scmp.eq.s32.totalorder %s41, 1
      %p298 = por %p296, %p297
      %p299 = scmp.ne.s32.totalorder %s290, %s291
      %p300 = scmp.eq.s32.totalorder %s41, 0
      %p301 = por %p299, %p300
      %p302 = scmp.ne.s32.totalorder %s290, %s291
      %p303 = scmp.eq.s32.totalorder %s42, 1
      %p304 = por %p302, %p303
      %p306 = scmp.ne.s32.totalorder %s291, %s305
      %p307 = scmp.eq.s32.totalorder %s42, 0
      %p308 = por %p306, %p307
      %s310 = sadd.s32 %s309, 1
      %p313 = scmp.eq.s32.totalorder %s36, 1
      %p314 = scmp.ne.s32.totalorder %s309, %s311
      %p315 = scmp.eq.s32.totalorder %s36, 0
      %p316 = por %p314, %p315
      %p317 = scmp.ne.s32.totalorder %s309, %s311
      %p318 = scmp.eq.s32.totalorder %s41, 1
      %p319 = por %p317, %p318
      %p320 = scmp.ne.s32.totalorder %s311, %s312
      %p321 = scmp.eq.s32.totalorder %s41, 0
      %p322 = por %p320, %p321
      %p323 = scmp.ne.s32.totalorder %s311, %s312
      %p324 = scmp.eq.s32.totalorder %s42, 1
      %p325 = por %p323, %p324
      %p327 = scmp.ne.s32.totalorder %s312, %s326
      %p328 = scmp.eq.s32.totalorder %s42, 0
      %p329 = por %p327, %p328
      %s331 = sadd.s32 %s330, 1
      %p334 = scmp.eq.s32.totalorder %s36, 1
      %p335 = scmp.ne.s32.totalorder %s330, %s332
      %p336 = scmp.eq.s32.totalorder %s36, 0
      %p337 = por %p335, %p336
      %p338 = scmp.ne.s32.totalorder %s330, %s332
      %p339 = scmp.eq.s32.totalorder %s41, 1
      %p340 = por %p338, %p339
      %p341 = scmp.ne.s32.totalorder %s332, %s333
      %p342 = scmp.eq.s32.totalorder %s41, 0
      %p343 = por %p341, %p342
      %p344 = scmp.ne.s32.totalorder %s332, %s333
      %p345 = scmp.eq.s32.totalorder %s42, 1
      %p346 = por %p344, %p345
      %p348 = scmp.ne.s32.totalorder %s333, %s347
      %p349 = scmp.eq.s32.totalorder %s42, 0
      %p350 = por %p348, %p349
      %s352 = sadd.s32 %s351, 1
      %p355 = scmp.eq.s32.totalorder %s36, 1
      %p356 = scmp.ne.s32.totalorder %s351, %s353
      %p357 = scmp.eq.s32.totalorder %s36, 0
      %p358 = por %p356, %p357
      %p359 = scmp.ne.s32.totalorder %s351, %s353
      %p360 = scmp.eq.s32.totalorder %s41, 1
      %p361 = por %p359, %p360
      %p362 = scmp.ne.s32.totalorder %s353, %s354
      %p363 = scmp.eq.s32.totalorder %s41, 0
      %p364 = por %p362, %p363
      %p365 = scmp.ne.s32.totalorder %s353, %s354
      %p366 = scmp.eq.s32.totalorder %s42, 1
      %p367 = por %p365, %p366
      %p369 = scmp.ne.s32.totalorder %s354, %s368
      %p370 = scmp.eq.s32.totalorder %s42, 0
      %p371 = por %p369, %p370
      %s373 = sadd.s32 %s372, 1
      %p376 = scmp.eq.s32.totalorder %s36, 1
      %p377 = scmp.ne.s32.totalorder %s372, %s374
      %p378 = scmp.eq.s32.totalorder %s36, 0
      %p379 = por %p377, %p378
      %p380 = scmp.ne.s32.totalorder %s372, %s374
      %p381 = scmp.eq.s32.totalorder %s41, 1
      %p382 = por %p380, %p381
      %p383 = scmp.ne.s32.totalorder %s374, %s375
      %p384 = scmp.eq.s32.totalorder %s41, 0
      %p385 = por %p383, %p384
      %p386 = scmp.ne.s32.totalorder %s374, %s375
      %p387 = scmp.eq.s32.totalorder %s42, 1
      %p388 = por %p386, %p387
      %p390 = scmp.ne.s32.totalorder %s375, %s389
      %p391 = scmp.eq.s32.totalorder %s42, 0
      %p392 = por %p390, %p391
      %s394 = sadd.s32 %s393, 1
      %p397 = scmp.eq.s32.totalorder %s36, 1
      %p398 = scmp.ne.s32.totalorder %s393, %s395
      %p399 = scmp.eq.s32.totalorder %s36, 0
      %p400 = por %p398, %p399
      %p401 = scmp.ne.s32.totalorder %s393, %s395
      %p402 = scmp.eq.s32.totalorder %s41, 1
      %p403 = por %p401, %p402
      %p404 = scmp.ne.s32.totalorder %s395, %s396
      %p405 = scmp.eq.s32.totalorder %s41, 0
      %p406 = por %p404, %p405
      %p407 = scmp.ne.s32.totalorder %s395, %s396
      %p408 = scmp.eq.s32.totalorder %s42, 1
      %p409 = por %p407, %p408
      %p411 = scmp.ne.s32.totalorder %s396, %s410
      %p412 = scmp.eq.s32.totalorder %s42, 0
      %p413 = por %p411, %p412
      %s414 = ssub.s32 %s43, %s55
      %s415 = ssub.s32 %s44, %s51
      %s416 = sor.u32 %s414, %s415
      %p417 = scmp.eq.s32.totalorder %s416, 0
      %s419 = sadd.s32 %s418, 1
      %s420 = scalar_select %p417, %s418, %s419
      %p423 = pneg %p417
      %p424 = scmp.eq.s32.totalorder %s36, 1
      %p425 = por %p423, %p424
      %p426 = scmp.ne.s32.totalorder %s418, %s421
      %p427 = scmp.eq.s32.totalorder %s36, 0
      %p428 = por %p426, %p427
      %p429 = scmp.ne.s32.totalorder %s418, %s421
      %p430 = scmp.eq.s32.totalorder %s41, 1
      %p431 = por %p429, %p430
      %p432 = scmp.ne.s32.totalorder %s421, %s422
      %p433 = scmp.eq.s32.totalorder %s41, 0
      %p434 = por %p432, %p433
      %p435 = scmp.ne.s32.totalorder %s421, %s422
      %p436 = scmp.eq.s32.totalorder %s42, 1
      %p437 = por %p435, %p436
      %p439 = scmp.ne.s32.totalorder %s422, %s438
      %p440 = scmp.eq.s32.totalorder %s42, 0
      %p441 = por %p439, %p440
      %s442 = ssub.s32 %s43, %s55
      %s443 = ssub.s32 %s44, %s51
      %s444 = sor.u32 %s442, %s443
      %p445 = scmp.eq.s32.totalorder %s444, 0
      %s447 = sadd.s32 %s446, 1
      %s448 = scalar_select %p445, %s446, %s447
      %p451 = pneg %p445
      %p452 = scmp.eq.s32.totalorder %s36, 1
      %p453 = por %p451, %p452
      %p454 = scmp.ne.s32.totalorder %s446, %s449
      %p455 = scmp.eq.s32.totalorder %s36, 0
      %p456 = por %p454, %p455
      %p457 = scmp.ne.s32.totalorder %s446, %s449
      %p458 = scmp.eq.s32.totalorder %s41, 1
      %p459 = por %p457, %p458
      %p460 = scmp.ne.s32.totalorder %s449, %s450
      %p461 = scmp.eq.s32.totalorder %s41, 0
      %p462 = por %p460, %p461
      %p463 = scmp.ne.s32.totalorder %s449, %s450
      %p464 = scmp.eq.s32.totalorder %s42, 1
      %p465 = por %p463, %p464
      %p467 = scmp.ne.s32.totalorder %s450, %s466
      %p468 = scmp.eq.s32.totalorder %s42, 0
      %p469 = por %p467, %p468
      %p470 = scmp.le.s32.totalorder 1, %s36
      %p471 = scmp.lt.s32.totalorder %s36, 3
      %p472 = pnand %p470, %p471
      %p473 = pneg %p472
      // Predicated region
      $region9: #{decoder.10} parent=5 // pred_check
        _
      $region10: #{decoder.10} parent=5 // pred_check_branch
        %475 = sbr.rel (%p472) target = $region12
      $region11: #{decoder.10} parent=5 // pred_region
        %s476 = ssub.s32 %s36, 1
        // Predicated region
        $region13: #{decoder.10} parent=11 // pred_check
          %p477 = pneg %p175
        $region14: #{decoder.10} parent=11 // pred_check_branch
          %479 = sbr.rel (%p477) target = $region16
        $region15: #{decoder.10} parent=11 // pred_region
          _
        $region16: #{decoder.10} parent=11 // pred_fallthru
          _
        // Predicated region
        $region17: #{decoder.10} parent=11 // pred_check
          %p480 = pneg %p196
        $region18: #{decoder.10} parent=11 // pred_check_branch
          %482 = sbr.rel (%p480) target = $region20
        $region19: #{decoder.10} parent=11 // pred_region
          %484 = vsyncadd [#allocation8], 0
          %s486 = sshll.u32 %s5, 4
          %s487 = int_to_ptr.hbm [resolvable:$true] %s486
          %s488 = sshll.u32 [#allocation7], 4
          %s489 = int_to_ptr.vmem [resolvable:$true] %s488
          %491 = dma.hbm_to_vmem [thread:$0]  %s487, 16, %s489, [#allocation8]
        $region20: #{decoder.10} parent=11 // pred_fallthru
          _
        // Predicated region
        $region21: #{decoder.10} parent=11 // pred_check
          %p492 = pneg %p217
        $region22: #{decoder.10} parent=11 // pred_check_branch
          %494 = sbr.rel (%p492) target = $region24
        $region23: #{decoder.10} parent=11 // pred_region
          %496 = vsyncadd [#allocation8], 0
          %s497 = sshll.u32 %s6, 4
          %s498 = int_to_ptr.hbm [resolvable:$true] %s497
          %s499 = sshll.u32 [#allocation9], 4
          %s500 = int_to_ptr.vmem [resolvable:$true] %s499
          %505 = dma.hbm_to_vmem [thread:$0]  %s498, 256, %s500, [#allocation8], 64, 64, 4
        $region24: #{decoder.10} parent=11 // pred_fallthru
          _
        // Predicated region
        $region25: #{decoder.10} parent=11 // pred_check
          %p506 = pneg %p238
        $region26: #{decoder.10} parent=11 // pred_check_branch
          %508 = sbr.rel (%p506) target = $region28
        $region27: #{decoder.10} parent=11 // pred_region
          %510 = vsyncadd [#allocation11], 0
          %s512 = sshll.u32 %s7, 4
          %s513 = int_to_ptr.hbm [resolvable:$true] %s512
          %s514 = sshll.u32 [#allocation10], 4
          %s515 = int_to_ptr.vmem [resolvable:$true] %s514
          %517 = dma.hbm_to_vmem [thread:$0]  %s513, 16, %s515, [#allocation11]
        $region28: #{decoder.10} parent=11 // pred_fallthru
          _
        // Predicated region
        $region29: #{decoder.10} parent=11 // pred_check
          %p518 = pneg %p259
        $region30: #{decoder.10} parent=11 // pred_check_branch
          %520 = sbr.rel (%p518) target = $region32
        $region31: #{decoder.10} parent=11 // pred_region
          %522 = vsyncadd [#allocation11], 0
          %s523 = sshll.u32 %s8, 4
          %s524 = int_to_ptr.hbm [resolvable:$true] %s523
          %s525 = sshll.u32 [#allocation12], 4
          %s526 = int_to_ptr.vmem [resolvable:$true] %s525
          %531 = dma.hbm_to_vmem [thread:$0]  %s524, 256, %s526, [#allocation11], 64, 64, 4
        $region32: #{decoder.10} parent=11 // pred_fallthru
          _
        // Predicated region
        $region33: #{decoder.10} parent=11 // pred_check
          %p532 = pneg %p280
        $region34: #{decoder.10} parent=11 // pred_check_branch
          %534 = sbr.rel (%p532) target = $region36
        $region35: #{decoder.10} parent=11 // pred_region
          %536 = vsyncadd [#allocation14], 0
          %s538 = sshll.u32 %s9, 4
          %s539 = int_to_ptr.hbm [resolvable:$true] %s538
          %s540 = sshll.u32 [#allocation13], 4
          %s541 = int_to_ptr.vmem [resolvable:$true] %s540
          %543 = dma.hbm_to_vmem [thread:$0]  %s539, 16, %s541, [#allocation14]
        $region36: #{decoder.10} parent=11 // pred_fallthru
          _
        // Predicated region
        $region37: #{decoder.10} parent=11 // pred_check
          %p544 = pneg %p301
        $region38: #{decoder.10} parent=11 // pred_check_branch
          %546 = sbr.rel (%p544) target = $region40
        $region39: #{decoder.10} parent=11 // pred_region
          %548 = vsyncadd [#allocation14], 0
          %s549 = sshll.u32 %s10, 4
          %s550 = int_to_ptr.hbm [resolvable:$true] %s549
          %s551 = sshll.u32 [#allocation15], 4
          %s552 = int_to_ptr.vmem [resolvable:$true] %s551
          %557 = dma.hbm_to_vmem [thread:$0]  %s550, 256, %s552, [#allocation14], 64, 64, 4
        $region40: #{decoder.10} parent=11 // pred_fallthru
          _
        // Predicated region
        $region41: #{decoder.10} parent=11 // pred_check
          %p558 = pneg %p322
        $region42: #{decoder.10} parent=11 // pred_check_branch
          %560 = sbr.rel (%p558) target = $region44
        $region43: #{decoder.10} parent=11 // pred_region
          %562 = vsyncadd [#allocation17], 0
          %s564 = sshll.u32 %s11, 4
          %s565 = int_to_ptr.hbm [resolvable:$true] %s564
          %s566 = sshll.u32 [#allocation16], 4
          %s567 = int_to_ptr.vmem [resolvable:$true] %s566
          %569 = dma.hbm_to_vmem [thread:$0]  %s565, 16, %s567, [#allocation17]
        $region44: #{decoder.10} parent=11 // pred_fallthru
          _
        // Predicated region
        $region45: #{decoder.10} parent=11 // pred_check
          %p570 = pneg %p343
        $region46: #{decoder.10} parent=11 // pred_check_branch
          %572 = sbr.rel (%p570) target = $region48
        $region47: #{decoder.10} parent=11 // pred_region
          %574 = vsyncadd [#allocation17], 0
          %s575 = sshll.u32 %s12, 4
          %s576 = int_to_ptr.hbm [resolvable:$true] %s575
          %s577 = sshll.u32 [#allocation18], 4
          %s578 = int_to_ptr.vmem [resolvable:$true] %s577
          %583 = dma.hbm_to_vmem [thread:$0]  %s576, 256, %s578, [#allocation17], 64, 64, 4
        $region48: #{decoder.10} parent=11 // pred_fallthru
          _
        // Predicated region
        $region49: #{decoder.10} parent=11 // pred_check
          %p584 = pneg %p364
        $region50: #{decoder.10} parent=11 // pred_check_branch
          %586 = sbr.rel (%p584) target = $region52
        $region51: #{decoder.10} parent=11 // pred_region
          %588 = vsyncadd [#allocation20], 0
          %s590 = sshll.u32 %s13, 4
          %s591 = int_to_ptr.hbm [resolvable:$true] %s590
          %s592 = sshll.u32 [#allocation19], 4
          %s593 = int_to_ptr.vmem [resolvable:$true] %s592
          %595 = dma.hbm_to_vmem [thread:$0]  %s591, 16, %s593, [#allocation20]
        $region52: #{decoder.10} parent=11 // pred_fallthru
          _
        // Predicated region
        $region53: #{decoder.10} parent=11 // pred_check
          %p596 = pneg %p385
        $region54: #{decoder.10} parent=11 // pred_check_branch
          %598 = sbr.rel (%p596) target = $region56
        $region55: #{decoder.10} parent=11 // pred_region
          %600 = vsyncadd [#allocation20], 0
          %s601 = sshll.u32 %s14, 4
          %s602 = int_to_ptr.hbm [resolvable:$true] %s601
          %s603 = sshll.u32 [#allocation21], 4
          %s604 = int_to_ptr.vmem [resolvable:$true] %s603
          %609 = dma.hbm_to_vmem [thread:$0]  %s602, 256, %s604, [#allocation20], 64, 64, 4
        $region56: #{decoder.10} parent=11 // pred_fallthru
          _
        // Predicated region
        $region57: #{decoder.10} parent=11 // pred_check
          %p610 = pneg %p406
        $region58: #{decoder.10} parent=11 // pred_check_branch
          %612 = sbr.rel (%p610) target = $region60
        $region59: #{decoder.10} parent=11 // pred_region
          %614 = vsyncadd [#allocation23], 0
          %s616 = sshll.u32 %s15, 4
          %s617 = int_to_ptr.hbm [resolvable:$true] %s616
          %s618 = sshll.u32 [#allocation22], 4
          %s619 = int_to_ptr.vmem [resolvable:$true] %s618
          %621 = dma.hbm_to_vmem [thread:$0]  %s617, 16, %s619, [#allocation23]
        $region60: #{decoder.10} parent=11 // pred_fallthru
          _
      $region12: #{decoder.10} parent=5 // pred_fallthru
        _
      %p622 = scmp.lt.s32.totalorder %s36, 2
      // Predicated region
      $region61: #{decoder.10} parent=5 // pred_check
        %p623 = pneg %p622
      $region62: #{decoder.10} parent=5 // pred_check_branch
        %625 = sbr.rel (%p623) target = $region64
      $region63: #{decoder.10} parent=5 // pred_region
        // Predicated region
        $region65: #{decoder.10} parent=63 // pred_check
          %p626 = pneg %p70
        $region66: #{decoder.10} parent=63 // pred_check_branch
          %628 = sbr.rel (%p626) target = $region68
        $region67: #{decoder.10} parent=63 // pred_region
          %p629 = scmp.lt.s32.totalorder %s43, 1
          %s630 = scalar_select %p629, %s43, 1
          %p631 = scmp.lt.s32.totalorder %s44, 0
          %s632 = scalar_select %p631, %s44, 0
          %s633 = sadd.s32 %s632, %s630
          %s634 = smul.addr %s633, 8
          %s635 = scalar_lea.vmem %s0, %s634
        $region68: #{decoder.10} parent=63 // pred_fallthru
          _
        // Predicated region
        $region69: #{decoder.10} parent=63 // pred_check
          %p636 = pneg %p96
        $region70: #{decoder.10} parent=63 // pred_check_branch
          %638 = sbr.rel (%p636) target = $region72
        $region71: #{decoder.10} parent=63 // pred_region
          %p639 = scmp.lt.s32.totalorder %s43, 1
          %s640 = scalar_select %p639, %s43, 1
          %s641 = smul.addr %s640, 8
          %s642 = scalar_lea.vmem %s1, %s641
        $region72: #{decoder.10} parent=63 // pred_fallthru
          _
        // Predicated region
        $region73: #{decoder.10} parent=63 // pred_check
          %p643 = pneg %p122
        $region74: #{decoder.10} parent=63 // pred_check_branch
          %645 = sbr.rel (%p643) target = $region76
        $region75: #{decoder.10} parent=63 // pred_region
          %s646 = sand.u32 %s112, 1
          %s647 = scalar_lea.sflag [#allocation5], %s646
          %s648 = sand.u32 %s112, 1
          %s649 = smul.addr %s648, 8
          %s650 = scalar_lea.vmem [#allocation4], %s649
          %652 = vsyncadd %s647, 0
          %s653 = smul.addr %s43, 8
          %s654 = scalar_lea.hbm %s2, %s653
          %s656 = sshll.u32 %s654, 4
          %s657 = int_to_ptr.hbm [resolvable:$true] %s656
          %s658 = sshll.u32 %s650, 4
          %s659 = int_to_ptr.vmem [resolvable:$true] %s658
          %661 = dma.hbm_to_vmem [thread:$0]  %s657, 128, %s659, %s647
        $region76: #{decoder.10} parent=63 // pred_fallthru
          _
        // Predicated region
        $region77: #{decoder.10} parent=63 // pred_check
          %p662 = pneg %p148
        $region78: #{decoder.10} parent=63 // pred_check_branch
          %664 = sbr.rel (%p662) target = $region80
        $region79: #{decoder.10} parent=63 // pred_region
          %p665 = scmp.lt.s32.totalorder %s43, 1
          %s666 = scalar_select %p665, %s43, 1
          %s667 = scalar_lea.vmem %s3, %s666
        $region80: #{decoder.10} parent=63 // pred_fallthru
          _
      $region64: #{decoder.10} parent=5 // pred_fallthru
        _
      %p668 = scmp.le.s32.totalorder 1, %s36
      %p669 = scmp.lt.s32.totalorder %s36, 3
      %p670 = pnand %p668, %p669
      %p671 = pneg %p670
      // Predicated region
      $region81: #{decoder.10} parent=5 // pred_check
        _
      $region82: #{decoder.10} parent=5 // pred_check_branch
        %673 = sbr.rel (%p670) target = $region84
      $region83: #{decoder.10} parent=5 // pred_region
        %s674 = ssub.s32 %s36, 1
        %s675 = sand.u32 %s115, 1
        %s676 = scalar_lea.sflag [#allocation5], %s675
        %s677 = sand.u32 %s115, 1
        %s678 = smul.addr %s677, 8
        %s679 = scalar_lea.vmem [#allocation4], %s678
        // Predicated region
        $region85: #{decoder.10} parent=83 // pred_check
          %p680 = pneg %p128
        $region86: #{decoder.10} parent=83 // pred_check_branch
          %682 = sbr.rel (%p680) target = $region88
        $region87: #{decoder.10} parent=83 // pred_region
          %684 = dma.done %s676, 128
        $region88: #{decoder.10} parent=83 // pred_fallthru
          _
        // Predicated region
        $region89: #{decoder.10} parent=83 // pred_check
          %p685 = pneg %p196
        $region90: #{decoder.10} parent=83 // pred_check_branch
          %687 = sbr.rel (%p685) target = $region92
        $region91: #{decoder.10} parent=83 // pred_region
          %689 = dma.done [#allocation8], 16
        $region92: #{decoder.10} parent=83 // pred_fallthru
          _
        // Predicated region
        $region93: #{decoder.10} parent=83 // pred_check
          %p690 = pneg %p217
        $region94: #{decoder.10} parent=83 // pred_check_branch
          %692 = sbr.rel (%p690) target = $region96
        $region95: #{decoder.10} parent=83 // pred_region
          %694 = dma.done [#allocation8], 256
        $region96: #{decoder.10} parent=83 // pred_fallthru
          _
        // Predicated region
        $region97: #{decoder.10} parent=83 // pred_check
          %p695 = pneg %p238
        $region98: #{decoder.10} parent=83 // pred_check_branch
          %697 = sbr.rel (%p695) target = $region100
        $region99: #{decoder.10} parent=83 // pred_region
          %699 = dma.done [#allocation11], 16
        $region100: #{decoder.10} parent=83 // pred_fallthru
          _
        // Predicated region
        $region101: #{decoder.10} parent=83 // pred_check
          %p700 = pneg %p259
        $region102: #{decoder.10} parent=83 // pred_check_branch
          %702 = sbr.rel (%p700) target = $region104
        $region103: #{decoder.10} parent=83 // pred_region
          %704 = dma.done [#allocation11], 256
        $region104: #{decoder.10} parent=83 // pred_fallthru
          _
        // Predicated region
        $region105: #{decoder.10} parent=83 // pred_check
          %p705 = pneg %p280
        $region106: #{decoder.10} parent=83 // pred_check_branch
          %707 = sbr.rel (%p705) target = $region108
        $region107: #{decoder.10} parent=83 // pred_region
          %709 = dma.done [#allocation14], 16
        $region108: #{decoder.10} parent=83 // pred_fallthru
          _
        // Predicated region
        $region109: #{decoder.10} parent=83 // pred_check
          %p710 = pneg %p301
        $region110: #{decoder.10} parent=83 // pred_check_branch
          %712 = sbr.rel (%p710) target = $region112
        $region111: #{decoder.10} parent=83 // pred_region
          %714 = dma.done [#allocation14], 256
        $region112: #{decoder.10} parent=83 // pred_fallthru
          _
        // Predicated region
        $region113: #{decoder.10} parent=83 // pred_check
          %p715 = pneg %p322
        $region114: #{decoder.10} parent=83 // pred_check_branch
          %717 = sbr.rel (%p715) target = $region116
        $region115: #{decoder.10} parent=83 // pred_region
          %719 = dma.done [#allocation17], 16
        $region116: #{decoder.10} parent=83 // pred_fallthru
          _
        // Predicated region
        $region117: #{decoder.10} parent=83 // pred_check
          %p720 = pneg %p343
        $region118: #{decoder.10} parent=83 // pred_check_branch
          %722 = sbr.rel (%p720) target = $region120
        $region119: #{decoder.10} parent=83 // pred_region
          %724 = dma.done [#allocation17], 256
        $region120: #{decoder.10} parent=83 // pred_fallthru
          _
        // Predicated region
        $region121: #{decoder.10} parent=83 // pred_check
          %p725 = pneg %p364
        $region122: #{decoder.10} parent=83 // pred_check_branch
          %727 = sbr.rel (%p725) target = $region124
        $region123: #{decoder.10} parent=83 // pred_region
          %729 = dma.done [#allocation20], 16
        $region124: #{decoder.10} parent=83 // pred_fallthru
          _
        // Predicated region
        $region125: #{decoder.10} parent=83 // pred_check
          %p730 = pneg %p385
        $region126: #{decoder.10} parent=83 // pred_check_branch
          %732 = sbr.rel (%p730) target = $region128
        $region127: #{decoder.10} parent=83 // pred_region
          %734 = dma.done [#allocation20], 256
        $region128: #{decoder.10} parent=83 // pred_fallthru
          _
        // Predicated region
        $region129: #{decoder.10} parent=83 // pred_check
          %p735 = pneg %p406
        $region130: #{decoder.10} parent=83 // pred_check_branch
          %737 = sbr.rel (%p735) target = $region132
        $region131: #{decoder.10} parent=83 // pred_region
          %739 = dma.done [#allocation23], 16
        $region132: #{decoder.10} parent=83 // pred_fallthru
          _
        %p740 = scmp.lt.s32.totalorder %s45, 1
        %s741 = scalar_select %p740, %s45, 1
        %p742 = scmp.lt.s32.totalorder %s46, 0
        %s743 = scalar_select %p742, %s46, 0
        %s744 = sadd.s32 %s743, %s741
        %s745 = smul.addr %s744, 8
        %s746 = scalar_lea.vmem %s0, %s745
        %p747 = pneg %p76
        %p748 = pneg %p73
        %p749 = scmp.lt.s32.totalorder %s45, 1
        %s750 = scalar_select %p749, %s45, 1
        %s751 = smul.addr %s750, 8
        %s752 = scalar_lea.vmem %s1, %s751
        %p753 = pneg %p102
        %p754 = pneg %p99
        %s755 = sand.u32 %s115, 1
        %s756 = scalar_lea.sflag [#allocation5], %s755
        %s757 = sand.u32 %s115, 1
        %s758 = smul.addr %s757, 8
        %s759 = scalar_lea.vmem [#allocation4], %s758
        %p760 = pneg %p128
        %p761 = pneg %p125
        %p762 = scmp.lt.s32.totalorder %s45, 1
        %s763 = scalar_select %p762, %s45, 1
        %s764 = scalar_lea.vmem %s3, %s763
        %p765 = pneg %p154
        %p766 = pneg %p151
        %p767 = pneg %p175
        %p768 = pneg %p172
        %p769 = pneg %p196
        %p770 = pneg %p193
        %p771 = pneg %p217
        %p772 = pneg %p214
        %p773 = pneg %p238
        %p774 = pneg %p235
        %p775 = pneg %p259
        %p776 = pneg %p256
        %p777 = pneg %p280
        %p778 = pneg %p277
        %p779 = pneg %p301
        %p780 = pneg %p298
        %p781 = pneg %p322
        %p782 = pneg %p319
        %p783 = pneg %p343
        %p784 = pneg %p340
        %p785 = pneg %p364
        %p786 = pneg %p361
        %p787 = pneg %p385
        %p788 = pneg %p382
        %p789 = pneg %p406
        %p790 = pneg %p403
        %p791 = pneg %p434
        %p792 = pneg %p431
        %p793 = scmp.lt.s32.totalorder %s45, 1
        %s794 = scalar_select %p793, %s45, 1
        %p795 = scmp.lt.s32.totalorder %s46, 0
        %s796 = scalar_select %p795, %s46, 0
        %s797 = sadd.s32 %s796, %s794
        %s798 = smul.addr %s797, 8
        %s799 = scalar_lea.vmem %s16, %s798
        %p800 = pneg %p462
        %p801 = pneg %p459
        %s802 = sand.u32 %s449, 1
        %s803 = scalar_lea.sflag [#allocation6], %s802
        %s804 = sand.u32 %s449, 1
        %s805 = smul.addr %s804, 16
        %s806 = scalar_lea.vmem [#allocation24], %s805
        %p807 = scmp.lt.s32.totalorder %s45, 1
        %s808 = scalar_select %p807, %s45, 1
        %p809 = scmp.lt.s32.totalorder %s46, 0
        %s810 = scalar_select %p809, %s46, 0
        %s811 = sadd.s32 %s810, %s808
        %s812 = smul.addr %s811, 8
        %s813 = scalar_lea.vmem %s0, %s812
        %p814 = scmp.lt.s32.totalorder %s45, 1
        %s815 = scalar_select %p814, %s45, 1
        %s816 = smul.addr %s815, 8
        %s817 = scalar_lea.vmem %s1, %s816
        %p818 = scmp.lt.s32.totalorder %s45, 1
        %s819 = scalar_select %p818, %s45, 1
        %s820 = scalar_lea.vmem %s3, %s819
        %p821 = scmp.lt.s32.totalorder %s45, 1
        %s822 = scalar_select %p821, %s45, 1
        %p823 = scmp.lt.s32.totalorder %s46, 0
        %s824 = scalar_select %p823, %s46, 0
        %s825 = sadd.s32 %s824, %s822
        %s826 = smul.addr %s825, 8
        %s827 = scalar_lea.vmem %s16, %s826
        %v831 = vld [vmem:[%s813] sm:$0xff]
        %p832 = scmp.eq.s32.totalorder %s46, 0
        // Predicated region
        $region133: #{decoder.10} parent=83 // pred_check
          %p833 = pneg %p832
        $region134: #{decoder.10} parent=83 // pred_check_branch
          %835 = sbr.rel (%p833) target = $region136
        $region135: #{decoder.10} parent=83 // pred_region
          %v836 = vld [vmem:[%s817] sm:$0xff]
          %v837 = vpack.c.bf16 %v836, %v836
          %v838 = vld [vmem:[#allocation12] sm:$0xf]
          %v839 = vld [vmem:[#allocation12 + $0x4] sm:$0xf]
          %v840 = vld [vmem:[#allocation12 + $0x8] sm:$0xf]
          %v841 = vld [vmem:[#allocation12 + $0xc] sm:$0xf]
          %v842 = vld [vmem:[#allocation13] sm:$0x1]
          %v844 = vperm.slane %v842, 0
          %v850 = vunpack.c.l.b16 %v838
          %v851 = vunpack.c.l.b16 %v839
          %v852 = vunpack.c.l.b16 %v840
          %v853 = vunpack.c.l.b16 %v841
          %v854 = vpack.c.b16 %v851, %v850
          %v855 = vpack.c.b16 %v853, %v852
          %vm858 = vcmask 261120
          %v860 = vsel %vm858, %v837, 0
          %862 = vmatpush.bf16.msra.mxu0 0
          %863 = vmatpush.bf16.msra.mxu0 0
          %864 = vmatpush.bf16.msra.mxu0 0
          %865 = vmatpush.bf16.msra.mxu0 0
          %866 = vmatpush.bf16.msra.mxu0 0
          %867 = vmatpush.bf16.msra.mxu0 0
          %868 = vmatpush.bf16.msra.mxu0 %v855
          %869 = vmatpush.bf16.msra.mxu0 %v854
          %870 = vmatmul.bf16.gmra.mxu0 %v860
          %v871 = vpop.f32.mrf.mxu0
          %v872 = vadd.f32 %v844, %v871
          %v873 = vpop.f32.mrf.mxu0
          %874 = vdwg.mxu0
          %v875 = vpack.c.bf16 %v872, %v872
          %vm876 = vcmask 519168
          %877 = vst.msk [vmem:[#allocation2] sm:$0xf] %vm876, %v875
          %v878 = vld [vmem:[%s679] sm:$0xff]
          %v879 = vpack.c.bf16 %v878, %v878
          %v880 = vld [vmem:[#allocation15] sm:$0xf]
          %v881 = vld [vmem:[#allocation15 + $0x4] sm:$0xf]
          %v882 = vld [vmem:[#allocation15 + $0x8] sm:$0xf]
          %v883 = vld [vmem:[#allocation15 + $0xc] sm:$0xf]
          %v884 = vld [vmem:[#allocation16] sm:$0x1]
          %v886 = vperm.slane %v884, 0
          %v892 = vunpack.c.l.b16 %v880
          %v893 = vunpack.c.l.b16 %v881
          %v894 = vunpack.c.l.b16 %v882
          %v895 = vunpack.c.l.b16 %v883
          %v896 = vpack.c.b16 %v893, %v892
          %v897 = vpack.c.b16 %v895, %v894
          %v901 = vsel %vm858, %v879, 0
          %903 = vmatpush.bf16.msra.mxu0 0
          %904 = vmatpush.bf16.msra.mxu0 0
          %905 = vmatpush.bf16.msra.mxu0 0
          %906 = vmatpush.bf16.msra.mxu0 0
          %907 = vmatpush.bf16.msra.mxu0 0
          %908 = vmatpush.bf16.msra.mxu0 0
          %909 = vmatpush.bf16.msra.mxu0 %v897
          %910 = vmatpush.bf16.msra.mxu0 %v896
          %911 = vmatmul.bf16.gmra.mxu0 %v901
          %v912 = vpop.f32.mrf.mxu0
          %v913 = vadd.f32 %v886, %v912
          %v914 = vpop.f32.mrf.mxu0
          %915 = vdwg.mxu0
          %v916 = vpack.c.bf16 %v913, %v913
          %917 = vst.msk [vmem:[#allocation3] sm:$0xf] %vm876, %v916
        $region136: #{decoder.10} parent=83 // pred_fallthru
          _
        %v918 = vld [vmem:[%s4] sm:$0x1]
        %v919 = vld [vmem:[#allocation7] sm:$0x1]
        %vm920 = vcmask 261120
        %v921 = vsel %vm920, %v831, 0.0
        %922 = vadd.xlane.f32.xlu0 %v921
        %v923 = vpop.xlane.xlu0 %922
        %v924 = vrcp.pop 32.0
        %v925 = vmul.f32 32.0, %v924
        %v926 = vsub.f32 1.0, %v925
        %v927 = vmul.f32 %v924, %v926
        %v928 = vadd.f32 %v924, %v927
        %vm929 = vweird.f32 %v924
        %v930 = vsel %vm929, %v924, %v928
        %v931 = vmul.f32 %v923, %v930
        %v932 = vsub.f32 %v831, %v931
        %v933 = vmul.f32 %v932, %v932
        %v934 = vsel %vm920, %v933, 0.0
        %935 = vadd.xlane.f32.xlu0 %v934
        %v936 = vpop.xlane.xlu0 %935
        %v937 = vmul.f32 %v936, %v930
        %v938 = vadd.f32 %v937, 1e-05
        %v939 = vrsqrt.pop %v938
        %v940 = vmul.f32 %v939, %v938
        %v941 = vmul.f32 %v940, %v939
        %v942 = vmul.f32 0.5, %v941
        %v943 = vsub.f32 1.5, %v942
        %v944 = vmul.f32 %v939, %v943
        %vm945 = vweird.f32 %v938
        %vm946 = vweird.f32 %v939
        %vm947 = vmor %vm945, %vm946
        %v948 = vsel %vm947, %v939, %v944
        %v949 = vmul.f32 %v932, %v948
        %v951 = vperm.slane %v918, 0
        %v953 = vmul.f32 %v949, %v951
        %v955 = vperm.slane %v919, 0
        %v957 = vadd.f32 %v953, %v955
        %v958 = vpack.c.bf16 %v957, %v957
        %v959 = vld [vmem:[#allocation9] sm:$0xf]
        %v960 = vld [vmem:[#allocation9 + $0x4] sm:$0xf]
        %v961 = vld [vmem:[#allocation9 + $0x8] sm:$0xf]
        %v962 = vld [vmem:[#allocation9 + $0xc] sm:$0xf]
        %v963 = vld [vmem:[#allocation10] sm:$0x1]
        %v965 = vperm.slane %v963, 0
        %v971 = vunpack.c.l.b16 %v959
        %v972 = vunpack.c.l.b16 %v960
        %v973 = vunpack.c.l.b16 %v961
        %v974 = vunpack.c.l.b16 %v962
        %v975 = vpack.c.b16 %v972, %v971
        %v976 = vpack.c.b16 %v974, %v973
        %v980 = vsel %vm920, %v958, 0
        %982 = vmatpush.bf16.msra.mxu0 0
        %983 = vmatpush.bf16.msra.mxu0 0
        %984 = vmatpush.bf16.msra.mxu0 0
        %985 = vmatpush.bf16.msra.mxu0 0
        %986 = vmatpush.bf16.msra.mxu0 0
        %987 = vmatpush.bf16.msra.mxu0 0
        %988 = vmatpush.bf16.msra.mxu0 %v976
        %989 = vmatpush.bf16.msra.mxu0 %v975
        %990 = vmatmul.bf16.gmra.mxu0 %v980
        %v991 = vpop.f32.mrf.mxu0
        %v992 = vadd.f32 %v965, %v991
        %v993 = vpop.f32.mrf.mxu0
        %994 = vdwg.mxu0
        %v995 = vpack.c.bf16 %v992, %v992
        %v996 = vld [vmem:[#allocation2] sm:$0xf]
        %v997 = vld [vmem:[#allocation3] sm:$0xf]
        %v998 = vld [vmem:[%s820] sm:$0x1]
        %vm999 = vnez %v998
        %v1000 = vld [vmem:[#allocation18] sm:$0xf]
        %v1001 = vld [vmem:[#allocation18 + $0x4] sm:$0xf]
        %v1002 = vld [vmem:[#allocation18 + $0x8] sm:$0xf]
        %v1003 = vld [vmem:[#allocation18 + $0xc] sm:$0xf]
        %vm1004 = vcmask 64512
        %v1006 = vsel %vm1004, %v995, 0
        %v1009 = vsel %vm1004, %v996, 0
        %1011 = vmatpush.bf16.xpose.msra.mxu0 0
        %1012 = vmatpush.bf16.xpose.msra.mxu0 0
        %1013 = vmatpush.bf16.xpose.msra.mxu0 0
        %1014 = vmatpush.bf16.xpose.msra.mxu0 0
        %1015 = vmatpush.bf16.xpose.msra.mxu0 0
        %1016 = vmatpush.bf16.xpose.msra.mxu0 0
        %1017 = vmatpush.bf16.xpose.msra.mxu0 0
        %1018 = vmatpush.bf16.xpose.msra.mxu0 %v1009
        %1019 = vmatmul.bf16.gmra.mxu0 %v1006
        %v1020 = vpop.f32.mrf.mxu0
        %v1021 = vadd.f32 0.0, %v1020
        %v1022 = vpop.f32.mrf.mxu0
        %1023 = vdwg.mxu0
        %v1024 = vmul.f32 %v1021, 0.35355338
        %v1025 = vsel %vm999, 16843009, 0
        %v1026 = vunpack.c.0.s8 %v1025
        %vm1027 = vcmp.ne.s32.totalorder %v1026, 0
        %v1028 = vsel %vm1027, 1, 0
        %v1029 = vperm.slane %v1028, 0
        %vm1030 = vcmp.eq.s32.totalorder %v1029, 1
        %v1031 = vsel %vm1030, %v1024, -1e+09
        %v1032 = vsel %vm1004, %v1031, -inf
        %1033 = vmax.xlane.f32.xlu0 %v1032
        %v1034 = vpop.xlane.xlu0 %1033
        %v1035 = vsub.f32 %v1031, %v1034
        %v1036 = vmul.f32 %v1035, 1.442695
        %v1037 = vpow.pop %v1036
        %v1038 = vsel %vm1004, %v1037, 0.0
        %1039 = vadd.xlane.f32.xlu0 %v1038
        %v1040 = vpop.xlane.xlu0 %1039
        %v1041 = vpack.c.bf16 %v1037, %v1037
        %v1043 = vunpack.c.l.b16 %v996
        %v1044 = vpack.c.b16 %v1043, %v1043
        %1045 = vrot.lane.b32.xlu0 %v1044, 96
        %v1046 = vpop.permute.xlu0 %1045
        %v1048 = vsel %vm1004, %v1041, 0
        %vm1050 = vcmask 1043456
        %v1052 = vsel %vm1050, %v1046, 0
        %1054 = vmatpush.bf16.msra.mxu0 0
        %1055 = vmatpush.bf16.msra.mxu0 0
        %1056 = vmatpush.bf16.msra.mxu0 0
        %1057 = vmatpush.bf16.msra.mxu0 0
        %1058 = vmatpush.bf16.msra.mxu0 0
        %1059 = vmatpush.bf16.msra.mxu0 0
        %1060 = vmatpush.bf16.msra.mxu0 0
        %1061 = vmatpush.bf16.msra.mxu0 %v1052
        %1062 = vmatmul.bf16.gmra.mxu0 %v1048
        %v1063 = vpop.f32.mrf.mxu0
        %v1064 = vadd.f32 0.0, %v1063
        %v1065 = vpop.f32.mrf.mxu0
        %1066 = vdwg.mxu0
        %v1067 = vrcp.pop %v1040
        %v1068 = vmul.f32 %v1064, %v1067
        %v1069 = vrcp.pop %v1040
        %v1070 = vmul.f32 %v1040, %v1069
        %v1071 = vsub.f32 1.0, %v1070
        %v1072 = vmul.f32 %v1069, %v1071
        %v1073 = vadd.f32 %v1069, %v1072
        %vm1074 = vweird.f32 %v1040
        %vm1075 = vweird.f32 %v1069
        %vm1076 = vmor %vm1074, %vm1075
        %v1077 = vsel %vm1076, %v1069, %v1073
        %v1078 = vand.u32 2147483647, %v1040
        %vm1079 = vcmp.eq.f32.partialorder %v1078, 8.507059e+37
        %v1080 = vand.u32 %v1040, 2147483648
        %v1081 = vor.u32 1.1754944e-38, %v1080
        %v1082 = vsel %vm1079, %v1081, %v1077
        %v1083 = vmul.f32 %v1037, %v1082
        %v1084 = vpack.c.bf16 %v1083, %v1083
        %vm1085 = vcmask 60416
        %1086 = vst.msk [vmem:[%s806] sm:$0xf] %vm1085, %v1084
        %v1087 = vpack.c.bf16 %v1068, %v1068
        %v1089 = vunpack.c.l.b16 %v995
        %v1090 = vpack.c.b16 %v1089, %v1089
        %1091 = vrot.lane.b32.xlu0 %v1090, 120
        %v1092 = vpop.permute.xlu0 %1091
        %1093 = vrot.lane.b32.xlu0 %v1044, 120
        %v1094 = vpop.permute.xlu0 %1093
        %v1096 = vsel %vm1004, %v1092, 0
        %v1099 = vsel %vm1004, %v1094, 0
        %1101 = vmatpush.bf16.xpose.msra.mxu0 0
        %1102 = vmatpush.bf16.xpose.msra.mxu0 0
        %1103 = vmatpush.bf16.xpose.msra.mxu0 0
        %1104 = vmatpush.bf16.xpose.msra.mxu0 0
        %1105 = vmatpush.bf16.xpose.msra.mxu0 0
        %1106 = vmatpush.bf16.xpose.msra.mxu0 0
        %1107 = vmatpush.bf16.xpose.msra.mxu0 0
        %1108 = vmatpush.bf16.xpose.msra.mxu0 %v1099
        %1109 = vmatmul.bf16.gmra.mxu0 %v1096
        %v1110 = vpop.f32.mrf.mxu0
        %v1111 = vadd.f32 0.0, %v1110
        %v1112 = vpop.f32.mrf.mxu0
        %1113 = vdwg.mxu0
        %v1114 = vmul.f32 %v1111, 0.35355338
        %v1115 = vsel %vm1030, %v1114, -1e+09
        %v1116 = vsel %vm1004, %v1115, -inf
        %1117 = vmax.xlane.f32.xlu0 %v1116
        %v1118 = vpop.xlane.xlu0 %1117
        %v1119 = vsub.f32 %v1115, %v1118
        %v1120 = vmul.f32 %v1119, 1.442695
        %v1121 = vpow.pop %v1120
        %v1122 = vsel %vm1004, %v1121, 0.0
        %1123 = vadd.xlane.f32.xlu0 %v1122
        %v1124 = vpop.xlane.xlu0 %1123
        %v1125 = vpack.c.bf16 %v1121, %v1121
        %1126 = vrot.lane.b32.xlu0 %v1044, 88
        %v1127 = vpop.permute.xlu0 %1126
        %v1129 = vsel %vm1004, %v1125, 0
        %v1132 = vsel %vm1050, %v1127, 0
        %1134 = vmatpush.bf16.msra.mxu0 0
        %1135 = vmatpush.bf16.msra.mxu0 0
        %1136 = vmatpush.bf16.msra.mxu0 0
        %1137 = vmatpush.bf16.msra.mxu0 0
        %1138 = vmatpush.bf16.msra.mxu0 0
        %1139 = vmatpush.bf16.msra.mxu0 0
        %1140 = vmatpush.bf16.msra.mxu0 0
        %1141 = vmatpush.bf16.msra.mxu0 %v1132
        %1142 = vmatmul.bf16.gmra.mxu0 %v1129
        %v1143 = vpop.f32.mrf.mxu0
        %v1144 = vadd.f32 0.0, %v1143
        %v1145 = vpop.f32.mrf.mxu0
        %1146 = vdwg.mxu0
        %v1147 = vrcp.pop %v1124
        %v1148 = vmul.f32 %v1144, %v1147
        %v1149 = vrcp.pop %v1124
        %v1150 = vmul.f32 %v1124, %v1149
        %v1151 = vsub.f32 1.0, %v1150
        %v1152 = vmul.f32 %v1149, %v1151
        %v1153 = vadd.f32 %v1149, %v1152
        %vm1154 = vweird.f32 %v1124
        %vm1155 = vweird.f32 %v1149
        %vm1156 = vmor %vm1154, %vm1155
        %v1157 = vsel %vm1156, %v1149, %v1153
        %v1158 = vand.u32 2147483647, %v1124
        %vm1159 = vcmp.eq.f32.partialorder %v1158, 8.507059e+37
        %v1160 = vand.u32 %v1124, 2147483648
        %v1161 = vor.u32 1.1754944e-38, %v1160
        %v1162 = vsel %vm1159, %v1161, %v1157
        %v1163 = vmul.f32 %v1121, %v1162
        %v1164 = vpack.c.bf16 %v1163, %v1163
        %s1165 = scalar_lea.vmem %s806, 4 [#allocation24]
        %1166 = vst.msk [vmem:[%s1165] sm:$0xf] %vm1085, %v1164
        %v1167 = vpack.c.bf16 %v1148, %v1148
        %1168 = vrot.lane.b32.xlu0 %v1090, 112
        %v1169 = vpop.permute.xlu0 %1168
        %1170 = vrot.lane.b32.xlu0 %v1044, 112
        %v1171 = vpop.permute.xlu0 %1170
        %v1173 = vsel %vm1004, %v1169, 0
        %v1176 = vsel %vm1004, %v1171, 0
        %1178 = vmatpush.bf16.xpose.msra.mxu0 0
        %1179 = vmatpush.bf16.xpose.msra.mxu0 0
        %1180 = vmatpush.bf16.xpose.msra.mxu0 0
        %1181 = vmatpush.bf16.xpose.msra.mxu0 0
        %1182 = vmatpush.bf16.xpose.msra.mxu0 0
        %1183 = vmatpush.bf16.xpose.msra.mxu0 0
        %1184 = vmatpush.bf16.xpose.msra.mxu0 0
        %1185 = vmatpush.bf16.xpose.msra.mxu0 %v1176
        %1186 = vmatmul.bf16.gmra.mxu0 %v1173
        %v1187 = vpop.f32.mrf.mxu0
        %v1188 = vadd.f32 0.0, %v1187
        %v1189 = vpop.f32.mrf.mxu0
        %1190 = vdwg.mxu0
        %v1191 = vmul.f32 %v1188, 0.35355338
        %v1192 = vsel %vm1030, %v1191, -1e+09
        %v1193 = vsel %vm1004, %v1192, -inf
        %1194 = vmax.xlane.f32.xlu0 %v1193
        %v1195 = vpop.xlane.xlu0 %1194
        %v1196 = vsub.f32 %v1192, %v1195
        %v1197 = vmul.f32 %v1196, 1.442695
        %v1198 = vpow.pop %v1197
        %v1199 = vsel %vm1004, %v1198, 0.0
        %1200 = vadd.xlane.f32.xlu0 %v1199
        %v1201 = vpop.xlane.xlu0 %1200
        %v1202 = vpack.c.bf16 %v1198, %v1198
        %1203 = vrot.lane.b32.xlu0 %v1044, 80
        %v1204 = vpop.permute.xlu0 %1203
        %v1206 = vsel %vm1004, %v1202, 0
        %v1209 = vsel %vm1050, %v1204, 0
        %1211 = vmatpush.bf16.msra.mxu0 0
        %1212 = vmatpush.bf16.msra.mxu0 0
        %1213 = vmatpush.bf16.msra.mxu0 0
        %1214 = vmatpush.bf16.msra.mxu0 0
        %1215 = vmatpush.bf16.msra.mxu0 0
        %1216 = vmatpush.bf16.msra.mxu0 0
        %1217 = vmatpush.bf16.msra.mxu0 0
        %1218 = vmatpush.bf16.msra.mxu0 %v1209
        %1219 = vmatmul.bf16.gmra.mxu0 %v1206
        %v1220 = vpop.f32.mrf.mxu0
        %v1221 = vadd.f32 0.0, %v1220
        %v1222 = vpop.f32.mrf.mxu0
        %1223 = vdwg.mxu0
        %v1224 = vrcp.pop %v1201
        %v1225 = vmul.f32 %v1221, %v1224
        %v1226 = vrcp.pop %v1201
        %v1227 = vmul.f32 %v1201, %v1226
        %v1228 = vsub.f32 1.0, %v1227
        %v1229 = vmul.f32 %v1226, %v1228
        %v1230 = vadd.f32 %v1226, %v1229
        %vm1231 = vweird.f32 %v1201
        %vm1232 = vweird.f32 %v1226
        %vm1233 = vmor %vm1231, %vm1232
        %v1234 = vsel %vm1233, %v1226, %v1230
        %v1235 = vand.u32 2147483647, %v1201
        %vm1236 = vcmp.eq.f32.partialorder %v1235, 8.507059e+37
        %v1237 = vand.u32 %v1201, 2147483648
        %v1238 = vor.u32 1.1754944e-38, %v1237
        %v1239 = vsel %vm1236, %v1238, %v1234
        %v1240 = vmul.f32 %v1198, %v1239
        %v1241 = vpack.c.bf16 %v1240, %v1240
        %s1242 = scalar_lea.vmem %s806, 8 [#allocation24]
        %1243 = vst.msk [vmem:[%s1242] sm:$0xf] %vm1085, %v1241
        %v1244 = vpack.c.bf16 %v1225, %v1225
        %1245 = vrot.lane.b32.xlu0 %v1090, 104
        %v1246 = vpop.permute.xlu0 %1245
        %1247 = vrot.lane.b32.xlu0 %v1044, 104
        %v1248 = vpop.permute.xlu0 %1247
        %v1250 = vsel %vm1004, %v1246, 0
        %v1253 = vsel %vm1004, %v1248, 0
        %1255 = vmatpush.bf16.xpose.msra.mxu0 0
        %1256 = vmatpush.bf16.xpose.msra.mxu0 0
        %1257 = vmatpush.bf16.xpose.msra.mxu0 0
        %1258 = vmatpush.bf16.xpose.msra.mxu0 0
        %1259 = vmatpush.bf16.xpose.msra.mxu0 0
        %1260 = vmatpush.bf16.xpose.msra.mxu0 0
        %1261 = vmatpush.bf16.xpose.msra.mxu0 0
        %1262 = vmatpush.bf16.xpose.msra.mxu0 %v1253
        %1263 = vmatmul.bf16.gmra.mxu0 %v1250
        %v1264 = vpop.f32.mrf.mxu0
        %v1265 = vadd.f32 0.0, %v1264
        %v1266 = vpop.f32.mrf.mxu0
        %1267 = vdwg.mxu0
        %v1268 = vmul.f32 %v1265, 0.35355338
        %v1269 = vsel %vm1030, %v1268, -1e+09
        %v1270 = vsel %vm1004, %v1269, -inf
        %1271 = vmax.xlane.f32.xlu0 %v1270
        %v1272 = vpop.xlane.xlu0 %1271
        %v1273 = vsub.f32 %v1269, %v1272
        %v1274 = vmul.f32 %v1273, 1.442695
        %v1275 = vpow.pop %v1274
        %v1276 = vsel %vm1004, %v1275, 0.0
        %1277 = vadd.xlane.f32.xlu0 %v1276
        %v1278 = vpop.xlane.xlu0 %1277
        %v1279 = vpack.c.bf16 %v1275, %v1275
        %1280 = vrot.lane.b32.xlu0 %v1044, 72
        %v1281 = vpop.permute.xlu0 %1280
        %v1283 = vsel %vm1004, %v1279, 0
        %v1286 = vsel %vm1050, %v1281, 0
        %1288 = vmatpush.bf16.msra.mxu0 0
        %1289 = vmatpush.bf16.msra.mxu0 0
        %1290 = vmatpush.bf16.msra.mxu0 0
        %1291 = vmatpush.bf16.msra.mxu0 0
        %1292 = vmatpush.bf16.msra.mxu0 0
        %1293 = vmatpush.bf16.msra.mxu0 0
        %1294 = vmatpush.bf16.msra.mxu0 0
        %1295 = vmatpush.bf16.msra.mxu0 %v1286
        %1296 = vmatmul.bf16.gmra.mxu0 %v1283
        %v1297 = vpop.f32.mrf.mxu0
        %v1298 = vadd.f32 0.0, %v1297
        %v1299 = vpop.f32.mrf.mxu0
        %1300 = vdwg.mxu0
        %v1301 = vrcp.pop %v1278
        %v1302 = vmul.f32 %v1298, %v1301
        %v1303 = vrcp.pop %v1278
        %v1304 = vmul.f32 %v1278, %v1303
        %v1305 = vsub.f32 1.0, %v1304
        %v1306 = vmul.f32 %v1303, %v1305
        %v1307 = vadd.f32 %v1303, %v1306
        %vm1308 = vweird.f32 %v1278
        %vm1309 = vweird.f32 %v1303
        %vm1310 = vmor %vm1308, %vm1309
        %v1311 = vsel %vm1310, %v1303, %v1307
        %v1312 = vand.u32 2147483647, %v1278
        %vm1313 = vcmp.eq.f32.partialorder %v1312, 8.507059e+37
        %v1314 = vand.u32 %v1278, 2147483648
        %v1315 = vor.u32 1.1754944e-38, %v1314
        %v1316 = vsel %vm1313, %v1315, %v1311
        %v1317 = vmul.f32 %v1275, %v1316
        %v1318 = vpack.c.bf16 %v1317, %v1317
        %s1319 = scalar_lea.vmem %s806, 12 [#allocation24]
        %1320 = vst.msk [vmem:[%s1319] sm:$0xf] %vm1085, %v1318
        %v1321 = vpack.c.bf16 %v1302, %v1302
        %v1323 = vunpack.c.l.b16 %v1167
        %v1324 = vpack.c.b16 %v1323, %v1323
        %1325 = vrot.lane.b32.xlu0 %v1324, 8
        %v1326 = vpop.permute.xlu0 %1325
        %v1328 = vunpack.c.l.b16 %v1244
        %v1329 = vpack.c.b16 %v1328, %v1328
        %1330 = vrot.lane.b32.xlu0 %v1329, 16
        %v1331 = vpop.permute.xlu0 %1330
        %v1333 = vunpack.c.l.b16 %v1321
        %v1334 = vpack.c.b16 %v1333, %v1333
        %1335 = vrot.lane.b32.xlu0 %v1334, 24
        %v1336 = vpop.permute.xlu0 %1335
        %v1339 = vsel %vm1004, %v1087, %v1326
        %vm1340 = vcmask 130048
        %v1342 = vsel %vm1340, %v1339, %v1331
        %vm1343 = vcmask 195584
        %v1345 = vsel %vm1343, %v1342, %v1336
        %v1346 = vld [vmem:[#allocation19] sm:$0x1]
        %v1348 = vperm.slane %v1346, 0
        %v1354 = vunpack.c.l.b16 %v1000
        %v1355 = vunpack.c.l.b16 %v1001
        %v1356 = vunpack.c.l.b16 %v1002
        %v1357 = vunpack.c.l.b16 %v1003
        %v1358 = vpack.c.b16 %v1355, %v1354
        %v1359 = vpack.c.b16 %v1357, %v1356
        %v1362 = vsel %vm920, %v1345, 0
        %1364 = vmatpush.bf16.msra.mxu0 0
        %1365 = vmatpush.bf16.msra.mxu0 0
        %1366 = vmatpush.bf16.msra.mxu0 0
        %1367 = vmatpush.bf16.msra.mxu0 0
        %1368 = vmatpush.bf16.msra.mxu0 0
        %1369 = vmatpush.bf16.msra.mxu0 0
        %1370 = vmatpush.bf16.msra.mxu0 %v1359
        %1371 = vmatpush.bf16.msra.mxu0 %v1358
        %1372 = vmatmul.bf16.gmra.mxu0 %v1362
        %v1373 = vpop.f32.mrf.mxu0
        %v1374 = vadd.f32 %v1348, %v1373
        %v1375 = vpop.f32.mrf.mxu0
        %1376 = vdwg.mxu0
        %v1377 = vld [vmem:[#allocation21] sm:$0xf]
        %v1378 = vld [vmem:[#allocation21 + $0x4] sm:$0xf]
        %v1379 = vld [vmem:[#allocation21 + $0x8] sm:$0xf]
        %v1380 = vld [vmem:[#allocation21 + $0xc] sm:$0xf]
        %1381 = vrot.lane.b32.xlu0 %v1090, 96
        %v1382 = vpop.permute.xlu0 %1381
        %v1384 = vsel %vm1004, %v1382, 0
        %v1387 = vsel %vm1004, %v997, 0
        %1389 = vmatpush.bf16.xpose.msra.mxu0 0
        %1390 = vmatpush.bf16.xpose.msra.mxu0 0
        %1391 = vmatpush.bf16.xpose.msra.mxu0 0
        %1392 = vmatpush.bf16.xpose.msra.mxu0 0
        %1393 = vmatpush.bf16.xpose.msra.mxu0 0
        %1394 = vmatpush.bf16.xpose.msra.mxu0 0
        %1395 = vmatpush.bf16.xpose.msra.mxu0 0
        %1396 = vmatpush.bf16.xpose.msra.mxu0 %v1387
        %1397 = vmatmul.bf16.gmra.mxu0 %v1384
        %v1398 = vpop.f32.mrf.mxu0
        %v1399 = vadd.f32 0.0, %v1398
        %v1400 = vpop.f32.mrf.mxu0
        %1401 = vdwg.mxu0
        %v1402 = vmul.f32 %v1399, 0.35355338
        %v1403 = vsel %vm1030, %v1402, -1e+09
        %v1404 = vsel %vm1004, %v1403, -inf
        %1405 = vmax.xlane.f32.xlu0 %v1404
        %v1406 = vpop.xlane.xlu0 %1405
        %v1407 = vsub.f32 %v1403, %v1406
        %v1408 = vmul.f32 %v1407, 1.442695
        %v1409 = vpow.pop %v1408
        %v1410 = vsel %vm1004, %v1409, 0.0
        %1411 = vadd.xlane.f32.xlu0 %v1410
        %v1412 = vpop.xlane.xlu0 %1411
        %v1413 = vpack.c.bf16 %v1409, %v1409
        %v1415 = vunpack.c.l.b16 %v997
        %v1416 = vpack.c.b16 %v1415, %v1415
        %1417 = vrot.lane.b32.xlu0 %v1416, 96
        %v1418 = vpop.permute.xlu0 %1417
        %v1420 = vsel %vm1004, %v1413, 0
        %v1423 = vsel %vm1050, %v1418, 0
        %1425 = vmatpush.bf16.msra.mxu0 0
        %1426 = vmatpush.bf16.msra.mxu0 0
        %1427 = vmatpush.bf16.msra.mxu0 0
        %1428 = vmatpush.bf16.msra.mxu0 0
        %1429 = vmatpush.bf16.msra.mxu0 0
        %1430 = vmatpush.bf16.msra.mxu0 0
        %1431 = vmatpush.bf16.msra.mxu0 0
        %1432 = vmatpush.bf16.msra.mxu0 %v1423
        %1433 = vmatmul.bf16.gmra.mxu0 %v1420
        %v1434 = vpop.f32.mrf.mxu0
        %v1435 = vadd.f32 0.0, %v1434
        %v1436 = vpop.f32.mrf.mxu0
        %1437 = vdwg.mxu0
        %v1438 = vrcp.pop %v1412
        %v1439 = vmul.f32 %v1435, %v1438
        %v1440 = vpack.c.bf16 %v1439, %v1439
        %1441 = vrot.lane.b32.xlu0 %v1090, 88
        %v1442 = vpop.permute.xlu0 %1441
        %1443 = vrot.lane.b32.xlu0 %v1416, 120
        %v1444 = vpop.permute.xlu0 %1443
        %v1446 = vsel %vm1004, %v1442, 0
        %v1449 = vsel %vm1004, %v1444, 0
        %1451 = vmatpush.bf16.xpose.msra.mxu0 0
        %1452 = vmatpush.bf16.xpose.msra.mxu0 0
        %1453 = vmatpush.bf16.xpose.msra.mxu0 0
        %1454 = vmatpush.bf16.xpose.msra.mxu0 0
        %1455 = vmatpush.bf16.xpose.msra.mxu0 0
        %1456 = vmatpush.bf16.xpose.msra.mxu0 0
        %1457 = vmatpush.bf16.xpose.msra.mxu0 0
        %1458 = vmatpush.bf16.xpose.msra.mxu0 %v1449
        %1459 = vmatmul.bf16.gmra.mxu0 %v1446
        %v1460 = vpop.f32.mrf.mxu0
        %v1461 = vadd.f32 0.0, %v1460
        %v1462 = vpop.f32.mrf.mxu0
        %1463 = vdwg.mxu0
        %v1464 = vmul.f32 %v1461, 0.35355338
        %v1465 = vsel %vm1030, %v1464, -1e+09
        %v1466 = vsel %vm1004, %v1465, -inf
        %1467 = vmax.xlane.f32.xlu0 %v1466
        %v1468 = vpop.xlane.xlu0 %1467
        %v1469 = vsub.f32 %v1465, %v1468
        %v1470 = vmul.f32 %v1469, 1.442695
        %v1471 = vpow.pop %v1470
        %v1472 = vsel %vm1004, %v1471, 0.0
        %1473 = vadd.xlane.f32.xlu0 %v1472
        %v1474 = vpop.xlane.xlu0 %1473
        %v1475 = vpack.c.bf16 %v1471, %v1471
        %1476 = vrot.lane.b32.xlu0 %v1416, 88
        %v1477 = vpop.permute.xlu0 %1476
        %v1479 = vsel %vm1004, %v1475, 0
        %v1482 = vsel %vm1050, %v1477, 0
        %1484 = vmatpush.bf16.msra.mxu0 0
        %1485 = vmatpush.bf16.msra.mxu0 0
        %1486 = vmatpush.bf16.msra.mxu0 0
        %1487 = vmatpush.bf16.msra.mxu0 0
        %1488 = vmatpush.bf16.msra.mxu0 0
        %1489 = vmatpush.bf16.msra.mxu0 0
        %1490 = vmatpush.bf16.msra.mxu0 0
        %1491 = vmatpush.bf16.msra.mxu0 %v1482
        %1492 = vmatmul.bf16.gmra.mxu0 %v1479
        %v1493 = vpop.f32.mrf.mxu0
        %v1494 = vadd.f32 0.0, %v1493
        %v1495 = vpop.f32.mrf.mxu0
        %1496 = vdwg.mxu0
        %v1497 = vrcp.pop %v1474
        %v1498 = vmul.f32 %v1494, %v1497
        %v1499 = vpack.c.bf16 %v1498, %v1498
        %1500 = vrot.lane.b32.xlu0 %v1090, 80
        %v1501 = vpop.permute.xlu0 %1500
        %1502 = vrot.lane.b32.xlu0 %v1416, 112
        %v1503 = vpop.permute.xlu0 %1502
        %v1505 = vsel %vm1004, %v1501, 0
        %v1508 = vsel %vm1004, %v1503, 0
        %1510 = vmatpush.bf16.xpose.msra.mxu0 0
        %1511 = vmatpush.bf16.xpose.msra.mxu0 0
        %1512 = vmatpush.bf16.xpose.msra.mxu0 0
        %1513 = vmatpush.bf16.xpose.msra.mxu0 0
        %1514 = vmatpush.bf16.xpose.msra.mxu0 0
        %1515 = vmatpush.bf16.xpose.msra.mxu0 0
        %1516 = vmatpush.bf16.xpose.msra.mxu0 0
        %1517 = vmatpush.bf16.xpose.msra.mxu0 %v1508
        %1518 = vmatmul.bf16.gmra.mxu0 %v1505
        %v1519 = vpop.f32.mrf.mxu0
        %v1520 = vadd.f32 0.0, %v1519
        %v1521 = vpop.f32.mrf.mxu0
        %1522 = vdwg.mxu0
        %v1523 = vmul.f32 %v1520, 0.35355338
        %v1524 = vsel %vm1030, %v1523, -1e+09
        %v1525 = vsel %vm1004, %v1524, -inf
        %1526 = vmax.xlane.f32.xlu0 %v1525
        %v1527 = vpop.xlane.xlu0 %1526
        %v1528 = vsub.f32 %v1524, %v1527
        %v1529 = vmul.f32 %v1528, 1.442695
        %v1530 = vpow.pop %v1529
        %v1531 = vsel %vm1004, %v1530, 0.0
        %1532 = vadd.xlane.f32.xlu0 %v1531
        %v1533 = vpop.xlane.xlu0 %1532
        %v1534 = vpack.c.bf16 %v1530, %v1530
        %1535 = vrot.lane.b32.xlu0 %v1416, 80
        %v1536 = vpop.permute.xlu0 %1535
        %v1538 = vsel %vm1004, %v1534, 0
        %v1541 = vsel %vm1050, %v1536, 0
        %1543 = vmatpush.bf16.msra.mxu0 0
        %1544 = vmatpush.bf16.msra.mxu0 0
        %1545 = vmatpush.bf16.msra.mxu0 0
        %1546 = vmatpush.bf16.msra.mxu0 0
        %1547 = vmatpush.bf16.msra.mxu0 0
        %1548 = vmatpush.bf16.msra.mxu0 0
        %1549 = vmatpush.bf16.msra.mxu0 0
        %1550 = vmatpush.bf16.msra.mxu0 %v1541
        %1551 = vmatmul.bf16.gmra.mxu0 %v1538
        %v1552 = vpop.f32.mrf.mxu0
        %v1553 = vadd.f32 0.0, %v1552
        %v1554 = vpop.f32.mrf.mxu0
        %1555 = vdwg.mxu0
        %v1556 = vrcp.pop %v1533
        %v1557 = vmul.f32 %v1553, %v1556
        %v1558 = vpack.c.bf16 %v1557, %v1557
        %1559 = vrot.lane.b32.xlu0 %v1090, 72
        %v1560 = vpop.permute.xlu0 %1559
        %1561 = vrot.lane.b32.xlu0 %v1416, 104
        %v1562 = vpop.permute.xlu0 %1561
        %v1564 = vsel %vm1004, %v1560, 0
        %v1567 = vsel %vm1004, %v1562, 0
        %1569 = vmatpush.bf16.xpose.msra.mxu0 0
        %1570 = vmatpush.bf16.xpose.msra.mxu0 0
        %1571 = vmatpush.bf16.xpose.msra.mxu0 0
        %1572 = vmatpush.bf16.xpose.msra.mxu0 0
        %1573 = vmatpush.bf16.xpose.msra.mxu0 0
        %1574 = vmatpush.bf16.xpose.msra.mxu0 0
        %1575 = vmatpush.bf16.xpose.msra.mxu0 0
        %1576 = vmatpush.bf16.xpose.msra.mxu0 %v1567
        %1577 = vmatmul.bf16.gmra.mxu0 %v1564
        %v1578 = vpop.f32.mrf.mxu0
        %v1579 = vadd.f32 0.0, %v1578
        %v1580 = vpop.f32.mrf.mxu0
        %1581 = vdwg.mxu0
        %v1582 = vmul.f32 %v1579, 0.35355338
        %v1583 = vsel %vm1030, %v1582, -1e+09
        %v1584 = vsel %vm1004, %v1583, -inf
        %1585 = vmax.xlane.f32.xlu0 %v1584
        %v1586 = vpop.xlane.xlu0 %1585
        %v1587 = vsub.f32 %v1583, %v1586
        %v1588 = vmul.f32 %v1587, 1.442695
        %v1589 = vpow.pop %v1588
        %v1590 = vsel %vm1004, %v1589, 0.0
        %1591 = vadd.xlane.f32.xlu0 %v1590
        %v1592 = vpop.xlane.xlu0 %1591
        %v1593 = vpack.c.bf16 %v1589, %v1589
        %1594 = vrot.lane.b32.xlu0 %v1416, 72
        %v1595 = vpop.permute.xlu0 %1594
        %v1597 = vsel %vm1004, %v1593, 0
        %v1600 = vsel %vm1050, %v1595, 0
        %1602 = vmatpush.bf16.msra.mxu0 0
        %1603 = vmatpush.bf16.msra.mxu0 0
        %1604 = vmatpush.bf16.msra.mxu0 0
        %1605 = vmatpush.bf16.msra.mxu0 0
        %1606 = vmatpush.bf16.msra.mxu0 0
        %1607 = vmatpush.bf16.msra.mxu0 0
        %1608 = vmatpush.bf16.msra.mxu0 0
        %1609 = vmatpush.bf16.msra.mxu0 %v1600
        %1610 = vmatmul.bf16.gmra.mxu0 %v1597
        %v1611 = vpop.f32.mrf.mxu0
        %v1612 = vadd.f32 0.0, %v1611
        %v1613 = vpop.f32.mrf.mxu0
        %1614 = vdwg.mxu0
        %v1615 = vrcp.pop %v1592
        %v1616 = vmul.f32 %v1612, %v1615
        %v1617 = vpack.c.bf16 %v1616, %v1616
        %v1619 = vunpack.c.l.b16 %v1499
        %v1620 = vpack.c.b16 %v1619, %v1619
        %1621 = vrot.lane.b32.xlu0 %v1620, 8
        %v1622 = vpop.permute.xlu0 %1621
        %v1624 = vunpack.c.l.b16 %v1558
        %v1625 = vpack.c.b16 %v1624, %v1624
        %1626 = vrot.lane.b32.xlu0 %v1625, 16
        %v1627 = vpop.permute.xlu0 %1626
        %v1629 = vunpack.c.l.b16 %v1617
        %v1630 = vpack.c.b16 %v1629, %v1629
        %1631 = vrot.lane.b32.xlu0 %v1630, 24
        %v1632 = vpop.permute.xlu0 %1631
        %v1635 = vsel %vm1004, %v1440, %v1622
        %v1637 = vsel %vm1340, %v1635, %v1627
        %v1639 = vsel %vm1343, %v1637, %v1632
        %v1640 = vld [vmem:[#allocation22] sm:$0x1]
        %v1642 = vperm.slane %v1640, 0
        %v1648 = vunpack.c.l.b16 %v1377
        %v1649 = vunpack.c.l.b16 %v1378
        %v1650 = vunpack.c.l.b16 %v1379
        %v1651 = vunpack.c.l.b16 %v1380
        %v1652 = vpack.c.b16 %v1649, %v1648
        %v1653 = vpack.c.b16 %v1651, %v1650
        %v1656 = vsel %vm920, %v1639, 0
        %1658 = vmatpush.bf16.msra.mxu0 0
        %1659 = vmatpush.bf16.msra.mxu0 0
        %1660 = vmatpush.bf16.msra.mxu0 0
        %1661 = vmatpush.bf16.msra.mxu0 0
        %1662 = vmatpush.bf16.msra.mxu0 0
        %1663 = vmatpush.bf16.msra.mxu0 0
        %1664 = vmatpush.bf16.msra.mxu0 %v1653
        %1665 = vmatpush.bf16.msra.mxu0 %v1652
        %1666 = vmatmul.bf16.gmra.mxu0 %v1656
        %v1667 = vpop.f32.mrf.mxu0
        %v1668 = vadd.f32 %v1642, %v1667
        %v1669 = vpop.f32.mrf.mxu0
        %1670 = vdwg.mxu0
        %v1671 = vadd.f32 %v1374, %v1668
        %v1672 = vmul.f32 %v1671, 0.5
        %v1673 = vadd.f32 %v831, %v1672
        %1674 = vst.msk [vmem:[%s827] sm:$0xff] %vm920, %v1673
        %p1675 = scmp.lt.s32.totalorder %s45, 1
        %s1676 = scalar_select %p1675, %s45, 1
        %p1677 = scmp.lt.s32.totalorder %s46, 0
        %s1678 = scalar_select %p1677, %s46, 0
        %s1679 = sadd.s32 %s1678, %s1676
        %s1680 = smul.addr %s1679, 8
        %s1681 = scalar_lea.vmem %s16, %s1680
        %s1682 = sand.u32 %s449, 1
        %s1683 = scalar_lea.sflag [#allocation6], %s1682
        %s1684 = sand.u32 %s449, 1
        %s1685 = smul.addr %s1684, 16
        %s1686 = scalar_lea.vmem [#allocation24], %s1685
        // Predicated region
        $region137: #{decoder.10} parent=83 // pred_check
          %p1687 = pneg %p431
        $region138: #{decoder.10} parent=83 // pred_check_branch
          %1689 = sbr.rel (%p1687) target = $region140
        $region139: #{decoder.10} parent=83 // pred_region
          _
        $region140: #{decoder.10} parent=83 // pred_fallthru
          _
        // Predicated region
        $region141: #{decoder.10} parent=83 // pred_check
          %p1690 = pneg %p459
        $region142: #{decoder.10} parent=83 // pred_check_branch
          %1692 = sbr.rel (%p1690) target = $region144
        $region143: #{decoder.10} parent=83 // pred_region
          %1694 = vsyncadd %s1683, 0
          %s1695 = smul.addr %s45, 4
          %s1696 = sadd.s32 %s46, %s1695
          %s1697 = smul.addr %s1696, 4
          %s1698 = scalar_lea.hbm %s17, %s1697
          %s1699 = sshll.u32 %s1686, 4
          %s1700 = int_to_ptr.vmem [resolvable:$true] %s1699
          %s1701 = sshll.u32 %s1698, 4
          %s1702 = int_to_ptr.hbm [resolvable:$true] %s1701
          %1707 = dma.vmem_to_hbm [thread:$0]  %s1700, 256, %s1702, %s1683, 64, 64, 4
        $region144: #{decoder.10} parent=83 // pred_fallthru
          _
      $region84: #{decoder.10} parent=5 // pred_fallthru
        _
      %p1708 = scmp.le.s32.totalorder 2, %s36
      // Predicated region
      $region145: #{decoder.10} parent=5 // pred_check
        %p1709 = pneg %p1708
      $region146: #{decoder.10} parent=5 // pred_check_branch
        %1711 = sbr.rel (%p1709) target = $region148
      $region147: #{decoder.10} parent=5 // pred_region
        %s1712 = ssub.s32 %s36, 2
        // Predicated region
        $region149: #{decoder.10} parent=147 // pred_check
          %p1713 = pneg %p437
        $region150: #{decoder.10} parent=147 // pred_check_branch
          %1715 = sbr.rel (%p1713) target = $region152
        $region151: #{decoder.10} parent=147 // pred_region
          %p1716 = scmp.lt.s32.totalorder %s47, 1
          %s1717 = scalar_select %p1716, %s47, 1
          %p1718 = scmp.lt.s32.totalorder %s48, 0
          %s1719 = scalar_select %p1718, %s48, 0
          %s1720 = sadd.s32 %s1719, %s1717
          %s1721 = smul.addr %s1720, 8
          %s1722 = scalar_lea.vmem %s16, %s1721
        $region152: #{decoder.10} parent=147 // pred_fallthru
          _
        // Predicated region
        $region153: #{decoder.10} parent=147 // pred_check
          %p1723 = pneg %p465
        $region154: #{decoder.10} parent=147 // pred_check_branch
          %1725 = sbr.rel (%p1723) target = $region156
        $region155: #{decoder.10} parent=147 // pred_region
          %s1726 = sand.u32 %s450, 1
          %s1727 = scalar_lea.sflag [#allocation6], %s1726
          %s1728 = sand.u32 %s450, 1
          %s1729 = smul.addr %s1728, 16
          %s1730 = scalar_lea.vmem [#allocation24], %s1729
          %1732 = dma.done %s1727, 256
        $region156: #{decoder.10} parent=147 // pred_fallthru
          _
      $region148: #{decoder.10} parent=5 // pred_fallthru
        _
    $region6: #{decoder.10} parent=1 // loop_footer
      %s40 = sadd.s32 1, %s36
    $region7: #{decoder.10} parent=1 // loop_footer_branch
      %35 = sbr.rel target = $region3
    $region8: #{decoder.10} parent=1 // loop_exit
      _
    %1733 = vsyncpa [#allocation5], 1
    %s1734 = scalar_lea.sflag [#allocation5], 1
    %1735 = vsyncpa %s1734, 1
    %1736 = vsyncpa [#allocation8], 1
    %1737 = vsyncpa [#allocation11], 1
    %1738 = vsyncpa [#allocation14], 1
    %1739 = vsyncpa [#allocation17], 1
    %1740 = vsyncpa [#allocation20], 1
    %1741 = vsyncpa [#allocation23], 1
    %1742 = vsyncpa [#allocation6], 1
    %s1743 = scalar_lea.sflag [#allocation6], 1
    %1744 = vsyncpa %s1743, 1

</llo_original>
